<compile_context>
chip_gen: v7x
topology: tpu7x:2x2x1
jax: 0.10.0
libtpu: 0.0.40
codegen_flags: <defaults>
</compile_context>

<pallas_src>
import functools

import jax
import jax.numpy as jnp
from jax.experimental import pallas as pl
from jax.experimental.pallas import tpu as pltpu

F32 = jnp.float32
BF16 = jnp.bfloat16
LABEL_PAD = 128          # classifier output padded to a full lane width


# --------------------------- elementwise helpers ------------------------------

def _erf(z):
    # Abramowitz & Stegun 7.1.26 (~1.5e-7 abs error), exp/mul/add only.
    # TODO(synk): switch to jax.lax.erf (review item) once its Mosaic lowering is
    # confirmed on all target chips; the polynomial is kept because it is
    # guaranteed to lower and matches exact erf-GELU to f32 noise.
    a1, a2, a3, a4, a5 = 0.254829592, -0.284496736, 1.421413741, -1.453152027, 1.061405429
    p = 0.3275911
    az = jnp.abs(z)
    t = 1.0 / (1.0 + p * az)
    poly = ((((a5 * t + a4) * t + a3) * t + a2) * t + a1) * t
    y = 1.0 - poly * jnp.exp(-az * az)
    return jnp.where(z >= 0, y, -y)


def _gelu_exact(x):
    return 0.5 * x * (1.0 + _erf(x * 0.7071067811865476))


def _layernorm(y, g, b, eps):
    mu = jnp.mean(y, axis=-1, keepdims=True)
    var = jnp.mean(jnp.square(y - mu), axis=-1, keepdims=True)
    return (y - mu) * jax.lax.rsqrt(var + eps) * g + b


# --------------------------- fused BERT encoder layer -------------------------

def _bert_layer_kernel(x_ref, bias_ref, wqkv_ref, bqkv_ref, wo_ref, bo_ref,
                       g1_ref, b1_ref, w1_ref, bf1_ref, w2_ref, bf2_ref,
                       g2_ref, b2_ref, o_ref, *, num_heads, head_dim, eps):
    """One full encoder layer for one batch element (grid=(B,))."""
    x = x_ref[...]                                       # (T, D) f32
    T, D = x.shape
    scale = 1.0 / float(head_dim) ** 0.5

    # Fused QKV projection: one bf16 MXU call.
    qkv = jnp.dot(x.astype(BF16), wqkv_ref[...],
                  preferred_element_type=F32) + bqkv_ref[...]        # (T, 3D)

    # Head-batched layout via one 2-D transpose + tile-aligned major-dim split
    # (no 16-wide lane slices, no per-head GEMMs).
    qkv_h = qkv.T.reshape(3, num_heads, head_dim, T)                 # (3,H,hd,T)
    qh = jnp.transpose(qkv_h[0], (0, 2, 1)).astype(BF16)             # (H, T, hd)
    kh = qkv_h[1].astype(BF16)                                       # (H, hd, T)
    vh = qkv_h[2].astype(BF16)                                       # (H, hd, T)

    s = jnp.einsum('hqd,hdk->hqk', qh, kh,
                   preferred_element_type=F32) * scale + bias_ref[...]   # (H,T,T)
    s = s - jnp.max(s, axis=-1, keepdims=True)
    p = jnp.exp(s)
    p = p / jnp.sum(p, axis=-1, keepdims=True)          # exact softmax denom
    ctx = jnp.einsum('hqk,hdk->hqd', p.astype(BF16), vh,
                     preferred_element_type=F32)                     # (H, T, hd)
    attn = jnp.einsum('hqd,hde->hqe', ctx.astype(BF16), wo_ref[...],
                      preferred_element_type=F32).sum(axis=0)        # (T, D)

    y = _layernorm(attn + bo_ref[...] + x, g1_ref[...], b1_ref[...], eps)

    # FFN + exact GELU + residual + LayerNorm (all fused in the same program).
    h = jnp.dot(y.astype(BF16), w1_ref[...],
                preferred_element_type=F32) + bf1_ref[...]
    h = _gelu_exact(h)
    z = jnp.dot(h.astype(BF16), w2_ref[...],
                preferred_element_type=F32) + bf2_ref[...] + y
    o_ref[...] = _layernorm(z, g2_ref[...], b2_ref[...], eps)


def pallas_bert_layer(x, mask_bias, layer, *, num_heads, eps=1e-12):
    """x: (B, T, D) f32; mask_bias: (B, 1, T) f32; one pallas_call per layer."""
    B, T, D = x.shape
    head_dim = D // num_heads
    I = layer['w_ffn1'].shape[1]

    def const(shape):
        return pl.BlockSpec(shape, lambda b: (0,) * len(shape))

    # NOTE: at real BERT-base sizes tile over the FFN inner dim and set
    # pltpu.CompilerParams(vmem_limit_bytes=...) for v7x's 64 MiB VMEM.
    return pl.pallas_call(
        functools.partial(_bert_layer_kernel, num_heads=num_heads,
                          head_dim=head_dim, eps=eps),
        out_shape=jax.ShapeDtypeStruct((B, T, D), F32),
        grid=(B,),
        in_specs=[pl.BlockSpec((None, T, D), lambda b: (b, 0, 0)),
                  pl.BlockSpec((None, 1, T), lambda b: (b, 0, 0)),
                  const((D, 3 * D)), const((1, 3 * D)),
                  const((num_heads, head_dim, D)), const((1, D)),
                  const((1, D)), const((1, D)),
                  const((D, I)), const((1, I)),
                  const((I, D)), const((1, D)),
                  const((1, D)), const((1, D))],
        out_specs=pl.BlockSpec((None, T, D), lambda b: (b, 0, 0)),
        compiler_params=pltpu.CompilerParams(
            dimension_semantics=("parallel",)),
    )(x, mask_bias, layer['wqkv'], layer['bqkv'], layer['wo_h'], layer['bo'],
      layer['ln1_g'], layer['ln1_b'], layer['w_ffn1'], layer['b_ffn1'],
      layer['w_ffn2'], layer['b_ffn2'], layer['ln2_g'], layer['ln2_b'])


# --------------------------- fused BiLSTM + classifier ------------------------

def _bilstm_cls_kernel(x_ref, wih_ref, b_ref, whh_ref, wcls_ref, bcls_ref,
                       o_ref, xp_ref, hf_ref, hb_ref, *, H):
    """Both LSTM directions folded into one program (fwd hidden in lanes [0:H],
    bwd in [H:2H] via a block-diagonal recurrent weight); classifier matmul is
    the fused, lane-dense epilogue."""
    T, Bq, D = x_ref.shape
    G = 4 * H

    # Input projection for BOTH directions in one bf16 MXU call.
    x_flat = x_ref[...].reshape(T * Bq, D)
    xp = jnp.dot(x_flat.astype(BF16), wih_ref[...],
                 preferred_element_type=F32) + b_ref[...]            # (T*Bq, 2G)
    xp_ref[...] = xp.reshape(T, Bq, 2 * G)

    whh = whh_ref[...]                                   # (2H, 2G) bf16 blockdiag

    def step(t, carry):
        h2, c2 = carry                                   # (Bq, 2H) f32 each
        hh = jnp.dot(h2.astype(BF16), whh, preferred_element_type=F32)  # (Bq,2G)
        gf = xp_ref[t][:, 0:G] + hh[:, 0:G]              # forward gates @ t
        gb = xp_ref[T - 1 - t][:, G:2 * G] + hh[:, G:2 * G]   # backward @ T-1-t
        # PyTorch gate order i, f, g, o; every slice is a full 128-lane block.
        i_g = jax.nn.sigmoid(jnp.concatenate([gf[:, 0:H], gb[:, 0:H]], axis=-1))
        f_g = jax.nn.sigmoid(jnp.concatenate([gf[:, H:2 * H], gb[:, H:2 * H]], axis=-1))
        g_g = jnp.tanh(jnp.concatenate([gf[:, 2 * H:3 * H], gb[:, 2 * H:3 * H]], axis=-1))
        o_g = jax.nn.sigmoid(jnp.concatenate([gf[:, 3 * H:4 * H], gb[:, 3 * H:4 * H]], axis=-1))
        c2 = f_g * c2 + i_g * g_g
        h2 = o_g * jnp.tanh(c2)
        hf_ref[t] = h2[:, 0:H]
        hb_ref[T - 1 - t] = h2[:, H:2 * H]
        return h2, c2

    h0 = jnp.zeros((Bq, 2 * H), F32)
    jax.lax.fori_loop(0, T, step, (h0, h0), unroll=True)

    # Classifier fused as epilogue (lane-dense 128-wide output).
    lstm = jnp.concatenate([hf_ref[...], hb_ref[...]], axis=-1)      # (T, Bq, 2H)
    emis = jnp.dot(lstm.reshape(T * Bq, 2 * H).astype(BF16), wcls_ref[...],
                   preferred_element_type=F32) + bcls_ref[...]
    o_ref[...] = emis.reshape(T, Bq, LABEL_PAD)


def pallas_bilstm_classifier(x_tbD, wih_cat, b_cat, whh_bd, w_cls, b_cls, *, H):
    """x_tbD: (T, Bp, D) f32 time-major (batch padded to a sublane multiple).
    Returns (T, Bp, 128) f32 padded classifier emissions."""
    T, Bp, D = x_tbD.shape
    G = 4 * H
    # Single program: directions are folded so single-TC v5e/v6e do not pay a
    # serialized 2-iteration grid.  (On v7x a grid=(2,) direction split would
    # map one direction per TensorCore instead.)
    return pl.pallas_call(
        functools.partial(_bilstm_cls_kernel, H=H),
        out_shape=jax.ShapeDtypeStruct((T, Bp, LABEL_PAD), F32),
        scratch_shapes=[pltpu.VMEM((T, Bp, 2 * G), F32),
                        pltpu.VMEM((T, Bp, H), F32),
                        pltpu.VMEM((T, Bp, H), F32)],
    )(x_tbD, wih_cat, b_cat, whh_bd, w_cls, b_cls)


# --------------------------- model glue (plain JAX) ---------------------------

class ModelOutput:
    def __init__(self, logits, labels, loss=None):
        self.logits = logits
        self.labels = labels
        self.loss = loss


def _layernorm_jax(x, g, b, eps=1e-12):
    mu = jnp.mean(x, axis=-1, keepdims=True)
    var = jnp.mean(jnp.square(x - mu), axis=-1, keepdims=True)
    return (x - mu) * jax.lax.rsqrt(var + eps) * g + b


def bert_forward(params, input_ids, attention_mask, num_heads):
    B, T = input_ids.shape
    emb = (params['word_emb'][input_ids]
           + params['pos_emb'][jnp.arange(T)][None, :, :]
           + params['type_emb'][0][None, None, :])
    # Embedding LayerNorm left to XLA so the encoder is exactly one
    # pallas_call per layer.
    x = _layernorm_jax(emb, params['emb_ln_g'], params['emb_ln_b'])
    mask_bias = ((1.0 - attention_mask.astype(F32)) * -10000.0).reshape(B, 1, T)
    for layer in params['layers']:
        x = pallas_bert_layer(x, mask_bias, layer, num_heads=num_heads)
    return x


def bilstm_ner_head(params, seq_out, H, num_labels):
    B, T, D = seq_out.shape
    Bp = ((B + 7) // 8) * 8
    # Only a tiny time-major transpose + sublane pad remains in XLA; direction
    # reversal, direction concat and the classifier all live inside the kernel.
    x_t = jnp.pad(jnp.transpose(seq_out, (1, 0, 2)),
                  ((0, 0), (0, Bp - B), (0, 0)))
    emis = pallas_bilstm_classifier(x_t, params['w_ih'], params['b_lstm'],
                                    params['w_hh_bd'], params['w_cls'],
                                    params['b_cls'], H=H)
    return jnp.transpose(emis[:, :B, :num_labels], (1, 0, 2))        # (B, T, L)


def crf_decode(emissions, mask, start, end, trans):
    """Viterbi decode (torchcrf semantics). Returns (B, T) int32, -1 at padding."""
    B, T, L = emissions.shape
    score0 = start[None, :] + emissions[:, 0]
    ident = jnp.arange(L, dtype=jnp.int32)[None, :]

    def fwd_step(score, inp):
        emit_t, mask_t = inp
        full = score[:, :, None] + trans[None, :, :] + emit_t[:, None, :]
        nxt = jnp.max(full, axis=1)
        idx = jnp.argmax(full, axis=1).astype(jnp.int32)
        score = jnp.where(mask_t[:, None], nxt, score)
        idx = jnp.where(mask_t[:, None], idx, ident)  # identity backptr on pad
        return score, idx

    score, history = jax.lax.scan(
        fwd_step, score0,
        (emissions[:, 1:].transpose(1, 0, 2), mask[:, 1:].T))
    score = score + end[None, :]
    last_tag = jnp.argmax(score, axis=-1).astype(jnp.int32)

    def back_step(tag, bp):
        prev = jnp.take_along_axis(bp, tag[:, None], axis=1)[:, 0]
        return prev, prev

    _, tags_prefix = jax.lax.scan(back_step, last_tag, history, reverse=True)
    tags = jnp.concatenate([tags_prefix, last_tag[None, :]], axis=0).T  # (B, T)
    return jnp.where(mask, tags, -1)


def crf_neg_log_likelihood(emissions, tags, mask, start, end, trans):
    """-CRF log-likelihood, reduction='mean' (mean over batch) as in torchcrf."""
    B, T, L = emissions.shape
    mask_f = mask.astype(F32)
    batch_idx = jnp.arange(B)

    num = start[tags[:, 0]] + emissions[batch_idx, 0, tags[:, 0]]

    def num_step(acc, inp):
        emit_t, tag_prev, tag_t, m_t = inp
        s = trans[tag_prev, tag_t] + emit_t[batch_idx, tag_t]
        return acc + s * m_t, None

    num, _ = jax.lax.scan(
        num_step, num,
        (emissions[:, 1:].transpose(1, 0, 2), tags[:, :-1].T, tags[:, 1:].T,
         mask_f[:, 1:].T))
    seq_ends = jnp.sum(mask, axis=1).astype(jnp.int32) - 1
    num = num + end[tags[batch_idx, seq_ends]]

    alpha = start[None, :] + emissions[:, 0]

    def den_step(alpha, inp):
        emit_t, mask_t = inp
        nxt = jax.scipy.special.logsumexp(
            alpha[:, :, None] + trans[None, :, :] + emit_t[:, None, :], axis=1)
        return jnp.where(mask_t[:, None], nxt, alpha), None

    alpha, _ = jax.lax.scan(
        den_step, alpha, (emissions[:, 1:].transpose(1, 0, 2), mask[:, 1:].T))
    den = jax.scipy.special.logsumexp(alpha + end[None, :], axis=1)
    return -jnp.mean(num - den)


def bert_bilstm_ner_forward(params, input_ids, attention_mask, labels=None,
                            *, num_heads, lstm_hidden, num_labels):
    seq_out = bert_forward(params['bert'], input_ids, attention_mask, num_heads)
    emissions = bilstm_ner_head(params['head'], seq_out, lstm_hidden, num_labels)
    mask = attention_mask.astype(bool)
    logits = crf_decode(emissions, mask, params['crf']['start'],
                        params['crf']['end'], params['crf']['trans'])
    loss = None
    if labels is not None:
        labels = labels.astype(jnp.int32)
        loss = crf_neg_log_likelihood(emissions, labels, mask,
                                      params['crf']['start'],
                                      params['crf']['end'],
                                      params['crf']['trans'])
    return ModelOutput(logits, labels, loss)
    # TODO(synk): nn.LSTM(dropout=0.1) is inert here (single-layer LSTM + eval
    # forward), so dropout is not modeled.


# --------------------------- deterministic params -----------------------------

def init_params(key, *, vocab_size, hidden, num_layers, num_heads,
                intermediate, max_pos, lstm_hidden, num_labels):
    keys = iter(jax.random.split(key, 256))

    def nrm(shape, scale=0.02, dtype=F32):
        return (scale * jax.random.normal(next(keys), shape, dtype=F32)).astype(dtype)

    D, H, I = hidden, lstm_hidden, intermediate
    hd = D // num_heads
    bert = dict(
        word_emb=nrm((vocab_size, D)),
        pos_emb=nrm((max_pos, D)),
        type_emb=nrm((2, D)),
        emb_ln_g=jnp.ones((D,), F32),
        emb_ln_b=jnp.zeros((D,), F32),
        layers=[])
    for _ in range(num_layers):
        bert['layers'].append(dict(
            wqkv=nrm((D, 3 * D), dtype=BF16),            # fused Wq|Wk|Wv
            bqkv=jnp.zeros((1, 3 * D), F32),
            # Out-projection stored head-major (nh, hd, D) so the context ->
            # out-proj contraction is one batched einsum.
            wo_h=nrm((num_heads, hd, D), dtype=BF16),
            bo=jnp.zeros((1, D), F32),
            ln1_g=jnp.ones((1, D), F32), ln1_b=jnp.zeros((1, D), F32),
            w_ffn1=nrm((D, I), dtype=BF16), b_ffn1=jnp.zeros((1, I), F32),
            w_ffn2=nrm((I, D), dtype=BF16), b_ffn2=jnp.zeros((1, D), F32),
            ln2_g=jnp.ones((1, D), F32), ln2_b=jnp.zeros((1, D), F32)))

    # BiLSTM weights laid out for the folded-direction kernel:
    #   w_ih    : (D, 8H)   = [W_ih_fwd^T | W_ih_bwd^T]
    #   b_lstm  : (1, 8H)   = [b_ih+b_hh fwd | b_ih+b_hh bwd]
    #   w_hh_bd : (2H, 8H)  = blockdiag(W_hh_fwd^T, W_hh_bwd^T)
    wih_f = nrm((D, 4 * H), 0.05)
    wih_b = nrm((D, 4 * H), 0.05)
    whh_f = nrm((H, 4 * H), 0.05)
    whh_b = nrm((H, 4 * H), 0.05)
    b_f = nrm((1, 4 * H), 0.05) + nrm((1, 4 * H), 0.05)
    b_b = nrm((1, 4 * H), 0.05) + nrm((1, 4 * H), 0.05)
    zeros_h = jnp.zeros((H, 4 * H), F32)
    w_hh_bd = jnp.concatenate(
        [jnp.concatenate([whh_f, zeros_h], axis=1),
         jnp.concatenate([zeros_h, whh_b], axis=1)], axis=0).astype(BF16)

    w_cls = nrm((2 * H, num_labels), 0.05)
    w_cls = jnp.pad(w_cls, ((0, 0), (0, LABEL_PAD - num_labels))).astype(BF16)
    head = dict(
        w_ih=jnp.concatenate([wih_f, wih_b], axis=1).astype(BF16),
        b_lstm=jnp.concatenate([b_f, b_b], axis=1),
        w_hh_bd=w_hh_bd,
        w_cls=w_cls,                                     # padded to 128 lanes
        b_cls=jnp.zeros((1, LABEL_PAD), F32))

    crf = dict(start=nrm((num_labels,), 0.1),
               end=nrm((num_labels,), 0.1),
               trans=nrm((num_labels, num_labels), 0.1))

    return dict(bert=bert, head=head, crf=crf)


# --------------------------- main ---------------------------------------------

if __name__ == "__main__":
    B, T = 2, 8                          # batch, max_seq_len
    vocab_size, hidden = 50, 64
    num_layers, num_heads, intermediate = 2, 4, 128
    lstm_hidden, num_labels = 128, 9     # module hard-codes lstm_hiden = 128

    key = jax.random.PRNGKey(0)
    pkey, ikey, lkey = jax.random.split(key, 3)
    params = init_params(pkey, vocab_size=vocab_size, hidden=hidden,
                         num_layers=num_layers, num_heads=num_heads,
                         intermediate=intermediate, max_pos=T,
                         lstm_hidden=lstm_hidden, num_labels=num_labels)

    input_ids = jax.random.randint(ikey, (B, T), 0, vocab_size, dtype=jnp.int32)
    attention_mask = jnp.array([[1, 1, 1, 1, 1, 1, 1, 1],
                                [1, 1, 1, 1, 1, 0, 0, 0]], dtype=jnp.int32)
    labels = jax.random.randint(lkey, (B, T), 0, num_labels, dtype=jnp.int32)

    @jax.jit
    def run(p, ids, am, lb):
        out = bert_bilstm_ner_forward(p, ids, am, lb, num_heads=num_heads,
                                      lstm_hidden=lstm_hidden,
                                      num_labels=num_labels)
        return out.logits, out.loss

    logits, loss = run(params, input_ids, attention_mask, labels)
    jax.block_until_ready(logits)
    jax.block_until_ready(loss)
    model_output = ModelOutput(logits, labels, loss)
    print("KERNEL_OK")
</pallas_src>

<mosaic_0001>
module attributes {stable_mosaic.version = 11 : i64} {
  func.func @_bert_layer_kernel(%arg0: i32, %arg1: memref<1x8x64xf32, #tpu.memory_space<vmem>>, %arg2: memref<1x1x8xf32, #tpu.memory_space<vmem>>, %arg3: memref<64x192xbf16, #tpu.memory_space<vmem>>, %arg4: memref<1x192xf32, #tpu.memory_space<vmem>>, %arg5: memref<4x16x64xbf16, #tpu.memory_space<vmem>>, %arg6: memref<1x64xf32, #tpu.memory_space<vmem>>, %arg7: memref<1x64xf32, #tpu.memory_space<vmem>>, %arg8: memref<1x64xf32, #tpu.memory_space<vmem>>, %arg9: memref<64x128xbf16, #tpu.memory_space<vmem>>, %arg10: memref<1x128xf32, #tpu.memory_space<vmem>>, %arg11: memref<128x64xbf16, #tpu.memory_space<vmem>>, %arg12: memref<1x64xf32, #tpu.memory_space<vmem>>, %arg13: memref<1x64xf32, #tpu.memory_space<vmem>>, %arg14: memref<1x64xf32, #tpu.memory_space<vmem>>, %arg15: memref<1x8x64xf32, #tpu.memory_space<vmem>>) attributes {dimension_semantics = [#tpu.dimension_semantics<parallel>], iteration_bounds = array<i64: 2>, scalar_prefetch = 0 : i64, scratch_operands = 0 : i64, tpu.core_type = #tpu.core_type<tc>, window_params = [{transform_indices = @transform_0, window_bounds = array<i64: 1, 8, 64>}, {transform_indices = @transform_1, window_bounds = array<i64: 1, 1, 8>}, {pipeline_mode = #tpu.pipeline_mode<synchronous>, transform_indices = @transform_2, window_bounds = array<i64: 64, 192>}, {pipeline_mode = #tpu.pipeline_mode<synchronous>, transform_indices = @transform_3, window_bounds = array<i64: 1, 192>}, {pipeline_mode = #tpu.pipeline_mode<synchronous>, transform_indices = @transform_4, window_bounds = array<i64: 4, 16, 64>}, {pipeline_mode = #tpu.pipeline_mode<synchronous>, transform_indices = @transform_5, window_bounds = array<i64: 1, 64>}, {pipeline_mode = #tpu.pipeline_mode<synchronous>, transform_indices = @transform_6, window_bounds = array<i64: 1, 64>}, {pipeline_mode = #tpu.pipeline_mode<synchronous>, transform_indices = @transform_7, window_bounds = array<i64: 1, 64>}, {pipeline_mode = #tpu.pipeline_mode<synchronous>, transform_indices = @transform_8, window_bounds = array<i64: 64, 128>}, {pipeline_mode = #tpu.pipeline_mode<synchronous>, transform_indices = @transform_9, window_bounds = array<i64: 1, 128>}, {pipeline_mode = #tpu.pipeline_mode<synchronous>, transform_indices = @transform_10, window_bounds = array<i64: 128, 64>}, {pipeline_mode = #tpu.pipeline_mode<synchronous>, transform_indices = @transform_11, window_bounds = array<i64: 1, 64>}, {pipeline_mode = #tpu.pipeline_mode<synchronous>, transform_indices = @transform_12, window_bounds = array<i64: 1, 64>}, {pipeline_mode = #tpu.pipeline_mode<synchronous>, transform_indices = @transform_13, window_bounds = array<i64: 1, 64>}, {transform_indices = @transform_14, window_bounds = array<i64: 1, 8, 64>}]} {
    %c0 = arith.constant 0 : index
    %c0_0 = arith.constant 0 : index
    %c0_1 = arith.constant 0 : index
    %0 = vector.load %arg1[%c0, %c0_0, %c0_1] : memref<1x8x64xf32, #tpu.memory_space<vmem>>, vector<1x8x64xf32>
    %1 = vector.shape_cast %0 : vector<1x8x64xf32> to vector<8x64xf32>
    %2 = arith.truncf %1 : vector<8x64xf32> to vector<8x64xbf16>
    %c0_2 = arith.constant 0 : index
    %c0_3 = arith.constant 0 : index
    %3 = vector.load %arg3[%c0_2, %c0_3] : memref<64x192xbf16, #tpu.memory_space<vmem>>, vector<64x192xbf16>
    %cst = arith.constant dense<0.000000e+00> : vector<8x192xf32>
    %4 = tpu.matmul %2, %3, %cst {dimension_numbers = #tpu.dot_dimension_numbers<[1], [0], [0], [1], [0, 0, 1, 1], [], []>} : vector<8x64xbf16>, vector<64x192xbf16>, vector<8x192xf32> -> vector<8x192xf32>
    %c0_4 = arith.constant 0 : index
    %c0_5 = arith.constant 0 : index
    %5 = vector.load %arg4[%c0_4, %c0_5] : memref<1x192xf32, #tpu.memory_space<vmem>>, vector<1x192xf32>
    %6 = vector.broadcast %5 : vector<1x192xf32> to vector<8x192xf32>
    %7 = arith.addf %4, %6 : vector<8x192xf32>
    %8 = tpu.transpose %7, [1, 0] : vector<8x192xf32> -> vector<192x8xf32>
    %9 = vector.shape_cast %8 : vector<192x8xf32> to vector<3x4x16x8xf32>
    %10 = vector.extract_strided_slice %9 {offsets = [0, 0, 0, 0], sizes = [1, 4, 16, 8], strides = [1, 1, 1, 1]} : vector<3x4x16x8xf32> to vector<1x4x16x8xf32>
    %11 = vector.shape_cast %10 : vector<1x4x16x8xf32> to vector<4x16x8xf32>
    %12 = tpu.transpose %11, [0, 2, 1] : vector<4x16x8xf32> -> vector<4x8x16xf32>
    %13 = arith.truncf %12 : vector<4x8x16xf32> to vector<4x8x16xbf16>
    %14 = vector.extract_strided_slice %9 {offsets = [1, 0, 0, 0], sizes = [1, 4, 16, 8], strides = [1, 1, 1, 1]} : vector<3x4x16x8xf32> to vector<1x4x16x8xf32>
    %15 = vector.shape_cast %14 : vector<1x4x16x8xf32> to vector<4x16x8xf32>
    %16 = arith.truncf %15 : vector<4x16x8xf32> to vector<4x16x8xbf16>
    %17 = vector.extract_strided_slice %9 {offsets = [2, 0, 0, 0], sizes = [1, 4, 16, 8], strides = [1, 1, 1, 1]} : vector<3x4x16x8xf32> to vector<1x4x16x8xf32>
    %18 = vector.shape_cast %17 : vector<1x4x16x8xf32> to vector<4x16x8xf32>
    %19 = arith.truncf %18 : vector<4x16x8xf32> to vector<4x16x8xbf16>
    "tpu.trace_start"() <{level = 10 : i32, message = "hqd,hdk->hqk"}> : () -> ()
    %cst_6 = arith.constant dense<0.000000e+00> : vector<4x8x8xf32>
    %20 = tpu.matmul %13, %16, %cst_6 {dimension_numbers = #tpu.dot_dimension_numbers<[2], [1], [1], [2], [0, 0, 0, 1, 1, 2], [0], [0]>} : vector<4x8x16xbf16>, vector<4x16x8xbf16>, vector<4x8x8xf32> -> vector<4x8x8xf32>
    "tpu.trace_stop"() : () -> ()
    %cst_7 = arith.constant 2.500000e-01 : f32
    %21 = vector.broadcast %cst_7 : f32 to vector<4x8x8xf32>
    %22 = arith.mulf %20, %21 : vector<4x8x8xf32>
    %c0_8 = arith.constant 0 : index
    %c0_9 = arith.constant 0 : index
    %c0_10 = arith.constant 0 : index
    %23 = vector.load %arg2[%c0_8, %c0_9, %c0_10] : memref<1x1x8xf32, #tpu.memory_space<vmem>>, vector<1x1x8xf32>
    %24 = vector.shape_cast %23 : vector<1x1x8xf32> to vector<1x8xf32>
    %25 = vector.shape_cast %24 : vector<1x8xf32> to vector<1x1x8xf32>
    %26 = vector.broadcast %25 : vector<1x1x8xf32> to vector<4x8x8xf32>
    %27 = arith.addf %22, %26 : vector<4x8x8xf32>
    %cst_11 = arith.constant dense<0xFF800000> : vector<4x8xf32>
    %28 = vector.multi_reduction <maximumf>, %27, %cst_11 [2] : vector<4x8x8xf32> to vector<4x8xf32>
    %29 = vector.shape_cast %28 : vector<4x8xf32> to vector<4x8x1xf32>
    %30 = vector.broadcast %29 : vector<4x8x1xf32> to vector<4x8x8xf32>
    %31 = arith.subf %27, %30 : vector<4x8x8xf32>
    %32 = math.exp %31 : vector<4x8x8xf32>
    %cst_12 = arith.constant dense<0.000000e+00> : vector<4x8xf32>
    %33 = vector.multi_reduction <add>, %32, %cst_12 [2] : vector<4x8x8xf32> to vector<4x8xf32>
    %34 = vector.shape_cast %33 : vector<4x8xf32> to vector<4x8x1xf32>
    %35 = vector.broadcast %34 : vector<4x8x1xf32> to vector<4x8x8xf32>
    %36 = arith.divf %32, %35 : vector<4x8x8xf32>
    %37 = arith.truncf %36 : vector<4x8x8xf32> to vector<4x8x8xbf16>
    "tpu.trace_start"() <{level = 10 : i32, message = "hqk,hdk->hqd"}> : () -> ()
    %cst_13 = arith.constant dense<0.000000e+00> : vector<4x8x16xf32>
    %38 = tpu.matmul %37, %19, %cst_13 {dimension_numbers = #tpu.dot_dimension_numbers<[2], [2], [1], [1], [0, 0, 0, 1, 1, 1], [0], [0]>} : vector<4x8x8xbf16>, vector<4x16x8xbf16>, vector<4x8x16xf32> -> vector<4x8x16xf32>
    "tpu.trace_stop"() : () -> ()
    %39 = arith.truncf %38 : vector<4x8x16xf32> to vector<4x8x16xbf16>
    %c0_14 = arith.constant 0 : index
    %c0_15 = arith.constant 0 : index
    %c0_16 = arith.constant 0 : index
    %40 = vector.load %arg5[%c0_14, %c0_15, %c0_16] : memref<4x16x64xbf16, #tpu.memory_space<vmem>>, vector<4x16x64xbf16>
    "tpu.trace_start"() <{level = 10 : i32, message = "hqd,hde->hqe"}> : () -> ()
    %cst_17 = arith.constant dense<0.000000e+00> : vector<4x8x64xf32>
    %41 = tpu.matmul %39, %40, %cst_17 {dimension_numbers = #tpu.dot_dimension_numbers<[2], [1], [1], [2], [0, 0, 0, 1, 1, 2], [0], [0]>} : vector<4x8x16xbf16>, vector<4x16x64xbf16>, vector<4x8x64xf32> -> vector<4x8x64xf32>
    "tpu.trace_stop"() : () -> ()
    %cst_18 = arith.constant dense<0.000000e+00> : vector<8x64xf32>
    %42 = vector.multi_reduction <add>, %41, %cst_18 [0] : vector<4x8x64xf32> to vector<8x64xf32>
    %c0_19 = arith.constant 0 : index
    %c0_20 = arith.constant 0 : index
    %43 = vector.load %arg6[%c0_19, %c0_20] : memref<1x64xf32, #tpu.memory_space<vmem>>, vector<1x64xf32>
    %44 = vector.broadcast %43 : vector<1x64xf32> to vector<8x64xf32>
    %45 = arith.addf %42, %44 : vector<8x64xf32>
    %46 = arith.addf %45, %1 : vector<8x64xf32>
    %c0_21 = arith.constant 0 : index
    %c0_22 = arith.constant 0 : index
    %47 = vector.load %arg7[%c0_21, %c0_22] : memref<1x64xf32, #tpu.memory_space<vmem>>, vector<1x64xf32>
    %c0_23 = arith.constant 0 : index
    %c0_24 = arith.constant 0 : index
    %48 = vector.load %arg8[%c0_23, %c0_24] : memref<1x64xf32, #tpu.memory_space<vmem>>, vector<1x64xf32>
    %cst_25 = arith.constant dense<0.000000e+00> : vector<8xf32>
    %49 = vector.multi_reduction <add>, %46, %cst_25 [1] : vector<8x64xf32> to vector<8xf32>
    %50 = vector.shape_cast %49 : vector<8xf32> to vector<8x1xf32>
    %cst_26 = arith.constant 6.400000e+01 : f32
    %51 = vector.broadcast %cst_26 : f32 to vector<8x1xf32>
    %52 = arith.divf %50, %51 : vector<8x1xf32>
    %53 = vector.broadcast %52 : vector<8x1xf32> to vector<8x64xf32>
    %54 = arith.subf %46, %53 : vector<8x64xf32>
    %55 = arith.mulf %54, %54 : vector<8x64xf32>
    %cst_27 = arith.constant dense<0.000000e+00> : vector<8xf32>
    %56 = vector.multi_reduction <add>, %55, %cst_27 [1] : vector<8x64xf32> to vector<8xf32>
    %57 = vector.shape_cast %56 : vector<8xf32> to vector<8x1xf32>
    %cst_28 = arith.constant 6.400000e+01 : f32
    %58 = vector.broadcast %cst_28 : f32 to vector<8x1xf32>
    %59 = arith.divf %57, %58 : vector<8x1xf32>
    %60 = vector.broadcast %52 : vector<8x1xf32> to vector<8x64xf32>
    %61 = arith.subf %46, %60 : vector<8x64xf32>
    %cst_29 = arith.constant 9.99999996E-13 : f32
    %62 = vector.broadcast %cst_29 : f32 to vector<8x1xf32>
    %63 = arith.addf %59, %62 : vector<8x1xf32>
    %64 = math.rsqrt %63 : vector<8x1xf32>
    %65 = vector.broadcast %64 : vector<8x1xf32> to vector<8x64xf32>
    %66 = arith.mulf %61, %65 : vector<8x64xf32>
    %67 = vector.broadcast %47 : vector<1x64xf32> to vector<8x64xf32>
    %68 = arith.mulf %66, %67 : vector<8x64xf32>
    %69 = vector.broadcast %48 : vector<1x64xf32> to vector<8x64xf32>
    %70 = arith.addf %68, %69 : vector<8x64xf32>
    %71 = arith.truncf %70 : vector<8x64xf32> to vector<8x64xbf16>
    %c0_30 = arith.constant 0 : index
    %c0_31 = arith.constant 0 : index
    %72 = vector.load %arg9[%c0_30, %c0_31] : memref<64x128xbf16, #tpu.memory_space<vmem>>, vector<64x128xbf16>
    %cst_32 = arith.constant dense<0.000000e+00> : vector<8x128xf32>
    %73 = tpu.matmul %71, %72, %cst_32 {dimension_numbers = #tpu.dot_dimension_numbers<[1], [0], [0], [1], [0, 0, 1, 1], [], []>} : vector<8x64xbf16>, vector<64x128xbf16>, vector<8x128xf32> -> vector<8x128xf32>
    %c0_33 = arith.constant 0 : index
    %c0_34 = arith.constant 0 : index
    %74 = vector.load %arg10[%c0_33, %c0_34] : memref<1x128xf32, #tpu.memory_space<vmem>>, vector<1x128xf32>
    %75 = vector.broadcast %74 : vector<1x128xf32> to vector<8x128xf32>
    %76 = arith.addf %73, %75 : vector<8x128xf32>
    %cst_35 = arith.constant 5.000000e-01 : f32
    %77 = vector.broadcast %cst_35 : f32 to vector<8x128xf32>
    %78 = arith.mulf %77, %76 : vector<8x128xf32>
    %cst_36 = arith.constant 0.707106769 : f32
    %79 = vector.broadcast %cst_36 : f32 to vector<8x128xf32>
    %80 = arith.mulf %76, %79 : vector<8x128xf32>
    %81 = math.absf %80 : vector<8x128xf32>
    %cst_37 = arith.constant 0.327591091 : f32
    %82 = vector.broadcast %cst_37 : f32 to vector<8x128xf32>
    %83 = arith.mulf %82, %81 : vector<8x128xf32>
    %cst_38 = arith.constant 1.000000e+00 : f32
    %84 = vector.broadcast %cst_38 : f32 to vector<8x128xf32>
    %85 = arith.addf %84, %83 : vector<8x128xf32>
    %cst_39 = arith.constant 1.000000e+00 : f32
    %86 = vector.broadcast %cst_39 : f32 to vector<8x128xf32>
    %87 = arith.divf %86, %85 : vector<8x128xf32>
    %cst_40 = arith.constant 1.06140542 : f32
    %88 = vector.broadcast %cst_40 : f32 to vector<8x128xf32>
    %89 = arith.mulf %88, %87 : vector<8x128xf32>
    %cst_41 = arith.constant -1.45315206 : f32
    %90 = vector.broadcast %cst_41 : f32 to vector<8x128xf32>
    %91 = arith.addf %89, %90 : vector<8x128xf32>
    %92 = arith.mulf %91, %87 : vector<8x128xf32>
    %cst_42 = arith.constant 1.42141378 : f32
    %93 = vector.broadcast %cst_42 : f32 to vector<8x128xf32>
    %94 = arith.addf %92, %93 : vector<8x128xf32>
    %95 = arith.mulf %94, %87 : vector<8x128xf32>
    %cst_43 = arith.constant -0.284496725 : f32
    %96 = vector.broadcast %cst_43 : f32 to vector<8x128xf32>
    %97 = arith.addf %95, %96 : vector<8x128xf32>
    %98 = arith.mulf %97, %87 : vector<8x128xf32>
    %cst_44 = arith.constant 0.254829586 : f32
    %99 = vector.broadcast %cst_44 : f32 to vector<8x128xf32>
    %100 = arith.addf %98, %99 : vector<8x128xf32>
    %101 = arith.mulf %100, %87 : vector<8x128xf32>
    %cst_45 = arith.constant 0.000000e+00 : f32
    %102 = vector.broadcast %cst_45 : f32 to vector<8x128xf32>
    %103 = arith.subf %102, %81 : vector<8x128xf32>
    %104 = arith.mulf %103, %81 : vector<8x128xf32>
    %105 = math.exp %104 : vector<8x128xf32>
    %106 = arith.mulf %101, %105 : vector<8x128xf32>
    %cst_46 = arith.constant 1.000000e+00 : f32
    %107 = vector.broadcast %cst_46 : f32 to vector<8x128xf32>
    %108 = arith.subf %107, %106 : vector<8x128xf32>
    %cst_47 = arith.constant 0.000000e+00 : f32
    %109 = vector.broadcast %cst_47 : f32 to vector<8x128xf32>
    %110 = arith.cmpf oge, %80, %109 : vector<8x128xf32>
    %cst_48 = arith.constant 0.000000e+00 : f32
    %111 = vector.broadcast %cst_48 : f32 to vector<8x128xf32>
    %112 = arith.subf %111, %108 : vector<8x128xf32>
    %113 = arith.select %110, %108, %112 : vector<8x128xi1>, vector<8x128xf32>
    %cst_49 = arith.constant 1.000000e+00 : f32
    %114 = vector.broadcast %cst_49 : f32 to vector<8x128xf32>
    %115 = arith.addf %114, %113 : vector<8x128xf32>
    %116 = arith.mulf %78, %115 : vector<8x128xf32>
    %117 = arith.truncf %116 : vector<8x128xf32> to vector<8x128xbf16>
    %c0_50 = arith.constant 0 : index
    %c0_51 = arith.constant 0 : index
    %118 = vector.load %arg11[%c0_50, %c0_51] : memref<128x64xbf16, #tpu.memory_space<vmem>>, vector<128x64xbf16>
    %cst_52 = arith.constant dense<0.000000e+00> : vector<8x64xf32>
    %119 = tpu.matmul %117, %118, %cst_52 {dimension_numbers = #tpu.dot_dimension_numbers<[1], [0], [0], [1], [0, 0, 1, 1], [], []>} : vector<8x128xbf16>, vector<128x64xbf16>, vector<8x64xf32> -> vector<8x64xf32>
    %c0_53 = arith.constant 0 : index
    %c0_54 = arith.constant 0 : index
    %120 = vector.load %arg12[%c0_53, %c0_54] : memref<1x64xf32, #tpu.memory_space<vmem>>, vector<1x64xf32>
    %121 = vector.broadcast %120 : vector<1x64xf32> to vector<8x64xf32>
    %122 = arith.addf %119, %121 : vector<8x64xf32>
    %123 = arith.addf %122, %70 : vector<8x64xf32>
    %c0_55 = arith.constant 0 : index
    %c0_56 = arith.constant 0 : index
    %124 = vector.load %arg13[%c0_55, %c0_56] : memref<1x64xf32, #tpu.memory_space<vmem>>, vector<1x64xf32>
    %c0_57 = arith.constant 0 : index
    %c0_58 = arith.constant 0 : index
    %125 = vector.load %arg14[%c0_57, %c0_58] : memref<1x64xf32, #tpu.memory_space<vmem>>, vector<1x64xf32>
    %cst_59 = arith.constant dense<0.000000e+00> : vector<8xf32>
    %126 = vector.multi_reduction <add>, %123, %cst_59 [1] : vector<8x64xf32> to vector<8xf32>
    %127 = vector.shape_cast %126 : vector<8xf32> to vector<8x1xf32>
    %cst_60 = arith.constant 6.400000e+01 : f32
    %128 = vector.broadcast %cst_60 : f32 to vector<8x1xf32>
    %129 = arith.divf %127, %128 : vector<8x1xf32>
    %130 = vector.broadcast %129 : vector<8x1xf32> to vector<8x64xf32>
    %131 = arith.subf %123, %130 : vector<8x64xf32>
    %132 = arith.mulf %131, %131 : vector<8x64xf32>
    %cst_61 = arith.constant dense<0.000000e+00> : vector<8xf32>
    %133 = vector.multi_reduction <add>, %132, %cst_61 [1] : vector<8x64xf32> to vector<8xf32>
    %134 = vector.shape_cast %133 : vector<8xf32> to vector<8x1xf32>
    %cst_62 = arith.constant 6.400000e+01 : f32
    %135 = vector.broadcast %cst_62 : f32 to vector<8x1xf32>
    %136 = arith.divf %134, %135 : vector<8x1xf32>
    %137 = vector.broadcast %129 : vector<8x1xf32> to vector<8x64xf32>
    %138 = arith.subf %123, %137 : vector<8x64xf32>
    %cst_63 = arith.constant 9.99999996E-13 : f32
    %139 = vector.broadcast %cst_63 : f32 to vector<8x1xf32>
    %140 = arith.addf %136, %139 : vector<8x1xf32>
    %141 = math.rsqrt %140 : vector<8x1xf32>
    %142 = vector.broadcast %141 : vector<8x1xf32> to vector<8x64xf32>
    %143 = arith.mulf %138, %142 : vector<8x64xf32>
    %144 = vector.broadcast %124 : vector<1x64xf32> to vector<8x64xf32>
    %145 = arith.mulf %143, %144 : vector<8x64xf32>
    %146 = vector.broadcast %125 : vector<1x64xf32> to vector<8x64xf32>
    %147 = arith.addf %145, %146 : vector<8x64xf32>
    %c0_64 = arith.constant 0 : index
    %c0_65 = arith.constant 0 : index
    %c0_66 = arith.constant 0 : index
    %148 = vector.load %arg15[%c0_64, %c0_65, %c0_66] : memref<1x8x64xf32, #tpu.memory_space<vmem>>, vector<1x8x64xf32>
    %149 = vector.shape_cast %148 : vector<1x8x64xf32> to vector<8x64xf32>
    %150 = vector.shape_cast %147 : vector<8x64xf32> to vector<1x8x64xf32>
    tpu.vector_store %arg15[%c0_64, %c0_65, %c0_66], %150 {strides = array<i32>} : memref<1x8x64xf32, #tpu.memory_space<vmem>>, vector<1x8x64xf32>,
    return
  }
  func.func @transform_0(%arg0: i32) -> (i32, i32, i32) {
    %c0_i32 = arith.constant 0 : i32
    %c0_i32_0 = arith.constant 0 : i32
    %c0_i32_1 = arith.constant 0 : i32
    return %arg0, %c0_i32, %c0_i32_0 : i32, i32, i32
  }
  func.func @transform_1(%arg0: i32) -> (i32, i32, i32) {
    %c0_i32 = arith.constant 0 : i32
    %c0_i32_0 = arith.constant 0 : i32
    %c0_i32_1 = arith.constant 0 : i32
    return %arg0, %c0_i32, %c0_i32_0 : i32, i32, i32
  }
  func.func @transform_2(%arg0: i32) -> (i32, i32) {
    %c0_i32 = arith.constant 0 : i32
    %c0_i32_0 = arith.constant 0 : i32
    %c0_i32_1 = arith.constant 0 : i32
    return %c0_i32, %c0_i32_0 : i32, i32
  }
  func.func @transform_3(%arg0: i32) -> (i32, i32) {
    %c0_i32 = arith.constant 0 : i32
    %c0_i32_0 = arith.constant 0 : i32
    %c0_i32_1 = arith.constant 0 : i32
    return %c0_i32, %c0_i32_0 : i32, i32
  }
  func.func @transform_4(%arg0: i32) -> (i32, i32, i32) {
    %c0_i32 = arith.constant 0 : i32
    %c0_i32_0 = arith.constant 0 : i32
    %c0_i32_1 = arith.constant 0 : i32
    %c0_i32_2 = arith.constant 0 : i32
    return %c0_i32, %c0_i32_0, %c0_i32_1 : i32, i32, i32
  }
  func.func @transform_5(%arg0: i32) -> (i32, i32) {
    %c0_i32 = arith.constant 0 : i32
    %c0_i32_0 = arith.constant 0 : i32
    %c0_i32_1 = arith.constant 0 : i32
    return %c0_i32, %c0_i32_0 : i32, i32
  }
  func.func @transform_6(%arg0: i32) -> (i32, i32) {
    %c0_i32 = arith.constant 0 : i32
    %c0_i32_0 = arith.constant 0 : i32
    %c0_i32_1 = arith.constant 0 : i32
    return %c0_i32, %c0_i32_0 : i32, i32
  }
  func.func @transform_7(%arg0: i32) -> (i32, i32) {
    %c0_i32 = arith.constant 0 : i32
    %c0_i32_0 = arith.constant 0 : i32
    %c0_i32_1 = arith.constant 0 : i32
    return %c0_i32, %c0_i32_0 : i32, i32
  }
  func.func @transform_8(%arg0: i32) -> (i32, i32) {
    %c0_i32 = arith.constant 0 : i32
    %c0_i32_0 = arith.constant 0 : i32
    %c0_i32_1 = arith.constant 0 : i32
    return %c0_i32, %c0_i32_0 : i32, i32
  }
  func.func @transform_9(%arg0: i32) -> (i32, i32) {
    %c0_i32 = arith.constant 0 : i32
    %c0_i32_0 = arith.constant 0 : i32
    %c0_i32_1 = arith.constant 0 : i32
    return %c0_i32, %c0_i32_0 : i32, i32
  }
  func.func @transform_10(%arg0: i32) -> (i32, i32) {
    %c0_i32 = arith.constant 0 : i32
    %c0_i32_0 = arith.constant 0 : i32
    %c0_i32_1 = arith.constant 0 : i32
    return %c0_i32, %c0_i32_0 : i32, i32
  }
  func.func @transform_11(%arg0: i32) -> (i32, i32) {
    %c0_i32 = arith.constant 0 : i32
    %c0_i32_0 = arith.constant 0 : i32
    %c0_i32_1 = arith.constant 0 : i32
    return %c0_i32, %c0_i32_0 : i32, i32
  }
  func.func @transform_12(%arg0: i32) -> (i32, i32) {
    %c0_i32 = arith.constant 0 : i32
    %c0_i32_0 = arith.constant 0 : i32
    %c0_i32_1 = arith.constant 0 : i32
    return %c0_i32, %c0_i32_0 : i32, i32
  }
  func.func @transform_13(%arg0: i32) -> (i32, i32) {
    %c0_i32 = arith.constant 0 : i32
    %c0_i32_0 = arith.constant 0 : i32
    %c0_i32_1 = arith.constant 0 : i32
    return %c0_i32, %c0_i32_0 : i32, i32
  }
  func.func @transform_14(%arg0: i32) -> (i32, i32, i32) {
    %c0_i32 = arith.constant 0 : i32
    %c0_i32_0 = arith.constant 0 : i32
    %c0_i32_1 = arith.constant 0 : i32
    return %arg0, %c0_i32, %c0_i32_0 : i32, i32, i32
  }
}

module attributes {stable_mosaic.version = 11 : i64} {
  func.func @_bert_layer_kernel(%arg0: i32, %arg1: memref<1x8x64xf32, #tpu.memory_space<vmem>>, %arg2: memref<1x1x8xf32, #tpu.memory_space<vmem>>, %arg3: memref<64x192xbf16, #tpu.memory_space<vmem>>, %arg4: memref<1x192xf32, #tpu.memory_space<vmem>>, %arg5: memref<4x16x64xbf16, #tpu.memory_space<vmem>>, %arg6: memref<1x64xf32, #tpu.memory_space<vmem>>, %arg7: memref<1x64xf32, #tpu.memory_space<vmem>>, %arg8: memref<1x64xf32, #tpu.memory_space<vmem>>, %arg9: memref<64x128xbf16, #tpu.memory_space<vmem>>, %arg10: memref<1x128xf32, #tpu.memory_space<vmem>>, %arg11: memref<128x64xbf16, #tpu.memory_space<vmem>>, %arg12: memref<1x64xf32, #tpu.memory_space<vmem>>, %arg13: memref<1x64xf32, #tpu.memory_space<vmem>>, %arg14: memref<1x64xf32, #tpu.memory_space<vmem>>, %arg15: memref<1x8x64xf32, #tpu.memory_space<vmem>>) attributes {dimension_semantics = [#tpu.dimension_semantics<parallel>], iteration_bounds = array<i64: 2>, scalar_prefetch = 0 : i64, scratch_operands = 0 : i64, tpu.core_type = #tpu.core_type<tc>, window_params = [{transform_indices = @transform_0, window_bounds = array<i64: 1, 8, 64>}, {transform_indices = @transform_1, window_bounds = array<i64: 1, 1, 8>}, {pipeline_mode = #tpu.pipeline_mode<synchronous>, transform_indices = @transform_2, window_bounds = array<i64: 64, 192>}, {pipeline_mode = #tpu.pipeline_mode<synchronous>, transform_indices = @transform_3, window_bounds = array<i64: 1, 192>}, {pipeline_mode = #tpu.pipeline_mode<synchronous>, transform_indices = @transform_4, window_bounds = array<i64: 4, 16, 64>}, {pipeline_mode = #tpu.pipeline_mode<synchronous>, transform_indices = @transform_5, window_bounds = array<i64: 1, 64>}, {pipeline_mode = #tpu.pipeline_mode<synchronous>, transform_indices = @transform_6, window_bounds = array<i64: 1, 64>}, {pipeline_mode = #tpu.pipeline_mode<synchronous>, transform_indices = @transform_7, window_bounds = array<i64: 1, 64>}, {pipeline_mode = #tpu.pipeline_mode<synchronous>, transform_indices = @transform_8, window_bounds = array<i64: 64, 128>}, {pipeline_mode = #tpu.pipeline_mode<synchronous>, transform_indices = @transform_9, window_bounds = array<i64: 1, 128>}, {pipeline_mode = #tpu.pipeline_mode<synchronous>, transform_indices = @transform_10, window_bounds = array<i64: 128, 64>}, {pipeline_mode = #tpu.pipeline_mode<synchronous>, transform_indices = @transform_11, window_bounds = array<i64: 1, 64>}, {pipeline_mode = #tpu.pipeline_mode<synchronous>, transform_indices = @transform_12, window_bounds = array<i64: 1, 64>}, {pipeline_mode = #tpu.pipeline_mode<synchronous>, transform_indices = @transform_13, window_bounds = array<i64: 1, 64>}, {transform_indices = @transform_14, window_bounds = array<i64: 1, 8, 64>}]} {
    %c0 = arith.constant 0 : index
    %c0_0 = arith.constant 0 : index
    %c0_1 = arith.constant 0 : index
    %0 = vector.load %arg1[%c0, %c0_0, %c0_1] : memref<1x8x64xf32, #tpu.memory_space<vmem>>, vector<1x8x64xf32>
    %1 = vector.shape_cast %0 : vector<1x8x64xf32> to vector<8x64xf32>
    %2 = arith.truncf %1 : vector<8x64xf32> to vector<8x64xbf16>
    %c0_2 = arith.constant 0 : index
    %c0_3 = arith.constant 0 : index
    %3 = vector.load %arg3[%c0_2, %c0_3] : memref<64x192xbf16, #tpu.memory_space<vmem>>, vector<64x192xbf16>
    %cst = arith.constant dense<0.000000e+00> : vector<8x192xf32>
    %4 = tpu.matmul %2, %3, %cst {dimension_numbers = #tpu.dot_dimension_numbers<[1], [0], [0], [1], [0, 0, 1, 1], [], []>} : vector<8x64xbf16>, vector<64x192xbf16>, vector<8x192xf32> -> vector<8x192xf32>
    %c0_4 = arith.constant 0 : index
    %c0_5 = arith.constant 0 : index
    %5 = vector.load %arg4[%c0_4, %c0_5] : memref<1x192xf32, #tpu.memory_space<vmem>>, vector<1x192xf32>
    %6 = vector.broadcast %5 : vector<1x192xf32> to vector<8x192xf32>
    %7 = arith.addf %4, %6 : vector<8x192xf32>
    %8 = tpu.transpose %7, [1, 0] : vector<8x192xf32> -> vector<192x8xf32>
    %9 = vector.shape_cast %8 : vector<192x8xf32> to vector<3x4x16x8xf32>
    %10 = vector.extract_strided_slice %9 {offsets = [0, 0, 0, 0], sizes = [1, 4, 16, 8], strides = [1, 1, 1, 1]} : vector<3x4x16x8xf32> to vector<1x4x16x8xf32>
    %11 = vector.shape_cast %10 : vector<1x4x16x8xf32> to vector<4x16x8xf32>
    %12 = tpu.transpose %11, [0, 2, 1] : vector<4x16x8xf32> -> vector<4x8x16xf32>
    %13 = arith.truncf %12 : vector<4x8x16xf32> to vector<4x8x16xbf16>
    %14 = vector.extract_strided_slice %9 {offsets = [1, 0, 0, 0], sizes = [1, 4, 16, 8], strides = [1, 1, 1, 1]} : vector<3x4x16x8xf32> to vector<1x4x16x8xf32>
    %15 = vector.shape_cast %14 : vector<1x4x16x8xf32> to vector<4x16x8xf32>
    %16 = arith.truncf %15 : vector<4x16x8xf32> to vector<4x16x8xbf16>
    %17 = vector.extract_strided_slice %9 {offsets = [2, 0, 0, 0], sizes = [1, 4, 16, 8], strides = [1, 1, 1, 1]} : vector<3x4x16x8xf32> to vector<1x4x16x8xf32>
    %18 = vector.shape_cast %17 : vector<1x4x16x8xf32> to vector<4x16x8xf32>
    %19 = arith.truncf %18 : vector<4x16x8xf32> to vector<4x16x8xbf16>
    "tpu.trace_start"() <{level = 10 : i32, message = "hqd,hdk->hqk"}> : () -> ()
    %cst_6 = arith.constant dense<0.000000e+00> : vector<4x8x8xf32>
    %20 = tpu.matmul %13, %16, %cst_6 {dimension_numbers = #tpu.dot_dimension_numbers<[2], [1], [1], [2], [0, 0, 0, 1, 1, 2], [0], [0]>} : vector<4x8x16xbf16>, vector<4x16x8xbf16>, vector<4x8x8xf32> -> vector<4x8x8xf32>
    "tpu.trace_stop"() : () -> ()
    %cst_7 = arith.constant 2.500000e-01 : f32
    %21 = vector.broadcast %cst_7 : f32 to vector<4x8x8xf32>
    %22 = arith.mulf %20, %21 : vector<4x8x8xf32>
    %c0_8 = arith.constant 0 : index
    %c0_9 = arith.constant 0 : index
    %c0_10 = arith.constant 0 : index
    %23 = vector.load %arg2[%c0_8, %c0_9, %c0_10] : memref<1x1x8xf32, #tpu.memory_space<vmem>>, vector<1x1x8xf32>
    %24 = vector.shape_cast %23 : vector<1x1x8xf32> to vector<1x8xf32>
    %25 = vector.shape_cast %24 : vector<1x8xf32> to vector<1x1x8xf32>
    %26 = vector.broadcast %25 : vector<1x1x8xf32> to vector<4x8x8xf32>
    %27 = arith.addf %22, %26 : vector<4x8x8xf32>
    %cst_11 = arith.constant dense<0xFF800000> : vector<4x8xf32>
    %28 = vector.multi_reduction <maximumf>, %27, %cst_11 [2] : vector<4x8x8xf32> to vector<4x8xf32>
    %29 = vector.shape_cast %28 : vector<4x8xf32> to vector<4x8x1xf32>
    %30 = vector.broadcast %29 : vector<4x8x1xf32> to vector<4x8x8xf32>
    %31 = arith.subf %27, %30 : vector<4x8x8xf32>
    %32 = math.exp %31 : vector<4x8x8xf32>
    %cst_12 = arith.constant dense<0.000000e+00> : vector<4x8xf32>
    %33 = vector.multi_reduction <add>, %32, %cst_12 [2] : vector<4x8x8xf32> to vector<4x8xf32>
    %34 = vector.shape_cast %33 : vector<4x8xf32> to vector<4x8x1xf32>
    %35 = vector.broadcast %34 : vector<4x8x1xf32> to vector<4x8x8xf32>
    %36 = arith.divf %32, %35 : vector<4x8x8xf32>
    %37 = arith.truncf %36 : vector<4x8x8xf32> to vector<4x8x8xbf16>
    "tpu.trace_start"() <{level = 10 : i32, message = "hqk,hdk->hqd"}> : () -> ()
    %cst_13 = arith.constant dense<0.000000e+00> : vector<4x8x16xf32>
    %38 = tpu.matmul %37, %19, %cst_13 {dimension_numbers = #tpu.dot_dimension_numbers<[2], [2], [1], [1], [0, 0, 0, 1, 1, 1], [0], [0]>} : vector<4x8x8xbf16>, vector<4x16x8xbf16>, vector<4x8x16xf32> -> vector<4x8x16xf32>
    "tpu.trace_stop"() : () -> ()
    %39 = arith.truncf %38 : vector<4x8x16xf32> to vector<4x8x16xbf16>
    %c0_14 = arith.constant 0 : index
    %c0_15 = arith.constant 0 : index
    %c0_16 = arith.constant 0 : index
    %40 = vector.load %arg5[%c0_14, %c0_15, %c0_16] : memref<4x16x64xbf16, #tpu.memory_space<vmem>>, vector<4x16x64xbf16>
    "tpu.trace_start"() <{level = 10 : i32, message = "hqd,hde->hqe"}> : () -> ()
    %cst_17 = arith.constant dense<0.000000e+00> : vector<4x8x64xf32>
    %41 = tpu.matmul %39, %40, %cst_17 {dimension_numbers = #tpu.dot_dimension_numbers<[2], [1], [1], [2], [0, 0, 0, 1, 1, 2], [0], [0]>} : vector<4x8x16xbf16>, vector<4x16x64xbf16>, vector<4x8x64xf32> -> vector<4x8x64xf32>
    "tpu.trace_stop"() : () -> ()
    %cst_18 = arith.constant dense<0.000000e+00> : vector<8x64xf32>
    %42 = vector.multi_reduction <add>, %41, %cst_18 [0] : vector<4x8x64xf32> to vector<8x64xf32>
    %c0_19 = arith.constant 0 : index
    %c0_20 = arith.constant 0 : index
    %43 = vector.load %arg6[%c0_19, %c0_20] : memref<1x64xf32, #tpu.memory_space<vmem>>, vector<1x64xf32>
    %44 = vector.broadcast %43 : vector<1x64xf32> to vector<8x64xf32>
    %45 = arith.addf %42, %44 : vector<8x64xf32>
    %46 = arith.addf %45, %1 : vector<8x64xf32>
    %c0_21 = arith.constant 0 : index
    %c0_22 = arith.constant 0 : index
    %47 = vector.load %arg7[%c0_21, %c0_22] : memref<1x64xf32, #tpu.memory_space<vmem>>, vector<1x64xf32>
    %c0_23 = arith.constant 0 : index
    %c0_24 = arith.constant 0 : index
    %48 = vector.load %arg8[%c0_23, %c0_24] : memref<1x64xf32, #tpu.memory_space<vmem>>, vector<1x64xf32>
    %cst_25 = arith.constant dense<0.000000e+00> : vector<8xf32>
    %49 = vector.multi_reduction <add>, %46, %cst_25 [1] : vector<8x64xf32> to vector<8xf32>
    %50 = vector.shape_cast %49 : vector<8xf32> to vector<8x1xf32>
    %cst_26 = arith.constant 6.400000e+01 : f32
    %51 = vector.broadcast %cst_26 : f32 to vector<8x1xf32>
    %52 = arith.divf %50, %51 : vector<8x1xf32>
    %53 = vector.broadcast %52 : vector<8x1xf32> to vector<8x64xf32>
    %54 = arith.subf %46, %53 : vector<8x64xf32>
    %55 = arith.mulf %54, %54 : vector<8x64xf32>
    %cst_27 = arith.constant dense<0.000000e+00> : vector<8xf32>
    %56 = vector.multi_reduction <add>, %55, %cst_27 [1] : vector<8x64xf32> to vector<8xf32>
    %57 = vector.shape_cast %56 : vector<8xf32> to vector<8x1xf32>
    %cst_28 = arith.constant 6.400000e+01 : f32
    %58 = vector.broadcast %cst_28 : f32 to vector<8x1xf32>
    %59 = arith.divf %57, %58 : vector<8x1xf32>
    %60 = vector.broadcast %52 : vector<8x1xf32> to vector<8x64xf32>
    %61 = arith.subf %46, %60 : vector<8x64xf32>
    %cst_29 = arith.constant 9.99999996E-13 : f32
    %62 = vector.broadcast %cst_29 : f32 to vector<8x1xf32>
    %63 = arith.addf %59, %62 : vector<8x1xf32>
    %64 = math.rsqrt %63 : vector<8x1xf32>
    %65 = vector.broadcast %64 : vector<8x1xf32> to vector<8x64xf32>
    %66 = arith.mulf %61, %65 : vector<8x64xf32>
    %67 = vector.broadcast %47 : vector<1x64xf32> to vector<8x64xf32>
    %68 = arith.mulf %66, %67 : vector<8x64xf32>
    %69 = vector.broadcast %48 : vector<1x64xf32> to vector<8x64xf32>
    %70 = arith.addf %68, %69 : vector<8x64xf32>
    %71 = arith.truncf %70 : vector<8x64xf32> to vector<8x64xbf16>
    %c0_30 = arith.constant 0 : index
    %c0_31 = arith.constant 0 : index
    %72 = vector.load %arg9[%c0_30, %c0_31] : memref<64x128xbf16, #tpu.memory_space<vmem>>, vector<64x128xbf16>
    %cst_32 = arith.constant dense<0.000000e+00> : vector<8x128xf32>
    %73 = tpu.matmul %71, %72, %cst_32 {dimension_numbers = #tpu.dot_dimension_numbers<[1], [0], [0], [1], [0, 0, 1, 1], [], []>} : vector<8x64xbf16>, vector<64x128xbf16>, vector<8x128xf32> -> vector<8x128xf32>
    %c0_33 = arith.constant 0 : index
    %c0_34 = arith.constant 0 : index
    %74 = vector.load %arg10[%c0_33, %c0_34] : memref<1x128xf32, #tpu.memory_space<vmem>>, vector<1x128xf32>
    %75 = vector.broadcast %74 : vector<1x128xf32> to vector<8x128xf32>
    %76 = arith.addf %73, %75 : vector<8x128xf32>
    %cst_35 = arith.constant 5.000000e-01 : f32
    %77 = vector.broadcast %cst_35 : f32 to vector<8x128xf32>
    %78 = arith.mulf %77, %76 : vector<8x128xf32>
    %cst_36 = arith.constant 0.707106769 : f32
    %79 = vector.broadcast %cst_36 : f32 to vector<8x128xf32>
    %80 = arith.mulf %76, %79 : vector<8x128xf32>
    %81 = math.absf %80 : vector<8x128xf32>
    %cst_37 = arith.constant 0.327591091 : f32
    %82 = vector.broadcast %cst_37 : f32 to vector<8x128xf32>
    %83 = arith.mulf %82, %81 : vector<8x128xf32>
    %cst_38 = arith.constant 1.000000e+00 : f32
    %84 = vector.broadcast %cst_38 : f32 to vector<8x128xf32>
    %85 = arith.addf %84, %83 : vector<8x128xf32>
    %cst_39 = arith.constant 1.000000e+00 : f32
    %86 = vector.broadcast %cst_39 : f32 to vector<8x128xf32>
    %87 = arith.divf %86, %85 : vector<8x128xf32>
    %cst_40 = arith.constant 1.06140542 : f32
    %88 = vector.broadcast %cst_40 : f32 to vector<8x128xf32>
    %89 = arith.mulf %88, %87 : vector<8x128xf32>
    %cst_41 = arith.constant -1.45315206 : f32
    %90 = vector.broadcast %cst_41 : f32 to vector<8x128xf32>
    %91 = arith.addf %89, %90 : vector<8x128xf32>
    %92 = arith.mulf %91, %87 : vector<8x128xf32>
    %cst_42 = arith.constant 1.42141378 : f32
    %93 = vector.broadcast %cst_42 : f32 to vector<8x128xf32>
    %94 = arith.addf %92, %93 : vector<8x128xf32>
    %95 = arith.mulf %94, %87 : vector<8x128xf32>
    %cst_43 = arith.constant -0.284496725 : f32
    %96 = vector.broadcast %cst_43 : f32 to vector<8x128xf32>
    %97 = arith.addf %95, %96 : vector<8x128xf32>
    %98 = arith.mulf %97, %87 : vector<8x128xf32>
    %cst_44 = arith.constant 0.254829586 : f32
    %99 = vector.broadcast %cst_44 : f32 to vector<8x128xf32>
    %100 = arith.addf %98, %99 : vector<8x128xf32>
    %101 = arith.mulf %100, %87 : vector<8x128xf32>
    %cst_45 = arith.constant 0.000000e+00 : f32
    %102 = vector.broadcast %cst_45 : f32 to vector<8x128xf32>
    %103 = arith.subf %102, %81 : vector<8x128xf32>
    %104 = arith.mulf %103, %81 : vector<8x128xf32>
    %105 = math.exp %104 : vector<8x128xf32>
    %106 = arith.mulf %101, %105 : vector<8x128xf32>
    %cst_46 = arith.constant 1.000000e+00 : f32
    %107 = vector.broadcast %cst_46 : f32 to vector<8x128xf32>
    %108 = arith.subf %107, %106 : vector<8x128xf32>
    %cst_47 = arith.constant 0.000000e+00 : f32
    %109 = vector.broadcast %cst_47 : f32 to vector<8x128xf32>
    %110 = arith.cmpf oge, %80, %109 : vector<8x128xf32>
    %cst_48 = arith.constant 0.000000e+00 : f32
    %111 = vector.broadcast %cst_48 : f32 to vector<8x128xf32>
    %112 = arith.subf %111, %108 : vector<8x128xf32>
    %113 = arith.select %110, %108, %112 : vector<8x128xi1>, vector<8x128xf32>
    %cst_49 = arith.constant 1.000000e+00 : f32
    %114 = vector.broadcast %cst_49 : f32 to vector<8x128xf32>
    %115 = arith.addf %114, %113 : vector<8x128xf32>
    %116 = arith.mulf %78, %115 : vector<8x128xf32>
    %117 = arith.truncf %116 : vector<8x128xf32> to vector<8x128xbf16>
    %c0_50 = arith.constant 0 : index
    %c0_51 = arith.constant 0 : index
    %118 = vector.load %arg11[%c0_50, %c0_51] : memref<128x64xbf16, #tpu.memory_space<vmem>>, vector<128x64xbf16>
    %cst_52 = arith.constant dense<0.000000e+00> : vector<8x64xf32>
    %119 = tpu.matmul %117, %118, %cst_52 {dimension_numbers = #tpu.dot_dimension_numbers<[1], [0], [0], [1], [0, 0, 1, 1], [], []>} : vector<8x128xbf16>, vector<128x64xbf16>, vector<8x64xf32> -> vector<8x64xf32>
    %c0_53 = arith.constant 0 : index
    %c0_54 = arith.constant 0 : index
    %120 = vector.load %arg12[%c0_53, %c0_54] : memref<1x64xf32, #tpu.memory_space<vmem>>, vector<1x64xf32>
    %121 = vector.broadcast %120 : vector<1x64xf32> to vector<8x64xf32>
    %122 = arith.addf %119, %121 : vector<8x64xf32>
    %123 = arith.addf %122, %70 : vector<8x64xf32>
    %c0_55 = arith.constant 0 : index
    %c0_56 = arith.constant 0 : index
    %124 = vector.load %arg13[%c0_55, %c0_56] : memref<1x64xf32, #tpu.memory_space<vmem>>, vector<1x64xf32>
    %c0_57 = arith.constant 0 : index
    %c0_58 = arith.constant 0 : index
    %125 = vector.load %arg14[%c0_57, %c0_58] : memref<1x64xf32, #tpu.memory_space<vmem>>, vector<1x64xf32>
    %cst_59 = arith.constant dense<0.000000e+00> : vector<8xf32>
    %126 = vector.multi_reduction <add>, %123, %cst_59 [1] : vector<8x64xf32> to vector<8xf32>
    %127 = vector.shape_cast %126 : vector<8xf32> to vector<8x1xf32>
    %cst_60 = arith.constant 6.400000e+01 : f32
    %128 = vector.broadcast %cst_60 : f32 to vector<8x1xf32>
    %129 = arith.divf %127, %128 : vector<8x1xf32>
    %130 = vector.broadcast %129 : vector<8x1xf32> to vector<8x64xf32>
    %131 = arith.subf %123, %130 : vector<8x64xf32>
    %132 = arith.mulf %131, %131 : vector<8x64xf32>
    %cst_61 = arith.constant dense<0.000000e+00> : vector<8xf32>
    %133 = vector.multi_reduction <add>, %132, %cst_61 [1] : vector<8x64xf32> to vector<8xf32>
    %134 = vector.shape_cast %133 : vector<8xf32> to vector<8x1xf32>
    %cst_62 = arith.constant 6.400000e+01 : f32
    %135 = vector.broadcast %cst_62 : f32 to vector<8x1xf32>
    %136 = arith.divf %134, %135 : vector<8x1xf32>
    %137 = vector.broadcast %129 : vector<8x1xf32> to vector<8x64xf32>
    %138 = arith.subf %123, %137 : vector<8x64xf32>
    %cst_63 = arith.constant 9.99999996E-13 : f32
    %139 = vector.broadcast %cst_63 : f32 to vector<8x1xf32>
    %140 = arith.addf %136, %139 : vector<8x1xf32>
    %141 = math.rsqrt %140 : vector<8x1xf32>
    %142 = vector.broadcast %141 : vector<8x1xf32> to vector<8x64xf32>
    %143 = arith.mulf %138, %142 : vector<8x64xf32>
    %144 = vector.broadcast %124 : vector<1x64xf32> to vector<8x64xf32>
    %145 = arith.mulf %143, %144 : vector<8x64xf32>
    %146 = vector.broadcast %125 : vector<1x64xf32> to vector<8x64xf32>
    %147 = arith.addf %145, %146 : vector<8x64xf32>
    %c0_64 = arith.constant 0 : index
    %c0_65 = arith.constant 0 : index
    %c0_66 = arith.constant 0 : index
    %148 = vector.load %arg15[%c0_64, %c0_65, %c0_66] : memref<1x8x64xf32, #tpu.memory_space<vmem>>, vector<1x8x64xf32>
    %149 = vector.shape_cast %148 : vector<1x8x64xf32> to vector<8x64xf32>
    %150 = vector.shape_cast %147 : vector<8x64xf32> to vector<1x8x64xf32>
    tpu.vector_store %arg15[%c0_64, %c0_65, %c0_66], %150 {strides = array<i32>} : memref<1x8x64xf32, #tpu.memory_space<vmem>>, vector<1x8x64xf32>,
    return
  }
  func.func @transform_0(%arg0: i32) -> (i32, i32, i32) {
    %c0_i32 = arith.constant 0 : i32
    %c0_i32_0 = arith.constant 0 : i32
    %c0_i32_1 = arith.constant 0 : i32
    return %arg0, %c0_i32, %c0_i32_0 : i32, i32, i32
  }
  func.func @transform_1(%arg0: i32) -> (i32, i32, i32) {
    %c0_i32 = arith.constant 0 : i32
    %c0_i32_0 = arith.constant 0 : i32
    %c0_i32_1 = arith.constant 0 : i32
    return %arg0, %c0_i32, %c0_i32_0 : i32, i32, i32
  }
  func.func @transform_2(%arg0: i32) -> (i32, i32) {
    %c0_i32 = arith.constant 0 : i32
    %c0_i32_0 = arith.constant 0 : i32
    %c0_i32_1 = arith.constant 0 : i32
    return %c0_i32, %c0_i32_0 : i32, i32
  }
  func.func @transform_3(%arg0: i32) -> (i32, i32) {
    %c0_i32 = arith.constant 0 : i32
    %c0_i32_0 = arith.constant 0 : i32
    %c0_i32_1 = arith.constant 0 : i32
    return %c0_i32, %c0_i32_0 : i32, i32
  }
  func.func @transform_4(%arg0: i32) -> (i32, i32, i32) {
    %c0_i32 = arith.constant 0 : i32
    %c0_i32_0 = arith.constant 0 : i32
    %c0_i32_1 = arith.constant 0 : i32
    %c0_i32_2 = arith.constant 0 : i32
    return %c0_i32, %c0_i32_0, %c0_i32_1 : i32, i32, i32
  }
  func.func @transform_5(%arg0: i32) -> (i32, i32) {
    %c0_i32 = arith.constant 0 : i32
    %c0_i32_0 = arith.constant 0 : i32
    %c0_i32_1 = arith.constant 0 : i32
    return %c0_i32, %c0_i32_0 : i32, i32
  }
  func.func @transform_6(%arg0: i32) -> (i32, i32) {
    %c0_i32 = arith.constant 0 : i32
    %c0_i32_0 = arith.constant 0 : i32
    %c0_i32_1 = arith.constant 0 : i32
    return %c0_i32, %c0_i32_0 : i32, i32
  }
  func.func @transform_7(%arg0: i32) -> (i32, i32) {
    %c0_i32 = arith.constant 0 : i32
    %c0_i32_0 = arith.constant 0 : i32
    %c0_i32_1 = arith.constant 0 : i32
    return %c0_i32, %c0_i32_0 : i32, i32
  }
  func.func @transform_8(%arg0: i32) -> (i32, i32) {
    %c0_i32 = arith.constant 0 : i32
    %c0_i32_0 = arith.constant 0 : i32
    %c0_i32_1 = arith.constant 0 : i32
    return %c0_i32, %c0_i32_0 : i32, i32
  }
  func.func @transform_9(%arg0: i32) -> (i32, i32) {
    %c0_i32 = arith.constant 0 : i32
    %c0_i32_0 = arith.constant 0 : i32
    %c0_i32_1 = arith.constant 0 : i32
    return %c0_i32, %c0_i32_0 : i32, i32
  }
  func.func @transform_10(%arg0: i32) -> (i32, i32) {
    %c0_i32 = arith.constant 0 : i32
    %c0_i32_0 = arith.constant 0 : i32
    %c0_i32_1 = arith.constant 0 : i32
    return %c0_i32, %c0_i32_0 : i32, i32
  }
  func.func @transform_11(%arg0: i32) -> (i32, i32) {
    %c0_i32 = arith.constant 0 : i32
    %c0_i32_0 = arith.constant 0 : i32
    %c0_i32_1 = arith.constant 0 : i32
    return %c0_i32, %c0_i32_0 : i32, i32
  }
  func.func @transform_12(%arg0: i32) -> (i32, i32) {
    %c0_i32 = arith.constant 0 : i32
    %c0_i32_0 = arith.constant 0 : i32
    %c0_i32_1 = arith.constant 0 : i32
    return %c0_i32, %c0_i32_0 : i32, i32
  }
  func.func @transform_13(%arg0: i32) -> (i32, i32) {
    %c0_i32 = arith.constant 0 : i32
    %c0_i32_0 = arith.constant 0 : i32
    %c0_i32_1 = arith.constant 0 : i32
    return %c0_i32, %c0_i32_0 : i32, i32
  }
  func.func @transform_14(%arg0: i32) -> (i32, i32, i32) {
    %c0_i32 = arith.constant 0 : i32
    %c0_i32_0 = arith.constant 0 : i32
    %c0_i32_1 = arith.constant 0 : i32
    return %arg0, %c0_i32, %c0_i32_0 : i32, i32, i32
  }
}

module attributes {stable_mosaic.version = 11 : i64} {
  func.func @_bilstm_cls_kernel(%arg0: memref<8x8x64xf32, #tpu.memory_space<vmem>>, %arg1: memref<64x1024xbf16, #tpu.memory_space<vmem>>, %arg2: memref<1x1024xf32, #tpu.memory_space<vmem>>, %arg3: memref<256x1024xbf16, #tpu.memory_space<vmem>>, %arg4: memref<256x128xbf16, #tpu.memory_space<vmem>>, %arg5: memref<1x128xf32, #tpu.memory_space<vmem>>, %arg6: memref<8x8x128xf32, #tpu.memory_space<vmem>>, %arg7: memref<8x8x1024xf32, #tpu.memory_space<vmem>>, %arg8: memref<8x8x128xf32, #tpu.memory_space<vmem>>, %arg9: memref<8x8x128xf32, #tpu.memory_space<vmem>>) attributes {dimension_semantics = [], scalar_prefetch = 0 : i64, scratch_operands = 3 : i64, tpu.core_type = #tpu.core_type<tc>} {
    %c0 = arith.constant 0 : index
    %c0_0 = arith.constant 0 : index
    %c0_1 = arith.constant 0 : index
    %0 = vector.load %arg0[%c0, %c0_0, %c0_1] : memref<8x8x64xf32, #tpu.memory_space<vmem>>, vector<8x8x64xf32>
    %1 = vector.shape_cast %0 : vector<8x8x64xf32> to vector<64x64xf32>
    %2 = arith.truncf %1 : vector<64x64xf32> to vector<64x64xbf16>
    %c0_2 = arith.constant 0 : index
    %c0_3 = arith.constant 0 : index
    %3 = vector.load %arg1[%c0_2, %c0_3] : memref<64x1024xbf16, #tpu.memory_space<vmem>>, vector<64x1024xbf16>
    %cst = arith.constant dense<0.000000e+00> : vector<64x1024xf32>
    %4 = tpu.matmul %2, %3, %cst {dimension_numbers = #tpu.dot_dimension_numbers<[1], [0], [0], [1], [0, 0, 1, 1], [], []>} : vector<64x64xbf16>, vector<64x1024xbf16>, vector<64x1024xf32> -> vector<64x1024xf32>
    %c0_4 = arith.constant 0 : index
    %c0_5 = arith.constant 0 : index
    %5 = vector.load %arg2[%c0_4, %c0_5] : memref<1x1024xf32, #tpu.memory_space<vmem>>, vector<1x1024xf32>
    %6 = vector.broadcast %5 : vector<1x1024xf32> to vector<64x1024xf32>
    %7 = arith.addf %4, %6 : vector<64x1024xf32>
    %8 = vector.shape_cast %7 : vector<64x1024xf32> to vector<8x8x1024xf32>
    %c0_6 = arith.constant 0 : index
    %c0_7 = arith.constant 0 : index
    %c0_8 = arith.constant 0 : index
    %9 = vector.load %arg7[%c0_6, %c0_7, %c0_8] : memref<8x8x1024xf32, #tpu.memory_space<vmem>>, vector<8x8x1024xf32>
    tpu.vector_store %arg7[%c0_6, %c0_7, %c0_8], %8 {strides = array<i32>} : memref<8x8x1024xf32, #tpu.memory_space<vmem>>, vector<8x8x1024xf32>,
    %c0_9 = arith.constant 0 : index
    %c0_10 = arith.constant 0 : index
    %10 = vector.load %arg3[%c0_9, %c0_10] : memref<256x1024xbf16, #tpu.memory_space<vmem>>, vector<256x1024xbf16>
    %cst_11 = arith.constant 0.000000e+00 : f32
    %11 = vector.broadcast %cst_11 : f32 to vector<8x256xf32>
    %c0_i32 = arith.constant 0 : i32
    %12 = arith.truncf %11 : vector<8x256xf32> to vector<8x256xbf16>
    %cst_12 = arith.constant dense<0.000000e+00> : vector<8x1024xf32>
    %13 = tpu.matmul %12, %10, %cst_12 {dimension_numbers = #tpu.dot_dimension_numbers<[1], [0], [0], [1], [0, 0, 1, 1], [], []>} : vector<8x256xbf16>, vector<256x1024xbf16>, vector<8x1024xf32> -> vector<8x1024xf32>
    %14 = arith.index_cast %c0_i32 : i32 to index
    %c0_13 = arith.constant 0 : index
    %c0_14 = arith.constant 0 : index
    %15 = vector.load %arg7[%14, %c0_13, %c0_14] : memref<8x8x1024xf32, #tpu.memory_space<vmem>>, vector<1x8x1024xf32>
    %16 = vector.shape_cast %15 : vector<1x8x1024xf32> to vector<8x1024xf32>
    %17 = vector.extract_strided_slice %16 {offsets = [0, 0], sizes = [8, 512], strides = [1, 1]} : vector<8x1024xf32> to vector<8x512xf32>
    %18 = vector.extract_strided_slice %13 {offsets = [0, 0], sizes = [8, 512], strides = [1, 1]} : vector<8x1024xf32> to vector<8x512xf32>
    %19 = arith.addf %17, %18 : vector<8x512xf32>
    %c7_i32 = arith.constant 7 : i32
    %20 = arith.subi %c7_i32, %c0_i32 : i32
    %21 = arith.index_cast %20 : i32 to index
    %c0_15 = arith.constant 0 : index
    %c0_16 = arith.constant 0 : index
    %22 = vector.load %arg7[%21, %c0_15, %c0_16] : memref<8x8x1024xf32, #tpu.memory_space<vmem>>, vector<1x8x1024xf32>
    %23 = vector.shape_cast %22 : vector<1x8x1024xf32> to vector<8x1024xf32>
    %24 = vector.extract_strided_slice %23 {offsets = [0, 512], sizes = [8, 512], strides = [1, 1]} : vector<8x1024xf32> to vector<8x512xf32>
    %25 = vector.extract_strided_slice %13 {offsets = [0, 512], sizes = [8, 512], strides = [1, 1]} : vector<8x1024xf32> to vector<8x512xf32>
    %26 = arith.addf %24, %25 : vector<8x512xf32>
    %27 = vector.extract_strided_slice %19 {offsets = [0, 0], sizes = [8, 128], strides = [1, 1]} : vector<8x512xf32> to vector<8x128xf32>
    %28 = vector.extract_strided_slice %26 {offsets = [0, 0], sizes = [8, 128], strides = [1, 1]} : vector<8x512xf32> to vector<8x128xf32>
    %29 = tpu.concatenate %27, %28 in 1 : vector<8x128xf32>, vector<8x128xf32> -> vector<8x256xf32>
    %30 = arith.negf %29 : vector<8x256xf32>
    %31 = math.exp %30 : vector<8x256xf32>
    %cst_17 = arith.constant 1.000000e+00 : f32
    %32 = vector.broadcast %cst_17 : f32 to vector<8x256xf32>
    %33 = arith.addf %32, %31 : vector<8x256xf32>
    %34 = arith.divf %32, %33 : vector<8x256xf32>
    %35 = vector.extract_strided_slice %19 {offsets = [0, 128], sizes = [8, 128], strides = [1, 1]} : vector<8x512xf32> to vector<8x128xf32>
    %36 = vector.extract_strided_slice %26 {offsets = [0, 128], sizes = [8, 128], strides = [1, 1]} : vector<8x512xf32> to vector<8x128xf32>
    %37 = tpu.concatenate %35, %36 in 1 : vector<8x128xf32>, vector<8x128xf32> -> vector<8x256xf32>
    %38 = arith.negf %37 : vector<8x256xf32>
    %39 = math.exp %38 : vector<8x256xf32>
    %cst_18 = arith.constant 1.000000e+00 : f32
    %40 = vector.broadcast %cst_18 : f32 to vector<8x256xf32>
    %41 = arith.addf %40, %39 : vector<8x256xf32>
    %42 = arith.divf %40, %41 : vector<8x256xf32>
    %43 = vector.extract_strided_slice %19 {offsets = [0, 256], sizes = [8, 128], strides = [1, 1]} : vector<8x512xf32> to vector<8x128xf32>
    %44 = vector.extract_strided_slice %26 {offsets = [0, 256], sizes = [8, 128], strides = [1, 1]} : vector<8x512xf32> to vector<8x128xf32>
    %45 = tpu.concatenate %43, %44 in 1 : vector<8x128xf32>, vector<8x128xf32> -> vector<8x256xf32>
    %46 = math.tanh %45 : vector<8x256xf32>
    %47 = vector.extract_strided_slice %19 {offsets = [0, 384], sizes = [8, 128], strides = [1, 1]} : vector<8x512xf32> to vector<8x128xf32>
    %48 = vector.extract_strided_slice %26 {offsets = [0, 384], sizes = [8, 128], strides = [1, 1]} : vector<8x512xf32> to vector<8x128xf32>
    %49 = tpu.concatenate %47, %48 in 1 : vector<8x128xf32>, vector<8x128xf32> -> vector<8x256xf32>
    %50 = arith.negf %49 : vector<8x256xf32>
    %51 = math.exp %50 : vector<8x256xf32>
    %cst_19 = arith.constant 1.000000e+00 : f32
    %52 = vector.broadcast %cst_19 : f32 to vector<8x256xf32>
    %53 = arith.addf %52, %51 : vector<8x256xf32>
    %54 = arith.divf %52, %53 : vector<8x256xf32>
    %55 = arith.mulf %42, %11 : vector<8x256xf32>
    %56 = arith.mulf %34, %46 : vector<8x256xf32>
    %57 = arith.addf %55, %56 : vector<8x256xf32>
    %58 = math.tanh %57 : vector<8x256xf32>
    %59 = arith.mulf %54, %58 : vector<8x256xf32>
    %60 = vector.extract_strided_slice %59 {offsets = [0, 0], sizes = [8, 128], strides = [1, 1]} : vector<8x256xf32> to vector<8x128xf32>
    %61 = arith.index_cast %c0_i32 : i32 to index
    %c0_20 = arith.constant 0 : index
    %c0_21 = arith.constant 0 : index
    %62 = vector.load %arg8[%61, %c0_20, %c0_21] : memref<8x8x128xf32, #tpu.memory_space<vmem>>, vector<1x8x128xf32>
    %63 = vector.shape_cast %62 : vector<1x8x128xf32> to vector<8x128xf32>
    %64 = vector.shape_cast %60 : vector<8x128xf32> to vector<1x8x128xf32>
    tpu.vector_store %arg8[%61, %c0_20, %c0_21], %64 {strides = array<i32>} : memref<8x8x128xf32, #tpu.memory_space<vmem>>, vector<1x8x128xf32>,
    %65 = vector.extract_strided_slice %59 {offsets = [0, 128], sizes = [8, 128], strides = [1, 1]} : vector<8x256xf32> to vector<8x128xf32>
    %c7_i32_22 = arith.constant 7 : i32
    %66 = arith.subi %c7_i32_22, %c0_i32 : i32
    %67 = arith.index_cast %66 : i32 to index
    %c0_23 = arith.constant 0 : index
    %c0_24 = arith.constant 0 : index
    %68 = vector.load %arg9[%67, %c0_23, %c0_24] : memref<8x8x128xf32, #tpu.memory_space<vmem>>, vector<1x8x128xf32>
    %69 = vector.shape_cast %68 : vector<1x8x128xf32> to vector<8x128xf32>
    %70 = vector.shape_cast %65 : vector<8x128xf32> to vector<1x8x128xf32>
    tpu.vector_store %arg9[%67, %c0_23, %c0_24], %70 {strides = array<i32>} : memref<8x8x128xf32, #tpu.memory_space<vmem>>, vector<1x8x128xf32>,
    %c1_i32 = arith.constant 1 : i32
    %71 = arith.truncf %59 : vector<8x256xf32> to vector<8x256xbf16>
    %cst_25 = arith.constant dense<0.000000e+00> : vector<8x1024xf32>
    %72 = tpu.matmul %71, %10, %cst_25 {dimension_numbers = #tpu.dot_dimension_numbers<[1], [0], [0], [1], [0, 0, 1, 1], [], []>} : vector<8x256xbf16>, vector<256x1024xbf16>, vector<8x1024xf32> -> vector<8x1024xf32>
    %73 = arith.index_cast %c1_i32 : i32 to index
    %c0_26 = arith.constant 0 : index
    %c0_27 = arith.constant 0 : index
    %74 = vector.load %arg7[%73, %c0_26, %c0_27] : memref<8x8x1024xf32, #tpu.memory_space<vmem>>, vector<1x8x1024xf32>
    %75 = vector.shape_cast %74 : vector<1x8x1024xf32> to vector<8x1024xf32>
    %76 = vector.extract_strided_slice %75 {offsets = [0, 0], sizes = [8, 512], strides = [1, 1]} : vector<8x1024xf32> to vector<8x512xf32>
    %77 = vector.extract_strided_slice %72 {offsets = [0, 0], sizes = [8, 512], strides = [1, 1]} : vector<8x1024xf32> to vector<8x512xf32>
    %78 = arith.addf %76, %77 : vector<8x512xf32>
    %c7_i32_28 = arith.constant 7 : i32
    %79 = arith.subi %c7_i32_28, %c1_i32 : i32
    %80 = arith.index_cast %79 : i32 to index
    %c0_29 = arith.constant 0 : index
    %c0_30 = arith.constant 0 : index
    %81 = vector.load %arg7[%80, %c0_29, %c0_30] : memref<8x8x1024xf32, #tpu.memory_space<vmem>>, vector<1x8x1024xf32>
    %82 = vector.shape_cast %81 : vector<1x8x1024xf32> to vector<8x1024xf32>
    %83 = vector.extract_strided_slice %82 {offsets = [0, 512], sizes = [8, 512], strides = [1, 1]} : vector<8x1024xf32> to vector<8x512xf32>
    %84 = vector.extract_strided_slice %72 {offsets = [0, 512], sizes = [8, 512], strides = [1, 1]} : vector<8x1024xf32> to vector<8x512xf32>
    %85 = arith.addf %83, %84 : vector<8x512xf32>
    %86 = vector.extract_strided_slice %78 {offsets = [0, 0], sizes = [8, 128], strides = [1, 1]} : vector<8x512xf32> to vector<8x128xf32>
    %87 = vector.extract_strided_slice %85 {offsets = [0, 0], sizes = [8, 128], strides = [1, 1]} : vector<8x512xf32> to vector<8x128xf32>
    %88 = tpu.concatenate %86, %87 in 1 : vector<8x128xf32>, vector<8x128xf32> -> vector<8x256xf32>
    %89 = arith.negf %88 : vector<8x256xf32>
    %90 = math.exp %89 : vector<8x256xf32>
    %cst_31 = arith.constant 1.000000e+00 : f32
    %91 = vector.broadcast %cst_31 : f32 to vector<8x256xf32>
    %92 = arith.addf %91, %90 : vector<8x256xf32>
    %93 = arith.divf %91, %92 : vector<8x256xf32>
    %94 = vector.extract_strided_slice %78 {offsets = [0, 128], sizes = [8, 128], strides = [1, 1]} : vector<8x512xf32> to vector<8x128xf32>
    %95 = vector.extract_strided_slice %85 {offsets = [0, 128], sizes = [8, 128], strides = [1, 1]} : vector<8x512xf32> to vector<8x128xf32>
    %96 = tpu.concatenate %94, %95 in 1 : vector<8x128xf32>, vector<8x128xf32> -> vector<8x256xf32>
    %97 = arith.negf %96 : vector<8x256xf32>
    %98 = math.exp %97 : vector<8x256xf32>
    %cst_32 = arith.constant 1.000000e+00 : f32
    %99 = vector.broadcast %cst_32 : f32 to vector<8x256xf32>
    %100 = arith.addf %99, %98 : vector<8x256xf32>
    %101 = arith.divf %99, %100 : vector<8x256xf32>
    %102 = vector.extract_strided_slice %78 {offsets = [0, 256], sizes = [8, 128], strides = [1, 1]} : vector<8x512xf32> to vector<8x128xf32>
    %103 = vector.extract_strided_slice %85 {offsets = [0, 256], sizes = [8, 128], strides = [1, 1]} : vector<8x512xf32> to vector<8x128xf32>
    %104 = tpu.concatenate %102, %103 in 1 : vector<8x128xf32>, vector<8x128xf32> -> vector<8x256xf32>
    %105 = math.tanh %104 : vector<8x256xf32>
    %106 = vector.extract_strided_slice %78 {offsets = [0, 384], sizes = [8, 128], strides = [1, 1]} : vector<8x512xf32> to vector<8x128xf32>
    %107 = vector.extract_strided_slice %85 {offsets = [0, 384], sizes = [8, 128], strides = [1, 1]} : vector<8x512xf32> to vector<8x128xf32>
    %108 = tpu.concatenate %106, %107 in 1 : vector<8x128xf32>, vector<8x128xf32> -> vector<8x256xf32>
    %109 = arith.negf %108 : vector<8x256xf32>
    %110 = math.exp %109 : vector<8x256xf32>
    %cst_33 = arith.constant 1.000000e+00 : f32
    %111 = vector.broadcast %cst_33 : f32 to vector<8x256xf32>
    %112 = arith.addf %111, %110 : vector<8x256xf32>
    %113 = arith.divf %111, %112 : vector<8x256xf32>
    %114 = arith.mulf %101, %57 : vector<8x256xf32>
    %115 = arith.mulf %93, %105 : vector<8x256xf32>
    %116 = arith.addf %114, %115 : vector<8x256xf32>
    %117 = math.tanh %116 : vector<8x256xf32>
    %118 = arith.mulf %113, %117 : vector<8x256xf32>
    %119 = vector.extract_strided_slice %118 {offsets = [0, 0], sizes = [8, 128], strides = [1, 1]} : vector<8x256xf32> to vector<8x128xf32>
    %120 = arith.index_cast %c1_i32 : i32 to index
    %c0_34 = arith.constant 0 : index
    %c0_35 = arith.constant 0 : index
    %121 = vector.load %arg8[%120, %c0_34, %c0_35] : memref<8x8x128xf32, #tpu.memory_space<vmem>>, vector<1x8x128xf32>
    %122 = vector.shape_cast %121 : vector<1x8x128xf32> to vector<8x128xf32>
    %123 = vector.shape_cast %119 : vector<8x128xf32> to vector<1x8x128xf32>
    tpu.vector_store %arg8[%120, %c0_34, %c0_35], %123 {strides = array<i32>} : memref<8x8x128xf32, #tpu.memory_space<vmem>>, vector<1x8x128xf32>,
    %124 = vector.extract_strided_slice %118 {offsets = [0, 128], sizes = [8, 128], strides = [1, 1]} : vector<8x256xf32> to vector<8x128xf32>
    %c7_i32_36 = arith.constant 7 : i32
    %125 = arith.subi %c7_i32_36, %c1_i32 : i32
    %126 = arith.index_cast %125 : i32 to index
    %c0_37 = arith.constant 0 : index
    %c0_38 = arith.constant 0 : index
    %127 = vector.load %arg9[%126, %c0_37, %c0_38] : memref<8x8x128xf32, #tpu.memory_space<vmem>>, vector<1x8x128xf32>
    %128 = vector.shape_cast %127 : vector<1x8x128xf32> to vector<8x128xf32>
    %129 = vector.shape_cast %124 : vector<8x128xf32> to vector<1x8x128xf32>
    tpu.vector_store %arg9[%126, %c0_37, %c0_38], %129 {strides = array<i32>} : memref<8x8x128xf32, #tpu.memory_space<vmem>>, vector<1x8x128xf32>,
    %c2_i32 = arith.constant 2 : i32
    %130 = arith.truncf %118 : vector<8x256xf32> to vector<8x256xbf16>
    %cst_39 = arith.constant dense<0.000000e+00> : vector<8x1024xf32>
    %131 = tpu.matmul %130, %10, %cst_39 {dimension_numbers = #tpu.dot_dimension_numbers<[1], [0], [0], [1], [0, 0, 1, 1], [], []>} : vector<8x256xbf16>, vector<256x1024xbf16>, vector<8x1024xf32> -> vector<8x1024xf32>
    %132 = arith.index_cast %c2_i32 : i32 to index
    %c0_40 = arith.constant 0 : index
    %c0_41 = arith.constant 0 : index
    %133 = vector.load %arg7[%132, %c0_40, %c0_41] : memref<8x8x1024xf32, #tpu.memory_space<vmem>>, vector<1x8x1024xf32>
    %134 = vector.shape_cast %133 : vector<1x8x1024xf32> to vector<8x1024xf32>
    %135 = vector.extract_strided_slice %134 {offsets = [0, 0], sizes = [8, 512], strides = [1, 1]} : vector<8x1024xf32> to vector<8x512xf32>
    %136 = vector.extract_strided_slice %131 {offsets = [0, 0], sizes = [8, 512], strides = [1, 1]} : vector<8x1024xf32> to vector<8x512xf32>
    %137 = arith.addf %135, %136 : vector<8x512xf32>
    %c7_i32_42 = arith.constant 7 : i32
    %138 = arith.subi %c7_i32_42, %c2_i32 : i32
    %139 = arith.index_cast %138 : i32 to index
    %c0_43 = arith.constant 0 : index
    %c0_44 = arith.constant 0 : index
    %140 = vector.load %arg7[%139, %c0_43, %c0_44] : memref<8x8x1024xf32, #tpu.memory_space<vmem>>, vector<1x8x1024xf32>
    %141 = vector.shape_cast %140 : vector<1x8x1024xf32> to vector<8x1024xf32>
    %142 = vector.extract_strided_slice %141 {offsets = [0, 512], sizes = [8, 512], strides = [1, 1]} : vector<8x1024xf32> to vector<8x512xf32>
    %143 = vector.extract_strided_slice %131 {offsets = [0, 512], sizes = [8, 512], strides = [1, 1]} : vector<8x1024xf32> to vector<8x512xf32>
    %144 = arith.addf %142, %143 : vector<8x512xf32>
    %145 = vector.extract_strided_slice %137 {offsets = [0, 0], sizes = [8, 128], strides = [1, 1]} : vector<8x512xf32> to vector<8x128xf32>
    %146 = vector.extract_strided_slice %144 {offsets = [0, 0], sizes = [8, 128], strides = [1, 1]} : vector<8x512xf32> to vector<8x128xf32>
    %147 = tpu.concatenate %145, %146 in 1 : vector<8x128xf32>, vector<8x128xf32> -> vector<8x256xf32>
    %148 = arith.negf %147 : vector<8x256xf32>
    %149 = math.exp %148 : vector<8x256xf32>
    %cst_45 = arith.constant 1.000000e+00 : f32
    %150 = vector.broadcast %cst_45 : f32 to vector<8x256xf32>
    %151 = arith.addf %150, %149 : vector<8x256xf32>
    %152 = arith.divf %150, %151 : vector<8x256xf32>
    %153 = vector.extract_strided_slice %137 {offsets = [0, 128], sizes = [8, 128], strides = [1, 1]} : vector<8x512xf32> to vector<8x128xf32>
    %154 = vector.extract_strided_slice %144 {offsets = [0, 128], sizes = [8, 128], strides = [1, 1]} : vector<8x512xf32> to vector<8x128xf32>
    %155 = tpu.concatenate %153, %154 in 1 : vector<8x128xf32>, vector<8x128xf32> -> vector<8x256xf32>
    %156 = arith.negf %155 : vector<8x256xf32>
    %157 = math.exp %156 : vector<8x256xf32>
    %cst_46 = arith.constant 1.000000e+00 : f32
    %158 = vector.broadcast %cst_46 : f32 to vector<8x256xf32>
    %159 = arith.addf %158, %157 : vector<8x256xf32>
    %160 = arith.divf %158, %159 : vector<8x256xf32>
    %161 = vector.extract_strided_slice %137 {offsets = [0, 256], sizes = [8, 128], strides = [1, 1]} : vector<8x512xf32> to vector<8x128xf32>
    %162 = vector.extract_strided_slice %144 {offsets = [0, 256], sizes = [8, 128], strides = [1, 1]} : vector<8x512xf32> to vector<8x128xf32>
    %163 = tpu.concatenate %161, %162 in 1 : vector<8x128xf32>, vector<8x128xf32> -> vector<8x256xf32>
    %164 = math.tanh %163 : vector<8x256xf32>
    %165 = vector.extract_strided_slice %137 {offsets = [0, 384], sizes = [8, 128], strides = [1, 1]} : vector<8x512xf32> to vector<8x128xf32>
    %166 = vector.extract_strided_slice %144 {offsets = [0, 384], sizes = [8, 128], strides = [1, 1]} : vector<8x512xf32> to vector<8x128xf32>
    %167 = tpu.concatenate %165, %166 in 1 : vector<8x128xf32>, vector<8x128xf32> -> vector<8x256xf32>
    %168 = arith.negf %167 : vector<8x256xf32>
    %169 = math.exp %168 : vector<8x256xf32>
    %cst_47 = arith.constant 1.000000e+00 : f32
    %170 = vector.broadcast %cst_47 : f32 to vector<8x256xf32>
    %171 = arith.addf %170, %169 : vector<8x256xf32>
    %172 = arith.divf %170, %171 : vector<8x256xf32>
    %173 = arith.mulf %160, %116 : vector<8x256xf32>
    %174 = arith.mulf %152, %164 : vector<8x256xf32>
    %175 = arith.addf %173, %174 : vector<8x256xf32>
    %176 = math.tanh %175 : vector<8x256xf32>
    %177 = arith.mulf %172, %176 : vector<8x256xf32>
    %178 = vector.extract_strided_slice %177 {offsets = [0, 0], sizes = [8, 128], strides = [1, 1]} : vector<8x256xf32> to vector<8x128xf32>
    %179 = arith.index_cast %c2_i32 : i32 to index
    %c0_48 = arith.constant 0 : index
    %c0_49 = arith.constant 0 : index
    %180 = vector.load %arg8[%179, %c0_48, %c0_49] : memref<8x8x128xf32, #tpu.memory_space<vmem>>, vector<1x8x128xf32>
    %181 = vector.shape_cast %180 : vector<1x8x128xf32> to vector<8x128xf32>
    %182 = vector.shape_cast %178 : vector<8x128xf32> to vector<1x8x128xf32>
    tpu.vector_store %arg8[%179, %c0_48, %c0_49], %182 {strides = array<i32>} : memref<8x8x128xf32, #tpu.memory_space<vmem>>, vector<1x8x128xf32>,
    %183 = vector.extract_strided_slice %177 {offsets = [0, 128], sizes = [8, 128], strides = [1, 1]} : vector<8x256xf32> to vector<8x128xf32>
    %c7_i32_50 = arith.constant 7 : i32
    %184 = arith.subi %c7_i32_50, %c2_i32 : i32
    %185 = arith.index_cast %184 : i32 to index
    %c0_51 = arith.constant 0 : index
    %c0_52 = arith.constant 0 : index
    %186 = vector.load %arg9[%185, %c0_51, %c0_52] : memref<8x8x128xf32, #tpu.memory_space<vmem>>, vector<1x8x128xf32>
    %187 = vector.shape_cast %186 : vector<1x8x128xf32> to vector<8x128xf32>
    %188 = vector.shape_cast %183 : vector<8x128xf32> to vector<1x8x128xf32>
    tpu.vector_store %arg9[%185, %c0_51, %c0_52], %188 {strides = array<i32>} : memref<8x8x128xf32, #tpu.memory_space<vmem>>, vector<1x8x128xf32>,
    %c3_i32 = arith.constant 3 : i32
    %189 = arith.truncf %177 : vector<8x256xf32> to vector<8x256xbf16>
    %cst_53 = arith.constant dense<0.000000e+00> : vector<8x1024xf32>
    %190 = tpu.matmul %189, %10, %cst_53 {dimension_numbers = #tpu.dot_dimension_numbers<[1], [0], [0], [1], [0, 0, 1, 1], [], []>} : vector<8x256xbf16>, vector<256x1024xbf16>, vector<8x1024xf32> -> vector<8x1024xf32>
    %191 = arith.index_cast %c3_i32 : i32 to index
    %c0_54 = arith.constant 0 : index
    %c0_55 = arith.constant 0 : index
    %192 = vector.load %arg7[%191, %c0_54, %c0_55] : memref<8x8x1024xf32, #tpu.memory_space<vmem>>, vector<1x8x1024xf32>
    %193 = vector.shape_cast %192 : vector<1x8x1024xf32> to vector<8x1024xf32>
    %194 = vector.extract_strided_slice %193 {offsets = [0, 0], sizes = [8, 512], strides = [1, 1]} : vector<8x1024xf32> to vector<8x512xf32>
    %195 = vector.extract_strided_slice %190 {offsets = [0, 0], sizes = [8, 512], strides = [1, 1]} : vector<8x1024xf32> to vector<8x512xf32>
    %196 = arith.addf %194, %195 : vector<8x512xf32>
    %c7_i32_56 = arith.constant 7 : i32
    %197 = arith.subi %c7_i32_56, %c3_i32 : i32
    %198 = arith.index_cast %197 : i32 to index
    %c0_57 = arith.constant 0 : index
    %c0_58 = arith.constant 0 : index
    %199 = vector.load %arg7[%198, %c0_57, %c0_58] : memref<8x8x1024xf32, #tpu.memory_space<vmem>>, vector<1x8x1024xf32>
    %200 = vector.shape_cast %199 : vector<1x8x1024xf32> to vector<8x1024xf32>
    %201 = vector.extract_strided_slice %200 {offsets = [0, 512], sizes = [8, 512], strides = [1, 1]} : vector<8x1024xf32> to vector<8x512xf32>
    %202 = vector.extract_strided_slice %190 {offsets = [0, 512], sizes = [8, 512], strides = [1, 1]} : vector<8x1024xf32> to vector<8x512xf32>
    %203 = arith.addf %201, %202 : vector<8x512xf32>
    %204 = vector.extract_strided_slice %196 {offsets = [0, 0], sizes = [8, 128], strides = [1, 1]} : vector<8x512xf32> to vector<8x128xf32>
    %205 = vector.extract_strided_slice %203 {offsets = [0, 0], sizes = [8, 128], strides = [1, 1]} : vector<8x512xf32> to vector<8x128xf32>
    %206 = tpu.concatenate %204, %205 in 1 : vector<8x128xf32>, vector<8x128xf32> -> vector<8x256xf32>
    %207 = arith.negf %206 : vector<8x256xf32>
    %208 = math.exp %207 : vector<8x256xf32>
    %cst_59 = arith.constant 1.000000e+00 : f32
    %209 = vector.broadcast %cst_59 : f32 to vector<8x256xf32>
    %210 = arith.addf %209, %208 : vector<8x256xf32>
    %211 = arith.divf %209, %210 : vector<8x256xf32>
    %212 = vector.extract_strided_slice %196 {offsets = [0, 128], sizes = [8, 128], strides = [1, 1]} : vector<8x512xf32> to vector<8x128xf32>
    %213 = vector.extract_strided_slice %203 {offsets = [0, 128], sizes = [8, 128], strides = [1, 1]} : vector<8x512xf32> to vector<8x128xf32>
    %214 = tpu.concatenate %212, %213 in 1 : vector<8x128xf32>, vector<8x128xf32> -> vector<8x256xf32>
    %215 = arith.negf %214 : vector<8x256xf32>
    %216 = math.exp %215 : vector<8x256xf32>
    %cst_60 = arith.constant 1.000000e+00 : f32
    %217 = vector.broadcast %cst_60 : f32 to vector<8x256xf32>
    %218 = arith.addf %217, %216 : vector<8x256xf32>
    %219 = arith.divf %217, %218 : vector<8x256xf32>
    %220 = vector.extract_strided_slice %196 {offsets = [0, 256], sizes = [8, 128], strides = [1, 1]} : vector<8x512xf32> to vector<8x128xf32>
    %221 = vector.extract_strided_slice %203 {offsets = [0, 256], sizes = [8, 128], strides = [1, 1]} : vector<8x512xf32> to vector<8x128xf32>
    %222 = tpu.concatenate %220, %221 in 1 : vector<8x128xf32>, vector<8x128xf32> -> vector<8x256xf32>
    %223 = math.tanh %222 : vector<8x256xf32>
    %224 = vector.extract_strided_slice %196 {offsets = [0, 384], sizes = [8, 128], strides = [1, 1]} : vector<8x512xf32> to vector<8x128xf32>
    %225 = vector.extract_strided_slice %203 {offsets = [0, 384], sizes = [8, 128], strides = [1, 1]} : vector<8x512xf32> to vector<8x128xf32>
    %226 = tpu.concatenate %224, %225 in 1 : vector<8x128xf32>, vector<8x128xf32> -> vector<8x256xf32>
    %227 = arith.negf %226 : vector<8x256xf32>
    %228 = math.exp %227 : vector<8x256xf32>
    %cst_61 = arith.constant 1.000000e+00 : f32
    %229 = vector.broadcast %cst_61 : f32 to vector<8x256xf32>
    %230 = arith.addf %229, %228 : vector<8x256xf32>
    %231 = arith.divf %229, %230 : vector<8x256xf32>
    %232 = arith.mulf %219, %175 : vector<8x256xf32>
    %233 = arith.mulf %211, %223 : vector<8x256xf32>
    %234 = arith.addf %232, %233 : vector<8x256xf32>
    %235 = math.tanh %234 : vector<8x256xf32>
    %236 = arith.mulf %231, %235 : vector<8x256xf32>
    %237 = vector.extract_strided_slice %236 {offsets = [0, 0], sizes = [8, 128], strides = [1, 1]} : vector<8x256xf32> to vector<8x128xf32>
    %238 = arith.index_cast %c3_i32 : i32 to index
    %c0_62 = arith.constant 0 : index
    %c0_63 = arith.constant 0 : index
    %239 = vector.load %arg8[%238, %c0_62, %c0_63] : memref<8x8x128xf32, #tpu.memory_space<vmem>>, vector<1x8x128xf32>
    %240 = vector.shape_cast %239 : vector<1x8x128xf32> to vector<8x128xf32>
    %241 = vector.shape_cast %237 : vector<8x128xf32> to vector<1x8x128xf32>
    tpu.vector_store %arg8[%238, %c0_62, %c0_63], %241 {strides = array<i32>} : memref<8x8x128xf32, #tpu.memory_space<vmem>>, vector<1x8x128xf32>,
    %242 = vector.extract_strided_slice %236 {offsets = [0, 128], sizes = [8, 128], strides = [1, 1]} : vector<8x256xf32> to vector<8x128xf32>
    %c7_i32_64 = arith.constant 7 : i32
    %243 = arith.subi %c7_i32_64, %c3_i32 : i32
    %244 = arith.index_cast %243 : i32 to index
    %c0_65 = arith.constant 0 : index
    %c0_66 = arith.constant 0 : index
    %245 = vector.load %arg9[%244, %c0_65, %c0_66] : memref<8x8x128xf32, #tpu.memory_space<vmem>>, vector<1x8x128xf32>
    %246 = vector.shape_cast %245 : vector<1x8x128xf32> to vector<8x128xf32>
    %247 = vector.shape_cast %242 : vector<8x128xf32> to vector<1x8x128xf32>
    tpu.vector_store %arg9[%244, %c0_65, %c0_66], %247 {strides = array<i32>} : memref<8x8x128xf32, #tpu.memory_space<vmem>>, vector<1x8x128xf32>,
    %c4_i32 = arith.constant 4 : i32
    %248 = arith.truncf %236 : vector<8x256xf32> to vector<8x256xbf16>
    %cst_67 = arith.constant dense<0.000000e+00> : vector<8x1024xf32>
    %249 = tpu.matmul %248, %10, %cst_67 {dimension_numbers = #tpu.dot_dimension_numbers<[1], [0], [0], [1], [0, 0, 1, 1], [], []>} : vector<8x256xbf16>, vector<256x1024xbf16>, vector<8x1024xf32> -> vector<8x1024xf32>
    %250 = arith.index_cast %c4_i32 : i32 to index
    %c0_68 = arith.constant 0 : index
    %c0_69 = arith.constant 0 : index
    %251 = vector.load %arg7[%250, %c0_68, %c0_69] : memref<8x8x1024xf32, #tpu.memory_space<vmem>>, vector<1x8x1024xf32>
    %252 = vector.shape_cast %251 : vector<1x8x1024xf32> to vector<8x1024xf32>
    %253 = vector.extract_strided_slice %252 {offsets = [0, 0], sizes = [8, 512], strides = [1, 1]} : vector<8x1024xf32> to vector<8x512xf32>
    %254 = vector.extract_strided_slice %249 {offsets = [0, 0], sizes = [8, 512], strides = [1, 1]} : vector<8x1024xf32> to vector<8x512xf32>
    %255 = arith.addf %253, %254 : vector<8x512xf32>
    %c7_i32_70 = arith.constant 7 : i32
    %256 = arith.subi %c7_i32_70, %c4_i32 : i32
    %257 = arith.index_cast %256 : i32 to index
    %c0_71 = arith.constant 0 : index
    %c0_72 = arith.constant 0 : index
    %258 = vector.load %arg7[%257, %c0_71, %c0_72] : memref<8x8x1024xf32, #tpu.memory_space<vmem>>, vector<1x8x1024xf32>
    %259 = vector.shape_cast %258 : vector<1x8x1024xf32> to vector<8x1024xf32>
    %260 = vector.extract_strided_slice %259 {offsets = [0, 512], sizes = [8, 512], strides = [1, 1]} : vector<8x1024xf32> to vector<8x512xf32>
    %261 = vector.extract_strided_slice %249 {offsets = [0, 512], sizes = [8, 512], strides = [1, 1]} : vector<8x1024xf32> to vector<8x512xf32>
    %262 = arith.addf %260, %261 : vector<8x512xf32>
    %263 = vector.extract_strided_slice %255 {offsets = [0, 0], sizes = [8, 128], strides = [1, 1]} : vector<8x512xf32> to vector<8x128xf32>
    %264 = vector.extract_strided_slice %262 {offsets = [0, 0], sizes = [8, 128], strides = [1, 1]} : vector<8x512xf32> to vector<8x128xf32>
    %265 = tpu.concatenate %263, %264 in 1 : vector<8x128xf32>, vector<8x128xf32> -> vector<8x256xf32>
    %266 = arith.negf %265 : vector<8x256xf32>
    %267 = math.exp %266 : vector<8x256xf32>
    %cst_73 = arith.constant 1.000000e+00 : f32
    %268 = vector.broadcast %cst_73 : f32 to vector<8x256xf32>
    %269 = arith.addf %268, %267 : vector<8x256xf32>
    %270 = arith.divf %268, %269 : vector<8x256xf32>
    %271 = vector.extract_strided_slice %255 {offsets = [0, 128], sizes = [8, 128], strides = [1, 1]} : vector<8x512xf32> to vector<8x128xf32>
    %272 = vector.extract_strided_slice %262 {offsets = [0, 128], sizes = [8, 128], strides = [1, 1]} : vector<8x512xf32> to vector<8x128xf32>
    %273 = tpu.concatenate %271, %272 in 1 : vector<8x128xf32>, vector<8x128xf32> -> vector<8x256xf32>
    %274 = arith.negf %273 : vector<8x256xf32>
    %275 = math.exp %274 : vector<8x256xf32>
    %cst_74 = arith.constant 1.000000e+00 : f32
    %276 = vector.broadcast %cst_74 : f32 to vector<8x256xf32>
    %277 = arith.addf %276, %275 : vector<8x256xf32>
    %278 = arith.divf %276, %277 : vector<8x256xf32>
    %279 = vector.extract_strided_slice %255 {offsets = [0, 256], sizes = [8, 128], strides = [1, 1]} : vector<8x512xf32> to vector<8x128xf32>
    %280 = vector.extract_strided_slice %262 {offsets = [0, 256], sizes = [8, 128], strides = [1, 1]} : vector<8x512xf32> to vector<8x128xf32>
    %281 = tpu.concatenate %279, %280 in 1 : vector<8x128xf32>, vector<8x128xf32> -> vector<8x256xf32>
    %282 = math.tanh %281 : vector<8x256xf32>
    %283 = vector.extract_strided_slice %255 {offsets = [0, 384], sizes = [8, 128], strides = [1, 1]} : vector<8x512xf32> to vector<8x128xf32>
    %284 = vector.extract_strided_slice %262 {offsets = [0, 384], sizes = [8, 128], strides = [1, 1]} : vector<8x512xf32> to vector<8x128xf32>
    %285 = tpu.concatenate %283, %284 in 1 : vector<8x128xf32>, vector<8x128xf32> -> vector<8x256xf32>
    %286 = arith.negf %285 : vector<8x256xf32>
    %287 = math.exp %286 : vector<8x256xf32>
    %cst_75 = arith.constant 1.000000e+00 : f32
    %288 = vector.broadcast %cst_75 : f32 to vector<8x256xf32>
    %289 = arith.addf %288, %287 : vector<8x256xf32>
    %290 = arith.divf %288, %289 : vector<8x256xf32>
    %291 = arith.mulf %278, %234 : vector<8x256xf32>
    %292 = arith.mulf %270, %282 : vector<8x256xf32>
    %293 = arith.addf %291, %292 : vector<8x256xf32>
    %294 = math.tanh %293 : vector<8x256xf32>
    %295 = arith.mulf %290, %294 : vector<8x256xf32>
    %296 = vector.extract_strided_slice %295 {offsets = [0, 0], sizes = [8, 128], strides = [1, 1]} : vector<8x256xf32> to vector<8x128xf32>
    %297 = arith.index_cast %c4_i32 : i32 to index
    %c0_76 = arith.constant 0 : index
    %c0_77 = arith.constant 0 : index
    %298 = vector.load %arg8[%297, %c0_76, %c0_77] : memref<8x8x128xf32, #tpu.memory_space<vmem>>, vector<1x8x128xf32>
    %299 = vector.shape_cast %298 : vector<1x8x128xf32> to vector<8x128xf32>
    %300 = vector.shape_cast %296 : vector<8x128xf32> to vector<1x8x128xf32>
    tpu.vector_store %arg8[%297, %c0_76, %c0_77], %300 {strides = array<i32>} : memref<8x8x128xf32, #tpu.memory_space<vmem>>, vector<1x8x128xf32>,
    %301 = vector.extract_strided_slice %295 {offsets = [0, 128], sizes = [8, 128], strides = [1, 1]} : vector<8x256xf32> to vector<8x128xf32>
    %c7_i32_78 = arith.constant 7 : i32
    %302 = arith.subi %c7_i32_78, %c4_i32 : i32
    %303 = arith.index_cast %302 : i32 to index
    %c0_79 = arith.constant 0 : index
    %c0_80 = arith.constant 0 : index
    %304 = vector.load %arg9[%303, %c0_79, %c0_80] : memref<8x8x128xf32, #tpu.memory_space<vmem>>, vector<1x8x128xf32>
    %305 = vector.shape_cast %304 : vector<1x8x128xf32> to vector<8x128xf32>
    %306 = vector.shape_cast %301 : vector<8x128xf32> to vector<1x8x128xf32>
    tpu.vector_store %arg9[%303, %c0_79, %c0_80], %306 {strides = array<i32>} : memref<8x8x128xf32, #tpu.memory_space<vmem>>, vector<1x8x128xf32>,
    %c5_i32 = arith.constant 5 : i32
    %307 = arith.truncf %295 : vector<8x256xf32> to vector<8x256xbf16>
    %cst_81 = arith.constant dense<0.000000e+00> : vector<8x1024xf32>
    %308 = tpu.matmul %307, %10, %cst_81 {dimension_numbers = #tpu.dot_dimension_numbers<[1], [0], [0], [1], [0, 0, 1, 1], [], []>} : vector<8x256xbf16>, vector<256x1024xbf16>, vector<8x1024xf32> -> vector<8x1024xf32>
    %309 = arith.index_cast %c5_i32 : i32 to index
    %c0_82 = arith.constant 0 : index
    %c0_83 = arith.constant 0 : index
    %310 = vector.load %arg7[%309, %c0_82, %c0_83] : memref<8x8x1024xf32, #tpu.memory_space<vmem>>, vector<1x8x1024xf32>
    %311 = vector.shape_cast %310 : vector<1x8x1024xf32> to vector<8x1024xf32>
    %312 = vector.extract_strided_slice %311 {offsets = [0, 0], sizes = [8, 512], strides = [1, 1]} : vector<8x1024xf32> to vector<8x512xf32>
    %313 = vector.extract_strided_slice %308 {offsets = [0, 0], sizes = [8, 512], strides = [1, 1]} : vector<8x1024xf32> to vector<8x512xf32>
    %314 = arith.addf %312, %313 : vector<8x512xf32>
    %c7_i32_84 = arith.constant 7 : i32
    %315 = arith.subi %c7_i32_84, %c5_i32 : i32
    %316 = arith.index_cast %315 : i32 to index
    %c0_85 = arith.constant 0 : index
    %c0_86 = arith.constant 0 : index
    %317 = vector.load %arg7[%316, %c0_85, %c0_86] : memref<8x8x1024xf32, #tpu.memory_space<vmem>>, vector<1x8x1024xf32>
    %318 = vector.shape_cast %317 : vector<1x8x1024xf32> to vector<8x1024xf32>
    %319 = vector.extract_strided_slice %318 {offsets = [0, 512], sizes = [8, 512], strides = [1, 1]} : vector<8x1024xf32> to vector<8x512xf32>
    %320 = vector.extract_strided_slice %308 {offsets = [0, 512], sizes = [8, 512], strides = [1, 1]} : vector<8x1024xf32> to vector<8x512xf32>
    %321 = arith.addf %319, %320 : vector<8x512xf32>
    %322 = vector.extract_strided_slice %314 {offsets = [0, 0], sizes = [8, 128], strides = [1, 1]} : vector<8x512xf32> to vector<8x128xf32>
    %323 = vector.extract_strided_slice %321 {offsets = [0, 0], sizes = [8, 128], strides = [1, 1]} : vector<8x512xf32> to vector<8x128xf32>
    %324 = tpu.concatenate %322, %323 in 1 : vector<8x128xf32>, vector<8x128xf32> -> vector<8x256xf32>
    %325 = arith.negf %324 : vector<8x256xf32>
    %326 = math.exp %325 : vector<8x256xf32>
    %cst_87 = arith.constant 1.000000e+00 : f32
    %327 = vector.broadcast %cst_87 : f32 to vector<8x256xf32>
    %328 = arith.addf %327, %326 : vector<8x256xf32>
    %329 = arith.divf %327, %328 : vector<8x256xf32>
    %330 = vector.extract_strided_slice %314 {offsets = [0, 128], sizes = [8, 128], strides = [1, 1]} : vector<8x512xf32> to vector<8x128xf32>
    %331 = vector.extract_strided_slice %321 {offsets = [0, 128], sizes = [8, 128], strides = [1, 1]} : vector<8x512xf32> to vector<8x128xf32>
    %332 = tpu.concatenate %330, %331 in 1 : vector<8x128xf32>, vector<8x128xf32> -> vector<8x256xf32>
    %333 = arith.negf %332 : vector<8x256xf32>
    %334 = math.exp %333 : vector<8x256xf32>
    %cst_88 = arith.constant 1.000000e+00 : f32
    %335 = vector.broadcast %cst_88 : f32 to vector<8x256xf32>
    %336 = arith.addf %335, %334 : vector<8x256xf32>
    %337 = arith.divf %335, %336 : vector<8x256xf32>
    %338 = vector.extract_strided_slice %314 {offsets = [0, 256], sizes = [8, 128], strides = [1, 1]} : vector<8x512xf32> to vector<8x128xf32>
    %339 = vector.extract_strided_slice %321 {offsets = [0, 256], sizes = [8, 128], strides = [1, 1]} : vector<8x512xf32> to vector<8x128xf32>
    %340 = tpu.concatenate %338, %339 in 1 : vector<8x128xf32>, vector<8x128xf32> -> vector<8x256xf32>
    %341 = math.tanh %340 : vector<8x256xf32>
    %342 = vector.extract_strided_slice %314 {offsets = [0, 384], sizes = [8, 128], strides = [1, 1]} : vector<8x512xf32> to vector<8x128xf32>
    %343 = vector.extract_strided_slice %321 {offsets = [0, 384], sizes = [8, 128], strides = [1, 1]} : vector<8x512xf32> to vector<8x128xf32>
    %344 = tpu.concatenate %342, %343 in 1 : vector<8x128xf32>, vector<8x128xf32> -> vector<8x256xf32>
    %345 = arith.negf %344 : vector<8x256xf32>
    %346 = math.exp %345 : vector<8x256xf32>
    %cst_89 = arith.constant 1.000000e+00 : f32
    %347 = vector.broadcast %cst_89 : f32 to vector<8x256xf32>
    %348 = arith.addf %347, %346 : vector<8x256xf32>
    %349 = arith.divf %347, %348 : vector<8x256xf32>
    %350 = arith.mulf %337, %293 : vector<8x256xf32>
    %351 = arith.mulf %329, %341 : vector<8x256xf32>
    %352 = arith.addf %350, %351 : vector<8x256xf32>
    %353 = math.tanh %352 : vector<8x256xf32>
    %354 = arith.mulf %349, %353 : vector<8x256xf32>
    %355 = vector.extract_strided_slice %354 {offsets = [0, 0], sizes = [8, 128], strides = [1, 1]} : vector<8x256xf32> to vector<8x128xf32>
    %356 = arith.index_cast %c5_i32 : i32 to index
    %c0_90 = arith.constant 0 : index
    %c0_91 = arith.constant 0 : index
    %357 = vector.load %arg8[%356, %c0_90, %c0_91] : memref<8x8x128xf32, #tpu.memory_space<vmem>>, vector<1x8x128xf32>
    %358 = vector.shape_cast %357 : vector<1x8x128xf32> to vector<8x128xf32>
    %359 = vector.shape_cast %355 : vector<8x128xf32> to vector<1x8x128xf32>
    tpu.vector_store %arg8[%356, %c0_90, %c0_91], %359 {strides = array<i32>} : memref<8x8x128xf32, #tpu.memory_space<vmem>>, vector<1x8x128xf32>,
    %360 = vector.extract_strided_slice %354 {offsets = [0, 128], sizes = [8, 128], strides = [1, 1]} : vector<8x256xf32> to vector<8x128xf32>
    %c7_i32_92 = arith.constant 7 : i32
    %361 = arith.subi %c7_i32_92, %c5_i32 : i32
    %362 = arith.index_cast %361 : i32 to index
    %c0_93 = arith.constant 0 : index
    %c0_94 = arith.constant 0 : index
    %363 = vector.load %arg9[%362, %c0_93, %c0_94] : memref<8x8x128xf32, #tpu.memory_space<vmem>>, vector<1x8x128xf32>
    %364 = vector.shape_cast %363 : vector<1x8x128xf32> to vector<8x128xf32>
    %365 = vector.shape_cast %360 : vector<8x128xf32> to vector<1x8x128xf32>
    tpu.vector_store %arg9[%362, %c0_93, %c0_94], %365 {strides = array<i32>} : memref<8x8x128xf32, #tpu.memory_space<vmem>>, vector<1x8x128xf32>,
    %c6_i32 = arith.constant 6 : i32
    %366 = arith.truncf %354 : vector<8x256xf32> to vector<8x256xbf16>
    %cst_95 = arith.constant dense<0.000000e+00> : vector<8x1024xf32>
    %367 = tpu.matmul %366, %10, %cst_95 {dimension_numbers = #tpu.dot_dimension_numbers<[1], [0], [0], [1], [0, 0, 1, 1], [], []>} : vector<8x256xbf16>, vector<256x1024xbf16>, vector<8x1024xf32> -> vector<8x1024xf32>
    %368 = arith.index_cast %c6_i32 : i32 to index
    %c0_96 = arith.constant 0 : index
    %c0_97 = arith.constant 0 : index
    %369 = vector.load %arg7[%368, %c0_96, %c0_97] : memref<8x8x1024xf32, #tpu.memory_space<vmem>>, vector<1x8x1024xf32>
    %370 = vector.shape_cast %369 : vector<1x8x1024xf32> to vector<8x1024xf32>
    %371 = vector.extract_strided_slice %370 {offsets = [0, 0], sizes = [8, 512], strides = [1, 1]} : vector<8x1024xf32> to vector<8x512xf32>
    %372 = vector.extract_strided_slice %367 {offsets = [0, 0], sizes = [8, 512], strides = [1, 1]} : vector<8x1024xf32> to vector<8x512xf32>
    %373 = arith.addf %371, %372 : vector<8x512xf32>
    %c7_i32_98 = arith.constant 7 : i32
    %374 = arith.subi %c7_i32_98, %c6_i32 : i32
    %375 = arith.index_cast %374 : i32 to index
    %c0_99 = arith.constant 0 : index
    %c0_100 = arith.constant 0 : index
    %376 = vector.load %arg7[%375, %c0_99, %c0_100] : memref<8x8x1024xf32, #tpu.memory_space<vmem>>, vector<1x8x1024xf32>
    %377 = vector.shape_cast %376 : vector<1x8x1024xf32> to vector<8x1024xf32>
    %378 = vector.extract_strided_slice %377 {offsets = [0, 512], sizes = [8, 512], strides = [1, 1]} : vector<8x1024xf32> to vector<8x512xf32>
    %379 = vector.extract_strided_slice %367 {offsets = [0, 512], sizes = [8, 512], strides = [1, 1]} : vector<8x1024xf32> to vector<8x512xf32>
    %380 = arith.addf %378, %379 : vector<8x512xf32>
    %381 = vector.extract_strided_slice %373 {offsets = [0, 0], sizes = [8, 128], strides = [1, 1]} : vector<8x512xf32> to vector<8x128xf32>
    %382 = vector.extract_strided_slice %380 {offsets = [0, 0], sizes = [8, 128], strides = [1, 1]} : vector<8x512xf32> to vector<8x128xf32>
    %383 = tpu.concatenate %381, %382 in 1 : vector<8x128xf32>, vector<8x128xf32> -> vector<8x256xf32>
    %384 = arith.negf %383 : vector<8x256xf32>
    %385 = math.exp %384 : vector<8x256xf32>
    %cst_101 = arith.constant 1.000000e+00 : f32
    %386 = vector.broadcast %cst_101 : f32 to vector<8x256xf32>
    %387 = arith.addf %386, %385 : vector<8x256xf32>
    %388 = arith.divf %386, %387 : vector<8x256xf32>
    %389 = vector.extract_strided_slice %373 {offsets = [0, 128], sizes = [8, 128], strides = [1, 1]} : vector<8x512xf32> to vector<8x128xf32>
    %390 = vector.extract_strided_slice %380 {offsets = [0, 128], sizes = [8, 128], strides = [1, 1]} : vector<8x512xf32> to vector<8x128xf32>
    %391 = tpu.concatenate %389, %390 in 1 : vector<8x128xf32>, vector<8x128xf32> -> vector<8x256xf32>
    %392 = arith.negf %391 : vector<8x256xf32>
    %393 = math.exp %392 : vector<8x256xf32>
    %cst_102 = arith.constant 1.000000e+00 : f32
    %394 = vector.broadcast %cst_102 : f32 to vector<8x256xf32>
    %395 = arith.addf %394, %393 : vector<8x256xf32>
    %396 = arith.divf %394, %395 : vector<8x256xf32>
    %397 = vector.extract_strided_slice %373 {offsets = [0, 256], sizes = [8, 128], strides = [1, 1]} : vector<8x512xf32> to vector<8x128xf32>
    %398 = vector.extract_strided_slice %380 {offsets = [0, 256], sizes = [8, 128], strides = [1, 1]} : vector<8x512xf32> to vector<8x128xf32>
    %399 = tpu.concatenate %397, %398 in 1 : vector<8x128xf32>, vector<8x128xf32> -> vector<8x256xf32>
    %400 = math.tanh %399 : vector<8x256xf32>
    %401 = vector.extract_strided_slice %373 {offsets = [0, 384], sizes = [8, 128], strides = [1, 1]} : vector<8x512xf32> to vector<8x128xf32>
    %402 = vector.extract_strided_slice %380 {offsets = [0, 384], sizes = [8, 128], strides = [1, 1]} : vector<8x512xf32> to vector<8x128xf32>
    %403 = tpu.concatenate %401, %402 in 1 : vector<8x128xf32>, vector<8x128xf32> -> vector<8x256xf32>
    %404 = arith.negf %403 : vector<8x256xf32>
    %405 = math.exp %404 : vector<8x256xf32>
    %cst_103 = arith.constant 1.000000e+00 : f32
    %406 = vector.broadcast %cst_103 : f32 to vector<8x256xf32>
    %407 = arith.addf %406, %405 : vector<8x256xf32>
    %408 = arith.divf %406, %407 : vector<8x256xf32>
    %409 = arith.mulf %396, %352 : vector<8x256xf32>
    %410 = arith.mulf %388, %400 : vector<8x256xf32>
    %411 = arith.addf %409, %410 : vector<8x256xf32>
    %412 = math.tanh %411 : vector<8x256xf32>
    %413 = arith.mulf %408, %412 : vector<8x256xf32>
    %414 = vector.extract_strided_slice %413 {offsets = [0, 0], sizes = [8, 128], strides = [1, 1]} : vector<8x256xf32> to vector<8x128xf32>
    %415 = arith.index_cast %c6_i32 : i32 to index
    %c0_104 = arith.constant 0 : index
    %c0_105 = arith.constant 0 : index
    %416 = vector.load %arg8[%415, %c0_104, %c0_105] : memref<8x8x128xf32, #tpu.memory_space<vmem>>, vector<1x8x128xf32>
    %417 = vector.shape_cast %416 : vector<1x8x128xf32> to vector<8x128xf32>
    %418 = vector.shape_cast %414 : vector<8x128xf32> to vector<1x8x128xf32>
    tpu.vector_store %arg8[%415, %c0_104, %c0_105], %418 {strides = array<i32>} : memref<8x8x128xf32, #tpu.memory_space<vmem>>, vector<1x8x128xf32>,
    %419 = vector.extract_strided_slice %413 {offsets = [0, 128], sizes = [8, 128], strides = [1, 1]} : vector<8x256xf32> to vector<8x128xf32>
    %c7_i32_106 = arith.constant 7 : i32
    %420 = arith.subi %c7_i32_106, %c6_i32 : i32
    %421 = arith.index_cast %420 : i32 to index
    %c0_107 = arith.constant 0 : index
    %c0_108 = arith.constant 0 : index
    %422 = vector.load %arg9[%421, %c0_107, %c0_108] : memref<8x8x128xf32, #tpu.memory_space<vmem>>, vector<1x8x128xf32>
    %423 = vector.shape_cast %422 : vector<1x8x128xf32> to vector<8x128xf32>
    %424 = vector.shape_cast %419 : vector<8x128xf32> to vector<1x8x128xf32>
    tpu.vector_store %arg9[%421, %c0_107, %c0_108], %424 {strides = array<i32>} : memref<8x8x128xf32, #tpu.memory_space<vmem>>, vector<1x8x128xf32>,
    %c7_i32_109 = arith.constant 7 : i32
    %425 = arith.truncf %413 : vector<8x256xf32> to vector<8x256xbf16>
    %cst_110 = arith.constant dense<0.000000e+00> : vector<8x1024xf32>
    %426 = tpu.matmul %425, %10, %cst_110 {dimension_numbers = #tpu.dot_dimension_numbers<[1], [0], [0], [1], [0, 0, 1, 1], [], []>} : vector<8x256xbf16>, vector<256x1024xbf16>, vector<8x1024xf32> -> vector<8x1024xf32>
    %427 = arith.index_cast %c7_i32_109 : i32 to index
    %c0_111 = arith.constant 0 : index
    %c0_112 = arith.constant 0 : index
    %428 = vector.load %arg7[%427, %c0_111, %c0_112] : memref<8x8x1024xf32, #tpu.memory_space<vmem>>, vector<1x8x1024xf32>
    %429 = vector.shape_cast %428 : vector<1x8x1024xf32> to vector<8x1024xf32>
    %430 = vector.extract_strided_slice %429 {offsets = [0, 0], sizes = [8, 512], strides = [1, 1]} : vector<8x1024xf32> to vector<8x512xf32>
    %431 = vector.extract_strided_slice %426 {offsets = [0, 0], sizes = [8, 512], strides = [1, 1]} : vector<8x1024xf32> to vector<8x512xf32>
    %432 = arith.addf %430, %431 : vector<8x512xf32>
    %c7_i32_113 = arith.constant 7 : i32
    %433 = arith.subi %c7_i32_113, %c7_i32_109 : i32
    %434 = arith.index_cast %433 : i32 to index
    %c0_114 = arith.constant 0 : index
    %c0_115 = arith.constant 0 : index
    %435 = vector.load %arg7[%434, %c0_114, %c0_115] : memref<8x8x1024xf32, #tpu.memory_space<vmem>>, vector<1x8x1024xf32>
    %436 = vector.shape_cast %435 : vector<1x8x1024xf32> to vector<8x1024xf32>
    %437 = vector.extract_strided_slice %436 {offsets = [0, 512], sizes = [8, 512], strides = [1, 1]} : vector<8x1024xf32> to vector<8x512xf32>
    %438 = vector.extract_strided_slice %426 {offsets = [0, 512], sizes = [8, 512], strides = [1, 1]} : vector<8x1024xf32> to vector<8x512xf32>
    %439 = arith.addf %437, %438 : vector<8x512xf32>
    %440 = vector.extract_strided_slice %432 {offsets = [0, 0], sizes = [8, 128], strides = [1, 1]} : vector<8x512xf32> to vector<8x128xf32>
    %441 = vector.extract_strided_slice %439 {offsets = [0, 0], sizes = [8, 128], strides = [1, 1]} : vector<8x512xf32> to vector<8x128xf32>
    %442 = tpu.concatenate %440, %441 in 1 : vector<8x128xf32>, vector<8x128xf32> -> vector<8x256xf32>
    %443 = arith.negf %442 : vector<8x256xf32>
    %444 = math.exp %443 : vector<8x256xf32>
    %cst_116 = arith.constant 1.000000e+00 : f32
    %445 = vector.broadcast %cst_116 : f32 to vector<8x256xf32>
    %446 = arith.addf %445, %444 : vector<8x256xf32>
    %447 = arith.divf %445, %446 : vector<8x256xf32>
    %448 = vector.extract_strided_slice %432 {offsets = [0, 128], sizes = [8, 128], strides = [1, 1]} : vector<8x512xf32> to vector<8x128xf32>
    %449 = vector.extract_strided_slice %439 {offsets = [0, 128], sizes = [8, 128], strides = [1, 1]} : vector<8x512xf32> to vector<8x128xf32>
    %450 = tpu.concatenate %448, %449 in 1 : vector<8x128xf32>, vector<8x128xf32> -> vector<8x256xf32>
    %451 = arith.negf %450 : vector<8x256xf32>
    %452 = math.exp %451 : vector<8x256xf32>
    %cst_117 = arith.constant 1.000000e+00 : f32
    %453 = vector.broadcast %cst_117 : f32 to vector<8x256xf32>
    %454 = arith.addf %453, %452 : vector<8x256xf32>
    %455 = arith.divf %453, %454 : vector<8x256xf32>
    %456 = vector.extract_strided_slice %432 {offsets = [0, 256], sizes = [8, 128], strides = [1, 1]} : vector<8x512xf32> to vector<8x128xf32>
    %457 = vector.extract_strided_slice %439 {offsets = [0, 256], sizes = [8, 128], strides = [1, 1]} : vector<8x512xf32> to vector<8x128xf32>
    %458 = tpu.concatenate %456, %457 in 1 : vector<8x128xf32>, vector<8x128xf32> -> vector<8x256xf32>
    %459 = math.tanh %458 : vector<8x256xf32>
    %460 = vector.extract_strided_slice %432 {offsets = [0, 384], sizes = [8, 128], strides = [1, 1]} : vector<8x512xf32> to vector<8x128xf32>
    %461 = vector.extract_strided_slice %439 {offsets = [0, 384], sizes = [8, 128], strides = [1, 1]} : vector<8x512xf32> to vector<8x128xf32>
    %462 = tpu.concatenate %460, %461 in 1 : vector<8x128xf32>, vector<8x128xf32> -> vector<8x256xf32>
    %463 = arith.negf %462 : vector<8x256xf32>
    %464 = math.exp %463 : vector<8x256xf32>
    %cst_118 = arith.constant 1.000000e+00 : f32
    %465 = vector.broadcast %cst_118 : f32 to vector<8x256xf32>
    %466 = arith.addf %465, %464 : vector<8x256xf32>
    %467 = arith.divf %465, %466 : vector<8x256xf32>
    %468 = arith.mulf %455, %411 : vector<8x256xf32>
    %469 = arith.mulf %447, %459 : vector<8x256xf32>
    %470 = arith.addf %468, %469 : vector<8x256xf32>
    %471 = math.tanh %470 : vector<8x256xf32>
    %472 = arith.mulf %467, %471 : vector<8x256xf32>
    %473 = vector.extract_strided_slice %472 {offsets = [0, 0], sizes = [8, 128], strides = [1, 1]} : vector<8x256xf32> to vector<8x128xf32>
    %474 = arith.index_cast %c7_i32_109 : i32 to index
    %c0_119 = arith.constant 0 : index
    %c0_120 = arith.constant 0 : index
    %475 = vector.load %arg8[%474, %c0_119, %c0_120] : memref<8x8x128xf32, #tpu.memory_space<vmem>>, vector<1x8x128xf32>
    %476 = vector.shape_cast %475 : vector<1x8x128xf32> to vector<8x128xf32>
    %477 = vector.shape_cast %473 : vector<8x128xf32> to vector<1x8x128xf32>
    tpu.vector_store %arg8[%474, %c0_119, %c0_120], %477 {strides = array<i32>} : memref<8x8x128xf32, #tpu.memory_space<vmem>>, vector<1x8x128xf32>,
    %478 = vector.extract_strided_slice %472 {offsets = [0, 128], sizes = [8, 128], strides = [1, 1]} : vector<8x256xf32> to vector<8x128xf32>
    %c7_i32_121 = arith.constant 7 : i32
    %479 = arith.subi %c7_i32_121, %c7_i32_109 : i32
    %480 = arith.index_cast %479 : i32 to index
    %c0_122 = arith.constant 0 : index
    %c0_123 = arith.constant 0 : index
    %481 = vector.load %arg9[%480, %c0_122, %c0_123] : memref<8x8x128xf32, #tpu.memory_space<vmem>>, vector<1x8x128xf32>
    %482 = vector.shape_cast %481 : vector<1x8x128xf32> to vector<8x128xf32>
    %483 = vector.shape_cast %478 : vector<8x128xf32> to vector<1x8x128xf32>
    tpu.vector_store %arg9[%480, %c0_122, %c0_123], %483 {strides = array<i32>} : memref<8x8x128xf32, #tpu.memory_space<vmem>>, vector<1x8x128xf32>,
    %c8_i32 = arith.constant 8 : i32
    %c0_124 = arith.constant 0 : index
    %c0_125 = arith.constant 0 : index
    %c0_126 = arith.constant 0 : index
    %484 = vector.load %arg8[%c0_124, %c0_125, %c0_126] : memref<8x8x128xf32, #tpu.memory_space<vmem>>, vector<8x8x128xf32>
    %c0_127 = arith.constant 0 : index
    %c0_128 = arith.constant 0 : index
    %c0_129 = arith.constant 0 : index
    %485 = vector.load %arg9[%c0_127, %c0_128, %c0_129] : memref<8x8x128xf32, #tpu.memory_space<vmem>>, vector<8x8x128xf32>
    %486 = tpu.concatenate %484, %485 in 2 : vector<8x8x128xf32>, vector<8x8x128xf32> -> vector<8x8x256xf32>
    %487 = vector.shape_cast %486 : vector<8x8x256xf32> to vector<64x256xf32>
    %488 = arith.truncf %487 : vector<64x256xf32> to vector<64x256xbf16>
    %c0_130 = arith.constant 0 : index
    %c0_131 = arith.constant 0 : index
    %489 = vector.load %arg4[%c0_130, %c0_131] : memref<256x128xbf16, #tpu.memory_space<vmem>>, vector<256x128xbf16>
    %cst_132 = arith.constant dense<0.000000e+00> : vector<64x128xf32>
    %490 = tpu.matmul %488, %489, %cst_132 {dimension_numbers = #tpu.dot_dimension_numbers<[1], [0], [0], [1], [0, 0, 1, 1], [], []>} : vector<64x256xbf16>, vector<256x128xbf16>, vector<64x128xf32> -> vector<64x128xf32>
    %c0_133 = arith.constant 0 : index
    %c0_134 = arith.constant 0 : index
    %491 = vector.load %arg5[%c0_133, %c0_134] : memref<1x128xf32, #tpu.memory_space<vmem>>, vector<1x128xf32>
    %492 = vector.broadcast %491 : vector<1x128xf32> to vector<64x128xf32>
    %493 = arith.addf %490, %492 : vector<64x128xf32>
    %494 = vector.shape_cast %493 : vector<64x128xf32> to vector<8x8x128xf32>
    %c0_135 = arith.constant 0 : index
    %c0_136 = arith.constant 0 : index
    %c0_137 = arith.constant 0 : index
    %495 = vector.load %arg6[%c0_135, %c0_136, %c0_137] : memref<8x8x128xf32, #tpu.memory_space<vmem>>, vector<8x8x128xf32>
    tpu.vector_store %arg6[%c0_135, %c0_136, %c0_137], %494 {strides = array<i32>} : memref<8x8x128xf32, #tpu.memory_space<vmem>>, vector<8x8x128xf32>,
    return
  }
}

</mosaic_0001>

<llo_original>
// kernel: custom-call.20
$region0: #{custom-call.20}
  %s0 = inlined_call_operand.vmem [shape: s32[7,2,9], index: 0, kind: output, shape index: {}]

// kernel: run.4
$region0: #{run.4}
  #allocation0 [shape = 'u32[]', space=smem, size = 0x4, offset = 0x4, fixed_abs, tag = 'smem constant byte address 0x4 - core index']
  #allocation1 [shape = 'u32[144,128]{1,0:T(1,128)}', space=vmem, size = 0x12000, scoped, tag = 'internal scratch']
  %s0 = inlined_call_operand.vmem [shape: f32[2,8,64], index: 0, kind: input, shape index: {}]
  %s1 = inlined_call_operand.vmem [shape: f32[2,1,8], index: 1, kind: input, shape index: {}]
  %s2 = inlined_call_operand.hbm [shape: bf16[64,192], index: 2, kind: input, shape index: {}]
  %s3 = inlined_call_operand.hbm [shape: f32[1,192], index: 3, kind: input, shape index: {}]
  %s4 = inlined_call_operand.hbm [shape: bf16[4,16,64], index: 4, kind: input, shape index: {}]
  %s5 = inlined_call_operand.hbm [shape: f32[1,64], index: 5, kind: input, shape index: {}]
  %s6 = inlined_call_operand.hbm [shape: f32[1,64], index: 6, kind: input, shape index: {}]
  %s7 = inlined_call_operand.hbm [shape: f32[1,64], index: 7, kind: input, shape index: {}]
  %s8 = inlined_call_operand.hbm [shape: bf16[64,128], index: 8, kind: input, shape index: {}]
  %s9 = inlined_call_operand.hbm [shape: f32[1,128], index: 9, kind: input, shape index: {}]
  %s10 = inlined_call_operand.vmem [shape: bf16[128,64], index: 10, kind: input, shape index: {}]
  %s11 = inlined_call_operand.hbm [shape: f32[1,64], index: 11, kind: input, shape index: {}]
  %s12 = inlined_call_operand.hbm [shape: f32[1,64], index: 12, kind: input, shape index: {}]
  %s13 = inlined_call_operand.hbm [shape: f32[1,64], index: 13, kind: input, shape index: {}]
  %s14 = inlined_call_operand.vmem [shape: f32[2,8,64], index: 14, kind: output, shape index: {}]
  %s15 = sld [smem:[#allocation0]]
  $region133: #{run.4} parent=0
    _
  %s17 = ssub.s32 1, %s15
  %s18 = scalar_select 0, %s17, %s15
  $region1: #{run.4} parent=0
    #allocation2 [shape = 'u8[32768]{0}', space=vmem, size = 0x8000, scoped, tag = 'input window, operand 2, single buffered']
    #allocation3 [shape = 's32[2]{0}', space=sflag, size = 0x8, scoped, tag = 'scoped memory for run.4']
    #allocation4 [shape = 'u8[1024]{0}', space=vmem, size = 0x400, scoped, tag = 'input window, operand 3, single buffered']
    #allocation5 [shape = 's32[1]{0}', space=sflag, size = 0x4, scoped, tag = 'scoped memory for run.4']
    #allocation6 [shape = 'u8[16384]{0}', space=vmem, size = 0x4000, scoped, tag = 'input window, operand 4, single buffered']
    #allocation7 [shape = 'u8[512]{0}', space=vmem, size = 0x400, scoped, tag = 'input window, operand 5, single buffered']
    #allocation8 [shape = 's32[1]{0}', space=sflag, size = 0x4, scoped, tag = 'scoped memory for run.4']
    #allocation9 [shape = 'u8[512]{0}', space=vmem, size = 0x400, scoped, tag = 'input window, operand 6, single buffered']
    #allocation10 [shape = 'u8[512]{0}', space=vmem, size = 0x400, scoped, tag = 'input window, operand 7, single buffered']
    #allocation11 [shape = 's32[1]{0}', space=sflag, size = 0x4, scoped, tag = 'scoped memory for run.4']
    #allocation12 [shape = 'u8[16384]{0}', space=vmem, size = 0x4000, scoped, tag = 'input window, operand 8, single buffered']
    #allocation13 [shape = 'u8[512]{0}', space=vmem, size = 0x400, scoped, tag = 'input window, operand 9, single buffered']
    #allocation14 [shape = 's32[1]{0}', space=sflag, size = 0x4, scoped, tag = 'scoped memory for run.4']
    #allocation15 [shape = 'u8[512]{0}', space=vmem, size = 0x400, scoped, tag = 'input window, operand 11, single buffered']
    #allocation16 [shape = 'u8[512]{0}', space=vmem, size = 0x400, scoped, tag = 'input window, operand 12, single buffered']
    #allocation17 [shape = 's32[1]{0}', space=sflag, size = 0x4, scoped, tag = 'scoped memory for run.4']
    #allocation18 [shape = 'u8[512]{0}', space=vmem, size = 0x400, scoped, tag = 'input window, operand 13, single buffered']
    %19 = vsyncpa [#allocation3], 0
    %20 = vsyncpa [#allocation5], 0
    %21 = vsyncpa [#allocation8], 0
    %22 = vsyncpa [#allocation11], 0
    %23 = vsyncpa [#allocation14], 0
    %24 = vsyncpa [#allocation17], 0
    loop: start=0, step=1, limit=4
    $region2: #{run.4} parent=1 // loop_pre_header
      _
    $region3: #{run.4} parent=1 // loop_header
      %s26 = sphi 0, %s30
      %p27 = scmp.ge.s32.totalorder %s26, 4
      %s36 = sphi 0, %s38
      %s39 = sphi 0, %s36
      %s40 = sphi 0, %s39
      %s56 = sphi 0, %s40
      %s62 = sphi 0, %s64
      %s65 = sphi 0, %s62
      %s66 = sphi 0, %s65
      %s82 = sphi 0, %s66
      %s86 = sphi 0, %s86
      %s88 = sphi 0, %s86
      %s89 = sphi 0, %s88
      %s103 = sphi 0, %s89
      %s107 = sphi 0, %s107
      %s109 = sphi 0, %s107
      %s110 = sphi 0, %s109
      %s124 = sphi 0, %s110
      %s128 = sphi 0, %s128
      %s130 = sphi 0, %s128
      %s131 = sphi 0, %s130
      %s145 = sphi 0, %s131
      %s149 = sphi 0, %s149
      %s151 = sphi 0, %s149
      %s152 = sphi 0, %s151
      %s166 = sphi 0, %s152
      %s170 = sphi 0, %s170
      %s172 = sphi 0, %s170
      %s173 = sphi 0, %s172
      %s187 = sphi 0, %s173
      %s191 = sphi 0, %s191
      %s193 = sphi 0, %s191
      %s194 = sphi 0, %s193
      %s208 = sphi 0, %s194
      %s212 = sphi 0, %s212
      %s214 = sphi 0, %s212
      %s215 = sphi 0, %s214
      %s229 = sphi 0, %s215
      %s233 = sphi 0, %s233
      %s235 = sphi 0, %s233
      %s236 = sphi 0, %s235
      %s250 = sphi 0, %s236
      %s254 = sphi 0, %s254
      %s256 = sphi 0, %s254
      %s257 = sphi 0, %s256
      %s271 = sphi 0, %s257
      %s275 = sphi 0, %s275
      %s277 = sphi 0, %s275
      %s278 = sphi 0, %s277
      %s292 = sphi 0, %s278
      %s296 = sphi 0, %s296
      %s298 = sphi 0, %s296
      %s299 = sphi 0, %s298
      %s313 = sphi 0, %s299
      %s317 = sphi 0, %s317
      %s319 = sphi 0, %s317
      %s320 = sphi 0, %s319
      %s334 = sphi 0, %s320
      %s340 = sphi 0, %s342
      %s343 = sphi 0, %s340
      %s344 = sphi 0, %s343
      %s360 = sphi 0, %s344
    $region4: #{run.4} parent=1 // loop_header_branch
      %29 = sbr.rel (%p27) target = $region8
    $region5: #{run.4} parent=1 // loop_body
      %s31 = ssub.s32 %s26, 1
      %s32 = ssub.s32 %s26, 2
      %s33 = sadd.s32 %s26, 1
      %s34 = ssub.s32 %s26, %s33
      %p35 = scmp.eq.s32.totalorder %s34, 0
      %s37 = sadd.s32 %s36, 1
      %s38 = scalar_select %p35, %s36, %s37
      %p41 = pneg %p35
      %p42 = scmp.eq.s32.totalorder %s26, 1
      %p43 = por %p41, %p42
      %p44 = scmp.ne.s32.totalorder %s36, %s39
      %p45 = scmp.eq.s32.totalorder %s26, 0
      %p46 = por %p44, %p45
      %p47 = scmp.ne.s32.totalorder %s36, %s39
      %p48 = scmp.eq.s32.totalorder %s31, 1
      %p49 = por %p47, %p48
      %p50 = scmp.ne.s32.totalorder %s39, %s40
      %p51 = scmp.eq.s32.totalorder %s31, 0
      %p52 = por %p50, %p51
      %p53 = scmp.ne.s32.totalorder %s39, %s40
      %p54 = scmp.eq.s32.totalorder %s32, 1
      %p55 = por %p53, %p54
      %p57 = scmp.ne.s32.totalorder %s40, %s56
      %p58 = scmp.eq.s32.totalorder %s32, 0
      %p59 = por %p57, %p58
      %s60 = ssub.s32 %s26, %s33
      %p61 = scmp.eq.s32.totalorder %s60, 0
      %s63 = sadd.s32 %s62, 1
      %s64 = scalar_select %p61, %s62, %s63
      %p67 = pneg %p61
      %p68 = scmp.eq.s32.totalorder %s26, 1
      %p69 = por %p67, %p68
      %p70 = scmp.ne.s32.totalorder %s62, %s65
      %p71 = scmp.eq.s32.totalorder %s26, 0
      %p72 = por %p70, %p71
      %p73 = scmp.ne.s32.totalorder %s62, %s65
      %p74 = scmp.eq.s32.totalorder %s31, 1
      %p75 = por %p73, %p74
      %p76 = scmp.ne.s32.totalorder %s65, %s66
      %p77 = scmp.eq.s32.totalorder %s31, 0
      %p78 = por %p76, %p77
      %p79 = scmp.ne.s32.totalorder %s65, %s66
      %p80 = scmp.eq.s32.totalorder %s32, 1
      %p81 = por %p79, %p80
      %p83 = scmp.ne.s32.totalorder %s66, %s82
      %p84 = scmp.eq.s32.totalorder %s32, 0
      %p85 = por %p83, %p84
      %s87 = sadd.s32 %s86, 1
      %p90 = scmp.eq.s32.totalorder %s26, 1
      %p91 = scmp.ne.s32.totalorder %s86, %s88
      %p92 = scmp.eq.s32.totalorder %s26, 0
      %p93 = por %p91, %p92
      %p94 = scmp.ne.s32.totalorder %s86, %s88
      %p95 = scmp.eq.s32.totalorder %s31, 1
      %p96 = por %p94, %p95
      %p97 = scmp.ne.s32.totalorder %s88, %s89
      %p98 = scmp.eq.s32.totalorder %s31, 0
      %p99 = por %p97, %p98
      %p100 = scmp.ne.s32.totalorder %s88, %s89
      %p101 = scmp.eq.s32.totalorder %s32, 1
      %p102 = por %p100, %p101
      %p104 = scmp.ne.s32.totalorder %s89, %s103
      %p105 = scmp.eq.s32.totalorder %s32, 0
      %p106 = por %p104, %p105
      %s108 = sadd.s32 %s107, 1
      %p111 = scmp.eq.s32.totalorder %s26, 1
      %p112 = scmp.ne.s32.totalorder %s107, %s109
      %p113 = scmp.eq.s32.totalorder %s26, 0
      %p114 = por %p112, %p113
      %p115 = scmp.ne.s32.totalorder %s107, %s109
      %p116 = scmp.eq.s32.totalorder %s31, 1
      %p117 = por %p115, %p116
      %p118 = scmp.ne.s32.totalorder %s109, %s110
      %p119 = scmp.eq.s32.totalorder %s31, 0
      %p120 = por %p118, %p119
      %p121 = scmp.ne.s32.totalorder %s109, %s110
      %p122 = scmp.eq.s32.totalorder %s32, 1
      %p123 = por %p121, %p122
      %p125 = scmp.ne.s32.totalorder %s110, %s124
      %p126 = scmp.eq.s32.totalorder %s32, 0
      %p127 = por %p125, %p126
      %s129 = sadd.s32 %s128, 1
      %p132 = scmp.eq.s32.totalorder %s26, 1
      %p133 = scmp.ne.s32.totalorder %s128, %s130
      %p134 = scmp.eq.s32.totalorder %s26, 0
      %p135 = por %p133, %p134
      %p136 = scmp.ne.s32.totalorder %s128, %s130
      %p137 = scmp.eq.s32.totalorder %s31, 1
      %p138 = por %p136, %p137
      %p139 = scmp.ne.s32.totalorder %s130, %s131
      %p140 = scmp.eq.s32.totalorder %s31, 0
      %p141 = por %p139, %p140
      %p142 = scmp.ne.s32.totalorder %s130, %s131
      %p143 = scmp.eq.s32.totalorder %s32, 1
      %p144 = por %p142, %p143
      %p146 = scmp.ne.s32.totalorder %s131, %s145
      %p147 = scmp.eq.s32.totalorder %s32, 0
      %p148 = por %p146, %p147
      %s150 = sadd.s32 %s149, 1
      %p153 = scmp.eq.s32.totalorder %s26, 1
      %p154 = scmp.ne.s32.totalorder %s149, %s151
      %p155 = scmp.eq.s32.totalorder %s26, 0
      %p156 = por %p154, %p155
      %p157 = scmp.ne.s32.totalorder %s149, %s151
      %p158 = scmp.eq.s32.totalorder %s31, 1
      %p159 = por %p157, %p158
      %p160 = scmp.ne.s32.totalorder %s151, %s152
      %p161 = scmp.eq.s32.totalorder %s31, 0
      %p162 = por %p160, %p161
      %p163 = scmp.ne.s32.totalorder %s151, %s152
      %p164 = scmp.eq.s32.totalorder %s32, 1
      %p165 = por %p163, %p164
      %p167 = scmp.ne.s32.totalorder %s152, %s166
      %p168 = scmp.eq.s32.totalorder %s32, 0
      %p169 = por %p167, %p168
      %s171 = sadd.s32 %s170, 1
      %p174 = scmp.eq.s32.totalorder %s26, 1
      %p175 = scmp.ne.s32.totalorder %s170, %s172
      %p176 = scmp.eq.s32.totalorder %s26, 0
      %p177 = por %p175, %p176
      %p178 = scmp.ne.s32.totalorder %s170, %s172
      %p179 = scmp.eq.s32.totalorder %s31, 1
      %p180 = por %p178, %p179
      %p181 = scmp.ne.s32.totalorder %s172, %s173
      %p182 = scmp.eq.s32.totalorder %s31, 0
      %p183 = por %p181, %p182
      %p184 = scmp.ne.s32.totalorder %s172, %s173
      %p185 = scmp.eq.s32.totalorder %s32, 1
      %p186 = por %p184, %p185
      %p188 = scmp.ne.s32.totalorder %s173, %s187
      %p189 = scmp.eq.s32.totalorder %s32, 0
      %p190 = por %p188, %p189
      %s192 = sadd.s32 %s191, 1
      %p195 = scmp.eq.s32.totalorder %s26, 1
      %p196 = scmp.ne.s32.totalorder %s191, %s193
      %p197 = scmp.eq.s32.totalorder %s26, 0
      %p198 = por %p196, %p197
      %p199 = scmp.ne.s32.totalorder %s191, %s193
      %p200 = scmp.eq.s32.totalorder %s31, 1
      %p201 = por %p199, %p200
      %p202 = scmp.ne.s32.totalorder %s193, %s194
      %p203 = scmp.eq.s32.totalorder %s31, 0
      %p204 = por %p202, %p203
      %p205 = scmp.ne.s32.totalorder %s193, %s194
      %p206 = scmp.eq.s32.totalorder %s32, 1
      %p207 = por %p205, %p206
      %p209 = scmp.ne.s32.totalorder %s194, %s208
      %p210 = scmp.eq.s32.totalorder %s32, 0
      %p211 = por %p209, %p210
      %s213 = sadd.s32 %s212, 1
      %p216 = scmp.eq.s32.totalorder %s26, 1
      %p217 = scmp.ne.s32.totalorder %s212, %s214
      %p218 = scmp.eq.s32.totalorder %s26, 0
      %p219 = por %p217, %p218
      %p220 = scmp.ne.s32.totalorder %s212, %s214
      %p221 = scmp.eq.s32.totalorder %s31, 1
      %p222 = por %p220, %p221
      %p223 = scmp.ne.s32.totalorder %s214, %s215
      %p224 = scmp.eq.s32.totalorder %s31, 0
      %p225 = por %p223, %p224
      %p226 = scmp.ne.s32.totalorder %s214, %s215
      %p227 = scmp.eq.s32.totalorder %s32, 1
      %p228 = por %p226, %p227
      %p230 = scmp.ne.s32.totalorder %s215, %s229
      %p231 = scmp.eq.s32.totalorder %s32, 0
      %p232 = por %p230, %p231
      %s234 = sadd.s32 %s233, 1
      %p237 = scmp.eq.s32.totalorder %s26, 1
      %p238 = scmp.ne.s32.totalorder %s233, %s235
      %p239 = scmp.eq.s32.totalorder %s26, 0
      %p240 = por %p238, %p239
      %p241 = scmp.ne.s32.totalorder %s233, %s235
      %p242 = scmp.eq.s32.totalorder %s31, 1
      %p243 = por %p241, %p242
      %p244 = scmp.ne.s32.totalorder %s235, %s236
      %p245 = scmp.eq.s32.totalorder %s31, 0
      %p246 = por %p244, %p245
      %p247 = scmp.ne.s32.totalorder %s235, %s236
      %p248 = scmp.eq.s32.totalorder %s32, 1
      %p249 = por %p247, %p248
      %p251 = scmp.ne.s32.totalorder %s236, %s250
      %p252 = scmp.eq.s32.totalorder %s32, 0
      %p253 = por %p251, %p252
      %s255 = sadd.s32 %s254, 1
      %p258 = scmp.eq.s32.totalorder %s26, 1
      %p259 = scmp.ne.s32.totalorder %s254, %s256
      %p260 = scmp.eq.s32.totalorder %s26, 0
      %p261 = por %p259, %p260
      %p262 = scmp.ne.s32.totalorder %s254, %s256
      %p263 = scmp.eq.s32.totalorder %s31, 1
      %p264 = por %p262, %p263
      %p265 = scmp.ne.s32.totalorder %s256, %s257
      %p266 = scmp.eq.s32.totalorder %s31, 0
      %p267 = por %p265, %p266
      %p268 = scmp.ne.s32.totalorder %s256, %s257
      %p269 = scmp.eq.s32.totalorder %s32, 1
      %p270 = por %p268, %p269
      %p272 = scmp.ne.s32.totalorder %s257, %s271
      %p273 = scmp.eq.s32.totalorder %s32, 0
      %p274 = por %p272, %p273
      %s276 = sadd.s32 %s275, 1
      %p279 = scmp.eq.s32.totalorder %s26, 1
      %p280 = scmp.ne.s32.totalorder %s275, %s277
      %p281 = scmp.eq.s32.totalorder %s26, 0
      %p282 = por %p280, %p281
      %p283 = scmp.ne.s32.totalorder %s275, %s277
      %p284 = scmp.eq.s32.totalorder %s31, 1
      %p285 = por %p283, %p284
      %p286 = scmp.ne.s32.totalorder %s277, %s278
      %p287 = scmp.eq.s32.totalorder %s31, 0
      %p288 = por %p286, %p287
      %p289 = scmp.ne.s32.totalorder %s277, %s278
      %p290 = scmp.eq.s32.totalorder %s32, 1
      %p291 = por %p289, %p290
      %p293 = scmp.ne.s32.totalorder %s278, %s292
      %p294 = scmp.eq.s32.totalorder %s32, 0
      %p295 = por %p293, %p294
      %s297 = sadd.s32 %s296, 1
      %p300 = scmp.eq.s32.totalorder %s26, 1
      %p301 = scmp.ne.s32.totalorder %s296, %s298
      %p302 = scmp.eq.s32.totalorder %s26, 0
      %p303 = por %p301, %p302
      %p304 = scmp.ne.s32.totalorder %s296, %s298
      %p305 = scmp.eq.s32.totalorder %s31, 1
      %p306 = por %p304, %p305
      %p307 = scmp.ne.s32.totalorder %s298, %s299
      %p308 = scmp.eq.s32.totalorder %s31, 0
      %p309 = por %p307, %p308
      %p310 = scmp.ne.s32.totalorder %s298, %s299
      %p311 = scmp.eq.s32.totalorder %s32, 1
      %p312 = por %p310, %p311
      %p314 = scmp.ne.s32.totalorder %s299, %s313
      %p315 = scmp.eq.s32.totalorder %s32, 0
      %p316 = por %p314, %p315
      %s318 = sadd.s32 %s317, 1
      %p321 = scmp.eq.s32.totalorder %s26, 1
      %p322 = scmp.ne.s32.totalorder %s317, %s319
      %p323 = scmp.eq.s32.totalorder %s26, 0
      %p324 = por %p322, %p323
      %p325 = scmp.ne.s32.totalorder %s317, %s319
      %p326 = scmp.eq.s32.totalorder %s31, 1
      %p327 = por %p325, %p326
      %p328 = scmp.ne.s32.totalorder %s319, %s320
      %p329 = scmp.eq.s32.totalorder %s31, 0
      %p330 = por %p328, %p329
      %p331 = scmp.ne.s32.totalorder %s319, %s320
      %p332 = scmp.eq.s32.totalorder %s32, 1
      %p333 = por %p331, %p332
      %p335 = scmp.ne.s32.totalorder %s320, %s334
      %p336 = scmp.eq.s32.totalorder %s32, 0
      %p337 = por %p335, %p336
      %s338 = ssub.s32 %s26, %s33
      %p339 = scmp.eq.s32.totalorder %s338, 0
      %s341 = sadd.s32 %s340, 1
      %s342 = scalar_select %p339, %s340, %s341
      %p345 = pneg %p339
      %p346 = scmp.eq.s32.totalorder %s26, 1
      %p347 = por %p345, %p346
      %p348 = scmp.ne.s32.totalorder %s340, %s343
      %p349 = scmp.eq.s32.totalorder %s26, 0
      %p350 = por %p348, %p349
      %p351 = scmp.ne.s32.totalorder %s340, %s343
      %p352 = scmp.eq.s32.totalorder %s31, 1
      %p353 = por %p351, %p352
      %p354 = scmp.ne.s32.totalorder %s343, %s344
      %p355 = scmp.eq.s32.totalorder %s31, 0
      %p356 = por %p354, %p355
      %p357 = scmp.ne.s32.totalorder %s343, %s344
      %p358 = scmp.eq.s32.totalorder %s32, 1
      %p359 = por %p357, %p358
      %p361 = scmp.ne.s32.totalorder %s344, %s360
      %p362 = scmp.eq.s32.totalorder %s32, 0
      %p363 = por %p361, %p362
      %p364 = scmp.le.s32.totalorder 1, %s26
      %p365 = scmp.lt.s32.totalorder %s26, 3
      %p366 = pnand %p364, %p365
      %p367 = pneg %p366
      // Predicated region
      $region9: #{run.4} parent=5 // pred_check
        _
      $region10: #{run.4} parent=5 // pred_check_branch
        %369 = sbr.rel (%p366) target = $region12
      $region11: #{run.4} parent=5 // pred_region
        %s370 = ssub.s32 %s26, 1
        // Predicated region
        $region13: #{run.4} parent=11 // pred_check
          %p371 = pneg %p99
        $region14: #{run.4} parent=11 // pred_check_branch
          %373 = sbr.rel (%p371) target = $region16
        $region15: #{run.4} parent=11 // pred_region
          %s375 = ssub.s32 1024, 1024
          %376 = vsyncadd [#allocation3], %s375
          %s377 = sshll.u32 [#allocation2], 4
          %s378 = int_to_ptr.vmem [resolvable:$true] %s377
          %383 = dma.hbm_to_vmem [thread:$0]  %s2, 1024, %s378, [#allocation3], 128, 128, 8
        $region16: #{run.4} parent=11 // pred_fallthru
          _
        // Predicated region
        $region17: #{run.4} parent=11 // pred_check
          %p384 = pneg %p120
        $region18: #{run.4} parent=11 // pred_check_branch
          %386 = sbr.rel (%p384) target = $region20
        $region19: #{run.4} parent=11 // pred_region
          %s388 = ssub.s32 32, 32
          %389 = vsyncadd [#allocation5], %s388
          %s391 = sshll.u32 [#allocation4], 4
          %s392 = int_to_ptr.vmem [resolvable:$true] %s391
          %394 = dma.hbm_to_vmem [thread:$0]  %s3, 32, %s392, [#allocation5]
        $region20: #{run.4} parent=11 // pred_fallthru
          _
        // Predicated region
        $region21: #{run.4} parent=11 // pred_check
          %p395 = pneg %p141
        $region22: #{run.4} parent=11 // pred_check_branch
          %397 = sbr.rel (%p395) target = $region24
        $region23: #{run.4} parent=11 // pred_region
          %s399 = ssub.s32 512, 512
          %400 = vsyncadd [#allocation5], %s399
          %s401 = sshll.u32 [#allocation6], 4
          %s402 = int_to_ptr.vmem [resolvable:$true] %s401
          %407 = dma.hbm_to_vmem [thread:$0]  %s4, 512, %s402, [#allocation5], 64, 64, 4
        $region24: #{run.4} parent=11 // pred_fallthru
          _
        // Predicated region
        $region25: #{run.4} parent=11 // pred_check
          %p408 = pneg %p162
        $region26: #{run.4} parent=11 // pred_check_branch
          %410 = sbr.rel (%p408) target = $region28
        $region27: #{run.4} parent=11 // pred_region
          %s412 = ssub.s32 16, 16
          %413 = vsyncadd [#allocation8], %s412
          %s415 = sshll.u32 [#allocation7], 4
          %s416 = int_to_ptr.vmem [resolvable:$true] %s415
          %418 = dma.hbm_to_vmem [thread:$0]  %s5, 16, %s416, [#allocation8]
        $region28: #{run.4} parent=11 // pred_fallthru
          _
        // Predicated region
        $region29: #{run.4} parent=11 // pred_check
          %p419 = pneg %p183
        $region30: #{run.4} parent=11 // pred_check_branch
          %421 = sbr.rel (%p419) target = $region32
        $region31: #{run.4} parent=11 // pred_region
          %s423 = ssub.s32 16, 16
          %424 = vsyncadd [#allocation8], %s423
          %s426 = sshll.u32 [#allocation9], 4
          %s427 = int_to_ptr.vmem [resolvable:$true] %s426
          %429 = dma.hbm_to_vmem [thread:$0]  %s6, 16, %s427, [#allocation8]
        $region32: #{run.4} parent=11 // pred_fallthru
          _
        // Predicated region
        $region33: #{run.4} parent=11 // pred_check
          %p430 = pneg %p204
        $region34: #{run.4} parent=11 // pred_check_branch
          %432 = sbr.rel (%p430) target = $region36
        $region35: #{run.4} parent=11 // pred_region
          %s434 = ssub.s32 16, 16
          %435 = vsyncadd [#allocation11], %s434
          %s437 = sshll.u32 [#allocation10], 4
          %s438 = int_to_ptr.vmem [resolvable:$true] %s437
          %440 = dma.hbm_to_vmem [thread:$0]  %s7, 16, %s438, [#allocation11]
        $region36: #{run.4} parent=11 // pred_fallthru
          _
        // Predicated region
        $region37: #{run.4} parent=11 // pred_check
          %p441 = pneg %p225
        $region38: #{run.4} parent=11 // pred_check_branch
          %443 = sbr.rel (%p441) target = $region40
        $region39: #{run.4} parent=11 // pred_region
          %s445 = ssub.s32 512, 512
          %446 = vsyncadd [#allocation11], %s445
          %s447 = sshll.u32 [#allocation12], 4
          %s448 = int_to_ptr.vmem [resolvable:$true] %s447
          %453 = dma.hbm_to_vmem [thread:$0]  %s8, 512, %s448, [#allocation11], 64, 64, 4
        $region40: #{run.4} parent=11 // pred_fallthru
          _
        // Predicated region
        $region41: #{run.4} parent=11 // pred_check
          %p454 = pneg %p246
        $region42: #{run.4} parent=11 // pred_check_branch
          %456 = sbr.rel (%p454) target = $region44
        $region43: #{run.4} parent=11 // pred_region
          %s458 = ssub.s32 16, 16
          %459 = vsyncadd [#allocation14], %s458
          %s461 = sshll.u32 [#allocation13], 4
          %s462 = int_to_ptr.vmem [resolvable:$true] %s461
          %464 = dma.hbm_to_vmem [thread:$0]  %s9, 16, %s462, [#allocation14]
        $region44: #{run.4} parent=11 // pred_fallthru
          _
        // Predicated region
        $region45: #{run.4} parent=11 // pred_check
          %p465 = pneg %p267
        $region46: #{run.4} parent=11 // pred_check_branch
          %467 = sbr.rel (%p465) target = $region48
        $region47: #{run.4} parent=11 // pred_region
          _
        $region48: #{run.4} parent=11 // pred_fallthru
          _
        // Predicated region
        $region49: #{run.4} parent=11 // pred_check
          %p468 = pneg %p288
        $region50: #{run.4} parent=11 // pred_check_branch
          %470 = sbr.rel (%p468) target = $region52
        $region51: #{run.4} parent=11 // pred_region
          %s472 = ssub.s32 16, 16
          %473 = vsyncadd [#allocation14], %s472
          %s475 = sshll.u32 [#allocation15], 4
          %s476 = int_to_ptr.vmem [resolvable:$true] %s475
          %478 = dma.hbm_to_vmem [thread:$0]  %s11, 16, %s476, [#allocation14]
        $region52: #{run.4} parent=11 // pred_fallthru
          _
        // Predicated region
        $region53: #{run.4} parent=11 // pred_check
          %p479 = pneg %p309
        $region54: #{run.4} parent=11 // pred_check_branch
          %481 = sbr.rel (%p479) target = $region56
        $region55: #{run.4} parent=11 // pred_region
          %s483 = ssub.s32 16, 16
          %484 = vsyncadd [#allocation17], %s483
          %s486 = sshll.u32 [#allocation16], 4
          %s487 = int_to_ptr.vmem [resolvable:$true] %s486
          %489 = dma.hbm_to_vmem [thread:$0]  %s12, 16, %s487, [#allocation17]
        $region56: #{run.4} parent=11 // pred_fallthru
          _
        // Predicated region
        $region57: #{run.4} parent=11 // pred_check
          %p490 = pneg %p330
        $region58: #{run.4} parent=11 // pred_check_branch
          %492 = sbr.rel (%p490) target = $region60
        $region59: #{run.4} parent=11 // pred_region
          %s494 = ssub.s32 16, 16
          %495 = vsyncadd [#allocation17], %s494
          %s497 = sshll.u32 [#allocation18], 4
          %s498 = int_to_ptr.vmem [resolvable:$true] %s497
          %500 = dma.hbm_to_vmem [thread:$0]  %s13, 16, %s498, [#allocation17]
        $region60: #{run.4} parent=11 // pred_fallthru
          _
      $region12: #{run.4} parent=5 // pred_fallthru
        _
      %p501 = scmp.lt.s32.totalorder %s26, 2
      // Predicated region
      $region61: #{run.4} parent=5 // pred_check
        %p502 = pneg %p501
      $region62: #{run.4} parent=5 // pred_check_branch
        %504 = sbr.rel (%p502) target = $region64
      $region63: #{run.4} parent=5 // pred_region
        // Predicated region
        $region65: #{run.4} parent=63 // pred_check
          %p505 = pneg %p46
        $region66: #{run.4} parent=63 // pred_check_branch
          %507 = sbr.rel (%p505) target = $region68
        $region67: #{run.4} parent=63 // pred_region
          %p508 = scmp.lt.s32.totalorder %s26, 1
          %s509 = scalar_select %p508, %s26, 1
          %s510 = smul.addr %s509, 8
          %s511 = scalar_lea.vmem %s0, %s510
        $region68: #{run.4} parent=63 // pred_fallthru
          _
        // Predicated region
        $region69: #{run.4} parent=63 // pred_check
          %p512 = pneg %p72
        $region70: #{run.4} parent=63 // pred_check_branch
          %514 = sbr.rel (%p512) target = $region72
        $region71: #{run.4} parent=63 // pred_region
          %p515 = scmp.lt.s32.totalorder %s26, 1
          %s516 = scalar_select %p515, %s26, 1
          %s517 = scalar_lea.vmem %s1, %s516
        $region72: #{run.4} parent=63 // pred_fallthru
          _
      $region64: #{run.4} parent=5 // pred_fallthru
        _
      %p518 = scmp.le.s32.totalorder 1, %s26
      %p519 = scmp.lt.s32.totalorder %s26, 3
      %p520 = pnand %p518, %p519
      %p521 = pneg %p520
      // Predicated region
      $region73: #{run.4} parent=5 // pred_check
        _
      $region74: #{run.4} parent=5 // pred_check_branch
        %523 = sbr.rel (%p520) target = $region76
      $region75: #{run.4} parent=5 // pred_region
        %s524 = ssub.s32 %s26, 1
        // Predicated region
        $region77: #{run.4} parent=75 // pred_check
          %p525 = pneg %p99
        $region78: #{run.4} parent=75 // pred_check_branch
          %527 = sbr.rel (%p525) target = $region80
        $region79: #{run.4} parent=75 // pred_region
          %528 = dma.done [#allocation3], 1024
        $region80: #{run.4} parent=75 // pred_fallthru
          _
        // Predicated region
        $region81: #{run.4} parent=75 // pred_check
          %p529 = pneg %p120
        $region82: #{run.4} parent=75 // pred_check_branch
          %531 = sbr.rel (%p529) target = $region84
        $region83: #{run.4} parent=75 // pred_region
          %532 = dma.done [#allocation5], 32
        $region84: #{run.4} parent=75 // pred_fallthru
          _
        // Predicated region
        $region85: #{run.4} parent=75 // pred_check
          %p533 = pneg %p141
        $region86: #{run.4} parent=75 // pred_check_branch
          %535 = sbr.rel (%p533) target = $region88
        $region87: #{run.4} parent=75 // pred_region
          %536 = dma.done [#allocation5], 512
        $region88: #{run.4} parent=75 // pred_fallthru
          _
        // Predicated region
        $region89: #{run.4} parent=75 // pred_check
          %p537 = pneg %p162
        $region90: #{run.4} parent=75 // pred_check_branch
          %539 = sbr.rel (%p537) target = $region92
        $region91: #{run.4} parent=75 // pred_region
          %540 = dma.done [#allocation8], 16
        $region92: #{run.4} parent=75 // pred_fallthru
          _
        // Predicated region
        $region93: #{run.4} parent=75 // pred_check
          %p541 = pneg %p183
        $region94: #{run.4} parent=75 // pred_check_branch
          %543 = sbr.rel (%p541) target = $region96
        $region95: #{run.4} parent=75 // pred_region
          %544 = dma.done [#allocation8], 16
        $region96: #{run.4} parent=75 // pred_fallthru
          _
        // Predicated region
        $region97: #{run.4} parent=75 // pred_check
          %p545 = pneg %p204
        $region98: #{run.4} parent=75 // pred_check_branch
          %547 = sbr.rel (%p545) target = $region100
        $region99: #{run.4} parent=75 // pred_region
          %548 = dma.done [#allocation11], 16
        $region100: #{run.4} parent=75 // pred_fallthru
          _
        // Predicated region
        $region101: #{run.4} parent=75 // pred_check
          %p549 = pneg %p225
        $region102: #{run.4} parent=75 // pred_check_branch
          %551 = sbr.rel (%p549) target = $region104
        $region103: #{run.4} parent=75 // pred_region
          %552 = dma.done [#allocation11], 512
        $region104: #{run.4} parent=75 // pred_fallthru
          _
        // Predicated region
        $region105: #{run.4} parent=75 // pred_check
          %p553 = pneg %p246
        $region106: #{run.4} parent=75 // pred_check_branch
          %555 = sbr.rel (%p553) target = $region108
        $region107: #{run.4} parent=75 // pred_region
          %556 = dma.done [#allocation14], 16
        $region108: #{run.4} parent=75 // pred_fallthru
          _
        // Predicated region
        $region109: #{run.4} parent=75 // pred_check
          %p557 = pneg %p288
        $region110: #{run.4} parent=75 // pred_check_branch
          %559 = sbr.rel (%p557) target = $region112
        $region111: #{run.4} parent=75 // pred_region
          %560 = dma.done [#allocation14], 16
        $region112: #{run.4} parent=75 // pred_fallthru
          _
        // Predicated region
        $region113: #{run.4} parent=75 // pred_check
          %p561 = pneg %p309
        $region114: #{run.4} parent=75 // pred_check_branch
          %563 = sbr.rel (%p561) target = $region116
        $region115: #{run.4} parent=75 // pred_region
          %564 = dma.done [#allocation17], 16
        $region116: #{run.4} parent=75 // pred_fallthru
          _
        // Predicated region
        $region117: #{run.4} parent=75 // pred_check
          %p565 = pneg %p330
        $region118: #{run.4} parent=75 // pred_check_branch
          %567 = sbr.rel (%p565) target = $region120
        $region119: #{run.4} parent=75 // pred_region
          %568 = dma.done [#allocation17], 16
        $region120: #{run.4} parent=75 // pred_fallthru
          _
        %p569 = scmp.lt.s32.totalorder %s31, 1
        %s570 = scalar_select %p569, %s31, 1
        %s571 = smul.addr %s570, 8
        %s572 = scalar_lea.vmem %s0, %s571
        %p573 = pneg %p52
        %p574 = pneg %p49
        %p575 = scmp.lt.s32.totalorder %s31, 1
        %s576 = scalar_select %p575, %s31, 1
        %s577 = scalar_lea.vmem %s1, %s576
        %p578 = pneg %p78
        %p579 = pneg %p75
        %p580 = pneg %p99
        %p581 = pneg %p96
        %p582 = pneg %p120
        %p583 = pneg %p117
        %p584 = pneg %p141
        %p585 = pneg %p138
        %p586 = pneg %p162
        %p587 = pneg %p159
        %p588 = pneg %p183
        %p589 = pneg %p180
        %p590 = pneg %p204
        %p591 = pneg %p201
        %p592 = pneg %p225
        %p593 = pneg %p222
        %p594 = pneg %p246
        %p595 = pneg %p243
        %p596 = pneg %p267
        %p597 = pneg %p264
        %p598 = pneg %p288
        %p599 = pneg %p285
        %p600 = pneg %p309
        %p601 = pneg %p306
        %p602 = pneg %p330
        %p603 = pneg %p327
        %p604 = pneg %p356
        %p605 = pneg %p353
        %p606 = scmp.lt.s32.totalorder %s31, 1
        %s607 = scalar_select %p606, %s31, 1
        %s608 = smul.addr %s607, 8
        %s609 = scalar_lea.vmem %s14, %s608
        %p610 = scmp.lt.s32.totalorder %s31, 1
        %s611 = scalar_select %p610, %s31, 1
        %s612 = smul.addr %s611, 8
        %s613 = scalar_lea.vmem %s0, %s612
        %p614 = scmp.lt.s32.totalorder %s31, 1
        %s615 = scalar_select %p614, %s31, 1
        %s616 = scalar_lea.vmem %s1, %s615
        %p617 = scmp.lt.s32.totalorder %s31, 1
        %s618 = scalar_select %p617, %s31, 1
        %s619 = smul.addr %s618, 8
        %s620 = scalar_lea.vmem %s14, %s619
        %v622 = vld [vmem:[%s613] sm:$0xff]
        %v623 = vpack.c.bf16 %v622, %v622
        %v624 = vld [vmem:[#allocation2] sm:$0xff]
        %v625 = vld [vmem:[#allocation2 + $0x8] sm:$0xff]
        %v626 = vld [vmem:[#allocation2 + $0x10] sm:$0xff]
        %v627 = vld [vmem:[#allocation2 + $0x18] sm:$0xff]
        %v628 = vld [vmem:[#allocation2 + $0x20] sm:$0xff]
        %v629 = vld [vmem:[#allocation2 + $0x28] sm:$0xff]
        %v630 = vld [vmem:[#allocation2 + $0x30] sm:$0xff]
        %v631 = vld [vmem:[#allocation2 + $0x38] sm:$0xff]
        %v632 = vld [vmem:[#allocation4] sm:$0x3]
        %v634 = vlaneseq
        %v635 = vshrl.u32 %v634, 7
        %v636 = vsub.s32 0, %v635
        %v637 = vrot.slane %v632, %v636
        %v638 = vlaneseq
        %v639 = vshrl.u32 %v638, 7
        %v640 = vsub.s32 1, %v639
        %v641 = vrot.slane %v632, %v640
        %v652 = vunpack.c.l.b16 %v624
        %v653 = vunpack.c.h.b16 %v624
        %v654 = vunpack.c.l.b16 %v625
        %v655 = vunpack.c.h.b16 %v625
        %v656 = vunpack.c.l.b16 %v626
        %v657 = vunpack.c.h.b16 %v626
        %v658 = vunpack.c.l.b16 %v627
        %v659 = vunpack.c.h.b16 %v627
        %v660 = vunpack.c.l.b16 %v628
        %v661 = vunpack.c.h.b16 %v628
        %v662 = vunpack.c.l.b16 %v629
        %v663 = vunpack.c.h.b16 %v629
        %v664 = vunpack.c.l.b16 %v630
        %v665 = vunpack.c.h.b16 %v630
        %v666 = vunpack.c.l.b16 %v631
        %v667 = vunpack.c.h.b16 %v631
        %v668 = vpack.c.b16 %v654, %v652
        %v669 = vpack.c.b16 %v655, %v653
        %v670 = vpack.c.b16 %v658, %v656
        %v671 = vpack.c.b16 %v659, %v657
        %v672 = vpack.c.b16 %v662, %v660
        %v673 = vpack.c.b16 %v663, %v661
        %v674 = vpack.c.b16 %v666, %v664
        %v675 = vpack.c.b16 %v667, %v665
        %vm684 = vcmask 523264
        %v686 = vsel %vm684, %v623, 0
        %688 = vmatprep.subr.bf16.mxu0 %v669
        %689 = vmatpush1.bf16.msra.mxu0 %v668
        %690 = vmatprep.subr.bf16.mxu0 %v671
        %691 = vmatpush1.bf16.msra.mxu0 %v670
        %692 = vmatprep.subr.bf16.mxu0 %v673
        %693 = vmatpush1.bf16.msra.mxu0 %v672
        %694 = vmatprep.subr.bf16.mxu0 %v675
        %695 = vmatpush1.bf16.msra.mxu0 %v674
        %696 = vmatprep.subr.bf16.mxu0 0
        %697 = vmatpush1.bf16.msra.mxu0 0
        %698 = vmatprep.subr.bf16.mxu0 0
        %699 = vmatpush1.bf16.msra.mxu0 0
        %700 = vmatprep.subr.bf16.mxu0 0
        %701 = vmatpush1.bf16.msra.mxu0 0
        %702 = vmatprep.subr.bf16.mxu0 0
        %703 = vmatpush1.bf16.msra.mxu0 0
        %704 = vmatprep.subr.bf16.mxu0 0
        %705 = vmatpush1.bf16.msra.mxu0 0
        %706 = vmatprep.subr.bf16.mxu0 0
        %707 = vmatpush1.bf16.msra.mxu0 0
        %708 = vmatprep.subr.bf16.mxu0 0
        %709 = vmatpush1.bf16.msra.mxu0 0
        %710 = vmatprep.subr.bf16.mxu0 0
        %711 = vmatpush1.bf16.msra.mxu0 0
        %712 = vmatprep.subr.bf16.mxu0 0
        %713 = vmatpush1.bf16.msra.mxu0 0
        %714 = vmatprep.subr.bf16.mxu0 0
        %715 = vmatpush1.bf16.msra.mxu0 0
        %716 = vmatprep.subr.bf16.mxu0 0
        %717 = vmatpush1.bf16.msra.mxu0 0
        %718 = vmatprep.subr.bf16.mxu0 0
        %719 = vmatpush1.bf16.msra.mxu0 0
        %720 = vmatprep.mubr.bf16.mxu0 0
        %721 = vmatmul.mubr.bf16.gmra.mrb[0].mxu0 %v686
        %v722 = vpop.f32.mrb[0].mxu0
        %v723 = vadd.f32 %v637, %v722
        %v724 = vpop.f32.mrb[0].mxu0
        %v725 = vadd.f32 %v641, %v724
        %v726 = vpop.f32.mrb[0].mxu0
        %v727 = vpop.f32.mrb[0].mxu0
        %728 = vdwg.mxu0
        %729 = vxpose.xlu0.b32.start [1/16] %v723, 128
        %730 = vxpose.xlu0.b32.cont [2/16] 0.0, 128
        %731 = vxpose.xlu0.b32.cont [3/16] 0.0, 128
        %732 = vxpose.xlu0.b32.cont [4/16] 0.0, 128
        %733 = vxpose.xlu0.b32.cont [5/16] 0.0, 128
        %734 = vxpose.xlu0.b32.cont [6/16] 0.0, 128
        %735 = vxpose.xlu0.b32.cont [7/16] 0.0, 128
        %736 = vxpose.xlu0.b32.cont [8/16] 0.0, 128
        %737 = vxpose.xlu0.b32.cont [9/16] 0.0, 128
        %738 = vxpose.xlu0.b32.cont [10/16] 0.0, 128
        %739 = vxpose.xlu0.b32.cont [11/16] 0.0, 128
        %740 = vxpose.xlu0.b32.cont [12/16] 0.0, 128
        %741 = vxpose.xlu0.b32.cont [13/16] 0.0, 128
        %742 = vxpose.xlu0.b32.cont [14/16] 0.0, 128
        %743 = vxpose.xlu0.b32.cont [15/16] 0.0, 128
        %744 = vxpose.xlu0.b32.end [16/16] 0.0, 128
        %v745 = vpop.trf.xlu0
        %v746 = vpop.trf.xlu0
        %v747 = vpop.trf.xlu0
        %v748 = vpop.trf.xlu0
        %v749 = vpop.trf.xlu0
        %v750 = vpop.trf.xlu0
        %v751 = vpop.trf.xlu0
        %v752 = vpop.trf.xlu0
        %v753 = vpop.trf.xlu0
        %v754 = vpop.trf.xlu0
        %v755 = vpop.trf.xlu0
        %v756 = vpop.trf.xlu0
        %v757 = vpop.trf.xlu0
        %v758 = vpop.trf.xlu0
        %v759 = vpop.trf.xlu0
        %v760 = vpop.trf.xlu0
        %761 = vxpose.xlu0.b32.start [1/16] %v725, 128
        %762 = vxpose.xlu0.b32.cont [2/16] 0.0, 128
        %763 = vxpose.xlu0.b32.cont [3/16] 0.0, 128
        %764 = vxpose.xlu0.b32.cont [4/16] 0.0, 128
        %765 = vxpose.xlu0.b32.cont [5/16] 0.0, 128
        %766 = vxpose.xlu0.b32.cont [6/16] 0.0, 128
        %767 = vxpose.xlu0.b32.cont [7/16] 0.0, 128
        %768 = vxpose.xlu0.b32.cont [8/16] 0.0, 128
        %769 = vxpose.xlu0.b32.cont [9/16] 0.0, 128
        %770 = vxpose.xlu0.b32.cont [10/16] 0.0, 128
        %771 = vxpose.xlu0.b32.cont [11/16] 0.0, 128
        %772 = vxpose.xlu0.b32.cont [12/16] 0.0, 128
        %773 = vxpose.xlu0.b32.cont [13/16] 0.0, 128
        %774 = vxpose.xlu0.b32.cont [14/16] 0.0, 128
        %775 = vxpose.xlu0.b32.cont [15/16] 0.0, 128
        %776 = vxpose.xlu0.b32.end [16/16] 0.0, 128
        %v777 = vpop.trf.xlu0
        %v778 = vpop.trf.xlu0
        %v779 = vpop.trf.xlu0
        %v780 = vpop.trf.xlu0
        %v781 = vpop.trf.xlu0
        %v782 = vpop.trf.xlu0
        %v783 = vpop.trf.xlu0
        %v784 = vpop.trf.xlu0
        %v785 = vpop.trf.xlu0
        %v786 = vpop.trf.xlu0
        %v787 = vpop.trf.xlu0
        %v788 = vpop.trf.xlu0
        %v789 = vpop.trf.xlu0
        %v790 = vpop.trf.xlu0
        %v791 = vpop.trf.xlu0
        %v792 = vpop.trf.xlu0
        %793 = vxpose.xlu0.b32.start [1/16] %v745, 128
        %794 = vxpose.xlu0.b32.cont [2/16] %v746, 128
        %795 = vxpose.xlu0.b32.cont [3/16] 0.0, 128
        %796 = vxpose.xlu0.b32.cont [4/16] 0.0, 128
        %797 = vxpose.xlu0.b32.cont [5/16] 0.0, 128
        %798 = vxpose.xlu0.b32.cont [6/16] 0.0, 128
        %799 = vxpose.xlu0.b32.cont [7/16] 0.0, 128
        %800 = vxpose.xlu0.b32.cont [8/16] 0.0, 128
        %801 = vxpose.xlu0.b32.cont [9/16] 0.0, 128
        %802 = vxpose.xlu0.b32.cont [10/16] 0.0, 128
        %803 = vxpose.xlu0.b32.cont [11/16] 0.0, 128
        %804 = vxpose.xlu0.b32.cont [12/16] 0.0, 128
        %805 = vxpose.xlu0.b32.cont [13/16] 0.0, 128
        %806 = vxpose.xlu0.b32.cont [14/16] 0.0, 128
        %807 = vxpose.xlu0.b32.cont [15/16] 0.0, 128
        %808 = vxpose.xlu0.b32.end [16/16] 0.0, 128
        %v809 = vpop.trf.xlu0
        %v810 = vpop.trf.xlu0
        %v811 = vpop.trf.xlu0
        %v812 = vpop.trf.xlu0
        %v813 = vpop.trf.xlu0
        %v814 = vpop.trf.xlu0
        %v815 = vpop.trf.xlu0
        %v816 = vpop.trf.xlu0
        %v817 = vpop.trf.xlu0
        %v818 = vpop.trf.xlu0
        %v819 = vpop.trf.xlu0
        %v820 = vpop.trf.xlu0
        %v821 = vpop.trf.xlu0
        %v822 = vpop.trf.xlu0
        %v823 = vpop.trf.xlu0
        %v824 = vpop.trf.xlu0
        %825 = vxpose.xlu0.b32.start [1/16] %v747, 128
        %826 = vxpose.xlu0.b32.cont [2/16] %v748, 128
        %827 = vxpose.xlu0.b32.cont [3/16] 0.0, 128
        %828 = vxpose.xlu0.b32.cont [4/16] 0.0, 128
        %829 = vxpose.xlu0.b32.cont [5/16] 0.0, 128
        %830 = vxpose.xlu0.b32.cont [6/16] 0.0, 128
        %831 = vxpose.xlu0.b32.cont [7/16] 0.0, 128
        %832 = vxpose.xlu0.b32.cont [8/16] 0.0, 128
        %833 = vxpose.xlu0.b32.cont [9/16] 0.0, 128
        %834 = vxpose.xlu0.b32.cont [10/16] 0.0, 128
        %835 = vxpose.xlu0.b32.cont [11/16] 0.0, 128
        %836 = vxpose.xlu0.b32.cont [12/16] 0.0, 128
        %837 = vxpose.xlu0.b32.cont [13/16] 0.0, 128
        %838 = vxpose.xlu0.b32.cont [14/16] 0.0, 128
        %839 = vxpose.xlu0.b32.cont [15/16] 0.0, 128
        %840 = vxpose.xlu0.b32.end [16/16] 0.0, 128
        %v841 = vpop.trf.xlu0
        %v842 = vpop.trf.xlu0
        %v843 = vpop.trf.xlu0
        %v844 = vpop.trf.xlu0
        %v845 = vpop.trf.xlu0
        %v846 = vpop.trf.xlu0
        %v847 = vpop.trf.xlu0
        %v848 = vpop.trf.xlu0
        %v849 = vpop.trf.xlu0
        %v850 = vpop.trf.xlu0
        %v851 = vpop.trf.xlu0
        %v852 = vpop.trf.xlu0
        %v853 = vpop.trf.xlu0
        %v854 = vpop.trf.xlu0
        %v855 = vpop.trf.xlu0
        %v856 = vpop.trf.xlu0
        %857 = vxpose.xlu0.b32.start [1/16] %v749, 128
        %858 = vxpose.xlu0.b32.cont [2/16] %v750, 128
        %859 = vxpose.xlu0.b32.cont [3/16] 0.0, 128
        %860 = vxpose.xlu0.b32.cont [4/16] 0.0, 128
        %861 = vxpose.xlu0.b32.cont [5/16] 0.0, 128
        %862 = vxpose.xlu0.b32.cont [6/16] 0.0, 128
        %863 = vxpose.xlu0.b32.cont [7/16] 0.0, 128
        %864 = vxpose.xlu0.b32.cont [8/16] 0.0, 128
        %865 = vxpose.xlu0.b32.cont [9/16] 0.0, 128
        %866 = vxpose.xlu0.b32.cont [10/16] 0.0, 128
        %867 = vxpose.xlu0.b32.cont [11/16] 0.0, 128
        %868 = vxpose.xlu0.b32.cont [12/16] 0.0, 128
        %869 = vxpose.xlu0.b32.cont [13/16] 0.0, 128
        %870 = vxpose.xlu0.b32.cont [14/16] 0.0, 128
        %871 = vxpose.xlu0.b32.cont [15/16] 0.0, 128
        %872 = vxpose.xlu0.b32.end [16/16] 0.0, 128
        %v873 = vpop.trf.xlu0
        %v874 = vpop.trf.xlu0
        %v875 = vpop.trf.xlu0
        %v876 = vpop.trf.xlu0
        %v877 = vpop.trf.xlu0
        %v878 = vpop.trf.xlu0
        %v879 = vpop.trf.xlu0
        %v880 = vpop.trf.xlu0
        %v881 = vpop.trf.xlu0
        %v882 = vpop.trf.xlu0
        %v883 = vpop.trf.xlu0
        %v884 = vpop.trf.xlu0
        %v885 = vpop.trf.xlu0
        %v886 = vpop.trf.xlu0
        %v887 = vpop.trf.xlu0
        %v888 = vpop.trf.xlu0
        %889 = vxpose.xlu0.b32.start [1/16] %v751, 128
        %890 = vxpose.xlu0.b32.cont [2/16] %v752, 128
        %891 = vxpose.xlu0.b32.cont [3/16] 0.0, 128
        %892 = vxpose.xlu0.b32.cont [4/16] 0.0, 128
        %893 = vxpose.xlu0.b32.cont [5/16] 0.0, 128
        %894 = vxpose.xlu0.b32.cont [6/16] 0.0, 128
        %895 = vxpose.xlu0.b32.cont [7/16] 0.0, 128
        %896 = vxpose.xlu0.b32.cont [8/16] 0.0, 128
        %897 = vxpose.xlu0.b32.cont [9/16] 0.0, 128
        %898 = vxpose.xlu0.b32.cont [10/16] 0.0, 128
        %899 = vxpose.xlu0.b32.cont [11/16] 0.0, 128
        %900 = vxpose.xlu0.b32.cont [12/16] 0.0, 128
        %901 = vxpose.xlu0.b32.cont [13/16] 0.0, 128
        %902 = vxpose.xlu0.b32.cont [14/16] 0.0, 128
        %903 = vxpose.xlu0.b32.cont [15/16] 0.0, 128
        %904 = vxpose.xlu0.b32.end [16/16] 0.0, 128
        %v905 = vpop.trf.xlu0
        %v906 = vpop.trf.xlu0
        %v907 = vpop.trf.xlu0
        %v908 = vpop.trf.xlu0
        %v909 = vpop.trf.xlu0
        %v910 = vpop.trf.xlu0
        %v911 = vpop.trf.xlu0
        %v912 = vpop.trf.xlu0
        %v913 = vpop.trf.xlu0
        %v914 = vpop.trf.xlu0
        %v915 = vpop.trf.xlu0
        %v916 = vpop.trf.xlu0
        %v917 = vpop.trf.xlu0
        %v918 = vpop.trf.xlu0
        %v919 = vpop.trf.xlu0
        %v920 = vpop.trf.xlu0
        %v921 = vpack.c.bf16 %v809, %v809
        %v922 = vpack.c.bf16 %v841, %v841
        %v923 = vpack.c.bf16 %v873, %v873
        %v924 = vpack.c.bf16 %v905, %v905
        %v925 = vpack.c.bf16 %v754, %v753
        %v926 = vpack.c.bf16 %v756, %v755
        %v927 = vpack.c.bf16 %v758, %v757
        %v928 = vpack.c.bf16 %v760, %v759
        %v929 = vpack.c.bf16 %v778, %v777
        %v930 = vpack.c.bf16 %v780, %v779
        %v931 = vpack.c.bf16 %v782, %v781
        %v932 = vpack.c.bf16 %v784, %v783
        %vm933 = vcmask 130048
        %v935 = vsel %vm933, %v921, 0
        %937 = vmatprep.subr.bf16.mxu0 0
        %938 = vmatpush1.bf16.msra.mxu0 %v925
        %939 = vmatprep.subr.bf16.mxu0 0
        %940 = vmatpush1.bf16.msra.mxu0 0
        %941 = vmatprep.subr.bf16.mxu0 0
        %942 = vmatpush1.bf16.msra.mxu0 0
        %943 = vmatprep.subr.bf16.mxu0 0
        %944 = vmatpush1.bf16.msra.mxu0 0
        %945 = vmatprep.subr.bf16.mxu0 0
        %946 = vmatpush1.bf16.msra.mxu0 0
        %947 = vmatprep.subr.bf16.mxu0 0
        %948 = vmatpush1.bf16.msra.mxu0 0
        %949 = vmatprep.subr.bf16.mxu0 0
        %950 = vmatpush1.bf16.msra.mxu0 0
        %951 = vmatprep.subr.bf16.mxu0 0
        %952 = vmatpush1.bf16.msra.mxu0 0
        %953 = vmatprep.subr.bf16.mxu0 0
        %954 = vmatpush1.bf16.msra.mxu0 0
        %955 = vmatprep.subr.bf16.mxu0 0
        %956 = vmatpush1.bf16.msra.mxu0 0
        %957 = vmatprep.subr.bf16.mxu0 0
        %958 = vmatpush1.bf16.msra.mxu0 0
        %959 = vmatprep.subr.bf16.mxu0 0
        %960 = vmatpush1.bf16.msra.mxu0 0
        %961 = vmatprep.subr.bf16.mxu0 0
        %962 = vmatpush1.bf16.msra.mxu0 0
        %963 = vmatprep.subr.bf16.mxu0 0
        %964 = vmatpush1.bf16.msra.mxu0 0
        %965 = vmatprep.subr.bf16.mxu0 0
        %966 = vmatpush1.bf16.msra.mxu0 0
        %967 = vmatprep.subr.bf16.mxu0 0
        %968 = vmatpush1.bf16.msra.mxu0 0
        %969 = vmatprep.mubr.bf16.mxu0 0
        %970 = vmatmul.mubr.bf16.gmra.mrb[0].mxu0 %v935
        %v971 = vpop.f32.mrb[0].mxu0
        %v972 = vadd.f32 0.0, %v971
        %v973 = vpop.f32.mrb[0].mxu0
        %v974 = vpop.f32.mrb[0].mxu0
        %v975 = vpop.f32.mrb[0].mxu0
        %976 = vdwg.mxu0
        %v978 = vsel %vm933, %v922, 0
        %980 = vmatprep.subr.bf16.mxu0 0
        %981 = vmatpush1.bf16.msra.mxu0 %v926
        %982 = vmatprep.subr.bf16.mxu0 0
        %983 = vmatpush1.bf16.msra.mxu0 0
        %984 = vmatprep.subr.bf16.mxu0 0
        %985 = vmatpush1.bf16.msra.mxu0 0
        %986 = vmatprep.subr.bf16.mxu0 0
        %987 = vmatpush1.bf16.msra.mxu0 0
        %988 = vmatprep.subr.bf16.mxu0 0
        %989 = vmatpush1.bf16.msra.mxu0 0
        %990 = vmatprep.subr.bf16.mxu0 0
        %991 = vmatpush1.bf16.msra.mxu0 0
        %992 = vmatprep.subr.bf16.mxu0 0
        %993 = vmatpush1.bf16.msra.mxu0 0
        %994 = vmatprep.subr.bf16.mxu0 0
        %995 = vmatpush1.bf16.msra.mxu0 0
        %996 = vmatprep.subr.bf16.mxu0 0
        %997 = vmatpush1.bf16.msra.mxu0 0
        %998 = vmatprep.subr.bf16.mxu0 0
        %999 = vmatpush1.bf16.msra.mxu0 0
        %1000 = vmatprep.subr.bf16.mxu0 0
        %1001 = vmatpush1.bf16.msra.mxu0 0
        %1002 = vmatprep.subr.bf16.mxu0 0
        %1003 = vmatpush1.bf16.msra.mxu0 0
        %1004 = vmatprep.subr.bf16.mxu0 0
        %1005 = vmatpush1.bf16.msra.mxu0 0
        %1006 = vmatprep.subr.bf16.mxu0 0
        %1007 = vmatpush1.bf16.msra.mxu0 0
        %1008 = vmatprep.subr.bf16.mxu0 0
        %1009 = vmatpush1.bf16.msra.mxu0 0
        %1010 = vmatprep.subr.bf16.mxu0 0
        %1011 = vmatpush1.bf16.msra.mxu0 0
        %1012 = vmatprep.mubr.bf16.mxu0 0
        %1013 = vmatmul.mubr.bf16.gmra.mrb[0].mxu0 %v978
        %v1014 = vpop.f32.mrb[0].mxu0
        %v1015 = vadd.f32 0.0, %v1014
        %v1016 = vpop.f32.mrb[0].mxu0
        %v1017 = vpop.f32.mrb[0].mxu0
        %v1018 = vpop.f32.mrb[0].mxu0
        %1019 = vdwg.mxu0
        %v1021 = vsel %vm933, %v923, 0
        %1023 = vmatprep.subr.bf16.mxu0 0
        %1024 = vmatpush1.bf16.msra.mxu0 %v927
        %1025 = vmatprep.subr.bf16.mxu0 0
        %1026 = vmatpush1.bf16.msra.mxu0 0
        %1027 = vmatprep.subr.bf16.mxu0 0
        %1028 = vmatpush1.bf16.msra.mxu0 0
        %1029 = vmatprep.subr.bf16.mxu0 0
        %1030 = vmatpush1.bf16.msra.mxu0 0
        %1031 = vmatprep.subr.bf16.mxu0 0
        %1032 = vmatpush1.bf16.msra.mxu0 0
        %1033 = vmatprep.subr.bf16.mxu0 0
        %1034 = vmatpush1.bf16.msra.mxu0 0
        %1035 = vmatprep.subr.bf16.mxu0 0
        %1036 = vmatpush1.bf16.msra.mxu0 0
        %1037 = vmatprep.subr.bf16.mxu0 0
        %1038 = vmatpush1.bf16.msra.mxu0 0
        %1039 = vmatprep.subr.bf16.mxu0 0
        %1040 = vmatpush1.bf16.msra.mxu0 0
        %1041 = vmatprep.subr.bf16.mxu0 0
        %1042 = vmatpush1.bf16.msra.mxu0 0
        %1043 = vmatprep.subr.bf16.mxu0 0
        %1044 = vmatpush1.bf16.msra.mxu0 0
        %1045 = vmatprep.subr.bf16.mxu0 0
        %1046 = vmatpush1.bf16.msra.mxu0 0
        %1047 = vmatprep.subr.bf16.mxu0 0
        %1048 = vmatpush1.bf16.msra.mxu0 0
        %1049 = vmatprep.subr.bf16.mxu0 0
        %1050 = vmatpush1.bf16.msra.mxu0 0
        %1051 = vmatprep.subr.bf16.mxu0 0
        %1052 = vmatpush1.bf16.msra.mxu0 0
        %1053 = vmatprep.subr.bf16.mxu0 0
        %1054 = vmatpush1.bf16.msra.mxu0 0
        %1055 = vmatprep.mubr.bf16.mxu0 0
        %1056 = vmatmul.mubr.bf16.gmra.mrb[0].mxu0 %v1021
        %v1057 = vpop.f32.mrb[0].mxu0
        %v1058 = vadd.f32 0.0, %v1057
        %v1059 = vpop.f32.mrb[0].mxu0
        %v1060 = vpop.f32.mrb[0].mxu0
        %v1061 = vpop.f32.mrb[0].mxu0
        %1062 = vdwg.mxu0
        %v1064 = vsel %vm933, %v924, 0
        %1066 = vmatprep.subr.bf16.mxu0 0
        %1067 = vmatpush1.bf16.msra.mxu0 %v928
        %1068 = vmatprep.subr.bf16.mxu0 0
        %1069 = vmatpush1.bf16.msra.mxu0 0
        %1070 = vmatprep.subr.bf16.mxu0 0
        %1071 = vmatpush1.bf16.msra.mxu0 0
        %1072 = vmatprep.subr.bf16.mxu0 0
        %1073 = vmatpush1.bf16.msra.mxu0 0
        %1074 = vmatprep.subr.bf16.mxu0 0
        %1075 = vmatpush1.bf16.msra.mxu0 0
        %1076 = vmatprep.subr.bf16.mxu0 0
        %1077 = vmatpush1.bf16.msra.mxu0 0
        %1078 = vmatprep.subr.bf16.mxu0 0
        %1079 = vmatpush1.bf16.msra.mxu0 0
        %1080 = vmatprep.subr.bf16.mxu0 0
        %1081 = vmatpush1.bf16.msra.mxu0 0
        %1082 = vmatprep.subr.bf16.mxu0 0
        %1083 = vmatpush1.bf16.msra.mxu0 0
        %1084 = vmatprep.subr.bf16.mxu0 0
        %1085 = vmatpush1.bf16.msra.mxu0 0
        %1086 = vmatprep.subr.bf16.mxu0 0
        %1087 = vmatpush1.bf16.msra.mxu0 0
        %1088 = vmatprep.subr.bf16.mxu0 0
        %1089 = vmatpush1.bf16.msra.mxu0 0
        %1090 = vmatprep.subr.bf16.mxu0 0
        %1091 = vmatpush1.bf16.msra.mxu0 0
        %1092 = vmatprep.subr.bf16.mxu0 0
        %1093 = vmatpush1.bf16.msra.mxu0 0
        %1094 = vmatprep.subr.bf16.mxu0 0
        %1095 = vmatpush1.bf16.msra.mxu0 0
        %1096 = vmatprep.subr.bf16.mxu0 0
        %1097 = vmatpush1.bf16.msra.mxu0 0
        %1098 = vmatprep.mubr.bf16.mxu0 0
        %1099 = vmatmul.mubr.bf16.gmra.mrb[0].mxu0 %v1064
        %v1100 = vpop.f32.mrb[0].mxu0
        %v1101 = vadd.f32 0.0, %v1100
        %v1102 = vpop.f32.mrb[0].mxu0
        %v1103 = vpop.f32.mrb[0].mxu0
        %v1104 = vpop.f32.mrb[0].mxu0
        %1105 = vdwg.mxu0
        %v1106 = vmul.f32 %v972, 0.25
        %v1107 = vmul.f32 %v1015, 0.25
        %v1108 = vmul.f32 %v1058, 0.25
        %v1109 = vmul.f32 %v1101, 0.25
        %v1110 = vld [vmem:[%s616] sm:$0x1]
        %v1112 = vlaneseq
        %v1113 = vshrl.u32 %v1112, 7
        %v1114 = vsub.s32 0, %v1113
        %v1115 = vrot.slane %v1110, %v1114
        %v1117 = vadd.f32 %v1106, %v1115
        %v1118 = vadd.f32 %v1107, %v1115
        %v1119 = vadd.f32 %v1108, %v1115
        %v1120 = vadd.f32 %v1109, %v1115
        %vm1121 = vcmask 64512
        %v1122 = vsel %vm1121, %v1117, -inf
        %1123 = vmax.xlane.f32.xlu0 %v1122
        %v1124 = vpop.xlane.xlu0 %1123
        %v1125 = vsel %vm1121, %v1118, -inf
        %1126 = vmax.xlane.f32.xlu0 %v1125
        %v1127 = vpop.xlane.xlu0 %1126
        %v1128 = vsel %vm1121, %v1119, -inf
        %1129 = vmax.xlane.f32.xlu0 %v1128
        %v1130 = vpop.xlane.xlu0 %1129
        %v1131 = vsel %vm1121, %v1120, -inf
        %1132 = vmax.xlane.f32.xlu0 %v1131
        %v1133 = vpop.xlane.xlu0 %1132
        %v1134 = vsub.f32 %v1117, %v1124
        %v1135 = vsub.f32 %v1118, %v1127
        %v1136 = vsub.f32 %v1119, %v1130
        %v1137 = vsub.f32 %v1120, %v1133
        %v1138 = vmul.f32 %v1134, 1.442695
        %v1139 = vpow.pop %v1138
        %v1140 = vmul.f32 %v1135, 1.442695
        %v1141 = vpow.pop %v1140
        %v1142 = vmul.f32 %v1136, 1.442695
        %v1143 = vpow.pop %v1142
        %v1144 = vmul.f32 %v1137, 1.442695
        %v1145 = vpow.pop %v1144
        %v1146 = vsel %vm1121, %v1139, 0.0
        %1147 = vadd.xlane.f32.xlu0 %v1146
        %v1148 = vpop.xlane.xlu0 %1147
        %v1149 = vsel %vm1121, %v1141, 0.0
        %1150 = vadd.xlane.f32.xlu0 %v1149
        %v1151 = vpop.xlane.xlu0 %1150
        %v1152 = vsel %vm1121, %v1143, 0.0
        %1153 = vadd.xlane.f32.xlu0 %v1152
        %v1154 = vpop.xlane.xlu0 %1153
        %v1155 = vsel %vm1121, %v1145, 0.0
        %1156 = vadd.xlane.f32.xlu0 %v1155
        %v1157 = vpop.xlane.xlu0 %1156
        %v1158 = vrcp.pop %v1148
        %v1159 = vmul.f32 %v1139, %v1158
        %v1160 = vrcp.pop %v1151
        %v1161 = vmul.f32 %v1141, %v1160
        %v1162 = vrcp.pop %v1154
        %v1163 = vmul.f32 %v1143, %v1162
        %v1164 = vrcp.pop %v1157
        %v1165 = vmul.f32 %v1145, %v1164
        %v1166 = vpack.c.bf16 %v1159, %v1159
        %v1167 = vpack.c.bf16 %v1161, %v1161
        %v1168 = vpack.c.bf16 %v1163, %v1163
        %v1169 = vpack.c.bf16 %v1165, %v1165
        %v1171 = vsel %vm1121, %v1166, 0
        %v1174 = vsel %vm1121, %v929, 0
        %1176 = vmatprep.subr.bf16.mxu0 0
        %1177 = vmatpush1.bf16.xpose.msra.mxu0 %v1174
        %1178 = vmatprep.subr.bf16.mxu0 0
        %1179 = vmatpush1.bf16.xpose.msra.mxu0 0
        %1180 = vmatprep.subr.bf16.mxu0 0
        %1181 = vmatpush1.bf16.xpose.msra.mxu0 0
        %1182 = vmatprep.subr.bf16.mxu0 0
        %1183 = vmatpush1.bf16.xpose.msra.mxu0 0
        %1184 = vmatprep.subr.bf16.mxu0 0
        %1185 = vmatpush1.bf16.xpose.msra.mxu0 0
        %1186 = vmatprep.subr.bf16.mxu0 0
        %1187 = vmatpush1.bf16.xpose.msra.mxu0 0
        %1188 = vmatprep.subr.bf16.mxu0 0
        %1189 = vmatpush1.bf16.xpose.msra.mxu0 0
        %1190 = vmatprep.subr.bf16.mxu0 0
        %1191 = vmatpush1.bf16.xpose.msra.mxu0 0
        %1192 = vmatprep.subr.bf16.mxu0 0
        %1193 = vmatpush1.bf16.xpose.msra.mxu0 0
        %1194 = vmatprep.subr.bf16.mxu0 0
        %1195 = vmatpush1.bf16.xpose.msra.mxu0 0
        %1196 = vmatprep.subr.bf16.mxu0 0
        %1197 = vmatpush1.bf16.xpose.msra.mxu0 0
        %1198 = vmatprep.subr.bf16.mxu0 0
        %1199 = vmatpush1.bf16.xpose.msra.mxu0 0
        %1200 = vmatprep.subr.bf16.mxu0 0
        %1201 = vmatpush1.bf16.xpose.msra.mxu0 0
        %1202 = vmatprep.subr.bf16.mxu0 0
        %1203 = vmatpush1.bf16.xpose.msra.mxu0 0
        %1204 = vmatprep.subr.bf16.mxu0 0
        %1205 = vmatpush1.bf16.xpose.msra.mxu0 0
        %1206 = vmatprep.subr.bf16.mxu0 0
        %1207 = vmatpush1.bf16.xpose.msra.mxu0 0
        %1208 = vmatprep.mubr.bf16.mxu0 0
        %1209 = vmatmul.mubr.bf16.gmra.mrb[0].mxu0 %v1171
        %v1210 = vpop.f32.mrb[0].mxu0
        %v1211 = vadd.f32 0.0, %v1210
        %v1212 = vpop.f32.mrb[0].mxu0
        %v1213 = vpop.f32.mrb[0].mxu0
        %v1214 = vpop.f32.mrb[0].mxu0
        %1215 = vdwg.mxu0
        %v1217 = vsel %vm1121, %v1167, 0
        %v1220 = vsel %vm1121, %v930, 0
        %1222 = vmatprep.subr.bf16.mxu0 0
        %1223 = vmatpush1.bf16.xpose.msra.mxu0 %v1220
        %1224 = vmatprep.subr.bf16.mxu0 0
        %1225 = vmatpush1.bf16.xpose.msra.mxu0 0
        %1226 = vmatprep.subr.bf16.mxu0 0
        %1227 = vmatpush1.bf16.xpose.msra.mxu0 0
        %1228 = vmatprep.subr.bf16.mxu0 0
        %1229 = vmatpush1.bf16.xpose.msra.mxu0 0
        %1230 = vmatprep.subr.bf16.mxu0 0
        %1231 = vmatpush1.bf16.xpose.msra.mxu0 0
        %1232 = vmatprep.subr.bf16.mxu0 0
        %1233 = vmatpush1.bf16.xpose.msra.mxu0 0
        %1234 = vmatprep.subr.bf16.mxu0 0
        %1235 = vmatpush1.bf16.xpose.msra.mxu0 0
        %1236 = vmatprep.subr.bf16.mxu0 0
        %1237 = vmatpush1.bf16.xpose.msra.mxu0 0
        %1238 = vmatprep.subr.bf16.mxu0 0
        %1239 = vmatpush1.bf16.xpose.msra.mxu0 0
        %1240 = vmatprep.subr.bf16.mxu0 0
        %1241 = vmatpush1.bf16.xpose.msra.mxu0 0
        %1242 = vmatprep.subr.bf16.mxu0 0
        %1243 = vmatpush1.bf16.xpose.msra.mxu0 0
        %1244 = vmatprep.subr.bf16.mxu0 0
        %1245 = vmatpush1.bf16.xpose.msra.mxu0 0
        %1246 = vmatprep.subr.bf16.mxu0 0
        %1247 = vmatpush1.bf16.xpose.msra.mxu0 0
        %1248 = vmatprep.subr.bf16.mxu0 0
        %1249 = vmatpush1.bf16.xpose.msra.mxu0 0
        %1250 = vmatprep.subr.bf16.mxu0 0
        %1251 = vmatpush1.bf16.xpose.msra.mxu0 0
        %1252 = vmatprep.subr.bf16.mxu0 0
        %1253 = vmatpush1.bf16.xpose.msra.mxu0 0
        %1254 = vmatprep.mubr.bf16.mxu0 0
        %1255 = vmatmul.mubr.bf16.gmra.mrb[0].mxu0 %v1217
        %v1256 = vpop.f32.mrb[0].mxu0
        %v1257 = vadd.f32 0.0, %v1256
        %v1258 = vpop.f32.mrb[0].mxu0
        %v1259 = vpop.f32.mrb[0].mxu0
        %v1260 = vpop.f32.mrb[0].mxu0
        %1261 = vdwg.mxu0
        %v1263 = vsel %vm1121, %v1168, 0
        %v1266 = vsel %vm1121, %v931, 0
        %1268 = vmatprep.subr.bf16.mxu0 0
        %1269 = vmatpush1.bf16.xpose.msra.mxu0 %v1266
        %1270 = vmatprep.subr.bf16.mxu0 0
        %1271 = vmatpush1.bf16.xpose.msra.mxu0 0
        %1272 = vmatprep.subr.bf16.mxu0 0
        %1273 = vmatpush1.bf16.xpose.msra.mxu0 0
        %1274 = vmatprep.subr.bf16.mxu0 0
        %1275 = vmatpush1.bf16.xpose.msra.mxu0 0
        %1276 = vmatprep.subr.bf16.mxu0 0
        %1277 = vmatpush1.bf16.xpose.msra.mxu0 0
        %1278 = vmatprep.subr.bf16.mxu0 0
        %1279 = vmatpush1.bf16.xpose.msra.mxu0 0
        %1280 = vmatprep.subr.bf16.mxu0 0
        %1281 = vmatpush1.bf16.xpose.msra.mxu0 0
        %1282 = vmatprep.subr.bf16.mxu0 0
        %1283 = vmatpush1.bf16.xpose.msra.mxu0 0
        %1284 = vmatprep.subr.bf16.mxu0 0
        %1285 = vmatpush1.bf16.xpose.msra.mxu0 0
        %1286 = vmatprep.subr.bf16.mxu0 0
        %1287 = vmatpush1.bf16.xpose.msra.mxu0 0
        %1288 = vmatprep.subr.bf16.mxu0 0
        %1289 = vmatpush1.bf16.xpose.msra.mxu0 0
        %1290 = vmatprep.subr.bf16.mxu0 0
        %1291 = vmatpush1.bf16.xpose.msra.mxu0 0
        %1292 = vmatprep.subr.bf16.mxu0 0
        %1293 = vmatpush1.bf16.xpose.msra.mxu0 0
        %1294 = vmatprep.subr.bf16.mxu0 0
        %1295 = vmatpush1.bf16.xpose.msra.mxu0 0
        %1296 = vmatprep.subr.bf16.mxu0 0
        %1297 = vmatpush1.bf16.xpose.msra.mxu0 0
        %1298 = vmatprep.subr.bf16.mxu0 0
        %1299 = vmatpush1.bf16.xpose.msra.mxu0 0
        %1300 = vmatprep.mubr.bf16.mxu0 0
        %1301 = vmatmul.mubr.bf16.gmra.mrb[0].mxu0 %v1263
        %v1302 = vpop.f32.mrb[0].mxu0
        %v1303 = vadd.f32 0.0, %v1302
        %v1304 = vpop.f32.mrb[0].mxu0
        %v1305 = vpop.f32.mrb[0].mxu0
        %v1306 = vpop.f32.mrb[0].mxu0
        %1307 = vdwg.mxu0
        %v1309 = vsel %vm1121, %v1169, 0
        %v1312 = vsel %vm1121, %v932, 0
        %1314 = vmatprep.subr.bf16.mxu0 0
        %1315 = vmatpush1.bf16.xpose.msra.mxu0 %v1312
        %1316 = vmatprep.subr.bf16.mxu0 0
        %1317 = vmatpush1.bf16.xpose.msra.mxu0 0
        %1318 = vmatprep.subr.bf16.mxu0 0
        %1319 = vmatpush1.bf16.xpose.msra.mxu0 0
        %1320 = vmatprep.subr.bf16.mxu0 0
        %1321 = vmatpush1.bf16.xpose.msra.mxu0 0
        %1322 = vmatprep.subr.bf16.mxu0 0
        %1323 = vmatpush1.bf16.xpose.msra.mxu0 0
        %1324 = vmatprep.subr.bf16.mxu0 0
        %1325 = vmatpush1.bf16.xpose.msra.mxu0 0
        %1326 = vmatprep.subr.bf16.mxu0 0
        %1327 = vmatpush1.bf16.xpose.msra.mxu0 0
        %1328 = vmatprep.subr.bf16.mxu0 0
        %1329 = vmatpush1.bf16.xpose.msra.mxu0 0
        %1330 = vmatprep.subr.bf16.mxu0 0
        %1331 = vmatpush1.bf16.xpose.msra.mxu0 0
        %1332 = vmatprep.subr.bf16.mxu0 0
        %1333 = vmatpush1.bf16.xpose.msra.mxu0 0
        %1334 = vmatprep.subr.bf16.mxu0 0
        %1335 = vmatpush1.bf16.xpose.msra.mxu0 0
        %1336 = vmatprep.subr.bf16.mxu0 0
        %1337 = vmatpush1.bf16.xpose.msra.mxu0 0
        %1338 = vmatprep.subr.bf16.mxu0 0
        %1339 = vmatpush1.bf16.xpose.msra.mxu0 0
        %1340 = vmatprep.subr.bf16.mxu0 0
        %1341 = vmatpush1.bf16.xpose.msra.mxu0 0
        %1342 = vmatprep.subr.bf16.mxu0 0
        %1343 = vmatpush1.bf16.xpose.msra.mxu0 0
        %1344 = vmatprep.subr.bf16.mxu0 0
        %1345 = vmatpush1.bf16.xpose.msra.mxu0 0
        %1346 = vmatprep.mubr.bf16.mxu0 0
        %1347 = vmatmul.mubr.bf16.gmra.mrb[0].mxu0 %v1309
        %v1348 = vpop.f32.mrb[0].mxu0
        %v1349 = vadd.f32 0.0, %v1348
        %v1350 = vpop.f32.mrb[0].mxu0
        %v1351 = vpop.f32.mrb[0].mxu0
        %v1352 = vpop.f32.mrb[0].mxu0
        %1353 = vdwg.mxu0
        %v1354 = vpack.c.bf16 %v1211, %v1211
        %v1355 = vpack.c.bf16 %v1257, %v1257
        %v1356 = vpack.c.bf16 %v1303, %v1303
        %v1357 = vpack.c.bf16 %v1349, %v1349
        %v1358 = vld [vmem:[#allocation6] sm:$0xf]
        %v1359 = vld [vmem:[#allocation6 + $0x4] sm:$0xf]
        %v1360 = vld [vmem:[#allocation6 + $0x8] sm:$0xf]
        %v1361 = vld [vmem:[#allocation6 + $0xc] sm:$0xf]
        %v1362 = vld [vmem:[#allocation6 + $0x10] sm:$0xf]
        %v1363 = vld [vmem:[#allocation6 + $0x14] sm:$0xf]
        %v1364 = vld [vmem:[#allocation6 + $0x18] sm:$0xf]
        %v1365 = vld [vmem:[#allocation6 + $0x1c] sm:$0xf]
        %v1368 = vunpack.c.l.b16 %v1358
        %v1369 = vunpack.c.l.b16 %v1359
        %v1370 = vpack.c.b16 %v1369, %v1368
        %v1373 = vsel %vm933, %v1354, 0
        %1375 = vmatprep.subr.bf16.mxu0 0
        %1376 = vmatpush1.bf16.msra.mxu0 %v1370
        %1377 = vmatprep.subr.bf16.mxu0 0
        %1378 = vmatpush1.bf16.msra.mxu0 0
        %1379 = vmatprep.subr.bf16.mxu0 0
        %1380 = vmatpush1.bf16.msra.mxu0 0
        %1381 = vmatprep.subr.bf16.mxu0 0
        %1382 = vmatpush1.bf16.msra.mxu0 0
        %1383 = vmatprep.subr.bf16.mxu0 0
        %1384 = vmatpush1.bf16.msra.mxu0 0
        %1385 = vmatprep.subr.bf16.mxu0 0
        %1386 = vmatpush1.bf16.msra.mxu0 0
        %1387 = vmatprep.subr.bf16.mxu0 0
        %1388 = vmatpush1.bf16.msra.mxu0 0
        %1389 = vmatprep.subr.bf16.mxu0 0
        %1390 = vmatpush1.bf16.msra.mxu0 0
        %1391 = vmatprep.subr.bf16.mxu0 0
        %1392 = vmatpush1.bf16.msra.mxu0 0
        %1393 = vmatprep.subr.bf16.mxu0 0
        %1394 = vmatpush1.bf16.msra.mxu0 0
        %1395 = vmatprep.subr.bf16.mxu0 0
        %1396 = vmatpush1.bf16.msra.mxu0 0
        %1397 = vmatprep.subr.bf16.mxu0 0
        %1398 = vmatpush1.bf16.msra.mxu0 0
        %1399 = vmatprep.subr.bf16.mxu0 0
        %1400 = vmatpush1.bf16.msra.mxu0 0
        %1401 = vmatprep.subr.bf16.mxu0 0
        %1402 = vmatpush1.bf16.msra.mxu0 0
        %1403 = vmatprep.subr.bf16.mxu0 0
        %1404 = vmatpush1.bf16.msra.mxu0 0
        %1405 = vmatprep.subr.bf16.mxu0 0
        %1406 = vmatpush1.bf16.msra.mxu0 0
        %1407 = vmatprep.mubr.bf16.mxu0 0
        %1408 = vmatmul.mubr.bf16.gmra.mrb[0].mxu0 %v1373
        %v1409 = vpop.f32.mrb[0].mxu0
        %v1410 = vadd.f32 0.0, %v1409
        %v1411 = vpop.f32.mrb[0].mxu0
        %v1412 = vpop.f32.mrb[0].mxu0
        %v1413 = vpop.f32.mrb[0].mxu0
        %1414 = vdwg.mxu0
        %v1417 = vunpack.c.l.b16 %v1360
        %v1418 = vunpack.c.l.b16 %v1361
        %v1419 = vpack.c.b16 %v1418, %v1417
        %v1422 = vsel %vm933, %v1355, 0
        %1424 = vmatprep.subr.bf16.mxu0 0
        %1425 = vmatpush1.bf16.msra.mxu0 %v1419
        %1426 = vmatprep.subr.bf16.mxu0 0
        %1427 = vmatpush1.bf16.msra.mxu0 0
        %1428 = vmatprep.subr.bf16.mxu0 0
        %1429 = vmatpush1.bf16.msra.mxu0 0
        %1430 = vmatprep.subr.bf16.mxu0 0
        %1431 = vmatpush1.bf16.msra.mxu0 0
        %1432 = vmatprep.subr.bf16.mxu0 0
        %1433 = vmatpush1.bf16.msra.mxu0 0
        %1434 = vmatprep.subr.bf16.mxu0 0
        %1435 = vmatpush1.bf16.msra.mxu0 0
        %1436 = vmatprep.subr.bf16.mxu0 0
        %1437 = vmatpush1.bf16.msra.mxu0 0
        %1438 = vmatprep.subr.bf16.mxu0 0
        %1439 = vmatpush1.bf16.msra.mxu0 0
        %1440 = vmatprep.subr.bf16.mxu0 0
        %1441 = vmatpush1.bf16.msra.mxu0 0
        %1442 = vmatprep.subr.bf16.mxu0 0
        %1443 = vmatpush1.bf16.msra.mxu0 0
        %1444 = vmatprep.subr.bf16.mxu0 0
        %1445 = vmatpush1.bf16.msra.mxu0 0
        %1446 = vmatprep.subr.bf16.mxu0 0
        %1447 = vmatpush1.bf16.msra.mxu0 0
        %1448 = vmatprep.subr.bf16.mxu0 0
        %1449 = vmatpush1.bf16.msra.mxu0 0
        %1450 = vmatprep.subr.bf16.mxu0 0
        %1451 = vmatpush1.bf16.msra.mxu0 0
        %1452 = vmatprep.subr.bf16.mxu0 0
        %1453 = vmatpush1.bf16.msra.mxu0 0
        %1454 = vmatprep.subr.bf16.mxu0 0
        %1455 = vmatpush1.bf16.msra.mxu0 0
        %1456 = vmatprep.mubr.bf16.mxu0 0
        %1457 = vmatmul.mubr.bf16.gmra.mrb[0].mxu0 %v1422
        %v1458 = vpop.f32.mrb[0].mxu0
        %v1459 = vadd.f32 0.0, %v1458
        %v1460 = vpop.f32.mrb[0].mxu0
        %v1461 = vpop.f32.mrb[0].mxu0
        %v1462 = vpop.f32.mrb[0].mxu0
        %1463 = vdwg.mxu0
        %v1466 = vunpack.c.l.b16 %v1362
        %v1467 = vunpack.c.l.b16 %v1363
        %v1468 = vpack.c.b16 %v1467, %v1466
        %v1471 = vsel %vm933, %v1356, 0
        %1473 = vmatprep.subr.bf16.mxu0 0
        %1474 = vmatpush1.bf16.msra.mxu0 %v1468
        %1475 = vmatprep.subr.bf16.mxu0 0
        %1476 = vmatpush1.bf16.msra.mxu0 0
        %1477 = vmatprep.subr.bf16.mxu0 0
        %1478 = vmatpush1.bf16.msra.mxu0 0
        %1479 = vmatprep.subr.bf16.mxu0 0
        %1480 = vmatpush1.bf16.msra.mxu0 0
        %1481 = vmatprep.subr.bf16.mxu0 0
        %1482 = vmatpush1.bf16.msra.mxu0 0
        %1483 = vmatprep.subr.bf16.mxu0 0
        %1484 = vmatpush1.bf16.msra.mxu0 0
        %1485 = vmatprep.subr.bf16.mxu0 0
        %1486 = vmatpush1.bf16.msra.mxu0 0
        %1487 = vmatprep.subr.bf16.mxu0 0
        %1488 = vmatpush1.bf16.msra.mxu0 0
        %1489 = vmatprep.subr.bf16.mxu0 0
        %1490 = vmatpush1.bf16.msra.mxu0 0
        %1491 = vmatprep.subr.bf16.mxu0 0
        %1492 = vmatpush1.bf16.msra.mxu0 0
        %1493 = vmatprep.subr.bf16.mxu0 0
        %1494 = vmatpush1.bf16.msra.mxu0 0
        %1495 = vmatprep.subr.bf16.mxu0 0
        %1496 = vmatpush1.bf16.msra.mxu0 0
        %1497 = vmatprep.subr.bf16.mxu0 0
        %1498 = vmatpush1.bf16.msra.mxu0 0
        %1499 = vmatprep.subr.bf16.mxu0 0
        %1500 = vmatpush1.bf16.msra.mxu0 0
        %1501 = vmatprep.subr.bf16.mxu0 0
        %1502 = vmatpush1.bf16.msra.mxu0 0
        %1503 = vmatprep.subr.bf16.mxu0 0
        %1504 = vmatpush1.bf16.msra.mxu0 0
        %1505 = vmatprep.mubr.bf16.mxu0 0
        %1506 = vmatmul.mubr.bf16.gmra.mrb[0].mxu0 %v1471
        %v1507 = vpop.f32.mrb[0].mxu0
        %v1508 = vadd.f32 0.0, %v1507
        %v1509 = vpop.f32.mrb[0].mxu0
        %v1510 = vpop.f32.mrb[0].mxu0
        %v1511 = vpop.f32.mrb[0].mxu0
        %1512 = vdwg.mxu0
        %v1515 = vunpack.c.l.b16 %v1364
        %v1516 = vunpack.c.l.b16 %v1365
        %v1517 = vpack.c.b16 %v1516, %v1515
        %v1520 = vsel %vm933, %v1357, 0
        %1522 = vmatprep.subr.bf16.mxu0 0
        %1523 = vmatpush1.bf16.msra.mxu0 %v1517
        %1524 = vmatprep.subr.bf16.mxu0 0
        %1525 = vmatpush1.bf16.msra.mxu0 0
        %1526 = vmatprep.subr.bf16.mxu0 0
        %1527 = vmatpush1.bf16.msra.mxu0 0
        %1528 = vmatprep.subr.bf16.mxu0 0
        %1529 = vmatpush1.bf16.msra.mxu0 0
        %1530 = vmatprep.subr.bf16.mxu0 0
        %1531 = vmatpush1.bf16.msra.mxu0 0
        %1532 = vmatprep.subr.bf16.mxu0 0
        %1533 = vmatpush1.bf16.msra.mxu0 0
        %1534 = vmatprep.subr.bf16.mxu0 0
        %1535 = vmatpush1.bf16.msra.mxu0 0
        %1536 = vmatprep.subr.bf16.mxu0 0
        %1537 = vmatpush1.bf16.msra.mxu0 0
        %1538 = vmatprep.subr.bf16.mxu0 0
        %1539 = vmatpush1.bf16.msra.mxu0 0
        %1540 = vmatprep.subr.bf16.mxu0 0
        %1541 = vmatpush1.bf16.msra.mxu0 0
        %1542 = vmatprep.subr.bf16.mxu0 0
        %1543 = vmatpush1.bf16.msra.mxu0 0
        %1544 = vmatprep.subr.bf16.mxu0 0
        %1545 = vmatpush1.bf16.msra.mxu0 0
        %1546 = vmatprep.subr.bf16.mxu0 0
        %1547 = vmatpush1.bf16.msra.mxu0 0
        %1548 = vmatprep.subr.bf16.mxu0 0
        %1549 = vmatpush1.bf16.msra.mxu0 0
        %1550 = vmatprep.subr.bf16.mxu0 0
        %1551 = vmatpush1.bf16.msra.mxu0 0
        %1552 = vmatprep.subr.bf16.mxu0 0
        %1553 = vmatpush1.bf16.msra.mxu0 0
        %1554 = vmatprep.mubr.bf16.mxu0 0
        %1555 = vmatmul.mubr.bf16.gmra.mrb[0].mxu0 %v1520
        %v1556 = vpop.f32.mrb[0].mxu0
        %v1557 = vadd.f32 0.0, %v1556
        %v1558 = vpop.f32.mrb[0].mxu0
        %v1559 = vpop.f32.mrb[0].mxu0
        %v1560 = vpop.f32.mrb[0].mxu0
        %1561 = vdwg.mxu0
        %v1562 = vsel %vm684, %v1410, 0.0
        %v1563 = vsel %vm684, %v1459, 0.0
        %v1564 = vadd.f32 %v1562, %v1563
        %v1565 = vsel %vm684, %v1508, 0.0
        %v1566 = vadd.f32 %v1564, %v1565
        %v1567 = vsel %vm684, %v1557, 0.0
        %v1568 = vadd.f32 %v1566, %v1567
        %v1569 = vld [vmem:[#allocation7] sm:$0x1]
        %v1571 = vlaneseq
        %v1572 = vshrl.u32 %v1571, 7
        %v1573 = vsub.s32 0, %v1572
        %v1574 = vrot.slane %v1569, %v1573
        %v1576 = vadd.f32 %v1568, %v1574
        %v1577 = vadd.f32 %v1576, %v622
        %v1578 = vld [vmem:[#allocation9] sm:$0x1]
        %v1579 = vld [vmem:[#allocation10] sm:$0x1]
        %v1580 = vsel %vm684, %v1577, 0.0
        %1581 = vadd.xlane.f32.xlu0 %v1580
        %v1582 = vpop.xlane.xlu0 %1581
        %v1583 = vrcp.pop 64.0
        %v1584 = vmul.f32 %v1582, %v1583
        %v1585 = vsub.f32 %v1577, %v1584
        %v1586 = vmul.f32 %v1585, %v1585
        %v1587 = vsel %vm684, %v1586, 0.0
        %1588 = vadd.xlane.f32.xlu0 %v1587
        %v1589 = vpop.xlane.xlu0 %1588
        %v1590 = vmul.f32 %v1589, %v1583
        %v1591 = vadd.f32 %v1590, 1e-12
        %v1592 = vrsqrt.pop %v1591
        %v1593 = vmul.f32 %v1585, %v1592
        %v1595 = vlaneseq
        %v1596 = vshrl.u32 %v1595, 7
        %v1597 = vsub.s32 0, %v1596
        %v1598 = vrot.slane %v1578, %v1597
        %v1600 = vmul.f32 %v1593, %v1598
        %v1602 = vlaneseq
        %v1603 = vshrl.u32 %v1602, 7
        %v1604 = vsub.s32 0, %v1603
        %v1605 = vrot.slane %v1579, %v1604
        %v1607 = vadd.f32 %v1600, %v1605
        %v1608 = vpack.c.bf16 %v1607, %v1607
        %v1609 = vld [vmem:[#allocation12] sm:$0xf]
        %v1610 = vld [vmem:[#allocation12 + $0x4] sm:$0xf]
        %v1611 = vld [vmem:[#allocation12 + $0x8] sm:$0xf]
        %v1612 = vld [vmem:[#allocation12 + $0xc] sm:$0xf]
        %v1613 = vld [vmem:[#allocation12 + $0x10] sm:$0xf]
        %v1614 = vld [vmem:[#allocation12 + $0x14] sm:$0xf]
        %v1615 = vld [vmem:[#allocation12 + $0x18] sm:$0xf]
        %v1616 = vld [vmem:[#allocation12 + $0x1c] sm:$0xf]
        %v1617 = vld [vmem:[#allocation13] sm:$0x1]
        %v1619 = vlaneseq
        %v1620 = vshrl.u32 %v1619, 7
        %v1621 = vsub.s32 0, %v1620
        %v1622 = vrot.slane %v1617, %v1621
        %v1632 = vunpack.c.l.b16 %v1609
        %v1633 = vunpack.c.l.b16 %v1610
        %v1634 = vunpack.c.l.b16 %v1611
        %v1635 = vunpack.c.l.b16 %v1612
        %v1636 = vunpack.c.l.b16 %v1613
        %v1637 = vunpack.c.l.b16 %v1614
        %v1638 = vunpack.c.l.b16 %v1615
        %v1639 = vunpack.c.l.b16 %v1616
        %v1640 = vpack.c.b16 %v1633, %v1632
        %v1641 = vpack.c.b16 %v1635, %v1634
        %v1642 = vpack.c.b16 %v1637, %v1636
        %v1643 = vpack.c.b16 %v1639, %v1638
        %v1649 = vsel %vm684, %v1608, 0
        %1651 = vmatprep.subr.bf16.mxu0 0
        %1652 = vmatpush1.bf16.msra.mxu0 %v1640
        %1653 = vmatprep.subr.bf16.mxu0 0
        %1654 = vmatpush1.bf16.msra.mxu0 %v1641
        %1655 = vmatprep.subr.bf16.mxu0 0
        %1656 = vmatpush1.bf16.msra.mxu0 %v1642
        %1657 = vmatprep.subr.bf16.mxu0 0
        %1658 = vmatpush1.bf16.msra.mxu0 %v1643
        %1659 = vmatprep.subr.bf16.mxu0 0
        %1660 = vmatpush1.bf16.msra.mxu0 0
        %1661 = vmatprep.subr.bf16.mxu0 0
        %1662 = vmatpush1.bf16.msra.mxu0 0
        %1663 = vmatprep.subr.bf16.mxu0 0
        %1664 = vmatpush1.bf16.msra.mxu0 0
        %1665 = vmatprep.subr.bf16.mxu0 0
        %1666 = vmatpush1.bf16.msra.mxu0 0
        %1667 = vmatprep.subr.bf16.mxu0 0
        %1668 = vmatpush1.bf16.msra.mxu0 0
        %1669 = vmatprep.subr.bf16.mxu0 0
        %1670 = vmatpush1.bf16.msra.mxu0 0
        %1671 = vmatprep.subr.bf16.mxu0 0
        %1672 = vmatpush1.bf16.msra.mxu0 0
        %1673 = vmatprep.subr.bf16.mxu0 0
        %1674 = vmatpush1.bf16.msra.mxu0 0
        %1675 = vmatprep.subr.bf16.mxu0 0
        %1676 = vmatpush1.bf16.msra.mxu0 0
        %1677 = vmatprep.subr.bf16.mxu0 0
        %1678 = vmatpush1.bf16.msra.mxu0 0
        %1679 = vmatprep.subr.bf16.mxu0 0
        %1680 = vmatpush1.bf16.msra.mxu0 0
        %1681 = vmatprep.subr.bf16.mxu0 0
        %1682 = vmatpush1.bf16.msra.mxu0 0
        %1683 = vmatprep.mubr.bf16.mxu0 0
        %1684 = vmatmul.mubr.bf16.gmra.mrb[0].mxu0 %v1649
        %v1685 = vpop.f32.mrb[0].mxu0
        %v1686 = vadd.f32 %v1622, %v1685
        %v1687 = vpop.f32.mrb[0].mxu0
        %v1688 = vpop.f32.mrb[0].mxu0
        %v1689 = vpop.f32.mrb[0].mxu0
        %1690 = vdwg.mxu0
        %v1691 = vmul.f32 %v1686, 0.5
        %v1692 = vmul.f32 %v1686, 0.70710677
        %v1693 = vand.u32 2147483647, %v1692
        %v1694 = vmul.f32 %v1693, 0.3275911
        %v1695 = vadd.f32 %v1694, 1.0
        %v1696 = vrcp.pop %v1695
        %v1697 = vmul.f32 1.0, %v1696
        %v1698 = vmul.f32 %v1697, 1.0614054
        %v1699 = vadd.f32 %v1698, -1.4531521
        %v1700 = vmul.f32 %v1699, %v1697
        %v1701 = vadd.f32 %v1700, 1.4214138
        %v1702 = vmul.f32 %v1701, %v1697
        %v1703 = vadd.f32 %v1702, -0.28449672
        %v1704 = vmul.f32 %v1703, %v1697
        %v1705 = vadd.f32 %v1704, 0.2548296
        %v1706 = vmul.f32 %v1705, %v1697
        %v1707 = vsub.f32 0.0, %v1693
        %v1708 = vmul.f32 %v1707, %v1693
        %v1709 = vmul.f32 %v1708, 1.442695
        %v1710 = vpow.pop %v1709
        %v1711 = vmul.f32 %v1706, %v1710
        %v1712 = vsub.f32 1.0, %v1711
        %vm1713 = vcmp.ge.f32.partialorder %v1692, 0.0
        %v1714 = vsub.f32 0.0, %v1712
        %v1715 = vsel %vm1713, %v1712, %v1714
        %v1716 = vadd.f32 %v1715, 1.0
        %v1717 = vmul.f32 %v1691, %v1716
        %v1718 = vpack.c.bf16 %v1717, %v1717
        %v1719 = vld [vmem:[%s10] sm:$0xf]
        %v1720 = vld [vmem:[%s10 + $0x4] sm:$0xf]
        %v1721 = vld [vmem:[%s10 + $0x8] sm:$0xf]
        %v1722 = vld [vmem:[%s10 + $0xc] sm:$0xf]
        %v1723 = vld [vmem:[%s10 + $0x10] sm:$0xf]
        %v1724 = vld [vmem:[%s10 + $0x14] sm:$0xf]
        %v1725 = vld [vmem:[%s10 + $0x18] sm:$0xf]
        %v1726 = vld [vmem:[%s10 + $0x1c] sm:$0xf]
        %v1727 = vld [vmem:[%s10 + $0x20] sm:$0xf]
        %v1728 = vld [vmem:[%s10 + $0x24] sm:$0xf]
        %v1729 = vld [vmem:[%s10 + $0x28] sm:$0xf]
        %v1730 = vld [vmem:[%s10 + $0x2c] sm:$0xf]
        %v1731 = vld [vmem:[%s10 + $0x30] sm:$0xf]
        %v1732 = vld [vmem:[%s10 + $0x34] sm:$0xf]
        %v1733 = vld [vmem:[%s10 + $0x38] sm:$0xf]
        %v1734 = vld [vmem:[%s10 + $0x3c] sm:$0xf]
        %v1735 = vld [vmem:[#allocation15] sm:$0x1]
        %v1737 = vlaneseq
        %v1738 = vshrl.u32 %v1737, 7
        %v1739 = vsub.s32 0, %v1738
        %v1740 = vrot.slane %v1735, %v1739
        %v1758 = vunpack.c.l.b16 %v1719
        %v1759 = vunpack.c.l.b16 %v1720
        %v1760 = vunpack.c.l.b16 %v1721
        %v1761 = vunpack.c.l.b16 %v1722
        %v1762 = vunpack.c.l.b16 %v1723
        %v1763 = vunpack.c.l.b16 %v1724
        %v1764 = vunpack.c.l.b16 %v1725
        %v1765 = vunpack.c.l.b16 %v1726
        %v1766 = vunpack.c.l.b16 %v1727
        %v1767 = vunpack.c.l.b16 %v1728
        %v1768 = vunpack.c.l.b16 %v1729
        %v1769 = vunpack.c.l.b16 %v1730
        %v1770 = vunpack.c.l.b16 %v1731
        %v1771 = vunpack.c.l.b16 %v1732
        %v1772 = vunpack.c.l.b16 %v1733
        %v1773 = vunpack.c.l.b16 %v1734
        %v1774 = vpack.c.b16 %v1759, %v1758
        %v1775 = vpack.c.b16 %v1761, %v1760
        %v1776 = vpack.c.b16 %v1763, %v1762
        %v1777 = vpack.c.b16 %v1765, %v1764
        %v1778 = vpack.c.b16 %v1767, %v1766
        %v1779 = vpack.c.b16 %v1769, %v1768
        %v1780 = vpack.c.b16 %v1771, %v1770
        %v1781 = vpack.c.b16 %v1773, %v1772
        %1790 = vmatprep.subr.bf16.mxu0 0
        %1791 = vmatpush1.bf16.msra.mxu0 %v1774
        %1792 = vmatprep.subr.bf16.mxu0 0
        %1793 = vmatpush1.bf16.msra.mxu0 %v1775
        %1794 = vmatprep.subr.bf16.mxu0 0
        %1795 = vmatpush1.bf16.msra.mxu0 %v1776
        %1796 = vmatprep.subr.bf16.mxu0 0
        %1797 = vmatpush1.bf16.msra.mxu0 %v1777
        %1798 = vmatprep.subr.bf16.mxu0 0
        %1799 = vmatpush1.bf16.msra.mxu0 %v1778
        %1800 = vmatprep.subr.bf16.mxu0 0
        %1801 = vmatpush1.bf16.msra.mxu0 %v1779
        %1802 = vmatprep.subr.bf16.mxu0 0
        %1803 = vmatpush1.bf16.msra.mxu0 %v1780
        %1804 = vmatprep.subr.bf16.mxu0 0
        %1805 = vmatpush1.bf16.msra.mxu0 %v1781
        %1806 = vmatprep.subr.bf16.mxu0 0
        %1807 = vmatpush1.bf16.msra.mxu0 0
        %1808 = vmatprep.subr.bf16.mxu0 0
        %1809 = vmatpush1.bf16.msra.mxu0 0
        %1810 = vmatprep.subr.bf16.mxu0 0
        %1811 = vmatpush1.bf16.msra.mxu0 0
        %1812 = vmatprep.subr.bf16.mxu0 0
        %1813 = vmatpush1.bf16.msra.mxu0 0
        %1814 = vmatprep.subr.bf16.mxu0 0
        %1815 = vmatpush1.bf16.msra.mxu0 0
        %1816 = vmatprep.subr.bf16.mxu0 0
        %1817 = vmatpush1.bf16.msra.mxu0 0
        %1818 = vmatprep.subr.bf16.mxu0 0
        %1819 = vmatpush1.bf16.msra.mxu0 0
        %1820 = vmatprep.subr.bf16.mxu0 0
        %1821 = vmatpush1.bf16.msra.mxu0 0
        %1822 = vmatprep.mubr.bf16.mxu0 0
        %1823 = vmatmul.mubr.bf16.gmra.mrb[0].mxu0 %v1718
        %v1824 = vpop.f32.mrb[0].mxu0
        %v1825 = vadd.f32 %v1740, %v1824
        %v1826 = vpop.f32.mrb[0].mxu0
        %v1827 = vpop.f32.mrb[0].mxu0
        %v1828 = vpop.f32.mrb[0].mxu0
        %1829 = vdwg.mxu0
        %v1830 = vadd.f32 %v1825, %v1607
        %v1831 = vld [vmem:[#allocation16] sm:$0x1]
        %v1832 = vld [vmem:[#allocation18] sm:$0x1]
        %v1833 = vsel %vm684, %v1830, 0.0
        %1834 = vadd.xlane.f32.xlu0 %v1833
        %v1835 = vpop.xlane.xlu0 %1834
        %v1836 = vmul.f32 %v1835, %v1583
        %v1837 = vsub.f32 %v1830, %v1836
        %v1838 = vmul.f32 %v1837, %v1837
        %v1839 = vsel %vm684, %v1838, 0.0
        %1840 = vadd.xlane.f32.xlu0 %v1839
        %v1841 = vpop.xlane.xlu0 %1840
        %v1842 = vmul.f32 %v1841, %v1583
        %v1843 = vadd.f32 %v1842, 1e-12
        %v1844 = vrsqrt.pop %v1843
        %v1845 = vmul.f32 %v1837, %v1844
        %v1847 = vlaneseq
        %v1848 = vshrl.u32 %v1847, 7
        %v1849 = vsub.s32 0, %v1848
        %v1850 = vrot.slane %v1831, %v1849
        %v1852 = vmul.f32 %v1845, %v1850
        %v1854 = vlaneseq
        %v1855 = vshrl.u32 %v1854, 7
        %v1856 = vsub.s32 0, %v1855
        %v1857 = vrot.slane %v1832, %v1856
        %v1859 = vadd.f32 %v1852, %v1857
        %1860 = vst.msk [vmem:[%s620] sm:$0xff] %vm684, %v1859
        %p1861 = scmp.lt.s32.totalorder %s31, 1
        %s1862 = scalar_select %p1861, %s31, 1
        %s1863 = smul.addr %s1862, 8
        %s1864 = scalar_lea.vmem %s14, %s1863
        // Predicated region
        $region121: #{run.4} parent=75 // pred_check
          %p1865 = pneg %p353
        $region122: #{run.4} parent=75 // pred_check_branch
          %1867 = sbr.rel (%p1865) target = $region124
        $region123: #{run.4} parent=75 // pred_region
          _
        $region124: #{run.4} parent=75 // pred_fallthru
          _
      $region76: #{run.4} parent=5 // pred_fallthru
        _
      %p1868 = scmp.le.s32.totalorder 2, %s26
      // Predicated region
      $region125: #{run.4} parent=5 // pred_check
        %p1869 = pneg %p1868
      $region126: #{run.4} parent=5 // pred_check_branch
        %1871 = sbr.rel (%p1869) target = $region128
      $region127: #{run.4} parent=5 // pred_region
        %s1872 = ssub.s32 %s26, 2
        // Predicated region
        $region129: #{run.4} parent=127 // pred_check
          %p1873 = pneg %p359
        $region130: #{run.4} parent=127 // pred_check_branch
          %1875 = sbr.rel (%p1873) target = $region132
        $region131: #{run.4} parent=127 // pred_region
          %p1876 = scmp.lt.s32.totalorder %s32, 1
          %s1877 = scalar_select %p1876, %s32, 1
          %s1878 = smul.addr %s1877, 8
          %s1879 = scalar_lea.vmem %s14, %s1878
        $region132: #{run.4} parent=127 // pred_fallthru
          _
      $region128: #{run.4} parent=5 // pred_fallthru
        _
    $region6: #{run.4} parent=1 // loop_footer
      %s30 = sadd.s32 1, %s26
    $region7: #{run.4} parent=1 // loop_footer_branch
      %25 = sbr.rel target = $region3
    $region8: #{run.4} parent=1 // loop_exit
      _
    %1880 = vsyncpa [#allocation3], 1
    %s1881 = scalar_lea.sflag [#allocation3], 1
    %1882 = vsyncpa %s1881, 1
    %1883 = vsyncpa [#allocation5], 1
    %1884 = vsyncpa [#allocation8], 1
    %1885 = vsyncpa [#allocation11], 1
    %1886 = vsyncpa [#allocation14], 1
    %1887 = vsyncpa [#allocation17], 1

// kernel: run.3
$region0: #{run.3}
  #allocation0 [shape = 'u32[]', space=smem, size = 0x4, offset = 0x4, fixed_abs, tag = 'smem constant byte address 0x4 - core index']
  #allocation1 [shape = 'u32[144,128]{1,0:T(1,128)}', space=vmem, size = 0x12000, scoped, tag = 'internal scratch']
  %s0 = inlined_call_operand.vmem [shape: f32[2,8,64], index: 0, kind: input, shape index: {}]
  %s1 = inlined_call_operand.vmem [shape: f32[2,1,8], index: 1, kind: input, shape index: {}]
  %s2 = inlined_call_operand.hbm [shape: bf16[64,192], index: 2, kind: input, shape index: {}]
  %s3 = inlined_call_operand.vmem [shape: f32[1,192], index: 3, kind: input, shape index: {}]
  %s4 = inlined_call_operand.vmem [shape: bf16[4,16,64], index: 4, kind: input, shape index: {}]
  %s5 = inlined_call_operand.vmem [shape: f32[1,64], index: 5, kind: input, shape index: {}]
  %s6 = inlined_call_operand.vmem [shape: f32[1,64], index: 6, kind: input, shape index: {}]
  %s7 = inlined_call_operand.vmem [shape: f32[1,64], index: 7, kind: input, shape index: {}]
  %s8 = inlined_call_operand.hbm [shape: bf16[64,128], index: 8, kind: input, shape index: {}]
  %s9 = inlined_call_operand.vmem [shape: f32[1,128], index: 9, kind: input, shape index: {}]
  %s10 = inlined_call_operand.vmem [shape: bf16[128,64], index: 10, kind: input, shape index: {}]
  %s11 = inlined_call_operand.vmem [shape: f32[1,64], index: 11, kind: input, shape index: {}]
  %s12 = inlined_call_operand.vmem [shape: f32[1,64], index: 12, kind: input, shape index: {}]
  %s13 = inlined_call_operand.hbm [shape: f32[1,64], index: 13, kind: input, shape index: {}]
  %s14 = inlined_call_operand.vmem [shape: f32[2,8,64], index: 14, kind: output, shape index: {}]
  %s15 = sld [smem:[#allocation0]]
  $region101: #{run.3} parent=0
    _
  %s17 = ssub.s32 1, %s15
  %s18 = scalar_select 0, %s17, %s15
  $region1: #{run.3} parent=0
    #allocation2 [shape = 'u8[32768]{0}', space=vmem, size = 0x8000, scoped, tag = 'input window, operand 2, single buffered']
    #allocation3 [shape = 's32[2]{0}', space=sflag, size = 0x8, scoped, tag = 'scoped memory for run.3']
    #allocation4 [shape = 'u8[16384]{0}', space=vmem, size = 0x4000, scoped, tag = 'input window, operand 8, single buffered']
    #allocation5 [shape = 's32[1]{0}', space=sflag, size = 0x4, scoped, tag = 'scoped memory for run.3']
    #allocation6 [shape = 'u8[512]{0}', space=vmem, size = 0x400, scoped, tag = 'input window, operand 13, single buffered']
    %19 = vsyncpa [#allocation3], 0
    %20 = vsyncpa [#allocation5], 0
    loop: start=0, step=1, limit=4
    $region2: #{run.3} parent=1 // loop_pre_header
      _
    $region3: #{run.3} parent=1 // loop_header
      %s22 = sphi 0, %s26
      %p23 = scmp.ge.s32.totalorder %s22, 4
      %s32 = sphi 0, %s34
      %s35 = sphi 0, %s32
      %s36 = sphi 0, %s35
      %s52 = sphi 0, %s36
      %s58 = sphi 0, %s60
      %s61 = sphi 0, %s58
      %s62 = sphi 0, %s61
      %s78 = sphi 0, %s62
      %s82 = sphi 0, %s82
      %s84 = sphi 0, %s82
      %s85 = sphi 0, %s84
      %s99 = sphi 0, %s85
      %s103 = sphi 0, %s103
      %s105 = sphi 0, %s103
      %s106 = sphi 0, %s105
      %s120 = sphi 0, %s106
      %s124 = sphi 0, %s124
      %s126 = sphi 0, %s124
      %s127 = sphi 0, %s126
      %s141 = sphi 0, %s127
      %s145 = sphi 0, %s145
      %s147 = sphi 0, %s145
      %s148 = sphi 0, %s147
      %s162 = sphi 0, %s148
      %s166 = sphi 0, %s166
      %s168 = sphi 0, %s166
      %s169 = sphi 0, %s168
      %s183 = sphi 0, %s169
      %s187 = sphi 0, %s187
      %s189 = sphi 0, %s187
      %s190 = sphi 0, %s189
      %s204 = sphi 0, %s190
      %s208 = sphi 0, %s208
      %s210 = sphi 0, %s208
      %s211 = sphi 0, %s210
      %s225 = sphi 0, %s211
      %s229 = sphi 0, %s229
      %s231 = sphi 0, %s229
      %s232 = sphi 0, %s231
      %s246 = sphi 0, %s232
      %s250 = sphi 0, %s250
      %s252 = sphi 0, %s250
      %s253 = sphi 0, %s252
      %s267 = sphi 0, %s253
      %s271 = sphi 0, %s271
      %s273 = sphi 0, %s271
      %s274 = sphi 0, %s273
      %s288 = sphi 0, %s274
      %s292 = sphi 0, %s292
      %s294 = sphi 0, %s292
      %s295 = sphi 0, %s294
      %s309 = sphi 0, %s295
      %s313 = sphi 0, %s313
      %s315 = sphi 0, %s313
      %s316 = sphi 0, %s315
      %s330 = sphi 0, %s316
      %s336 = sphi 0, %s338
      %s339 = sphi 0, %s336
      %s340 = sphi 0, %s339
      %s356 = sphi 0, %s340
    $region4: #{run.3} parent=1 // loop_header_branch
      %25 = sbr.rel (%p23) target = $region8
    $region5: #{run.3} parent=1 // loop_body
      %s27 = ssub.s32 %s22, 1
      %s28 = ssub.s32 %s22, 2
      %s29 = sadd.s32 %s22, 1
      %s30 = ssub.s32 %s22, %s29
      %p31 = scmp.eq.s32.totalorder %s30, 0
      %s33 = sadd.s32 %s32, 1
      %s34 = scalar_select %p31, %s32, %s33
      %p37 = pneg %p31
      %p38 = scmp.eq.s32.totalorder %s22, 1
      %p39 = por %p37, %p38
      %p40 = scmp.ne.s32.totalorder %s32, %s35
      %p41 = scmp.eq.s32.totalorder %s22, 0
      %p42 = por %p40, %p41
      %p43 = scmp.ne.s32.totalorder %s32, %s35
      %p44 = scmp.eq.s32.totalorder %s27, 1
      %p45 = por %p43, %p44
      %p46 = scmp.ne.s32.totalorder %s35, %s36
      %p47 = scmp.eq.s32.totalorder %s27, 0
      %p48 = por %p46, %p47
      %p49 = scmp.ne.s32.totalorder %s35, %s36
      %p50 = scmp.eq.s32.totalorder %s28, 1
      %p51 = por %p49, %p50
      %p53 = scmp.ne.s32.totalorder %s36, %s52
      %p54 = scmp.eq.s32.totalorder %s28, 0
      %p55 = por %p53, %p54
      %s56 = ssub.s32 %s22, %s29
      %p57 = scmp.eq.s32.totalorder %s56, 0
      %s59 = sadd.s32 %s58, 1
      %s60 = scalar_select %p57, %s58, %s59
      %p63 = pneg %p57
      %p64 = scmp.eq.s32.totalorder %s22, 1
      %p65 = por %p63, %p64
      %p66 = scmp.ne.s32.totalorder %s58, %s61
      %p67 = scmp.eq.s32.totalorder %s22, 0
      %p68 = por %p66, %p67
      %p69 = scmp.ne.s32.totalorder %s58, %s61
      %p70 = scmp.eq.s32.totalorder %s27, 1
      %p71 = por %p69, %p70
      %p72 = scmp.ne.s32.totalorder %s61, %s62
      %p73 = scmp.eq.s32.totalorder %s27, 0
      %p74 = por %p72, %p73
      %p75 = scmp.ne.s32.totalorder %s61, %s62
      %p76 = scmp.eq.s32.totalorder %s28, 1
      %p77 = por %p75, %p76
      %p79 = scmp.ne.s32.totalorder %s62, %s78
      %p80 = scmp.eq.s32.totalorder %s28, 0
      %p81 = por %p79, %p80
      %s83 = sadd.s32 %s82, 1
      %p86 = scmp.eq.s32.totalorder %s22, 1
      %p87 = scmp.ne.s32.totalorder %s82, %s84
      %p88 = scmp.eq.s32.totalorder %s22, 0
      %p89 = por %p87, %p88
      %p90 = scmp.ne.s32.totalorder %s82, %s84
      %p91 = scmp.eq.s32.totalorder %s27, 1
      %p92 = por %p90, %p91
      %p93 = scmp.ne.s32.totalorder %s84, %s85
      %p94 = scmp.eq.s32.totalorder %s27, 0
      %p95 = por %p93, %p94
      %p96 = scmp.ne.s32.totalorder %s84, %s85
      %p97 = scmp.eq.s32.totalorder %s28, 1
      %p98 = por %p96, %p97
      %p100 = scmp.ne.s32.totalorder %s85, %s99
      %p101 = scmp.eq.s32.totalorder %s28, 0
      %p102 = por %p100, %p101
      %s104 = sadd.s32 %s103, 1
      %p107 = scmp.eq.s32.totalorder %s22, 1
      %p108 = scmp.ne.s32.totalorder %s103, %s105
      %p109 = scmp.eq.s32.totalorder %s22, 0
      %p110 = por %p108, %p109
      %p111 = scmp.ne.s32.totalorder %s103, %s105
      %p112 = scmp.eq.s32.totalorder %s27, 1
      %p113 = por %p111, %p112
      %p114 = scmp.ne.s32.totalorder %s105, %s106
      %p115 = scmp.eq.s32.totalorder %s27, 0
      %p116 = por %p114, %p115
      %p117 = scmp.ne.s32.totalorder %s105, %s106
      %p118 = scmp.eq.s32.totalorder %s28, 1
      %p119 = por %p117, %p118
      %p121 = scmp.ne.s32.totalorder %s106, %s120
      %p122 = scmp.eq.s32.totalorder %s28, 0
      %p123 = por %p121, %p122
      %s125 = sadd.s32 %s124, 1
      %p128 = scmp.eq.s32.totalorder %s22, 1
      %p129 = scmp.ne.s32.totalorder %s124, %s126
      %p130 = scmp.eq.s32.totalorder %s22, 0
      %p131 = por %p129, %p130
      %p132 = scmp.ne.s32.totalorder %s124, %s126
      %p133 = scmp.eq.s32.totalorder %s27, 1
      %p134 = por %p132, %p133
      %p135 = scmp.ne.s32.totalorder %s126, %s127
      %p136 = scmp.eq.s32.totalorder %s27, 0
      %p137 = por %p135, %p136
      %p138 = scmp.ne.s32.totalorder %s126, %s127
      %p139 = scmp.eq.s32.totalorder %s28, 1
      %p140 = por %p138, %p139
      %p142 = scmp.ne.s32.totalorder %s127, %s141
      %p143 = scmp.eq.s32.totalorder %s28, 0
      %p144 = por %p142, %p143
      %s146 = sadd.s32 %s145, 1
      %p149 = scmp.eq.s32.totalorder %s22, 1
      %p150 = scmp.ne.s32.totalorder %s145, %s147
      %p151 = scmp.eq.s32.totalorder %s22, 0
      %p152 = por %p150, %p151
      %p153 = scmp.ne.s32.totalorder %s145, %s147
      %p154 = scmp.eq.s32.totalorder %s27, 1
      %p155 = por %p153, %p154
      %p156 = scmp.ne.s32.totalorder %s147, %s148
      %p157 = scmp.eq.s32.totalorder %s27, 0
      %p158 = por %p156, %p157
      %p159 = scmp.ne.s32.totalorder %s147, %s148
      %p160 = scmp.eq.s32.totalorder %s28, 1
      %p161 = por %p159, %p160
      %p163 = scmp.ne.s32.totalorder %s148, %s162
      %p164 = scmp.eq.s32.totalorder %s28, 0
      %p165 = por %p163, %p164
      %s167 = sadd.s32 %s166, 1
      %p170 = scmp.eq.s32.totalorder %s22, 1
      %p171 = scmp.ne.s32.totalorder %s166, %s168
      %p172 = scmp.eq.s32.totalorder %s22, 0
      %p173 = por %p171, %p172
      %p174 = scmp.ne.s32.totalorder %s166, %s168
      %p175 = scmp.eq.s32.totalorder %s27, 1
      %p176 = por %p174, %p175
      %p177 = scmp.ne.s32.totalorder %s168, %s169
      %p178 = scmp.eq.s32.totalorder %s27, 0
      %p179 = por %p177, %p178
      %p180 = scmp.ne.s32.totalorder %s168, %s169
      %p181 = scmp.eq.s32.totalorder %s28, 1
      %p182 = por %p180, %p181
      %p184 = scmp.ne.s32.totalorder %s169, %s183
      %p185 = scmp.eq.s32.totalorder %s28, 0
      %p186 = por %p184, %p185
      %s188 = sadd.s32 %s187, 1
      %p191 = scmp.eq.s32.totalorder %s22, 1
      %p192 = scmp.ne.s32.totalorder %s187, %s189
      %p193 = scmp.eq.s32.totalorder %s22, 0
      %p194 = por %p192, %p193
      %p195 = scmp.ne.s32.totalorder %s187, %s189
      %p196 = scmp.eq.s32.totalorder %s27, 1
      %p197 = por %p195, %p196
      %p198 = scmp.ne.s32.totalorder %s189, %s190
      %p199 = scmp.eq.s32.totalorder %s27, 0
      %p200 = por %p198, %p199
      %p201 = scmp.ne.s32.totalorder %s189, %s190
      %p202 = scmp.eq.s32.totalorder %s28, 1
      %p203 = por %p201, %p202
      %p205 = scmp.ne.s32.totalorder %s190, %s204
      %p206 = scmp.eq.s32.totalorder %s28, 0
      %p207 = por %p205, %p206
      %s209 = sadd.s32 %s208, 1
      %p212 = scmp.eq.s32.totalorder %s22, 1
      %p213 = scmp.ne.s32.totalorder %s208, %s210
      %p214 = scmp.eq.s32.totalorder %s22, 0
      %p215 = por %p213, %p214
      %p216 = scmp.ne.s32.totalorder %s208, %s210
      %p217 = scmp.eq.s32.totalorder %s27, 1
      %p218 = por %p216, %p217
      %p219 = scmp.ne.s32.totalorder %s210, %s211
      %p220 = scmp.eq.s32.totalorder %s27, 0
      %p221 = por %p219, %p220
      %p222 = scmp.ne.s32.totalorder %s210, %s211
      %p223 = scmp.eq.s32.totalorder %s28, 1
      %p224 = por %p222, %p223
      %p226 = scmp.ne.s32.totalorder %s211, %s225
      %p227 = scmp.eq.s32.totalorder %s28, 0
      %p228 = por %p226, %p227
      %s230 = sadd.s32 %s229, 1
      %p233 = scmp.eq.s32.totalorder %s22, 1
      %p234 = scmp.ne.s32.totalorder %s229, %s231
      %p235 = scmp.eq.s32.totalorder %s22, 0
      %p236 = por %p234, %p235
      %p237 = scmp.ne.s32.totalorder %s229, %s231
      %p238 = scmp.eq.s32.totalorder %s27, 1
      %p239 = por %p237, %p238
      %p240 = scmp.ne.s32.totalorder %s231, %s232
      %p241 = scmp.eq.s32.totalorder %s27, 0
      %p242 = por %p240, %p241
      %p243 = scmp.ne.s32.totalorder %s231, %s232
      %p244 = scmp.eq.s32.totalorder %s28, 1
      %p245 = por %p243, %p244
      %p247 = scmp.ne.s32.totalorder %s232, %s246
      %p248 = scmp.eq.s32.totalorder %s28, 0
      %p249 = por %p247, %p248
      %s251 = sadd.s32 %s250, 1
      %p254 = scmp.eq.s32.totalorder %s22, 1
      %p255 = scmp.ne.s32.totalorder %s250, %s252
      %p256 = scmp.eq.s32.totalorder %s22, 0
      %p257 = por %p255, %p256
      %p258 = scmp.ne.s32.totalorder %s250, %s252
      %p259 = scmp.eq.s32.totalorder %s27, 1
      %p260 = por %p258, %p259
      %p261 = scmp.ne.s32.totalorder %s252, %s253
      %p262 = scmp.eq.s32.totalorder %s27, 0
      %p263 = por %p261, %p262
      %p264 = scmp.ne.s32.totalorder %s252, %s253
      %p265 = scmp.eq.s32.totalorder %s28, 1
      %p266 = por %p264, %p265
      %p268 = scmp.ne.s32.totalorder %s253, %s267
      %p269 = scmp.eq.s32.totalorder %s28, 0
      %p270 = por %p268, %p269
      %s272 = sadd.s32 %s271, 1
      %p275 = scmp.eq.s32.totalorder %s22, 1
      %p276 = scmp.ne.s32.totalorder %s271, %s273
      %p277 = scmp.eq.s32.totalorder %s22, 0
      %p278 = por %p276, %p277
      %p279 = scmp.ne.s32.totalorder %s271, %s273
      %p280 = scmp.eq.s32.totalorder %s27, 1
      %p281 = por %p279, %p280
      %p282 = scmp.ne.s32.totalorder %s273, %s274
      %p283 = scmp.eq.s32.totalorder %s27, 0
      %p284 = por %p282, %p283
      %p285 = scmp.ne.s32.totalorder %s273, %s274
      %p286 = scmp.eq.s32.totalorder %s28, 1
      %p287 = por %p285, %p286
      %p289 = scmp.ne.s32.totalorder %s274, %s288
      %p290 = scmp.eq.s32.totalorder %s28, 0
      %p291 = por %p289, %p290
      %s293 = sadd.s32 %s292, 1
      %p296 = scmp.eq.s32.totalorder %s22, 1
      %p297 = scmp.ne.s32.totalorder %s292, %s294
      %p298 = scmp.eq.s32.totalorder %s22, 0
      %p299 = por %p297, %p298
      %p300 = scmp.ne.s32.totalorder %s292, %s294
      %p301 = scmp.eq.s32.totalorder %s27, 1
      %p302 = por %p300, %p301
      %p303 = scmp.ne.s32.totalorder %s294, %s295
      %p304 = scmp.eq.s32.totalorder %s27, 0
      %p305 = por %p303, %p304
      %p306 = scmp.ne.s32.totalorder %s294, %s295
      %p307 = scmp.eq.s32.totalorder %s28, 1
      %p308 = por %p306, %p307
      %p310 = scmp.ne.s32.totalorder %s295, %s309
      %p311 = scmp.eq.s32.totalorder %s28, 0
      %p312 = por %p310, %p311
      %s314 = sadd.s32 %s313, 1
      %p317 = scmp.eq.s32.totalorder %s22, 1
      %p318 = scmp.ne.s32.totalorder %s313, %s315
      %p319 = scmp.eq.s32.totalorder %s22, 0
      %p320 = por %p318, %p319
      %p321 = scmp.ne.s32.totalorder %s313, %s315
      %p322 = scmp.eq.s32.totalorder %s27, 1
      %p323 = por %p321, %p322
      %p324 = scmp.ne.s32.totalorder %s315, %s316
      %p325 = scmp.eq.s32.totalorder %s27, 0
      %p326 = por %p324, %p325
      %p327 = scmp.ne.s32.totalorder %s315, %s316
      %p328 = scmp.eq.s32.totalorder %s28, 1
      %p329 = por %p327, %p328
      %p331 = scmp.ne.s32.totalorder %s316, %s330
      %p332 = scmp.eq.s32.totalorder %s28, 0
      %p333 = por %p331, %p332
      %s334 = ssub.s32 %s22, %s29
      %p335 = scmp.eq.s32.totalorder %s334, 0
      %s337 = sadd.s32 %s336, 1
      %s338 = scalar_select %p335, %s336, %s337
      %p341 = pneg %p335
      %p342 = scmp.eq.s32.totalorder %s22, 1
      %p343 = por %p341, %p342
      %p344 = scmp.ne.s32.totalorder %s336, %s339
      %p345 = scmp.eq.s32.totalorder %s22, 0
      %p346 = por %p344, %p345
      %p347 = scmp.ne.s32.totalorder %s336, %s339
      %p348 = scmp.eq.s32.totalorder %s27, 1
      %p349 = por %p347, %p348
      %p350 = scmp.ne.s32.totalorder %s339, %s340
      %p351 = scmp.eq.s32.totalorder %s27, 0
      %p352 = por %p350, %p351
      %p353 = scmp.ne.s32.totalorder %s339, %s340
      %p354 = scmp.eq.s32.totalorder %s28, 1
      %p355 = por %p353, %p354
      %p357 = scmp.ne.s32.totalorder %s340, %s356
      %p358 = scmp.eq.s32.totalorder %s28, 0
      %p359 = por %p357, %p358
      %p360 = scmp.le.s32.totalorder 1, %s22
      %p361 = scmp.lt.s32.totalorder %s22, 3
      %p362 = pnand %p360, %p361
      %p363 = pneg %p362
      // Predicated region
      $region9: #{run.3} parent=5 // pred_check
        _
      $region10: #{run.3} parent=5 // pred_check_branch
        %365 = sbr.rel (%p362) target = $region12
      $region11: #{run.3} parent=5 // pred_region
        %s366 = ssub.s32 %s22, 1
        // Predicated region
        $region13: #{run.3} parent=11 // pred_check
          %p367 = pneg %p95
        $region14: #{run.3} parent=11 // pred_check_branch
          %369 = sbr.rel (%p367) target = $region16
        $region15: #{run.3} parent=11 // pred_region
          %s371 = ssub.s32 1024, 1024
          %372 = vsyncadd [#allocation3], %s371
          %s373 = sshll.u32 [#allocation2], 4
          %s374 = int_to_ptr.vmem [resolvable:$true] %s373
          %379 = dma.hbm_to_vmem [thread:$0]  %s2, 1024, %s374, [#allocation3], 128, 128, 8
        $region16: #{run.3} parent=11 // pred_fallthru
          _
        // Predicated region
        $region17: #{run.3} parent=11 // pred_check
          %p380 = pneg %p116
        $region18: #{run.3} parent=11 // pred_check_branch
          %382 = sbr.rel (%p380) target = $region20
        $region19: #{run.3} parent=11 // pred_region
          _
        $region20: #{run.3} parent=11 // pred_fallthru
          _
        // Predicated region
        $region21: #{run.3} parent=11 // pred_check
          %p383 = pneg %p137
        $region22: #{run.3} parent=11 // pred_check_branch
          %385 = sbr.rel (%p383) target = $region24
        $region23: #{run.3} parent=11 // pred_region
          _
        $region24: #{run.3} parent=11 // pred_fallthru
          _
        // Predicated region
        $region25: #{run.3} parent=11 // pred_check
          %p386 = pneg %p158
        $region26: #{run.3} parent=11 // pred_check_branch
          %388 = sbr.rel (%p386) target = $region28
        $region27: #{run.3} parent=11 // pred_region
          _
        $region28: #{run.3} parent=11 // pred_fallthru
          _
        // Predicated region
        $region29: #{run.3} parent=11 // pred_check
          %p389 = pneg %p179
        $region30: #{run.3} parent=11 // pred_check_branch
          %391 = sbr.rel (%p389) target = $region32
        $region31: #{run.3} parent=11 // pred_region
          _
        $region32: #{run.3} parent=11 // pred_fallthru
          _
        // Predicated region
        $region33: #{run.3} parent=11 // pred_check
          %p392 = pneg %p200
        $region34: #{run.3} parent=11 // pred_check_branch
          %394 = sbr.rel (%p392) target = $region36
        $region35: #{run.3} parent=11 // pred_region
          _
        $region36: #{run.3} parent=11 // pred_fallthru
          _
        // Predicated region
        $region37: #{run.3} parent=11 // pred_check
          %p395 = pneg %p221
        $region38: #{run.3} parent=11 // pred_check_branch
          %397 = sbr.rel (%p395) target = $region40
        $region39: #{run.3} parent=11 // pred_region
          %s399 = ssub.s32 512, 512
          %400 = vsyncadd [#allocation5], %s399
          %s401 = sshll.u32 [#allocation4], 4
          %s402 = int_to_ptr.vmem [resolvable:$true] %s401
          %407 = dma.hbm_to_vmem [thread:$0]  %s8, 512, %s402, [#allocation5], 64, 64, 4
        $region40: #{run.3} parent=11 // pred_fallthru
          _
        // Predicated region
        $region41: #{run.3} parent=11 // pred_check
          %p408 = pneg %p242
        $region42: #{run.3} parent=11 // pred_check_branch
          %410 = sbr.rel (%p408) target = $region44
        $region43: #{run.3} parent=11 // pred_region
          _
        $region44: #{run.3} parent=11 // pred_fallthru
          _
        // Predicated region
        $region45: #{run.3} parent=11 // pred_check
          %p411 = pneg %p263
        $region46: #{run.3} parent=11 // pred_check_branch
          %413 = sbr.rel (%p411) target = $region48
        $region47: #{run.3} parent=11 // pred_region
          _
        $region48: #{run.3} parent=11 // pred_fallthru
          _
        // Predicated region
        $region49: #{run.3} parent=11 // pred_check
          %p414 = pneg %p284
        $region50: #{run.3} parent=11 // pred_check_branch
          %416 = sbr.rel (%p414) target = $region52
        $region51: #{run.3} parent=11 // pred_region
          _
        $region52: #{run.3} parent=11 // pred_fallthru
          _
        // Predicated region
        $region53: #{run.3} parent=11 // pred_check
          %p417 = pneg %p305
        $region54: #{run.3} parent=11 // pred_check_branch
          %419 = sbr.rel (%p417) target = $region56
        $region55: #{run.3} parent=11 // pred_region
          _
        $region56: #{run.3} parent=11 // pred_fallthru
          _
        // Predicated region
        $region57: #{run.3} parent=11 // pred_check
          %p420 = pneg %p326
        $region58: #{run.3} parent=11 // pred_check_branch
          %422 = sbr.rel (%p420) target = $region60
        $region59: #{run.3} parent=11 // pred_region
          %s424 = ssub.s32 16, 16
          %425 = vsyncadd [#allocation5], %s424
          %s427 = sshll.u32 [#allocation6], 4
          %s428 = int_to_ptr.vmem [resolvable:$true] %s427
          %430 = dma.hbm_to_vmem [thread:$0]  %s13, 16, %s428, [#allocation5]
        $region60: #{run.3} parent=11 // pred_fallthru
          _
      $region12: #{run.3} parent=5 // pred_fallthru
        _
      %p431 = scmp.lt.s32.totalorder %s22, 2
      // Predicated region
      $region61: #{run.3} parent=5 // pred_check
        %p432 = pneg %p431
      $region62: #{run.3} parent=5 // pred_check_branch
        %434 = sbr.rel (%p432) target = $region64
      $region63: #{run.3} parent=5 // pred_region
        // Predicated region
        $region65: #{run.3} parent=63 // pred_check
          %p435 = pneg %p42
        $region66: #{run.3} parent=63 // pred_check_branch
          %437 = sbr.rel (%p435) target = $region68
        $region67: #{run.3} parent=63 // pred_region
          %p438 = scmp.lt.s32.totalorder %s22, 1
          %s439 = scalar_select %p438, %s22, 1
          %s440 = smul.addr %s439, 8
          %s441 = scalar_lea.vmem %s0, %s440
        $region68: #{run.3} parent=63 // pred_fallthru
          _
        // Predicated region
        $region69: #{run.3} parent=63 // pred_check
          %p442 = pneg %p68
        $region70: #{run.3} parent=63 // pred_check_branch
          %444 = sbr.rel (%p442) target = $region72
        $region71: #{run.3} parent=63 // pred_region
          %p445 = scmp.lt.s32.totalorder %s22, 1
          %s446 = scalar_select %p445, %s22, 1
          %s447 = scalar_lea.vmem %s1, %s446
        $region72: #{run.3} parent=63 // pred_fallthru
          _
      $region64: #{run.3} parent=5 // pred_fallthru
        _
      %p448 = scmp.le.s32.totalorder 1, %s22
      %p449 = scmp.lt.s32.totalorder %s22, 3
      %p450 = pnand %p448, %p449
      %p451 = pneg %p450
      // Predicated region
      $region73: #{run.3} parent=5 // pred_check
        _
      $region74: #{run.3} parent=5 // pred_check_branch
        %453 = sbr.rel (%p450) target = $region76
      $region75: #{run.3} parent=5 // pred_region
        %s454 = ssub.s32 %s22, 1
        // Predicated region
        $region77: #{run.3} parent=75 // pred_check
          %p455 = pneg %p95
        $region78: #{run.3} parent=75 // pred_check_branch
          %457 = sbr.rel (%p455) target = $region80
        $region79: #{run.3} parent=75 // pred_region
          %458 = dma.done [#allocation3], 1024
        $region80: #{run.3} parent=75 // pred_fallthru
          _
        // Predicated region
        $region81: #{run.3} parent=75 // pred_check
          %p459 = pneg %p221
        $region82: #{run.3} parent=75 // pred_check_branch
          %461 = sbr.rel (%p459) target = $region84
        $region83: #{run.3} parent=75 // pred_region
          %462 = dma.done [#allocation5], 512
        $region84: #{run.3} parent=75 // pred_fallthru
          _
        // Predicated region
        $region85: #{run.3} parent=75 // pred_check
          %p463 = pneg %p326
        $region86: #{run.3} parent=75 // pred_check_branch
          %465 = sbr.rel (%p463) target = $region88
        $region87: #{run.3} parent=75 // pred_region
          %466 = dma.done [#allocation5], 16
        $region88: #{run.3} parent=75 // pred_fallthru
          _
        %p467 = scmp.lt.s32.totalorder %s27, 1
        %s468 = scalar_select %p467, %s27, 1
        %s469 = smul.addr %s468, 8
        %s470 = scalar_lea.vmem %s0, %s469
        %p471 = pneg %p48
        %p472 = pneg %p45
        %p473 = scmp.lt.s32.totalorder %s27, 1
        %s474 = scalar_select %p473, %s27, 1
        %s475 = scalar_lea.vmem %s1, %s474
        %p476 = pneg %p74
        %p477 = pneg %p71
        %p478 = pneg %p95
        %p479 = pneg %p92
        %p480 = pneg %p116
        %p481 = pneg %p113
        %p482 = pneg %p137
        %p483 = pneg %p134
        %p484 = pneg %p158
        %p485 = pneg %p155
        %p486 = pneg %p179
        %p487 = pneg %p176
        %p488 = pneg %p200
        %p489 = pneg %p197
        %p490 = pneg %p221
        %p491 = pneg %p218
        %p492 = pneg %p242
        %p493 = pneg %p239
        %p494 = pneg %p263
        %p495 = pneg %p260
        %p496 = pneg %p284
        %p497 = pneg %p281
        %p498 = pneg %p305
        %p499 = pneg %p302
        %p500 = pneg %p326
        %p501 = pneg %p323
        %p502 = pneg %p352
        %p503 = pneg %p349
        %p504 = scmp.lt.s32.totalorder %s27, 1
        %s505 = scalar_select %p504, %s27, 1
        %s506 = smul.addr %s505, 8
        %s507 = scalar_lea.vmem %s14, %s506
        %p508 = scmp.lt.s32.totalorder %s27, 1
        %s509 = scalar_select %p508, %s27, 1
        %s510 = smul.addr %s509, 8
        %s511 = scalar_lea.vmem %s0, %s510
        %p512 = scmp.lt.s32.totalorder %s27, 1
        %s513 = scalar_select %p512, %s27, 1
        %s514 = scalar_lea.vmem %s1, %s513
        %p515 = scmp.lt.s32.totalorder %s27, 1
        %s516 = scalar_select %p515, %s27, 1
        %s517 = smul.addr %s516, 8
        %s518 = scalar_lea.vmem %s14, %s517
        %v520 = vld [vmem:[%s511] sm:$0xff]
        %v521 = vpack.c.bf16 %v520, %v520
        %v522 = vld [vmem:[#allocation2] sm:$0xff]
        %v523 = vld [vmem:[#allocation2 + $0x8] sm:$0xff]
        %v524 = vld [vmem:[#allocation2 + $0x10] sm:$0xff]
        %v525 = vld [vmem:[#allocation2 + $0x18] sm:$0xff]
        %v526 = vld [vmem:[#allocation2 + $0x20] sm:$0xff]
        %v527 = vld [vmem:[#allocation2 + $0x28] sm:$0xff]
        %v528 = vld [vmem:[#allocation2 + $0x30] sm:$0xff]
        %v529 = vld [vmem:[#allocation2 + $0x38] sm:$0xff]
        %v530 = vld [vmem:[%s3] sm:$0x3]
        %v532 = vlaneseq
        %v533 = vshrl.u32 %v532, 7
        %v534 = vsub.s32 0, %v533
        %v535 = vrot.slane %v530, %v534
        %v536 = vlaneseq
        %v537 = vshrl.u32 %v536, 7
        %v538 = vsub.s32 1, %v537
        %v539 = vrot.slane %v530, %v538
        %v550 = vunpack.c.l.b16 %v522
        %v551 = vunpack.c.h.b16 %v522
        %v552 = vunpack.c.l.b16 %v523
        %v553 = vunpack.c.h.b16 %v523
        %v554 = vunpack.c.l.b16 %v524
        %v555 = vunpack.c.h.b16 %v524
        %v556 = vunpack.c.l.b16 %v525
        %v557 = vunpack.c.h.b16 %v525
        %v558 = vunpack.c.l.b16 %v526
        %v559 = vunpack.c.h.b16 %v526
        %v560 = vunpack.c.l.b16 %v527
        %v561 = vunpack.c.h.b16 %v527
        %v562 = vunpack.c.l.b16 %v528
        %v563 = vunpack.c.h.b16 %v528
        %v564 = vunpack.c.l.b16 %v529
        %v565 = vunpack.c.h.b16 %v529
        %v566 = vpack.c.b16 %v552, %v550
        %v567 = vpack.c.b16 %v553, %v551
        %v568 = vpack.c.b16 %v556, %v554
        %v569 = vpack.c.b16 %v557, %v555
        %v570 = vpack.c.b16 %v560, %v558
        %v571 = vpack.c.b16 %v561, %v559
        %v572 = vpack.c.b16 %v564, %v562
        %v573 = vpack.c.b16 %v565, %v563
        %vm582 = vcmask 523264
        %v584 = vsel %vm582, %v521, 0
        %586 = vmatprep.subr.bf16.mxu0 %v567
        %587 = vmatpush1.bf16.msra.mxu0 %v566
        %588 = vmatprep.subr.bf16.mxu0 %v569
        %589 = vmatpush1.bf16.msra.mxu0 %v568
        %590 = vmatprep.subr.bf16.mxu0 %v571
        %591 = vmatpush1.bf16.msra.mxu0 %v570
        %592 = vmatprep.subr.bf16.mxu0 %v573
        %593 = vmatpush1.bf16.msra.mxu0 %v572
        %594 = vmatprep.subr.bf16.mxu0 0
        %595 = vmatpush1.bf16.msra.mxu0 0
        %596 = vmatprep.subr.bf16.mxu0 0
        %597 = vmatpush1.bf16.msra.mxu0 0
        %598 = vmatprep.subr.bf16.mxu0 0
        %599 = vmatpush1.bf16.msra.mxu0 0
        %600 = vmatprep.subr.bf16.mxu0 0
        %601 = vmatpush1.bf16.msra.mxu0 0
        %602 = vmatprep.subr.bf16.mxu0 0
        %603 = vmatpush1.bf16.msra.mxu0 0
        %604 = vmatprep.subr.bf16.mxu0 0
        %605 = vmatpush1.bf16.msra.mxu0 0
        %606 = vmatprep.subr.bf16.mxu0 0
        %607 = vmatpush1.bf16.msra.mxu0 0
        %608 = vmatprep.subr.bf16.mxu0 0
        %609 = vmatpush1.bf16.msra.mxu0 0
        %610 = vmatprep.subr.bf16.mxu0 0
        %611 = vmatpush1.bf16.msra.mxu0 0
        %612 = vmatprep.subr.bf16.mxu0 0
        %613 = vmatpush1.bf16.msra.mxu0 0
        %614 = vmatprep.subr.bf16.mxu0 0
        %615 = vmatpush1.bf16.msra.mxu0 0
        %616 = vmatprep.subr.bf16.mxu0 0
        %617 = vmatpush1.bf16.msra.mxu0 0
        %618 = vmatprep.mubr.bf16.mxu0 0
        %619 = vmatmul.mubr.bf16.gmra.mrb[0].mxu0 %v584
        %v620 = vpop.f32.mrb[0].mxu0
        %v621 = vadd.f32 %v535, %v620
        %v622 = vpop.f32.mrb[0].mxu0
        %v623 = vadd.f32 %v539, %v622
        %v624 = vpop.f32.mrb[0].mxu0
        %v625 = vpop.f32.mrb[0].mxu0
        %626 = vdwg.mxu0
        %627 = vxpose.xlu0.b32.start [1/16] %v621, 128
        %628 = vxpose.xlu0.b32.cont [2/16] 0.0, 128
        %629 = vxpose.xlu0.b32.cont [3/16] 0.0, 128
        %630 = vxpose.xlu0.b32.cont [4/16] 0.0, 128
        %631 = vxpose.xlu0.b32.cont [5/16] 0.0, 128
        %632 = vxpose.xlu0.b32.cont [6/16] 0.0, 128
        %633 = vxpose.xlu0.b32.cont [7/16] 0.0, 128
        %634 = vxpose.xlu0.b32.cont [8/16] 0.0, 128
        %635 = vxpose.xlu0.b32.cont [9/16] 0.0, 128
        %636 = vxpose.xlu0.b32.cont [10/16] 0.0, 128
        %637 = vxpose.xlu0.b32.cont [11/16] 0.0, 128
        %638 = vxpose.xlu0.b32.cont [12/16] 0.0, 128
        %639 = vxpose.xlu0.b32.cont [13/16] 0.0, 128
        %640 = vxpose.xlu0.b32.cont [14/16] 0.0, 128
        %641 = vxpose.xlu0.b32.cont [15/16] 0.0, 128
        %642 = vxpose.xlu0.b32.end [16/16] 0.0, 128
        %v643 = vpop.trf.xlu0
        %v644 = vpop.trf.xlu0
        %v645 = vpop.trf.xlu0
        %v646 = vpop.trf.xlu0
        %v647 = vpop.trf.xlu0
        %v648 = vpop.trf.xlu0
        %v649 = vpop.trf.xlu0
        %v650 = vpop.trf.xlu0
        %v651 = vpop.trf.xlu0
        %v652 = vpop.trf.xlu0
        %v653 = vpop.trf.xlu0
        %v654 = vpop.trf.xlu0
        %v655 = vpop.trf.xlu0
        %v656 = vpop.trf.xlu0
        %v657 = vpop.trf.xlu0
        %v658 = vpop.trf.xlu0
        %659 = vxpose.xlu0.b32.start [1/16] %v623, 128
        %660 = vxpose.xlu0.b32.cont [2/16] 0.0, 128
        %661 = vxpose.xlu0.b32.cont [3/16] 0.0, 128
        %662 = vxpose.xlu0.b32.cont [4/16] 0.0, 128
        %663 = vxpose.xlu0.b32.cont [5/16] 0.0, 128
        %664 = vxpose.xlu0.b32.cont [6/16] 0.0, 128
        %665 = vxpose.xlu0.b32.cont [7/16] 0.0, 128
        %666 = vxpose.xlu0.b32.cont [8/16] 0.0, 128
        %667 = vxpose.xlu0.b32.cont [9/16] 0.0, 128
        %668 = vxpose.xlu0.b32.cont [10/16] 0.0, 128
        %669 = vxpose.xlu0.b32.cont [11/16] 0.0, 128
        %670 = vxpose.xlu0.b32.cont [12/16] 0.0, 128
        %671 = vxpose.xlu0.b32.cont [13/16] 0.0, 128
        %672 = vxpose.xlu0.b32.cont [14/16] 0.0, 128
        %673 = vxpose.xlu0.b32.cont [15/16] 0.0, 128
        %674 = vxpose.xlu0.b32.end [16/16] 0.0, 128
        %v675 = vpop.trf.xlu0
        %v676 = vpop.trf.xlu0
        %v677 = vpop.trf.xlu0
        %v678 = vpop.trf.xlu0
        %v679 = vpop.trf.xlu0
        %v680 = vpop.trf.xlu0
        %v681 = vpop.trf.xlu0
        %v682 = vpop.trf.xlu0
        %v683 = vpop.trf.xlu0
        %v684 = vpop.trf.xlu0
        %v685 = vpop.trf.xlu0
        %v686 = vpop.trf.xlu0
        %v687 = vpop.trf.xlu0
        %v688 = vpop.trf.xlu0
        %v689 = vpop.trf.xlu0
        %v690 = vpop.trf.xlu0
        %691 = vxpose.xlu0.b32.start [1/16] %v643, 128
        %692 = vxpose.xlu0.b32.cont [2/16] %v644, 128
        %693 = vxpose.xlu0.b32.cont [3/16] 0.0, 128
        %694 = vxpose.xlu0.b32.cont [4/16] 0.0, 128
        %695 = vxpose.xlu0.b32.cont [5/16] 0.0, 128
        %696 = vxpose.xlu0.b32.cont [6/16] 0.0, 128
        %697 = vxpose.xlu0.b32.cont [7/16] 0.0, 128
        %698 = vxpose.xlu0.b32.cont [8/16] 0.0, 128
        %699 = vxpose.xlu0.b32.cont [9/16] 0.0, 128
        %700 = vxpose.xlu0.b32.cont [10/16] 0.0, 128
        %701 = vxpose.xlu0.b32.cont [11/16] 0.0, 128
        %702 = vxpose.xlu0.b32.cont [12/16] 0.0, 128
        %703 = vxpose.xlu0.b32.cont [13/16] 0.0, 128
        %704 = vxpose.xlu0.b32.cont [14/16] 0.0, 128
        %705 = vxpose.xlu0.b32.cont [15/16] 0.0, 128
        %706 = vxpose.xlu0.b32.end [16/16] 0.0, 128
        %v707 = vpop.trf.xlu0
        %v708 = vpop.trf.xlu0
        %v709 = vpop.trf.xlu0
        %v710 = vpop.trf.xlu0
        %v711 = vpop.trf.xlu0
        %v712 = vpop.trf.xlu0
        %v713 = vpop.trf.xlu0
        %v714 = vpop.trf.xlu0
        %v715 = vpop.trf.xlu0
        %v716 = vpop.trf.xlu0
        %v717 = vpop.trf.xlu0
        %v718 = vpop.trf.xlu0
        %v719 = vpop.trf.xlu0
        %v720 = vpop.trf.xlu0
        %v721 = vpop.trf.xlu0
        %v722 = vpop.trf.xlu0
        %723 = vxpose.xlu0.b32.start [1/16] %v645, 128
        %724 = vxpose.xlu0.b32.cont [2/16] %v646, 128
        %725 = vxpose.xlu0.b32.cont [3/16] 0.0, 128
        %726 = vxpose.xlu0.b32.cont [4/16] 0.0, 128
        %727 = vxpose.xlu0.b32.cont [5/16] 0.0, 128
        %728 = vxpose.xlu0.b32.cont [6/16] 0.0, 128
        %729 = vxpose.xlu0.b32.cont [7/16] 0.0, 128
        %730 = vxpose.xlu0.b32.cont [8/16] 0.0, 128
        %731 = vxpose.xlu0.b32.cont [9/16] 0.0, 128
        %732 = vxpose.xlu0.b32.cont [10/16] 0.0, 128
        %733 = vxpose.xlu0.b32.cont [11/16] 0.0, 128
        %734 = vxpose.xlu0.b32.cont [12/16] 0.0, 128
        %735 = vxpose.xlu0.b32.cont [13/16] 0.0, 128
        %736 = vxpose.xlu0.b32.cont [14/16] 0.0, 128
        %737 = vxpose.xlu0.b32.cont [15/16] 0.0, 128
        %738 = vxpose.xlu0.b32.end [16/16] 0.0, 128
        %v739 = vpop.trf.xlu0
        %v740 = vpop.trf.xlu0
        %v741 = vpop.trf.xlu0
        %v742 = vpop.trf.xlu0
        %v743 = vpop.trf.xlu0
        %v744 = vpop.trf.xlu0
        %v745 = vpop.trf.xlu0
        %v746 = vpop.trf.xlu0
        %v747 = vpop.trf.xlu0
        %v748 = vpop.trf.xlu0
        %v749 = vpop.trf.xlu0
        %v750 = vpop.trf.xlu0
        %v751 = vpop.trf.xlu0
        %v752 = vpop.trf.xlu0
        %v753 = vpop.trf.xlu0
        %v754 = vpop.trf.xlu0
        %755 = vxpose.xlu0.b32.start [1/16] %v647, 128
        %756 = vxpose.xlu0.b32.cont [2/16] %v648, 128
        %757 = vxpose.xlu0.b32.cont [3/16] 0.0, 128
        %758 = vxpose.xlu0.b32.cont [4/16] 0.0, 128
        %759 = vxpose.xlu0.b32.cont [5/16] 0.0, 128
        %760 = vxpose.xlu0.b32.cont [6/16] 0.0, 128
        %761 = vxpose.xlu0.b32.cont [7/16] 0.0, 128
        %762 = vxpose.xlu0.b32.cont [8/16] 0.0, 128
        %763 = vxpose.xlu0.b32.cont [9/16] 0.0, 128
        %764 = vxpose.xlu0.b32.cont [10/16] 0.0, 128
        %765 = vxpose.xlu0.b32.cont [11/16] 0.0, 128
        %766 = vxpose.xlu0.b32.cont [12/16] 0.0, 128
        %767 = vxpose.xlu0.b32.cont [13/16] 0.0, 128
        %768 = vxpose.xlu0.b32.cont [14/16] 0.0, 128
        %769 = vxpose.xlu0.b32.cont [15/16] 0.0, 128
        %770 = vxpose.xlu0.b32.end [16/16] 0.0, 128
        %v771 = vpop.trf.xlu0
        %v772 = vpop.trf.xlu0
        %v773 = vpop.trf.xlu0
        %v774 = vpop.trf.xlu0
        %v775 = vpop.trf.xlu0
        %v776 = vpop.trf.xlu0
        %v777 = vpop.trf.xlu0
        %v778 = vpop.trf.xlu0
        %v779 = vpop.trf.xlu0
        %v780 = vpop.trf.xlu0
        %v781 = vpop.trf.xlu0
        %v782 = vpop.trf.xlu0
        %v783 = vpop.trf.xlu0
        %v784 = vpop.trf.xlu0
        %v785 = vpop.trf.xlu0
        %v786 = vpop.trf.xlu0
        %787 = vxpose.xlu0.b32.start [1/16] %v649, 128
        %788 = vxpose.xlu0.b32.cont [2/16] %v650, 128
        %789 = vxpose.xlu0.b32.cont [3/16] 0.0, 128
        %790 = vxpose.xlu0.b32.cont [4/16] 0.0, 128
        %791 = vxpose.xlu0.b32.cont [5/16] 0.0, 128
        %792 = vxpose.xlu0.b32.cont [6/16] 0.0, 128
        %793 = vxpose.xlu0.b32.cont [7/16] 0.0, 128
        %794 = vxpose.xlu0.b32.cont [8/16] 0.0, 128
        %795 = vxpose.xlu0.b32.cont [9/16] 0.0, 128
        %796 = vxpose.xlu0.b32.cont [10/16] 0.0, 128
        %797 = vxpose.xlu0.b32.cont [11/16] 0.0, 128
        %798 = vxpose.xlu0.b32.cont [12/16] 0.0, 128
        %799 = vxpose.xlu0.b32.cont [13/16] 0.0, 128
        %800 = vxpose.xlu0.b32.cont [14/16] 0.0, 128
        %801 = vxpose.xlu0.b32.cont [15/16] 0.0, 128
        %802 = vxpose.xlu0.b32.end [16/16] 0.0, 128
        %v803 = vpop.trf.xlu0
        %v804 = vpop.trf.xlu0
        %v805 = vpop.trf.xlu0
        %v806 = vpop.trf.xlu0
        %v807 = vpop.trf.xlu0
        %v808 = vpop.trf.xlu0
        %v809 = vpop.trf.xlu0
        %v810 = vpop.trf.xlu0
        %v811 = vpop.trf.xlu0
        %v812 = vpop.trf.xlu0
        %v813 = vpop.trf.xlu0
        %v814 = vpop.trf.xlu0
        %v815 = vpop.trf.xlu0
        %v816 = vpop.trf.xlu0
        %v817 = vpop.trf.xlu0
        %v818 = vpop.trf.xlu0
        %v819 = vpack.c.bf16 %v707, %v707
        %v820 = vpack.c.bf16 %v739, %v739
        %v821 = vpack.c.bf16 %v771, %v771
        %v822 = vpack.c.bf16 %v803, %v803
        %v823 = vpack.c.bf16 %v652, %v651
        %v824 = vpack.c.bf16 %v654, %v653
        %v825 = vpack.c.bf16 %v656, %v655
        %v826 = vpack.c.bf16 %v658, %v657
        %v827 = vpack.c.bf16 %v676, %v675
        %v828 = vpack.c.bf16 %v678, %v677
        %v829 = vpack.c.bf16 %v680, %v679
        %v830 = vpack.c.bf16 %v682, %v681
        %vm831 = vcmask 130048
        %v833 = vsel %vm831, %v819, 0
        %835 = vmatprep.subr.bf16.mxu0 0
        %836 = vmatpush1.bf16.msra.mxu0 %v823
        %837 = vmatprep.subr.bf16.mxu0 0
        %838 = vmatpush1.bf16.msra.mxu0 0
        %839 = vmatprep.subr.bf16.mxu0 0
        %840 = vmatpush1.bf16.msra.mxu0 0
        %841 = vmatprep.subr.bf16.mxu0 0
        %842 = vmatpush1.bf16.msra.mxu0 0
        %843 = vmatprep.subr.bf16.mxu0 0
        %844 = vmatpush1.bf16.msra.mxu0 0
        %845 = vmatprep.subr.bf16.mxu0 0
        %846 = vmatpush1.bf16.msra.mxu0 0
        %847 = vmatprep.subr.bf16.mxu0 0
        %848 = vmatpush1.bf16.msra.mxu0 0
        %849 = vmatprep.subr.bf16.mxu0 0
        %850 = vmatpush1.bf16.msra.mxu0 0
        %851 = vmatprep.subr.bf16.mxu0 0
        %852 = vmatpush1.bf16.msra.mxu0 0
        %853 = vmatprep.subr.bf16.mxu0 0
        %854 = vmatpush1.bf16.msra.mxu0 0
        %855 = vmatprep.subr.bf16.mxu0 0
        %856 = vmatpush1.bf16.msra.mxu0 0
        %857 = vmatprep.subr.bf16.mxu0 0
        %858 = vmatpush1.bf16.msra.mxu0 0
        %859 = vmatprep.subr.bf16.mxu0 0
        %860 = vmatpush1.bf16.msra.mxu0 0
        %861 = vmatprep.subr.bf16.mxu0 0
        %862 = vmatpush1.bf16.msra.mxu0 0
        %863 = vmatprep.subr.bf16.mxu0 0
        %864 = vmatpush1.bf16.msra.mxu0 0
        %865 = vmatprep.subr.bf16.mxu0 0
        %866 = vmatpush1.bf16.msra.mxu0 0
        %867 = vmatprep.mubr.bf16.mxu0 0
        %868 = vmatmul.mubr.bf16.gmra.mrb[0].mxu0 %v833
        %v869 = vpop.f32.mrb[0].mxu0
        %v870 = vadd.f32 0.0, %v869
        %v871 = vpop.f32.mrb[0].mxu0
        %v872 = vpop.f32.mrb[0].mxu0
        %v873 = vpop.f32.mrb[0].mxu0
        %874 = vdwg.mxu0
        %v876 = vsel %vm831, %v820, 0
        %878 = vmatprep.subr.bf16.mxu0 0
        %879 = vmatpush1.bf16.msra.mxu0 %v824
        %880 = vmatprep.subr.bf16.mxu0 0
        %881 = vmatpush1.bf16.msra.mxu0 0
        %882 = vmatprep.subr.bf16.mxu0 0
        %883 = vmatpush1.bf16.msra.mxu0 0
        %884 = vmatprep.subr.bf16.mxu0 0
        %885 = vmatpush1.bf16.msra.mxu0 0
        %886 = vmatprep.subr.bf16.mxu0 0
        %887 = vmatpush1.bf16.msra.mxu0 0
        %888 = vmatprep.subr.bf16.mxu0 0
        %889 = vmatpush1.bf16.msra.mxu0 0
        %890 = vmatprep.subr.bf16.mxu0 0
        %891 = vmatpush1.bf16.msra.mxu0 0
        %892 = vmatprep.subr.bf16.mxu0 0
        %893 = vmatpush1.bf16.msra.mxu0 0
        %894 = vmatprep.subr.bf16.mxu0 0
        %895 = vmatpush1.bf16.msra.mxu0 0
        %896 = vmatprep.subr.bf16.mxu0 0
        %897 = vmatpush1.bf16.msra.mxu0 0
        %898 = vmatprep.subr.bf16.mxu0 0
        %899 = vmatpush1.bf16.msra.mxu0 0
        %900 = vmatprep.subr.bf16.mxu0 0
        %901 = vmatpush1.bf16.msra.mxu0 0
        %902 = vmatprep.subr.bf16.mxu0 0
        %903 = vmatpush1.bf16.msra.mxu0 0
        %904 = vmatprep.subr.bf16.mxu0 0
        %905 = vmatpush1.bf16.msra.mxu0 0
        %906 = vmatprep.subr.bf16.mxu0 0
        %907 = vmatpush1.bf16.msra.mxu0 0
        %908 = vmatprep.subr.bf16.mxu0 0
        %909 = vmatpush1.bf16.msra.mxu0 0
        %910 = vmatprep.mubr.bf16.mxu0 0
        %911 = vmatmul.mubr.bf16.gmra.mrb[0].mxu0 %v876
        %v912 = vpop.f32.mrb[0].mxu0
        %v913 = vadd.f32 0.0, %v912
        %v914 = vpop.f32.mrb[0].mxu0
        %v915 = vpop.f32.mrb[0].mxu0
        %v916 = vpop.f32.mrb[0].mxu0
        %917 = vdwg.mxu0
        %v919 = vsel %vm831, %v821, 0
        %921 = vmatprep.subr.bf16.mxu0 0
        %922 = vmatpush1.bf16.msra.mxu0 %v825
        %923 = vmatprep.subr.bf16.mxu0 0
        %924 = vmatpush1.bf16.msra.mxu0 0
        %925 = vmatprep.subr.bf16.mxu0 0
        %926 = vmatpush1.bf16.msra.mxu0 0
        %927 = vmatprep.subr.bf16.mxu0 0
        %928 = vmatpush1.bf16.msra.mxu0 0
        %929 = vmatprep.subr.bf16.mxu0 0
        %930 = vmatpush1.bf16.msra.mxu0 0
        %931 = vmatprep.subr.bf16.mxu0 0
        %932 = vmatpush1.bf16.msra.mxu0 0
        %933 = vmatprep.subr.bf16.mxu0 0
        %934 = vmatpush1.bf16.msra.mxu0 0
        %935 = vmatprep.subr.bf16.mxu0 0
        %936 = vmatpush1.bf16.msra.mxu0 0
        %937 = vmatprep.subr.bf16.mxu0 0
        %938 = vmatpush1.bf16.msra.mxu0 0
        %939 = vmatprep.subr.bf16.mxu0 0
        %940 = vmatpush1.bf16.msra.mxu0 0
        %941 = vmatprep.subr.bf16.mxu0 0
        %942 = vmatpush1.bf16.msra.mxu0 0
        %943 = vmatprep.subr.bf16.mxu0 0
        %944 = vmatpush1.bf16.msra.mxu0 0
        %945 = vmatprep.subr.bf16.mxu0 0
        %946 = vmatpush1.bf16.msra.mxu0 0
        %947 = vmatprep.subr.bf16.mxu0 0
        %948 = vmatpush1.bf16.msra.mxu0 0
        %949 = vmatprep.subr.bf16.mxu0 0
        %950 = vmatpush1.bf16.msra.mxu0 0
        %951 = vmatprep.subr.bf16.mxu0 0
        %952 = vmatpush1.bf16.msra.mxu0 0
        %953 = vmatprep.mubr.bf16.mxu0 0
        %954 = vmatmul.mubr.bf16.gmra.mrb[0].mxu0 %v919
        %v955 = vpop.f32.mrb[0].mxu0
        %v956 = vadd.f32 0.0, %v955
        %v957 = vpop.f32.mrb[0].mxu0
        %v958 = vpop.f32.mrb[0].mxu0
        %v959 = vpop.f32.mrb[0].mxu0
        %960 = vdwg.mxu0
        %v962 = vsel %vm831, %v822, 0
        %964 = vmatprep.subr.bf16.mxu0 0
        %965 = vmatpush1.bf16.msra.mxu0 %v826
        %966 = vmatprep.subr.bf16.mxu0 0
        %967 = vmatpush1.bf16.msra.mxu0 0
        %968 = vmatprep.subr.bf16.mxu0 0
        %969 = vmatpush1.bf16.msra.mxu0 0
        %970 = vmatprep.subr.bf16.mxu0 0
        %971 = vmatpush1.bf16.msra.mxu0 0
        %972 = vmatprep.subr.bf16.mxu0 0
        %973 = vmatpush1.bf16.msra.mxu0 0
        %974 = vmatprep.subr.bf16.mxu0 0
        %975 = vmatpush1.bf16.msra.mxu0 0
        %976 = vmatprep.subr.bf16.mxu0 0
        %977 = vmatpush1.bf16.msra.mxu0 0
        %978 = vmatprep.subr.bf16.mxu0 0
        %979 = vmatpush1.bf16.msra.mxu0 0
        %980 = vmatprep.subr.bf16.mxu0 0
        %981 = vmatpush1.bf16.msra.mxu0 0
        %982 = vmatprep.subr.bf16.mxu0 0
        %983 = vmatpush1.bf16.msra.mxu0 0
        %984 = vmatprep.subr.bf16.mxu0 0
        %985 = vmatpush1.bf16.msra.mxu0 0
        %986 = vmatprep.subr.bf16.mxu0 0
        %987 = vmatpush1.bf16.msra.mxu0 0
        %988 = vmatprep.subr.bf16.mxu0 0
        %989 = vmatpush1.bf16.msra.mxu0 0
        %990 = vmatprep.subr.bf16.mxu0 0
        %991 = vmatpush1.bf16.msra.mxu0 0
        %992 = vmatprep.subr.bf16.mxu0 0
        %993 = vmatpush1.bf16.msra.mxu0 0
        %994 = vmatprep.subr.bf16.mxu0 0
        %995 = vmatpush1.bf16.msra.mxu0 0
        %996 = vmatprep.mubr.bf16.mxu0 0
        %997 = vmatmul.mubr.bf16.gmra.mrb[0].mxu0 %v962
        %v998 = vpop.f32.mrb[0].mxu0
        %v999 = vadd.f32 0.0, %v998
        %v1000 = vpop.f32.mrb[0].mxu0
        %v1001 = vpop.f32.mrb[0].mxu0
        %v1002 = vpop.f32.mrb[0].mxu0
        %1003 = vdwg.mxu0
        %v1004 = vmul.f32 %v870, 0.25
        %v1005 = vmul.f32 %v913, 0.25
        %v1006 = vmul.f32 %v956, 0.25
        %v1007 = vmul.f32 %v999, 0.25
        %v1008 = vld [vmem:[%s514] sm:$0x1]
        %v1010 = vlaneseq
        %v1011 = vshrl.u32 %v1010, 7
        %v1012 = vsub.s32 0, %v1011
        %v1013 = vrot.slane %v1008, %v1012
        %v1015 = vadd.f32 %v1004, %v1013
        %v1016 = vadd.f32 %v1005, %v1013
        %v1017 = vadd.f32 %v1006, %v1013
        %v1018 = vadd.f32 %v1007, %v1013
        %vm1019 = vcmask 64512
        %v1020 = vsel %vm1019, %v1015, -inf
        %1021 = vmax.xlane.f32.xlu0 %v1020
        %v1022 = vpop.xlane.xlu0 %1021
        %v1023 = vsel %vm1019, %v1016, -inf
        %1024 = vmax.xlane.f32.xlu0 %v1023
        %v1025 = vpop.xlane.xlu0 %1024
        %v1026 = vsel %vm1019, %v1017, -inf
        %1027 = vmax.xlane.f32.xlu0 %v1026
        %v1028 = vpop.xlane.xlu0 %1027
        %v1029 = vsel %vm1019, %v1018, -inf
        %1030 = vmax.xlane.f32.xlu0 %v1029
        %v1031 = vpop.xlane.xlu0 %1030
        %v1032 = vsub.f32 %v1015, %v1022
        %v1033 = vsub.f32 %v1016, %v1025
        %v1034 = vsub.f32 %v1017, %v1028
        %v1035 = vsub.f32 %v1018, %v1031
        %v1036 = vmul.f32 %v1032, 1.442695
        %v1037 = vpow.pop %v1036
        %v1038 = vmul.f32 %v1033, 1.442695
        %v1039 = vpow.pop %v1038
        %v1040 = vmul.f32 %v1034, 1.442695
        %v1041 = vpow.pop %v1040
        %v1042 = vmul.f32 %v1035, 1.442695
        %v1043 = vpow.pop %v1042
        %v1044 = vsel %vm1019, %v1037, 0.0
        %1045 = vadd.xlane.f32.xlu0 %v1044
        %v1046 = vpop.xlane.xlu0 %1045
        %v1047 = vsel %vm1019, %v1039, 0.0
        %1048 = vadd.xlane.f32.xlu0 %v1047
        %v1049 = vpop.xlane.xlu0 %1048
        %v1050 = vsel %vm1019, %v1041, 0.0
        %1051 = vadd.xlane.f32.xlu0 %v1050
        %v1052 = vpop.xlane.xlu0 %1051
        %v1053 = vsel %vm1019, %v1043, 0.0
        %1054 = vadd.xlane.f32.xlu0 %v1053
        %v1055 = vpop.xlane.xlu0 %1054
        %v1056 = vrcp.pop %v1046
        %v1057 = vmul.f32 %v1037, %v1056
        %v1058 = vrcp.pop %v1049
        %v1059 = vmul.f32 %v1039, %v1058
        %v1060 = vrcp.pop %v1052
        %v1061 = vmul.f32 %v1041, %v1060
        %v1062 = vrcp.pop %v1055
        %v1063 = vmul.f32 %v1043, %v1062
        %v1064 = vpack.c.bf16 %v1057, %v1057
        %v1065 = vpack.c.bf16 %v1059, %v1059
        %v1066 = vpack.c.bf16 %v1061, %v1061
        %v1067 = vpack.c.bf16 %v1063, %v1063
        %v1069 = vsel %vm1019, %v1064, 0
        %v1072 = vsel %vm1019, %v827, 0
        %1074 = vmatprep.subr.bf16.mxu0 0
        %1075 = vmatpush1.bf16.xpose.msra.mxu0 %v1072
        %1076 = vmatprep.subr.bf16.mxu0 0
        %1077 = vmatpush1.bf16.xpose.msra.mxu0 0
        %1078 = vmatprep.subr.bf16.mxu0 0
        %1079 = vmatpush1.bf16.xpose.msra.mxu0 0
        %1080 = vmatprep.subr.bf16.mxu0 0
        %1081 = vmatpush1.bf16.xpose.msra.mxu0 0
        %1082 = vmatprep.subr.bf16.mxu0 0
        %1083 = vmatpush1.bf16.xpose.msra.mxu0 0
        %1084 = vmatprep.subr.bf16.mxu0 0
        %1085 = vmatpush1.bf16.xpose.msra.mxu0 0
        %1086 = vmatprep.subr.bf16.mxu0 0
        %1087 = vmatpush1.bf16.xpose.msra.mxu0 0
        %1088 = vmatprep.subr.bf16.mxu0 0
        %1089 = vmatpush1.bf16.xpose.msra.mxu0 0
        %1090 = vmatprep.subr.bf16.mxu0 0
        %1091 = vmatpush1.bf16.xpose.msra.mxu0 0
        %1092 = vmatprep.subr.bf16.mxu0 0
        %1093 = vmatpush1.bf16.xpose.msra.mxu0 0
        %1094 = vmatprep.subr.bf16.mxu0 0
        %1095 = vmatpush1.bf16.xpose.msra.mxu0 0
        %1096 = vmatprep.subr.bf16.mxu0 0
        %1097 = vmatpush1.bf16.xpose.msra.mxu0 0
        %1098 = vmatprep.subr.bf16.mxu0 0
        %1099 = vmatpush1.bf16.xpose.msra.mxu0 0
        %1100 = vmatprep.subr.bf16.mxu0 0
        %1101 = vmatpush1.bf16.xpose.msra.mxu0 0
        %1102 = vmatprep.subr.bf16.mxu0 0
        %1103 = vmatpush1.bf16.xpose.msra.mxu0 0
        %1104 = vmatprep.subr.bf16.mxu0 0
        %1105 = vmatpush1.bf16.xpose.msra.mxu0 0
        %1106 = vmatprep.mubr.bf16.mxu0 0
        %1107 = vmatmul.mubr.bf16.gmra.mrb[0].mxu0 %v1069
        %v1108 = vpop.f32.mrb[0].mxu0
        %v1109 = vadd.f32 0.0, %v1108
        %v1110 = vpop.f32.mrb[0].mxu0
        %v1111 = vpop.f32.mrb[0].mxu0
        %v1112 = vpop.f32.mrb[0].mxu0
        %1113 = vdwg.mxu0
        %v1115 = vsel %vm1019, %v1065, 0
        %v1118 = vsel %vm1019, %v828, 0
        %1120 = vmatprep.subr.bf16.mxu0 0
        %1121 = vmatpush1.bf16.xpose.msra.mxu0 %v1118
        %1122 = vmatprep.subr.bf16.mxu0 0
        %1123 = vmatpush1.bf16.xpose.msra.mxu0 0
        %1124 = vmatprep.subr.bf16.mxu0 0
        %1125 = vmatpush1.bf16.xpose.msra.mxu0 0
        %1126 = vmatprep.subr.bf16.mxu0 0
        %1127 = vmatpush1.bf16.xpose.msra.mxu0 0
        %1128 = vmatprep.subr.bf16.mxu0 0
        %1129 = vmatpush1.bf16.xpose.msra.mxu0 0
        %1130 = vmatprep.subr.bf16.mxu0 0
        %1131 = vmatpush1.bf16.xpose.msra.mxu0 0
        %1132 = vmatprep.subr.bf16.mxu0 0
        %1133 = vmatpush1.bf16.xpose.msra.mxu0 0
        %1134 = vmatprep.subr.bf16.mxu0 0
        %1135 = vmatpush1.bf16.xpose.msra.mxu0 0
        %1136 = vmatprep.subr.bf16.mxu0 0
        %1137 = vmatpush1.bf16.xpose.msra.mxu0 0
        %1138 = vmatprep.subr.bf16.mxu0 0
        %1139 = vmatpush1.bf16.xpose.msra.mxu0 0
        %1140 = vmatprep.subr.bf16.mxu0 0
        %1141 = vmatpush1.bf16.xpose.msra.mxu0 0
        %1142 = vmatprep.subr.bf16.mxu0 0
        %1143 = vmatpush1.bf16.xpose.msra.mxu0 0
        %1144 = vmatprep.subr.bf16.mxu0 0
        %1145 = vmatpush1.bf16.xpose.msra.mxu0 0
        %1146 = vmatprep.subr.bf16.mxu0 0
        %1147 = vmatpush1.bf16.xpose.msra.mxu0 0
        %1148 = vmatprep.subr.bf16.mxu0 0
        %1149 = vmatpush1.bf16.xpose.msra.mxu0 0
        %1150 = vmatprep.subr.bf16.mxu0 0
        %1151 = vmatpush1.bf16.xpose.msra.mxu0 0
        %1152 = vmatprep.mubr.bf16.mxu0 0
        %1153 = vmatmul.mubr.bf16.gmra.mrb[0].mxu0 %v1115
        %v1154 = vpop.f32.mrb[0].mxu0
        %v1155 = vadd.f32 0.0, %v1154
        %v1156 = vpop.f32.mrb[0].mxu0
        %v1157 = vpop.f32.mrb[0].mxu0
        %v1158 = vpop.f32.mrb[0].mxu0
        %1159 = vdwg.mxu0
        %v1161 = vsel %vm1019, %v1066, 0
        %v1164 = vsel %vm1019, %v829, 0
        %1166 = vmatprep.subr.bf16.mxu0 0
        %1167 = vmatpush1.bf16.xpose.msra.mxu0 %v1164
        %1168 = vmatprep.subr.bf16.mxu0 0
        %1169 = vmatpush1.bf16.xpose.msra.mxu0 0
        %1170 = vmatprep.subr.bf16.mxu0 0
        %1171 = vmatpush1.bf16.xpose.msra.mxu0 0
        %1172 = vmatprep.subr.bf16.mxu0 0
        %1173 = vmatpush1.bf16.xpose.msra.mxu0 0
        %1174 = vmatprep.subr.bf16.mxu0 0
        %1175 = vmatpush1.bf16.xpose.msra.mxu0 0
        %1176 = vmatprep.subr.bf16.mxu0 0
        %1177 = vmatpush1.bf16.xpose.msra.mxu0 0
        %1178 = vmatprep.subr.bf16.mxu0 0
        %1179 = vmatpush1.bf16.xpose.msra.mxu0 0
        %1180 = vmatprep.subr.bf16.mxu0 0
        %1181 = vmatpush1.bf16.xpose.msra.mxu0 0
        %1182 = vmatprep.subr.bf16.mxu0 0
        %1183 = vmatpush1.bf16.xpose.msra.mxu0 0
        %1184 = vmatprep.subr.bf16.mxu0 0
        %1185 = vmatpush1.bf16.xpose.msra.mxu0 0
        %1186 = vmatprep.subr.bf16.mxu0 0
        %1187 = vmatpush1.bf16.xpose.msra.mxu0 0
        %1188 = vmatprep.subr.bf16.mxu0 0
        %1189 = vmatpush1.bf16.xpose.msra.mxu0 0
        %1190 = vmatprep.subr.bf16.mxu0 0
        %1191 = vmatpush1.bf16.xpose.msra.mxu0 0
        %1192 = vmatprep.subr.bf16.mxu0 0
        %1193 = vmatpush1.bf16.xpose.msra.mxu0 0
        %1194 = vmatprep.subr.bf16.mxu0 0
        %1195 = vmatpush1.bf16.xpose.msra.mxu0 0
        %1196 = vmatprep.subr.bf16.mxu0 0
        %1197 = vmatpush1.bf16.xpose.msra.mxu0 0
        %1198 = vmatprep.mubr.bf16.mxu0 0
        %1199 = vmatmul.mubr.bf16.gmra.mrb[0].mxu0 %v1161
        %v1200 = vpop.f32.mrb[0].mxu0
        %v1201 = vadd.f32 0.0, %v1200
        %v1202 = vpop.f32.mrb[0].mxu0
        %v1203 = vpop.f32.mrb[0].mxu0
        %v1204 = vpop.f32.mrb[0].mxu0
        %1205 = vdwg.mxu0
        %v1207 = vsel %vm1019, %v1067, 0
        %v1210 = vsel %vm1019, %v830, 0
        %1212 = vmatprep.subr.bf16.mxu0 0
        %1213 = vmatpush1.bf16.xpose.msra.mxu0 %v1210
        %1214 = vmatprep.subr.bf16.mxu0 0
        %1215 = vmatpush1.bf16.xpose.msra.mxu0 0
        %1216 = vmatprep.subr.bf16.mxu0 0
        %1217 = vmatpush1.bf16.xpose.msra.mxu0 0
        %1218 = vmatprep.subr.bf16.mxu0 0
        %1219 = vmatpush1.bf16.xpose.msra.mxu0 0
        %1220 = vmatprep.subr.bf16.mxu0 0
        %1221 = vmatpush1.bf16.xpose.msra.mxu0 0
        %1222 = vmatprep.subr.bf16.mxu0 0
        %1223 = vmatpush1.bf16.xpose.msra.mxu0 0
        %1224 = vmatprep.subr.bf16.mxu0 0
        %1225 = vmatpush1.bf16.xpose.msra.mxu0 0
        %1226 = vmatprep.subr.bf16.mxu0 0
        %1227 = vmatpush1.bf16.xpose.msra.mxu0 0
        %1228 = vmatprep.subr.bf16.mxu0 0
        %1229 = vmatpush1.bf16.xpose.msra.mxu0 0
        %1230 = vmatprep.subr.bf16.mxu0 0
        %1231 = vmatpush1.bf16.xpose.msra.mxu0 0
        %1232 = vmatprep.subr.bf16.mxu0 0
        %1233 = vmatpush1.bf16.xpose.msra.mxu0 0
        %1234 = vmatprep.subr.bf16.mxu0 0
        %1235 = vmatpush1.bf16.xpose.msra.mxu0 0
        %1236 = vmatprep.subr.bf16.mxu0 0
        %1237 = vmatpush1.bf16.xpose.msra.mxu0 0
        %1238 = vmatprep.subr.bf16.mxu0 0
        %1239 = vmatpush1.bf16.xpose.msra.mxu0 0
        %1240 = vmatprep.subr.bf16.mxu0 0
        %1241 = vmatpush1.bf16.xpose.msra.mxu0 0
        %1242 = vmatprep.subr.bf16.mxu0 0
        %1243 = vmatpush1.bf16.xpose.msra.mxu0 0
        %1244 = vmatprep.mubr.bf16.mxu0 0
        %1245 = vmatmul.mubr.bf16.gmra.mrb[0].mxu0 %v1207
        %v1246 = vpop.f32.mrb[0].mxu0
        %v1247 = vadd.f32 0.0, %v1246
        %v1248 = vpop.f32.mrb[0].mxu0
        %v1249 = vpop.f32.mrb[0].mxu0
        %v1250 = vpop.f32.mrb[0].mxu0
        %1251 = vdwg.mxu0
        %v1252 = vpack.c.bf16 %v1109, %v1109
        %v1253 = vpack.c.bf16 %v1155, %v1155
        %v1254 = vpack.c.bf16 %v1201, %v1201
        %v1255 = vpack.c.bf16 %v1247, %v1247
        %v1256 = vld [vmem:[%s4] sm:$0xf]
        %v1257 = vld [vmem:[%s4 + $0x4] sm:$0xf]
        %v1258 = vld [vmem:[%s4 + $0x8] sm:$0xf]
        %v1259 = vld [vmem:[%s4 + $0xc] sm:$0xf]
        %v1260 = vld [vmem:[%s4 + $0x10] sm:$0xf]
        %v1261 = vld [vmem:[%s4 + $0x14] sm:$0xf]
        %v1262 = vld [vmem:[%s4 + $0x18] sm:$0xf]
        %v1263 = vld [vmem:[%s4 + $0x1c] sm:$0xf]
        %v1266 = vunpack.c.l.b16 %v1256
        %v1267 = vunpack.c.l.b16 %v1257
        %v1268 = vpack.c.b16 %v1267, %v1266
        %v1271 = vsel %vm831, %v1252, 0
        %1273 = vmatprep.subr.bf16.mxu0 0
        %1274 = vmatpush1.bf16.msra.mxu0 %v1268
        %1275 = vmatprep.subr.bf16.mxu0 0
        %1276 = vmatpush1.bf16.msra.mxu0 0
        %1277 = vmatprep.subr.bf16.mxu0 0
        %1278 = vmatpush1.bf16.msra.mxu0 0
        %1279 = vmatprep.subr.bf16.mxu0 0
        %1280 = vmatpush1.bf16.msra.mxu0 0
        %1281 = vmatprep.subr.bf16.mxu0 0
        %1282 = vmatpush1.bf16.msra.mxu0 0
        %1283 = vmatprep.subr.bf16.mxu0 0
        %1284 = vmatpush1.bf16.msra.mxu0 0
        %1285 = vmatprep.subr.bf16.mxu0 0
        %1286 = vmatpush1.bf16.msra.mxu0 0
        %1287 = vmatprep.subr.bf16.mxu0 0
        %1288 = vmatpush1.bf16.msra.mxu0 0
        %1289 = vmatprep.subr.bf16.mxu0 0
        %1290 = vmatpush1.bf16.msra.mxu0 0
        %1291 = vmatprep.subr.bf16.mxu0 0
        %1292 = vmatpush1.bf16.msra.mxu0 0
        %1293 = vmatprep.subr.bf16.mxu0 0
        %1294 = vmatpush1.bf16.msra.mxu0 0
        %1295 = vmatprep.subr.bf16.mxu0 0
        %1296 = vmatpush1.bf16.msra.mxu0 0
        %1297 = vmatprep.subr.bf16.mxu0 0
        %1298 = vmatpush1.bf16.msra.mxu0 0
        %1299 = vmatprep.subr.bf16.mxu0 0
        %1300 = vmatpush1.bf16.msra.mxu0 0
        %1301 = vmatprep.subr.bf16.mxu0 0
        %1302 = vmatpush1.bf16.msra.mxu0 0
        %1303 = vmatprep.subr.bf16.mxu0 0
        %1304 = vmatpush1.bf16.msra.mxu0 0
        %1305 = vmatprep.mubr.bf16.mxu0 0
        %1306 = vmatmul.mubr.bf16.gmra.mrb[0].mxu0 %v1271
        %v1307 = vpop.f32.mrb[0].mxu0
        %v1308 = vadd.f32 0.0, %v1307
        %v1309 = vpop.f32.mrb[0].mxu0
        %v1310 = vpop.f32.mrb[0].mxu0
        %v1311 = vpop.f32.mrb[0].mxu0
        %1312 = vdwg.mxu0
        %v1315 = vunpack.c.l.b16 %v1258
        %v1316 = vunpack.c.l.b16 %v1259
        %v1317 = vpack.c.b16 %v1316, %v1315
        %v1320 = vsel %vm831, %v1253, 0
        %1322 = vmatprep.subr.bf16.mxu0 0
        %1323 = vmatpush1.bf16.msra.mxu0 %v1317
        %1324 = vmatprep.subr.bf16.mxu0 0
        %1325 = vmatpush1.bf16.msra.mxu0 0
        %1326 = vmatprep.subr.bf16.mxu0 0
        %1327 = vmatpush1.bf16.msra.mxu0 0
        %1328 = vmatprep.subr.bf16.mxu0 0
        %1329 = vmatpush1.bf16.msra.mxu0 0
        %1330 = vmatprep.subr.bf16.mxu0 0
        %1331 = vmatpush1.bf16.msra.mxu0 0
        %1332 = vmatprep.subr.bf16.mxu0 0
        %1333 = vmatpush1.bf16.msra.mxu0 0
        %1334 = vmatprep.subr.bf16.mxu0 0
        %1335 = vmatpush1.bf16.msra.mxu0 0
        %1336 = vmatprep.subr.bf16.mxu0 0
        %1337 = vmatpush1.bf16.msra.mxu0 0
        %1338 = vmatprep.subr.bf16.mxu0 0
        %1339 = vmatpush1.bf16.msra.mxu0 0
        %1340 = vmatprep.subr.bf16.mxu0 0
        %1341 = vmatpush1.bf16.msra.mxu0 0
        %1342 = vmatprep.subr.bf16.mxu0 0
        %1343 = vmatpush1.bf16.msra.mxu0 0
        %1344 = vmatprep.subr.bf16.mxu0 0
        %1345 = vmatpush1.bf16.msra.mxu0 0
        %1346 = vmatprep.subr.bf16.mxu0 0
        %1347 = vmatpush1.bf16.msra.mxu0 0
        %1348 = vmatprep.subr.bf16.mxu0 0
        %1349 = vmatpush1.bf16.msra.mxu0 0
        %1350 = vmatprep.subr.bf16.mxu0 0
        %1351 = vmatpush1.bf16.msra.mxu0 0
        %1352 = vmatprep.subr.bf16.mxu0 0
        %1353 = vmatpush1.bf16.msra.mxu0 0
        %1354 = vmatprep.mubr.bf16.mxu0 0
        %1355 = vmatmul.mubr.bf16.gmra.mrb[0].mxu0 %v1320
        %v1356 = vpop.f32.mrb[0].mxu0
        %v1357 = vadd.f32 0.0, %v1356
        %v1358 = vpop.f32.mrb[0].mxu0
        %v1359 = vpop.f32.mrb[0].mxu0
        %v1360 = vpop.f32.mrb[0].mxu0
        %1361 = vdwg.mxu0
        %v1364 = vunpack.c.l.b16 %v1260
        %v1365 = vunpack.c.l.b16 %v1261
        %v1366 = vpack.c.b16 %v1365, %v1364
        %v1369 = vsel %vm831, %v1254, 0
        %1371 = vmatprep.subr.bf16.mxu0 0
        %1372 = vmatpush1.bf16.msra.mxu0 %v1366
        %1373 = vmatprep.subr.bf16.mxu0 0
        %1374 = vmatpush1.bf16.msra.mxu0 0
        %1375 = vmatprep.subr.bf16.mxu0 0
        %1376 = vmatpush1.bf16.msra.mxu0 0
        %1377 = vmatprep.subr.bf16.mxu0 0
        %1378 = vmatpush1.bf16.msra.mxu0 0
        %1379 = vmatprep.subr.bf16.mxu0 0
        %1380 = vmatpush1.bf16.msra.mxu0 0
        %1381 = vmatprep.subr.bf16.mxu0 0
        %1382 = vmatpush1.bf16.msra.mxu0 0
        %1383 = vmatprep.subr.bf16.mxu0 0
        %1384 = vmatpush1.bf16.msra.mxu0 0
        %1385 = vmatprep.subr.bf16.mxu0 0
        %1386 = vmatpush1.bf16.msra.mxu0 0
        %1387 = vmatprep.subr.bf16.mxu0 0
        %1388 = vmatpush1.bf16.msra.mxu0 0
        %1389 = vmatprep.subr.bf16.mxu0 0
        %1390 = vmatpush1.bf16.msra.mxu0 0
        %1391 = vmatprep.subr.bf16.mxu0 0
        %1392 = vmatpush1.bf16.msra.mxu0 0
        %1393 = vmatprep.subr.bf16.mxu0 0
        %1394 = vmatpush1.bf16.msra.mxu0 0
        %1395 = vmatprep.subr.bf16.mxu0 0
        %1396 = vmatpush1.bf16.msra.mxu0 0
        %1397 = vmatprep.subr.bf16.mxu0 0
        %1398 = vmatpush1.bf16.msra.mxu0 0
        %1399 = vmatprep.subr.bf16.mxu0 0
        %1400 = vmatpush1.bf16.msra.mxu0 0
        %1401 = vmatprep.subr.bf16.mxu0 0
        %1402 = vmatpush1.bf16.msra.mxu0 0
        %1403 = vmatprep.mubr.bf16.mxu0 0
        %1404 = vmatmul.mubr.bf16.gmra.mrb[0].mxu0 %v1369
        %v1405 = vpop.f32.mrb[0].mxu0
        %v1406 = vadd.f32 0.0, %v1405
        %v1407 = vpop.f32.mrb[0].mxu0
        %v1408 = vpop.f32.mrb[0].mxu0
        %v1409 = vpop.f32.mrb[0].mxu0
        %1410 = vdwg.mxu0
        %v1413 = vunpack.c.l.b16 %v1262
        %v1414 = vunpack.c.l.b16 %v1263
        %v1415 = vpack.c.b16 %v1414, %v1413
        %v1418 = vsel %vm831, %v1255, 0
        %1420 = vmatprep.subr.bf16.mxu0 0
        %1421 = vmatpush1.bf16.msra.mxu0 %v1415
        %1422 = vmatprep.subr.bf16.mxu0 0
        %1423 = vmatpush1.bf16.msra.mxu0 0
        %1424 = vmatprep.subr.bf16.mxu0 0
        %1425 = vmatpush1.bf16.msra.mxu0 0
        %1426 = vmatprep.subr.bf16.mxu0 0
        %1427 = vmatpush1.bf16.msra.mxu0 0
        %1428 = vmatprep.subr.bf16.mxu0 0
        %1429 = vmatpush1.bf16.msra.mxu0 0
        %1430 = vmatprep.subr.bf16.mxu0 0
        %1431 = vmatpush1.bf16.msra.mxu0 0
        %1432 = vmatprep.subr.bf16.mxu0 0
        %1433 = vmatpush1.bf16.msra.mxu0 0
        %1434 = vmatprep.subr.bf16.mxu0 0
        %1435 = vmatpush1.bf16.msra.mxu0 0
        %1436 = vmatprep.subr.bf16.mxu0 0
        %1437 = vmatpush1.bf16.msra.mxu0 0
        %1438 = vmatprep.subr.bf16.mxu0 0
        %1439 = vmatpush1.bf16.msra.mxu0 0
        %1440 = vmatprep.subr.bf16.mxu0 0
        %1441 = vmatpush1.bf16.msra.mxu0 0
        %1442 = vmatprep.subr.bf16.mxu0 0
        %1443 = vmatpush1.bf16.msra.mxu0 0
        %1444 = vmatprep.subr.bf16.mxu0 0
        %1445 = vmatpush1.bf16.msra.mxu0 0
        %1446 = vmatprep.subr.bf16.mxu0 0
        %1447 = vmatpush1.bf16.msra.mxu0 0
        %1448 = vmatprep.subr.bf16.mxu0 0
        %1449 = vmatpush1.bf16.msra.mxu0 0
        %1450 = vmatprep.subr.bf16.mxu0 0
        %1451 = vmatpush1.bf16.msra.mxu0 0
        %1452 = vmatprep.mubr.bf16.mxu0 0
        %1453 = vmatmul.mubr.bf16.gmra.mrb[0].mxu0 %v1418
        %v1454 = vpop.f32.mrb[0].mxu0
        %v1455 = vadd.f32 0.0, %v1454
        %v1456 = vpop.f32.mrb[0].mxu0
        %v1457 = vpop.f32.mrb[0].mxu0
        %v1458 = vpop.f32.mrb[0].mxu0
        %1459 = vdwg.mxu0
        %v1460 = vsel %vm582, %v1308, 0.0
        %v1461 = vsel %vm582, %v1357, 0.0
        %v1462 = vadd.f32 %v1460, %v1461
        %v1463 = vsel %vm582, %v1406, 0.0
        %v1464 = vadd.f32 %v1462, %v1463
        %v1465 = vsel %vm582, %v1455, 0.0
        %v1466 = vadd.f32 %v1464, %v1465
        %v1467 = vld [vmem:[%s5] sm:$0x1]
        %v1469 = vlaneseq
        %v1470 = vshrl.u32 %v1469, 7
        %v1471 = vsub.s32 0, %v1470
        %v1472 = vrot.slane %v1467, %v1471
        %v1474 = vadd.f32 %v1466, %v1472
        %v1475 = vadd.f32 %v1474, %v520
        %v1476 = vld [vmem:[%s6] sm:$0x1]
        %v1477 = vld [vmem:[%s7] sm:$0x1]
        %v1478 = vsel %vm582, %v1475, 0.0
        %1479 = vadd.xlane.f32.xlu0 %v1478
        %v1480 = vpop.xlane.xlu0 %1479
        %v1481 = vrcp.pop 64.0
        %v1482 = vmul.f32 %v1480, %v1481
        %v1483 = vsub.f32 %v1475, %v1482
        %v1484 = vmul.f32 %v1483, %v1483
        %v1485 = vsel %vm582, %v1484, 0.0
        %1486 = vadd.xlane.f32.xlu0 %v1485
        %v1487 = vpop.xlane.xlu0 %1486
        %v1488 = vmul.f32 %v1487, %v1481
        %v1489 = vadd.f32 %v1488, 1e-12
        %v1490 = vrsqrt.pop %v1489
        %v1491 = vmul.f32 %v1483, %v1490
        %v1493 = vlaneseq
        %v1494 = vshrl.u32 %v1493, 7
        %v1495 = vsub.s32 0, %v1494
        %v1496 = vrot.slane %v1476, %v1495
        %v1498 = vmul.f32 %v1491, %v1496
        %v1500 = vlaneseq
        %v1501 = vshrl.u32 %v1500, 7
        %v1502 = vsub.s32 0, %v1501
        %v1503 = vrot.slane %v1477, %v1502
        %v1505 = vadd.f32 %v1498, %v1503
        %v1506 = vpack.c.bf16 %v1505, %v1505
        %v1507 = vld [vmem:[#allocation4] sm:$0xf]
        %v1508 = vld [vmem:[#allocation4 + $0x4] sm:$0xf]
        %v1509 = vld [vmem:[#allocation4 + $0x8] sm:$0xf]
        %v1510 = vld [vmem:[#allocation4 + $0xc] sm:$0xf]
        %v1511 = vld [vmem:[#allocation4 + $0x10] sm:$0xf]
        %v1512 = vld [vmem:[#allocation4 + $0x14] sm:$0xf]
        %v1513 = vld [vmem:[#allocation4 + $0x18] sm:$0xf]
        %v1514 = vld [vmem:[#allocation4 + $0x1c] sm:$0xf]
        %v1515 = vld [vmem:[%s9] sm:$0x1]
        %v1517 = vlaneseq
        %v1518 = vshrl.u32 %v1517, 7
        %v1519 = vsub.s32 0, %v1518
        %v1520 = vrot.slane %v1515, %v1519
        %v1530 = vunpack.c.l.b16 %v1507
        %v1531 = vunpack.c.l.b16 %v1508
        %v1532 = vunpack.c.l.b16 %v1509
        %v1533 = vunpack.c.l.b16 %v1510
        %v1534 = vunpack.c.l.b16 %v1511
        %v1535 = vunpack.c.l.b16 %v1512
        %v1536 = vunpack.c.l.b16 %v1513
        %v1537 = vunpack.c.l.b16 %v1514
        %v1538 = vpack.c.b16 %v1531, %v1530
        %v1539 = vpack.c.b16 %v1533, %v1532
        %v1540 = vpack.c.b16 %v1535, %v1534
        %v1541 = vpack.c.b16 %v1537, %v1536
        %v1547 = vsel %vm582, %v1506, 0
        %1549 = vmatprep.subr.bf16.mxu0 0
        %1550 = vmatpush1.bf16.msra.mxu0 %v1538
        %1551 = vmatprep.subr.bf16.mxu0 0
        %1552 = vmatpush1.bf16.msra.mxu0 %v1539
        %1553 = vmatprep.subr.bf16.mxu0 0
        %1554 = vmatpush1.bf16.msra.mxu0 %v1540
        %1555 = vmatprep.subr.bf16.mxu0 0
        %1556 = vmatpush1.bf16.msra.mxu0 %v1541
        %1557 = vmatprep.subr.bf16.mxu0 0
        %1558 = vmatpush1.bf16.msra.mxu0 0
        %1559 = vmatprep.subr.bf16.mxu0 0
        %1560 = vmatpush1.bf16.msra.mxu0 0
        %1561 = vmatprep.subr.bf16.mxu0 0
        %1562 = vmatpush1.bf16.msra.mxu0 0
        %1563 = vmatprep.subr.bf16.mxu0 0
        %1564 = vmatpush1.bf16.msra.mxu0 0
        %1565 = vmatprep.subr.bf16.mxu0 0
        %1566 = vmatpush1.bf16.msra.mxu0 0
        %1567 = vmatprep.subr.bf16.mxu0 0
        %1568 = vmatpush1.bf16.msra.mxu0 0
        %1569 = vmatprep.subr.bf16.mxu0 0
        %1570 = vmatpush1.bf16.msra.mxu0 0
        %1571 = vmatprep.subr.bf16.mxu0 0
        %1572 = vmatpush1.bf16.msra.mxu0 0
        %1573 = vmatprep.subr.bf16.mxu0 0
        %1574 = vmatpush1.bf16.msra.mxu0 0
        %1575 = vmatprep.subr.bf16.mxu0 0
        %1576 = vmatpush1.bf16.msra.mxu0 0
        %1577 = vmatprep.subr.bf16.mxu0 0
        %1578 = vmatpush1.bf16.msra.mxu0 0
        %1579 = vmatprep.subr.bf16.mxu0 0
        %1580 = vmatpush1.bf16.msra.mxu0 0
        %1581 = vmatprep.mubr.bf16.mxu0 0
        %1582 = vmatmul.mubr.bf16.gmra.mrb[0].mxu0 %v1547
        %v1583 = vpop.f32.mrb[0].mxu0
        %v1584 = vadd.f32 %v1520, %v1583
        %v1585 = vpop.f32.mrb[0].mxu0
        %v1586 = vpop.f32.mrb[0].mxu0
        %v1587 = vpop.f32.mrb[0].mxu0
        %1588 = vdwg.mxu0
        %v1589 = vmul.f32 %v1584, 0.5
        %v1590 = vmul.f32 %v1584, 0.70710677
        %v1591 = vand.u32 2147483647, %v1590
        %v1592 = vmul.f32 %v1591, 0.3275911
        %v1593 = vadd.f32 %v1592, 1.0
        %v1594 = vrcp.pop %v1593
        %v1595 = vmul.f32 1.0, %v1594
        %v1596 = vmul.f32 %v1595, 1.0614054
        %v1597 = vadd.f32 %v1596, -1.4531521
        %v1598 = vmul.f32 %v1597, %v1595
        %v1599 = vadd.f32 %v1598, 1.4214138
        %v1600 = vmul.f32 %v1599, %v1595
        %v1601 = vadd.f32 %v1600, -0.28449672
        %v1602 = vmul.f32 %v1601, %v1595
        %v1603 = vadd.f32 %v1602, 0.2548296
        %v1604 = vmul.f32 %v1603, %v1595
        %v1605 = vsub.f32 0.0, %v1591
        %v1606 = vmul.f32 %v1605, %v1591
        %v1607 = vmul.f32 %v1606, 1.442695
        %v1608 = vpow.pop %v1607
        %v1609 = vmul.f32 %v1604, %v1608
        %v1610 = vsub.f32 1.0, %v1609
        %vm1611 = vcmp.ge.f32.partialorder %v1590, 0.0
        %v1612 = vsub.f32 0.0, %v1610
        %v1613 = vsel %vm1611, %v1610, %v1612
        %v1614 = vadd.f32 %v1613, 1.0
        %v1615 = vmul.f32 %v1589, %v1614
        %v1616 = vpack.c.bf16 %v1615, %v1615
        %v1617 = vld [vmem:[%s10] sm:$0xf]
        %v1618 = vld [vmem:[%s10 + $0x4] sm:$0xf]
        %v1619 = vld [vmem:[%s10 + $0x8] sm:$0xf]
        %v1620 = vld [vmem:[%s10 + $0xc] sm:$0xf]
        %v1621 = vld [vmem:[%s10 + $0x10] sm:$0xf]
        %v1622 = vld [vmem:[%s10 + $0x14] sm:$0xf]
        %v1623 = vld [vmem:[%s10 + $0x18] sm:$0xf]
        %v1624 = vld [vmem:[%s10 + $0x1c] sm:$0xf]
        %v1625 = vld [vmem:[%s10 + $0x20] sm:$0xf]
        %v1626 = vld [vmem:[%s10 + $0x24] sm:$0xf]
        %v1627 = vld [vmem:[%s10 + $0x28] sm:$0xf]
        %v1628 = vld [vmem:[%s10 + $0x2c] sm:$0xf]
        %v1629 = vld [vmem:[%s10 + $0x30] sm:$0xf]
        %v1630 = vld [vmem:[%s10 + $0x34] sm:$0xf]
        %v1631 = vld [vmem:[%s10 + $0x38] sm:$0xf]
        %v1632 = vld [vmem:[%s10 + $0x3c] sm:$0xf]
        %v1633 = vld [vmem:[%s11] sm:$0x1]
        %v1635 = vlaneseq
        %v1636 = vshrl.u32 %v1635, 7
        %v1637 = vsub.s32 0, %v1636
        %v1638 = vrot.slane %v1633, %v1637
        %v1656 = vunpack.c.l.b16 %v1617
        %v1657 = vunpack.c.l.b16 %v1618
        %v1658 = vunpack.c.l.b16 %v1619
        %v1659 = vunpack.c.l.b16 %v1620
        %v1660 = vunpack.c.l.b16 %v1621
        %v1661 = vunpack.c.l.b16 %v1622
        %v1662 = vunpack.c.l.b16 %v1623
        %v1663 = vunpack.c.l.b16 %v1624
        %v1664 = vunpack.c.l.b16 %v1625
        %v1665 = vunpack.c.l.b16 %v1626
        %v1666 = vunpack.c.l.b16 %v1627
        %v1667 = vunpack.c.l.b16 %v1628
        %v1668 = vunpack.c.l.b16 %v1629
        %v1669 = vunpack.c.l.b16 %v1630
        %v1670 = vunpack.c.l.b16 %v1631
        %v1671 = vunpack.c.l.b16 %v1632
        %v1672 = vpack.c.b16 %v1657, %v1656
        %v1673 = vpack.c.b16 %v1659, %v1658
        %v1674 = vpack.c.b16 %v1661, %v1660
        %v1675 = vpack.c.b16 %v1663, %v1662
        %v1676 = vpack.c.b16 %v1665, %v1664
        %v1677 = vpack.c.b16 %v1667, %v1666
        %v1678 = vpack.c.b16 %v1669, %v1668
        %v1679 = vpack.c.b16 %v1671, %v1670
        %1688 = vmatprep.subr.bf16.mxu0 0
        %1689 = vmatpush1.bf16.msra.mxu0 %v1672
        %1690 = vmatprep.subr.bf16.mxu0 0
        %1691 = vmatpush1.bf16.msra.mxu0 %v1673
        %1692 = vmatprep.subr.bf16.mxu0 0
        %1693 = vmatpush1.bf16.msra.mxu0 %v1674
        %1694 = vmatprep.subr.bf16.mxu0 0
        %1695 = vmatpush1.bf16.msra.mxu0 %v1675
        %1696 = vmatprep.subr.bf16.mxu0 0
        %1697 = vmatpush1.bf16.msra.mxu0 %v1676
        %1698 = vmatprep.subr.bf16.mxu0 0
        %1699 = vmatpush1.bf16.msra.mxu0 %v1677
        %1700 = vmatprep.subr.bf16.mxu0 0
        %1701 = vmatpush1.bf16.msra.mxu0 %v1678
        %1702 = vmatprep.subr.bf16.mxu0 0
        %1703 = vmatpush1.bf16.msra.mxu0 %v1679
        %1704 = vmatprep.subr.bf16.mxu0 0
        %1705 = vmatpush1.bf16.msra.mxu0 0
        %1706 = vmatprep.subr.bf16.mxu0 0
        %1707 = vmatpush1.bf16.msra.mxu0 0
        %1708 = vmatprep.subr.bf16.mxu0 0
        %1709 = vmatpush1.bf16.msra.mxu0 0
        %1710 = vmatprep.subr.bf16.mxu0 0
        %1711 = vmatpush1.bf16.msra.mxu0 0
        %1712 = vmatprep.subr.bf16.mxu0 0
        %1713 = vmatpush1.bf16.msra.mxu0 0
        %1714 = vmatprep.subr.bf16.mxu0 0
        %1715 = vmatpush1.bf16.msra.mxu0 0
        %1716 = vmatprep.subr.bf16.mxu0 0
        %1717 = vmatpush1.bf16.msra.mxu0 0
        %1718 = vmatprep.subr.bf16.mxu0 0
        %1719 = vmatpush1.bf16.msra.mxu0 0
        %1720 = vmatprep.mubr.bf16.mxu0 0
        %1721 = vmatmul.mubr.bf16.gmra.mrb[0].mxu0 %v1616
        %v1722 = vpop.f32.mrb[0].mxu0
        %v1723 = vadd.f32 %v1638, %v1722
        %v1724 = vpop.f32.mrb[0].mxu0
        %v1725 = vpop.f32.mrb[0].mxu0
        %v1726 = vpop.f32.mrb[0].mxu0
        %1727 = vdwg.mxu0
        %v1728 = vadd.f32 %v1723, %v1505
        %v1729 = vld [vmem:[%s12] sm:$0x1]
        %v1730 = vld [vmem:[#allocation6] sm:$0x1]
        %v1731 = vsel %vm582, %v1728, 0.0
        %1732 = vadd.xlane.f32.xlu0 %v1731
        %v1733 = vpop.xlane.xlu0 %1732
        %v1734 = vmul.f32 %v1733, %v1481
        %v1735 = vsub.f32 %v1728, %v1734
        %v1736 = vmul.f32 %v1735, %v1735
        %v1737 = vsel %vm582, %v1736, 0.0
        %1738 = vadd.xlane.f32.xlu0 %v1737
        %v1739 = vpop.xlane.xlu0 %1738
        %v1740 = vmul.f32 %v1739, %v1481
        %v1741 = vadd.f32 %v1740, 1e-12
        %v1742 = vrsqrt.pop %v1741
        %v1743 = vmul.f32 %v1735, %v1742
        %v1745 = vlaneseq
        %v1746 = vshrl.u32 %v1745, 7
        %v1747 = vsub.s32 0, %v1746
        %v1748 = vrot.slane %v1729, %v1747
        %v1750 = vmul.f32 %v1743, %v1748
        %v1752 = vlaneseq
        %v1753 = vshrl.u32 %v1752, 7
        %v1754 = vsub.s32 0, %v1753
        %v1755 = vrot.slane %v1730, %v1754
        %v1757 = vadd.f32 %v1750, %v1755
        %1758 = vst.msk [vmem:[%s518] sm:$0xff] %vm582, %v1757
        %p1759 = scmp.lt.s32.totalorder %s27, 1
        %s1760 = scalar_select %p1759, %s27, 1
        %s1761 = smul.addr %s1760, 8
        %s1762 = scalar_lea.vmem %s14, %s1761
        // Predicated region
        $region89: #{run.3} parent=75 // pred_check
          %p1763 = pneg %p349
        $region90: #{run.3} parent=75 // pred_check_branch
          %1765 = sbr.rel (%p1763) target = $region92
        $region91: #{run.3} parent=75 // pred_region
          _
        $region92: #{run.3} parent=75 // pred_fallthru
          _
      $region76: #{run.3} parent=5 // pred_fallthru
        _
      %p1766 = scmp.le.s32.totalorder 2, %s22
      // Predicated region
      $region93: #{run.3} parent=5 // pred_check
        %p1767 = pneg %p1766
      $region94: #{run.3} parent=5 // pred_check_branch
        %1769 = sbr.rel (%p1767) target = $region96
      $region95: #{run.3} parent=5 // pred_region
        %s1770 = ssub.s32 %s22, 2
        // Predicated region
        $region97: #{run.3} parent=95 // pred_check
          %p1771 = pneg %p355
        $region98: #{run.3} parent=95 // pred_check_branch
          %1773 = sbr.rel (%p1771) target = $region100
        $region99: #{run.3} parent=95 // pred_region
          %p1774 = scmp.lt.s32.totalorder %s28, 1
          %s1775 = scalar_select %p1774, %s28, 1
          %s1776 = smul.addr %s1775, 8
          %s1777 = scalar_lea.vmem %s14, %s1776
        $region100: #{run.3} parent=95 // pred_fallthru
          _
      $region96: #{run.3} parent=5 // pred_fallthru
        _
    $region6: #{run.3} parent=1 // loop_footer
      %s26 = sadd.s32 1, %s22
    $region7: #{run.3} parent=1 // loop_footer_branch
      %21 = sbr.rel target = $region3
    $region8: #{run.3} parent=1 // loop_exit
      _
    %1778 = vsyncpa [#allocation3], 1
    %s1779 = scalar_lea.sflag [#allocation3], 1
    %1780 = vsyncpa %s1779, 1
    %1781 = vsyncpa [#allocation5], 1

// kernel: run.5
$region0: #{run.5}
  #allocation0 [shape = 'u32[]', space=smem, size = 0x4, offset = 0x4, fixed_abs, tag = 'smem constant byte address 0x4 - core index']
  #allocation1 [shape = 'u32[144,128]{1,0:T(1,128)}', space=vmem, size = 0x12000, scoped, tag = 'internal scratch']
  #allocation2 [shape = 'f32[8,8,1024]{2,1,0:T(8,128)}', space=vmem, size = 0x40000, scoped, tag = 'scratch operand']
  #allocation3 [shape = 'f32[8,8,128]{2,1,0:T(8,128)}', space=vmem, size = 0x8000, scoped, tag = 'scratch operand']
  #allocation4 [shape = 'f32[8,8,128]{2,1,0:T(8,128)}', space=vmem, size = 0x8000, scoped, tag = 'scratch operand']
  %s0 = inlined_call_operand.vmem [shape: f32[8,8,64], index: 0, kind: input, shape index: {}]
  %s1 = inlined_call_operand.hbm [shape: bf16[64,1024], index: 1, kind: input, shape index: {}]
  %s2 = inlined_call_operand.hbm [shape: f32[1,1024], index: 2, kind: input, shape index: {}]
  %s3 = inlined_call_operand.vmem [shape: bf16[256,1024], index: 3, kind: input, shape index: {}]
  %s4 = inlined_call_operand.vmem [shape: bf16[256,128], index: 4, kind: input, shape index: {}]
  %s5 = inlined_call_operand.hbm [shape: f32[1,128], index: 5, kind: input, shape index: {}]
  %s6 = inlined_call_operand.vmem [shape: f32[8,8,128], index: 6, kind: output, shape index: {}]
  %s7 = sld [smem:[#allocation0]]
  $region46: #{run.5} parent=0
    _
  %s9 = ssub.s32 1, %s7
  %s10 = scalar_select 0, %s9, %s7
  $region1: #{run.5} parent=0
    #allocation5 [shape = 'u8[131072]{0}', space=vmem, size = 0x20000, scoped, tag = 'input window, operand 1, single buffered']
    #allocation6 [shape = 's32[1]{0}', space=sflag, size = 0x4, scoped, tag = 'scoped memory for run.5']
    #allocation7 [shape = 'u8[4096]{0}', space=vmem, size = 0x1000, scoped, tag = 'input window, operand 2, single buffered']
    #allocation8 [shape = 's32[1]{0}', space=sflag, size = 0x4, scoped, tag = 'scoped memory for run.5']
    #allocation9 [shape = 'u8[512]{0}', space=vmem, size = 0x400, scoped, tag = 'input window, operand 5, single buffered']
    %11 = vsyncpa [#allocation6], 0
    %12 = vsyncpa [#allocation8], 0
    // Predicated region
    $region2: #{run.5} parent=1 // pred_check
      _
    $region3: #{run.5} parent=1 // pred_check_branch
      %14 = sbr.rel (0) target = $region5
    $region4: #{run.5} parent=1 // pred_region
      _
    $region5: #{run.5} parent=1 // pred_fallthru
      _
    // Predicated region
    $region6: #{run.5} parent=1 // pred_check
      _
    $region7: #{run.5} parent=1 // pred_check_branch
      %16 = sbr.rel (0) target = $region9
    $region8: #{run.5} parent=1 // pred_region
      %s18 = ssub.s32 4096, 4096
      %19 = vsyncadd [#allocation6], %s18
      %s20 = sshll.u32 [#allocation5], 4
      %s21 = int_to_ptr.vmem [resolvable:$true] %s20
      %26 = dma.hbm_to_vmem [thread:$0]  %s1, 4096, %s21, [#allocation6], 512, 512, 32
    $region9: #{run.5} parent=1 // pred_fallthru
      _
    // Predicated region
    $region10: #{run.5} parent=1 // pred_check
      _
    $region11: #{run.5} parent=1 // pred_check_branch
      %28 = sbr.rel (0) target = $region13
    $region12: #{run.5} parent=1 // pred_region
      %s30 = ssub.s32 128, 128
      %31 = vsyncadd [#allocation8], %s30
      %s33 = sshll.u32 [#allocation7], 4
      %s34 = int_to_ptr.vmem [resolvable:$true] %s33
      %36 = dma.hbm_to_vmem [thread:$0]  %s2, 128, %s34, [#allocation8]
    $region13: #{run.5} parent=1 // pred_fallthru
      _
    // Predicated region
    $region14: #{run.5} parent=1 // pred_check
      _
    $region15: #{run.5} parent=1 // pred_check_branch
      %38 = sbr.rel (0) target = $region17
    $region16: #{run.5} parent=1 // pred_region
      _
    $region17: #{run.5} parent=1 // pred_fallthru
      _
    // Predicated region
    $region18: #{run.5} parent=1 // pred_check
      _
    $region19: #{run.5} parent=1 // pred_check_branch
      %40 = sbr.rel (0) target = $region21
    $region20: #{run.5} parent=1 // pred_region
      _
    $region21: #{run.5} parent=1 // pred_fallthru
      _
    // Predicated region
    $region22: #{run.5} parent=1 // pred_check
      _
    $region23: #{run.5} parent=1 // pred_check_branch
      %42 = sbr.rel (0) target = $region25
    $region24: #{run.5} parent=1 // pred_region
      %s44 = ssub.s32 16, 16
      %45 = vsyncadd [#allocation8], %s44
      %s47 = sshll.u32 [#allocation9], 4
      %s48 = int_to_ptr.vmem [resolvable:$true] %s47
      %50 = dma.hbm_to_vmem [thread:$0]  %s5, 16, %s48, [#allocation8]
    $region25: #{run.5} parent=1 // pred_fallthru
      _
    // Predicated region
    $region26: #{run.5} parent=1 // pred_check
      _
    $region27: #{run.5} parent=1 // pred_check_branch
      %52 = sbr.rel (0) target = $region29
    $region28: #{run.5} parent=1 // pred_region
      %53 = dma.done [#allocation6], 4096
    $region29: #{run.5} parent=1 // pred_fallthru
      _
    // Predicated region
    $region30: #{run.5} parent=1 // pred_check
      _
    $region31: #{run.5} parent=1 // pred_check_branch
      %55 = sbr.rel (0) target = $region33
    $region32: #{run.5} parent=1 // pred_region
      %56 = dma.done [#allocation8], 128
    $region33: #{run.5} parent=1 // pred_fallthru
      _
    // Predicated region
    $region34: #{run.5} parent=1 // pred_check
      _
    $region35: #{run.5} parent=1 // pred_check_branch
      %58 = sbr.rel (0) target = $region37
    $region36: #{run.5} parent=1 // pred_region
      %59 = dma.done [#allocation8], 16
    $region37: #{run.5} parent=1 // pred_fallthru
      _
    %v61 = vld [vmem:[%s0] sm:$0xff]
    %v62 = vld [vmem:[%s0 + $0x8] sm:$0xff]
    %v63 = vld [vmem:[%s0 + $0x10] sm:$0xff]
    %v64 = vld [vmem:[%s0 + $0x18] sm:$0xff]
    %v65 = vld [vmem:[%s0 + $0x20] sm:$0xff]
    %v66 = vld [vmem:[%s0 + $0x28] sm:$0xff]
    %v67 = vld [vmem:[%s0 + $0x30] sm:$0xff]
    %v68 = vld [vmem:[%s0 + $0x38] sm:$0xff]
    %v69 = vpack.c.bf16 %v62, %v61
    %v70 = vpack.c.bf16 %v64, %v63
    %v71 = vpack.c.bf16 %v66, %v65
    %v72 = vpack.c.bf16 %v68, %v67
    %v73 = vld [vmem:[#allocation5] sm:$0xff]
    %v74 = vld [vmem:[#allocation5 + $0x8] sm:$0xff]
    %v75 = vld [vmem:[#allocation5 + $0x10] sm:$0xff]
    %v76 = vld [vmem:[#allocation5 + $0x18] sm:$0xff]
    %v77 = vld [vmem:[#allocation5 + $0x20] sm:$0xff]
    %v78 = vld [vmem:[#allocation5 + $0x28] sm:$0xff]
    %v79 = vld [vmem:[#allocation5 + $0x30] sm:$0xff]
    %v80 = vld [vmem:[#allocation5 + $0x38] sm:$0xff]
    %v81 = vld [vmem:[#allocation5 + $0x40] sm:$0xff]
    %v82 = vld [vmem:[#allocation5 + $0x48] sm:$0xff]
    %v83 = vld [vmem:[#allocation5 + $0x50] sm:$0xff]
    %v84 = vld [vmem:[#allocation5 + $0x58] sm:$0xff]
    %v85 = vld [vmem:[#allocation5 + $0x60] sm:$0xff]
    %v86 = vld [vmem:[#allocation5 + $0x68] sm:$0xff]
    %v87 = vld [vmem:[#allocation5 + $0x70] sm:$0xff]
    %v88 = vld [vmem:[#allocation5 + $0x78] sm:$0xff]
    %v89 = vld [vmem:[#allocation5 + $0x80] sm:$0xff]
    %v90 = vld [vmem:[#allocation5 + $0x88] sm:$0xff]
    %v91 = vld [vmem:[#allocation5 + $0x90] sm:$0xff]
    %v92 = vld [vmem:[#allocation5 + $0x98] sm:$0xff]
    %v93 = vld [vmem:[#allocation5 + $0xa0] sm:$0xff]
    %v94 = vld [vmem:[#allocation5 + $0xa8] sm:$0xff]
    %v95 = vld [vmem:[#allocation5 + $0xb0] sm:$0xff]
    %v96 = vld [vmem:[#allocation5 + $0xb8] sm:$0xff]
    %v97 = vld [vmem:[#allocation5 + $0xc0] sm:$0xff]
    %v98 = vld [vmem:[#allocation5 + $0xc8] sm:$0xff]
    %v99 = vld [vmem:[#allocation5 + $0xd0] sm:$0xff]
    %v100 = vld [vmem:[#allocation5 + $0xd8] sm:$0xff]
    %v101 = vld [vmem:[#allocation5 + $0xe0] sm:$0xff]
    %v102 = vld [vmem:[#allocation5 + $0xe8] sm:$0xff]
    %v103 = vld [vmem:[#allocation5 + $0xf0] sm:$0xff]
    %v104 = vld [vmem:[#allocation5 + $0xf8] sm:$0xff]
    %v105 = vld [vmem:[#allocation7] sm:$0xff]
    %v107 = vlaneseq
    %v108 = vshrl.u32 %v107, 7
    %v109 = vsub.s32 0, %v108
    %v110 = vrot.slane %v105, %v109
    %v111 = vlaneseq
    %v112 = vshrl.u32 %v111, 7
    %v113 = vsub.s32 1, %v112
    %v114 = vrot.slane %v105, %v113
    %v115 = vlaneseq
    %v116 = vshrl.u32 %v115, 7
    %v117 = vsub.s32 2, %v116
    %v118 = vrot.slane %v105, %v117
    %v119 = vlaneseq
    %v120 = vshrl.u32 %v119, 7
    %v121 = vsub.s32 3, %v120
    %v122 = vrot.slane %v105, %v121
    %v123 = vlaneseq
    %v124 = vshrl.u32 %v123, 7
    %v125 = vsub.s32 4, %v124
    %v126 = vrot.slane %v105, %v125
    %v127 = vlaneseq
    %v128 = vshrl.u32 %v127, 7
    %v129 = vsub.s32 5, %v128
    %v130 = vrot.slane %v105, %v129
    %v131 = vlaneseq
    %v132 = vshrl.u32 %v131, 7
    %v133 = vsub.s32 6, %v132
    %v134 = vrot.slane %v105, %v133
    %v135 = vlaneseq
    %v136 = vshrl.u32 %v135, 7
    %v137 = vsub.s32 7, %v136
    %v138 = vrot.slane %v105, %v137
    %v179 = vunpack.c.l.b16 %v73
    %v180 = vunpack.c.h.b16 %v73
    %v181 = vunpack.c.l.b16 %v74
    %v182 = vunpack.c.h.b16 %v74
    %v183 = vunpack.c.l.b16 %v75
    %v184 = vunpack.c.h.b16 %v75
    %v185 = vunpack.c.l.b16 %v76
    %v186 = vunpack.c.h.b16 %v76
    %v187 = vunpack.c.l.b16 %v77
    %v188 = vunpack.c.h.b16 %v77
    %v189 = vunpack.c.l.b16 %v78
    %v190 = vunpack.c.h.b16 %v78
    %v191 = vunpack.c.l.b16 %v79
    %v192 = vunpack.c.h.b16 %v79
    %v193 = vunpack.c.l.b16 %v80
    %v194 = vunpack.c.h.b16 %v80
    %v195 = vunpack.c.l.b16 %v81
    %v196 = vunpack.c.h.b16 %v81
    %v197 = vunpack.c.l.b16 %v82
    %v198 = vunpack.c.h.b16 %v82
    %v199 = vunpack.c.l.b16 %v83
    %v200 = vunpack.c.h.b16 %v83
    %v201 = vunpack.c.l.b16 %v84
    %v202 = vunpack.c.h.b16 %v84
    %v203 = vunpack.c.l.b16 %v85
    %v204 = vunpack.c.h.b16 %v85
    %v205 = vunpack.c.l.b16 %v86
    %v206 = vunpack.c.h.b16 %v86
    %v207 = vunpack.c.l.b16 %v87
    %v208 = vunpack.c.h.b16 %v87
    %v209 = vunpack.c.l.b16 %v88
    %v210 = vunpack.c.h.b16 %v88
    %v211 = vunpack.c.l.b16 %v89
    %v212 = vunpack.c.h.b16 %v89
    %v213 = vunpack.c.l.b16 %v90
    %v214 = vunpack.c.h.b16 %v90
    %v215 = vunpack.c.l.b16 %v91
    %v216 = vunpack.c.h.b16 %v91
    %v217 = vunpack.c.l.b16 %v92
    %v218 = vunpack.c.h.b16 %v92
    %v219 = vunpack.c.l.b16 %v93
    %v220 = vunpack.c.h.b16 %v93
    %v221 = vunpack.c.l.b16 %v94
    %v222 = vunpack.c.h.b16 %v94
    %v223 = vunpack.c.l.b16 %v95
    %v224 = vunpack.c.h.b16 %v95
    %v225 = vunpack.c.l.b16 %v96
    %v226 = vunpack.c.h.b16 %v96
    %v227 = vunpack.c.l.b16 %v97
    %v228 = vunpack.c.h.b16 %v97
    %v229 = vunpack.c.l.b16 %v98
    %v230 = vunpack.c.h.b16 %v98
    %v231 = vunpack.c.l.b16 %v99
    %v232 = vunpack.c.h.b16 %v99
    %v233 = vunpack.c.l.b16 %v100
    %v234 = vunpack.c.h.b16 %v100
    %v235 = vunpack.c.l.b16 %v101
    %v236 = vunpack.c.h.b16 %v101
    %v237 = vunpack.c.l.b16 %v102
    %v238 = vunpack.c.h.b16 %v102
    %v239 = vunpack.c.l.b16 %v103
    %v240 = vunpack.c.h.b16 %v103
    %v241 = vunpack.c.l.b16 %v104
    %v242 = vunpack.c.h.b16 %v104
    %v243 = vpack.c.b16 %v187, %v179
    %v244 = vpack.c.b16 %v188, %v180
    %v245 = vpack.c.b16 %v189, %v181
    %v246 = vpack.c.b16 %v190, %v182
    %v247 = vpack.c.b16 %v191, %v183
    %v248 = vpack.c.b16 %v192, %v184
    %v249 = vpack.c.b16 %v193, %v185
    %v250 = vpack.c.b16 %v194, %v186
    %v251 = vpack.c.b16 %v203, %v195
    %v252 = vpack.c.b16 %v204, %v196
    %v253 = vpack.c.b16 %v205, %v197
    %v254 = vpack.c.b16 %v206, %v198
    %v255 = vpack.c.b16 %v207, %v199
    %v256 = vpack.c.b16 %v208, %v200
    %v257 = vpack.c.b16 %v209, %v201
    %v258 = vpack.c.b16 %v210, %v202
    %v259 = vpack.c.b16 %v219, %v211
    %v260 = vpack.c.b16 %v220, %v212
    %v261 = vpack.c.b16 %v221, %v213
    %v262 = vpack.c.b16 %v222, %v214
    %v263 = vpack.c.b16 %v223, %v215
    %v264 = vpack.c.b16 %v224, %v216
    %v265 = vpack.c.b16 %v225, %v217
    %v266 = vpack.c.b16 %v226, %v218
    %v267 = vpack.c.b16 %v235, %v227
    %v268 = vpack.c.b16 %v236, %v228
    %v269 = vpack.c.b16 %v237, %v229
    %v270 = vpack.c.b16 %v238, %v230
    %v271 = vpack.c.b16 %v239, %v231
    %v272 = vpack.c.b16 %v240, %v232
    %v273 = vpack.c.b16 %v241, %v233
    %v274 = vpack.c.b16 %v242, %v234
    %vm307 = vcmask 523264
    %v309 = vsel %vm307, %v69, 0
    %v312 = vsel %vm307, %v70, 0
    %v315 = vsel %vm307, %v71, 0
    %v318 = vsel %vm307, %v72, 0
    %320 = vmatprep.subr.bf16.mxu0 %v244
    %321 = vmatpush1.bf16.msra.mxu0 %v243
    %322 = vmatprep.subr.bf16.mxu0 %v252
    %323 = vmatpush1.bf16.msra.mxu0 %v251
    %324 = vmatprep.subr.bf16.mxu0 %v260
    %325 = vmatpush1.bf16.msra.mxu0 %v259
    %326 = vmatprep.subr.bf16.mxu0 %v268
    %327 = vmatpush1.bf16.msra.mxu0 %v267
    %328 = vmatprep.subr.bf16.mxu0 0
    %329 = vmatpush1.bf16.msra.mxu0 0
    %330 = vmatprep.subr.bf16.mxu0 0
    %331 = vmatpush1.bf16.msra.mxu0 0
    %332 = vmatprep.subr.bf16.mxu0 0
    %333 = vmatpush1.bf16.msra.mxu0 0
    %334 = vmatprep.subr.bf16.mxu0 0
    %335 = vmatpush1.bf16.msra.mxu0 0
    %336 = vmatprep.subr.bf16.mxu0 0
    %337 = vmatpush1.bf16.msra.mxu0 0
    %338 = vmatprep.subr.bf16.mxu0 0
    %339 = vmatpush1.bf16.msra.mxu0 0
    %340 = vmatprep.subr.bf16.mxu0 0
    %341 = vmatpush1.bf16.msra.mxu0 0
    %342 = vmatprep.subr.bf16.mxu0 0
    %343 = vmatpush1.bf16.msra.mxu0 0
    %344 = vmatprep.subr.bf16.mxu0 0
    %345 = vmatpush1.bf16.msra.mxu0 0
    %346 = vmatprep.subr.bf16.mxu0 0
    %347 = vmatpush1.bf16.msra.mxu0 0
    %348 = vmatprep.subr.bf16.mxu0 0
    %349 = vmatpush1.bf16.msra.mxu0 0
    %350 = vmatprep.subr.bf16.mxu0 0
    %351 = vmatpush1.bf16.msra.mxu0 0
    %352 = vmatprep.mubr.bf16.mxu0 0
    %353 = vmatmul.mubr.bf16.gmra.mrb[0].mxu0 %v309
    %v354 = vpop.f32.mrb[0].mxu0
    %v355 = vadd.f32 %v110, %v354
    %v356 = vpop.f32.mrb[0].mxu0
    %v357 = vadd.f32 %v114, %v356
    %v358 = vpop.f32.mrb[0].mxu0
    %v359 = vadd.f32 %v110, %v358
    %v360 = vpop.f32.mrb[0].mxu0
    %v361 = vadd.f32 %v114, %v360
    %362 = vmatprep.mubr.bf16.mxu0 0
    %363 = vmatmul.mubr.bf16.gmra.mrb[0].mxu0 %v312
    %v364 = vpop.f32.mrb[0].mxu0
    %v365 = vadd.f32 %v110, %v364
    %v366 = vpop.f32.mrb[0].mxu0
    %v367 = vadd.f32 %v114, %v366
    %v368 = vpop.f32.mrb[0].mxu0
    %v369 = vadd.f32 %v110, %v368
    %v370 = vpop.f32.mrb[0].mxu0
    %v371 = vadd.f32 %v114, %v370
    %372 = vmatprep.mubr.bf16.mxu0 0
    %373 = vmatmul.mubr.bf16.gmra.mrb[0].mxu0 %v315
    %v374 = vpop.f32.mrb[0].mxu0
    %v375 = vadd.f32 %v110, %v374
    %v376 = vpop.f32.mrb[0].mxu0
    %v377 = vadd.f32 %v114, %v376
    %v378 = vpop.f32.mrb[0].mxu0
    %v379 = vadd.f32 %v110, %v378
    %v380 = vpop.f32.mrb[0].mxu0
    %v381 = vadd.f32 %v114, %v380
    %382 = vmatprep.mubr.bf16.mxu0 0
    %383 = vmatmul.mubr.bf16.gmra.mrb[0].mxu0 %v318
    %v384 = vpop.f32.mrb[0].mxu0
    %v385 = vadd.f32 %v110, %v384
    %v386 = vpop.f32.mrb[0].mxu0
    %v387 = vadd.f32 %v114, %v386
    %v388 = vpop.f32.mrb[0].mxu0
    %v389 = vadd.f32 %v110, %v388
    %v390 = vpop.f32.mrb[0].mxu0
    %v391 = vadd.f32 %v114, %v390
    %392 = vdwg.mxu0
    %393 = vmatprep.subr.bf16.mxu0 %v246
    %394 = vmatpush1.bf16.msra.mxu0 %v245
    %395 = vmatprep.subr.bf16.mxu0 %v254
    %396 = vmatpush1.bf16.msra.mxu0 %v253
    %397 = vmatprep.subr.bf16.mxu0 %v262
    %398 = vmatpush1.bf16.msra.mxu0 %v261
    %399 = vmatprep.subr.bf16.mxu0 %v270
    %400 = vmatpush1.bf16.msra.mxu0 %v269
    %401 = vmatprep.subr.bf16.mxu0 0
    %402 = vmatpush1.bf16.msra.mxu0 0
    %403 = vmatprep.subr.bf16.mxu0 0
    %404 = vmatpush1.bf16.msra.mxu0 0
    %405 = vmatprep.subr.bf16.mxu0 0
    %406 = vmatpush1.bf16.msra.mxu0 0
    %407 = vmatprep.subr.bf16.mxu0 0
    %408 = vmatpush1.bf16.msra.mxu0 0
    %409 = vmatprep.subr.bf16.mxu0 0
    %410 = vmatpush1.bf16.msra.mxu0 0
    %411 = vmatprep.subr.bf16.mxu0 0
    %412 = vmatpush1.bf16.msra.mxu0 0
    %413 = vmatprep.subr.bf16.mxu0 0
    %414 = vmatpush1.bf16.msra.mxu0 0
    %415 = vmatprep.subr.bf16.mxu0 0
    %416 = vmatpush1.bf16.msra.mxu0 0
    %417 = vmatprep.subr.bf16.mxu0 0
    %418 = vmatpush1.bf16.msra.mxu0 0
    %419 = vmatprep.subr.bf16.mxu0 0
    %420 = vmatpush1.bf16.msra.mxu0 0
    %421 = vmatprep.subr.bf16.mxu0 0
    %422 = vmatpush1.bf16.msra.mxu0 0
    %423 = vmatprep.subr.bf16.mxu0 0
    %424 = vmatpush1.bf16.msra.mxu0 0
    %425 = vmatprep.mubr.bf16.mxu0 0
    %426 = vmatmul.mubr.bf16.gmra.mrb[0].mxu0 %v309
    %v427 = vpop.f32.mrb[0].mxu0
    %v428 = vadd.f32 %v118, %v427
    %v429 = vpop.f32.mrb[0].mxu0
    %v430 = vadd.f32 %v122, %v429
    %v431 = vpop.f32.mrb[0].mxu0
    %v432 = vadd.f32 %v118, %v431
    %v433 = vpop.f32.mrb[0].mxu0
    %v434 = vadd.f32 %v122, %v433
    %435 = vmatprep.mubr.bf16.mxu0 0
    %436 = vmatmul.mubr.bf16.gmra.mrb[0].mxu0 %v312
    %v437 = vpop.f32.mrb[0].mxu0
    %v438 = vadd.f32 %v118, %v437
    %v439 = vpop.f32.mrb[0].mxu0
    %v440 = vadd.f32 %v122, %v439
    %v441 = vpop.f32.mrb[0].mxu0
    %v442 = vadd.f32 %v118, %v441
    %v443 = vpop.f32.mrb[0].mxu0
    %v444 = vadd.f32 %v122, %v443
    %445 = vmatprep.mubr.bf16.mxu0 0
    %446 = vmatmul.mubr.bf16.gmra.mrb[0].mxu0 %v315
    %v447 = vpop.f32.mrb[0].mxu0
    %v448 = vadd.f32 %v118, %v447
    %v449 = vpop.f32.mrb[0].mxu0
    %v450 = vadd.f32 %v122, %v449
    %v451 = vpop.f32.mrb[0].mxu0
    %v452 = vadd.f32 %v118, %v451
    %v453 = vpop.f32.mrb[0].mxu0
    %v454 = vadd.f32 %v122, %v453
    %455 = vmatprep.mubr.bf16.mxu0 0
    %456 = vmatmul.mubr.bf16.gmra.mrb[0].mxu0 %v318
    %v457 = vpop.f32.mrb[0].mxu0
    %v458 = vadd.f32 %v118, %v457
    %v459 = vpop.f32.mrb[0].mxu0
    %v460 = vadd.f32 %v122, %v459
    %v461 = vpop.f32.mrb[0].mxu0
    %v462 = vadd.f32 %v118, %v461
    %v463 = vpop.f32.mrb[0].mxu0
    %v464 = vadd.f32 %v122, %v463
    %465 = vdwg.mxu0
    %466 = vmatprep.subr.bf16.mxu0 %v248
    %467 = vmatpush1.bf16.msra.mxu0 %v247
    %468 = vmatprep.subr.bf16.mxu0 %v256
    %469 = vmatpush1.bf16.msra.mxu0 %v255
    %470 = vmatprep.subr.bf16.mxu0 %v264
    %471 = vmatpush1.bf16.msra.mxu0 %v263
    %472 = vmatprep.subr.bf16.mxu0 %v272
    %473 = vmatpush1.bf16.msra.mxu0 %v271
    %474 = vmatprep.subr.bf16.mxu0 0
    %475 = vmatpush1.bf16.msra.mxu0 0
    %476 = vmatprep.subr.bf16.mxu0 0
    %477 = vmatpush1.bf16.msra.mxu0 0
    %478 = vmatprep.subr.bf16.mxu0 0
    %479 = vmatpush1.bf16.msra.mxu0 0
    %480 = vmatprep.subr.bf16.mxu0 0
    %481 = vmatpush1.bf16.msra.mxu0 0
    %482 = vmatprep.subr.bf16.mxu0 0
    %483 = vmatpush1.bf16.msra.mxu0 0
    %484 = vmatprep.subr.bf16.mxu0 0
    %485 = vmatpush1.bf16.msra.mxu0 0
    %486 = vmatprep.subr.bf16.mxu0 0
    %487 = vmatpush1.bf16.msra.mxu0 0
    %488 = vmatprep.subr.bf16.mxu0 0
    %489 = vmatpush1.bf16.msra.mxu0 0
    %490 = vmatprep.subr.bf16.mxu0 0
    %491 = vmatpush1.bf16.msra.mxu0 0
    %492 = vmatprep.subr.bf16.mxu0 0
    %493 = vmatpush1.bf16.msra.mxu0 0
    %494 = vmatprep.subr.bf16.mxu0 0
    %495 = vmatpush1.bf16.msra.mxu0 0
    %496 = vmatprep.subr.bf16.mxu0 0
    %497 = vmatpush1.bf16.msra.mxu0 0
    %498 = vmatprep.mubr.bf16.mxu0 0
    %499 = vmatmul.mubr.bf16.gmra.mrb[0].mxu0 %v309
    %v500 = vpop.f32.mrb[0].mxu0
    %v501 = vadd.f32 %v126, %v500
    %v502 = vpop.f32.mrb[0].mxu0
    %v503 = vadd.f32 %v130, %v502
    %v504 = vpop.f32.mrb[0].mxu0
    %v505 = vadd.f32 %v126, %v504
    %v506 = vpop.f32.mrb[0].mxu0
    %v507 = vadd.f32 %v130, %v506
    %508 = vmatprep.mubr.bf16.mxu0 0
    %509 = vmatmul.mubr.bf16.gmra.mrb[0].mxu0 %v312
    %v510 = vpop.f32.mrb[0].mxu0
    %v511 = vadd.f32 %v126, %v510
    %v512 = vpop.f32.mrb[0].mxu0
    %v513 = vadd.f32 %v130, %v512
    %v514 = vpop.f32.mrb[0].mxu0
    %v515 = vadd.f32 %v126, %v514
    %v516 = vpop.f32.mrb[0].mxu0
    %v517 = vadd.f32 %v130, %v516
    %518 = vmatprep.mubr.bf16.mxu0 0
    %519 = vmatmul.mubr.bf16.gmra.mrb[0].mxu0 %v315
    %v520 = vpop.f32.mrb[0].mxu0
    %v521 = vadd.f32 %v126, %v520
    %v522 = vpop.f32.mrb[0].mxu0
    %v523 = vadd.f32 %v130, %v522
    %v524 = vpop.f32.mrb[0].mxu0
    %v525 = vadd.f32 %v126, %v524
    %v526 = vpop.f32.mrb[0].mxu0
    %v527 = vadd.f32 %v130, %v526
    %528 = vmatprep.mubr.bf16.mxu0 0
    %529 = vmatmul.mubr.bf16.gmra.mrb[0].mxu0 %v318
    %v530 = vpop.f32.mrb[0].mxu0
    %v531 = vadd.f32 %v126, %v530
    %v532 = vpop.f32.mrb[0].mxu0
    %v533 = vadd.f32 %v130, %v532
    %v534 = vpop.f32.mrb[0].mxu0
    %v535 = vadd.f32 %v126, %v534
    %v536 = vpop.f32.mrb[0].mxu0
    %v537 = vadd.f32 %v130, %v536
    %538 = vdwg.mxu0
    %539 = vmatprep.subr.bf16.mxu0 %v250
    %540 = vmatpush1.bf16.msra.mxu0 %v249
    %541 = vmatprep.subr.bf16.mxu0 %v258
    %542 = vmatpush1.bf16.msra.mxu0 %v257
    %543 = vmatprep.subr.bf16.mxu0 %v266
    %544 = vmatpush1.bf16.msra.mxu0 %v265
    %545 = vmatprep.subr.bf16.mxu0 %v274
    %546 = vmatpush1.bf16.msra.mxu0 %v273
    %547 = vmatprep.subr.bf16.mxu0 0
    %548 = vmatpush1.bf16.msra.mxu0 0
    %549 = vmatprep.subr.bf16.mxu0 0
    %550 = vmatpush1.bf16.msra.mxu0 0
    %551 = vmatprep.subr.bf16.mxu0 0
    %552 = vmatpush1.bf16.msra.mxu0 0
    %553 = vmatprep.subr.bf16.mxu0 0
    %554 = vmatpush1.bf16.msra.mxu0 0
    %555 = vmatprep.subr.bf16.mxu0 0
    %556 = vmatpush1.bf16.msra.mxu0 0
    %557 = vmatprep.subr.bf16.mxu0 0
    %558 = vmatpush1.bf16.msra.mxu0 0
    %559 = vmatprep.subr.bf16.mxu0 0
    %560 = vmatpush1.bf16.msra.mxu0 0
    %561 = vmatprep.subr.bf16.mxu0 0
    %562 = vmatpush1.bf16.msra.mxu0 0
    %563 = vmatprep.subr.bf16.mxu0 0
    %564 = vmatpush1.bf16.msra.mxu0 0
    %565 = vmatprep.subr.bf16.mxu0 0
    %566 = vmatpush1.bf16.msra.mxu0 0
    %567 = vmatprep.subr.bf16.mxu0 0
    %568 = vmatpush1.bf16.msra.mxu0 0
    %569 = vmatprep.subr.bf16.mxu0 0
    %570 = vmatpush1.bf16.msra.mxu0 0
    %571 = vmatprep.mubr.bf16.mxu0 0
    %572 = vmatmul.mubr.bf16.gmra.mrb[0].mxu0 %v309
    %v573 = vpop.f32.mrb[0].mxu0
    %v574 = vadd.f32 %v134, %v573
    %v575 = vpop.f32.mrb[0].mxu0
    %v576 = vadd.f32 %v138, %v575
    %v577 = vpop.f32.mrb[0].mxu0
    %v578 = vadd.f32 %v134, %v577
    %v579 = vpop.f32.mrb[0].mxu0
    %v580 = vadd.f32 %v138, %v579
    %581 = vmatprep.mubr.bf16.mxu0 0
    %582 = vmatmul.mubr.bf16.gmra.mrb[0].mxu0 %v312
    %v583 = vpop.f32.mrb[0].mxu0
    %v584 = vadd.f32 %v134, %v583
    %v585 = vpop.f32.mrb[0].mxu0
    %v586 = vadd.f32 %v138, %v585
    %v587 = vpop.f32.mrb[0].mxu0
    %v588 = vadd.f32 %v134, %v587
    %v589 = vpop.f32.mrb[0].mxu0
    %v590 = vadd.f32 %v138, %v589
    %591 = vmatprep.mubr.bf16.mxu0 0
    %592 = vmatmul.mubr.bf16.gmra.mrb[0].mxu0 %v315
    %v593 = vpop.f32.mrb[0].mxu0
    %v594 = vadd.f32 %v134, %v593
    %v595 = vpop.f32.mrb[0].mxu0
    %v596 = vadd.f32 %v138, %v595
    %v597 = vpop.f32.mrb[0].mxu0
    %v598 = vadd.f32 %v134, %v597
    %v599 = vpop.f32.mrb[0].mxu0
    %v600 = vadd.f32 %v138, %v599
    %601 = vmatprep.mubr.bf16.mxu0 0
    %602 = vmatmul.mubr.bf16.gmra.mrb[0].mxu0 %v318
    %v603 = vpop.f32.mrb[0].mxu0
    %v604 = vadd.f32 %v134, %v603
    %v605 = vpop.f32.mrb[0].mxu0
    %v606 = vadd.f32 %v138, %v605
    %v607 = vpop.f32.mrb[0].mxu0
    %v608 = vadd.f32 %v134, %v607
    %v609 = vpop.f32.mrb[0].mxu0
    %v610 = vadd.f32 %v138, %v609
    %611 = vdwg.mxu0
    %612 = vst [vmem:[#allocation2] sm:$0xff] %v355
    %613 = vst [vmem:[#allocation2 + $0x8] sm:$0xff] %v357
    %614 = vst [vmem:[#allocation2 + $0x10] sm:$0xff] %v428
    %615 = vst [vmem:[#allocation2 + $0x18] sm:$0xff] %v430
    %616 = vst [vmem:[#allocation2 + $0x20] sm:$0xff] %v501
    %617 = vst [vmem:[#allocation2 + $0x28] sm:$0xff] %v503
    %618 = vst [vmem:[#allocation2 + $0x30] sm:$0xff] %v574
    %619 = vst [vmem:[#allocation2 + $0x38] sm:$0xff] %v576
    %620 = vst [vmem:[#allocation2 + $0x40] sm:$0xff] %v359
    %621 = vst [vmem:[#allocation2 + $0x48] sm:$0xff] %v361
    %622 = vst [vmem:[#allocation2 + $0x50] sm:$0xff] %v432
    %623 = vst [vmem:[#allocation2 + $0x58] sm:$0xff] %v434
    %624 = vst [vmem:[#allocation2 + $0x60] sm:$0xff] %v505
    %625 = vst [vmem:[#allocation2 + $0x68] sm:$0xff] %v507
    %626 = vst [vmem:[#allocation2 + $0x70] sm:$0xff] %v578
    %627 = vst [vmem:[#allocation2 + $0x78] sm:$0xff] %v580
    %628 = vst [vmem:[#allocation2 + $0x80] sm:$0xff] %v365
    %629 = vst [vmem:[#allocation2 + $0x88] sm:$0xff] %v367
    %630 = vst [vmem:[#allocation2 + $0x90] sm:$0xff] %v438
    %631 = vst [vmem:[#allocation2 + $0x98] sm:$0xff] %v440
    %632 = vst [vmem:[#allocation2 + $0xa0] sm:$0xff] %v511
    %633 = vst [vmem:[#allocation2 + $0xa8] sm:$0xff] %v513
    %634 = vst [vmem:[#allocation2 + $0xb0] sm:$0xff] %v584
    %635 = vst [vmem:[#allocation2 + $0xb8] sm:$0xff] %v586
    %636 = vst [vmem:[#allocation2 + $0xc0] sm:$0xff] %v369
    %637 = vst [vmem:[#allocation2 + $0xc8] sm:$0xff] %v371
    %638 = vst [vmem:[#allocation2 + $0xd0] sm:$0xff] %v442
    %639 = vst [vmem:[#allocation2 + $0xd8] sm:$0xff] %v444
    %640 = vst [vmem:[#allocation2 + $0xe0] sm:$0xff] %v515
    %641 = vst [vmem:[#allocation2 + $0xe8] sm:$0xff] %v517
    %642 = vst [vmem:[#allocation2 + $0xf0] sm:$0xff] %v588
    %643 = vst [vmem:[#allocation2 + $0xf8] sm:$0xff] %v590
    %644 = vst [vmem:[#allocation2 + $0x100] sm:$0xff] %v375
    %645 = vst [vmem:[#allocation2 + $0x108] sm:$0xff] %v377
    %646 = vst [vmem:[#allocation2 + $0x110] sm:$0xff] %v448
    %647 = vst [vmem:[#allocation2 + $0x118] sm:$0xff] %v450
    %648 = vst [vmem:[#allocation2 + $0x120] sm:$0xff] %v521
    %649 = vst [vmem:[#allocation2 + $0x128] sm:$0xff] %v523
    %650 = vst [vmem:[#allocation2 + $0x130] sm:$0xff] %v594
    %651 = vst [vmem:[#allocation2 + $0x138] sm:$0xff] %v596
    %652 = vst [vmem:[#allocation2 + $0x140] sm:$0xff] %v379
    %653 = vst [vmem:[#allocation2 + $0x148] sm:$0xff] %v381
    %654 = vst [vmem:[#allocation2 + $0x150] sm:$0xff] %v452
    %655 = vst [vmem:[#allocation2 + $0x158] sm:$0xff] %v454
    %656 = vst [vmem:[#allocation2 + $0x160] sm:$0xff] %v525
    %657 = vst [vmem:[#allocation2 + $0x168] sm:$0xff] %v527
    %658 = vst [vmem:[#allocation2 + $0x170] sm:$0xff] %v598
    %659 = vst [vmem:[#allocation2 + $0x178] sm:$0xff] %v600
    %660 = vst [vmem:[#allocation2 + $0x180] sm:$0xff] %v385
    %661 = vst [vmem:[#allocation2 + $0x188] sm:$0xff] %v387
    %662 = vst [vmem:[#allocation2 + $0x190] sm:$0xff] %v458
    %663 = vst [vmem:[#allocation2 + $0x198] sm:$0xff] %v460
    %664 = vst [vmem:[#allocation2 + $0x1a0] sm:$0xff] %v531
    %665 = vst [vmem:[#allocation2 + $0x1a8] sm:$0xff] %v533
    %666 = vst [vmem:[#allocation2 + $0x1b0] sm:$0xff] %v604
    %667 = vst [vmem:[#allocation2 + $0x1b8] sm:$0xff] %v606
    %668 = vst [vmem:[#allocation2 + $0x1c0] sm:$0xff] %v389
    %669 = vst [vmem:[#allocation2 + $0x1c8] sm:$0xff] %v391
    %670 = vst [vmem:[#allocation2 + $0x1d0] sm:$0xff] %v462
    %671 = vst [vmem:[#allocation2 + $0x1d8] sm:$0xff] %v464
    %672 = vst [vmem:[#allocation2 + $0x1e0] sm:$0xff] %v535
    %673 = vst [vmem:[#allocation2 + $0x1e8] sm:$0xff] %v537
    %674 = vst [vmem:[#allocation2 + $0x1f0] sm:$0xff] %v608
    %675 = vst [vmem:[#allocation2 + $0x1f8] sm:$0xff] %v610
    %v676 = vld [vmem:[%s3] sm:$0xff]
    %v677 = vld [vmem:[%s3 + $0x8] sm:$0xff]
    %v678 = vld [vmem:[%s3 + $0x10] sm:$0xff]
    %v679 = vld [vmem:[%s3 + $0x18] sm:$0xff]
    %v680 = vld [vmem:[%s3 + $0x20] sm:$0xff]
    %v681 = vld [vmem:[%s3 + $0x28] sm:$0xff]
    %v682 = vld [vmem:[%s3 + $0x30] sm:$0xff]
    %v683 = vld [vmem:[%s3 + $0x38] sm:$0xff]
    %v684 = vld [vmem:[%s3 + $0x40] sm:$0xff]
    %v685 = vld [vmem:[%s3 + $0x48] sm:$0xff]
    %v686 = vld [vmem:[%s3 + $0x50] sm:$0xff]
    %v687 = vld [vmem:[%s3 + $0x58] sm:$0xff]
    %v688 = vld [vmem:[%s3 + $0x60] sm:$0xff]
    %v689 = vld [vmem:[%s3 + $0x68] sm:$0xff]
    %v690 = vld [vmem:[%s3 + $0x70] sm:$0xff]
    %v691 = vld [vmem:[%s3 + $0x78] sm:$0xff]
    %v692 = vld [vmem:[%s3 + $0x80] sm:$0xff]
    %v693 = vld [vmem:[%s3 + $0x88] sm:$0xff]
    %v694 = vld [vmem:[%s3 + $0x90] sm:$0xff]
    %v695 = vld [vmem:[%s3 + $0x98] sm:$0xff]
    %v696 = vld [vmem:[%s3 + $0xa0] sm:$0xff]
    %v697 = vld [vmem:[%s3 + $0xa8] sm:$0xff]
    %v698 = vld [vmem:[%s3 + $0xb0] sm:$0xff]
    %v699 = vld [vmem:[%s3 + $0xb8] sm:$0xff]
    %v700 = vld [vmem:[%s3 + $0xc0] sm:$0xff]
    %v701 = vld [vmem:[%s3 + $0xc8] sm:$0xff]
    %v702 = vld [vmem:[%s3 + $0xd0] sm:$0xff]
    %v703 = vld [vmem:[%s3 + $0xd8] sm:$0xff]
    %v704 = vld [vmem:[%s3 + $0xe0] sm:$0xff]
    %v705 = vld [vmem:[%s3 + $0xe8] sm:$0xff]
    %v706 = vld [vmem:[%s3 + $0xf0] sm:$0xff]
    %v707 = vld [vmem:[%s3 + $0xf8] sm:$0xff]
    %v708 = vld [vmem:[%s3 + $0x100] sm:$0xff]
    %v709 = vld [vmem:[%s3 + $0x108] sm:$0xff]
    %v710 = vld [vmem:[%s3 + $0x110] sm:$0xff]
    %v711 = vld [vmem:[%s3 + $0x118] sm:$0xff]
    %v712 = vld [vmem:[%s3 + $0x120] sm:$0xff]
    %v713 = vld [vmem:[%s3 + $0x128] sm:$0xff]
    %v714 = vld [vmem:[%s3 + $0x130] sm:$0xff]
    %v715 = vld [vmem:[%s3 + $0x138] sm:$0xff]
    %v716 = vld [vmem:[%s3 + $0x140] sm:$0xff]
    %v717 = vld [vmem:[%s3 + $0x148] sm:$0xff]
    %v718 = vld [vmem:[%s3 + $0x150] sm:$0xff]
    %v719 = vld [vmem:[%s3 + $0x158] sm:$0xff]
    %v720 = vld [vmem:[%s3 + $0x160] sm:$0xff]
    %v721 = vld [vmem:[%s3 + $0x168] sm:$0xff]
    %v722 = vld [vmem:[%s3 + $0x170] sm:$0xff]
    %v723 = vld [vmem:[%s3 + $0x178] sm:$0xff]
    %v724 = vld [vmem:[%s3 + $0x180] sm:$0xff]
    %v725 = vld [vmem:[%s3 + $0x188] sm:$0xff]
    %v726 = vld [vmem:[%s3 + $0x190] sm:$0xff]
    %v727 = vld [vmem:[%s3 + $0x198] sm:$0xff]
    %v728 = vld [vmem:[%s3 + $0x1a0] sm:$0xff]
    %v729 = vld [vmem:[%s3 + $0x1a8] sm:$0xff]
    %v730 = vld [vmem:[%s3 + $0x1b0] sm:$0xff]
    %v731 = vld [vmem:[%s3 + $0x1b8] sm:$0xff]
    %v732 = vld [vmem:[%s3 + $0x1c0] sm:$0xff]
    %v733 = vld [vmem:[%s3 + $0x1c8] sm:$0xff]
    %v734 = vld [vmem:[%s3 + $0x1d0] sm:$0xff]
    %v735 = vld [vmem:[%s3 + $0x1d8] sm:$0xff]
    %v736 = vld [vmem:[%s3 + $0x1e0] sm:$0xff]
    %v737 = vld [vmem:[%s3 + $0x1e8] sm:$0xff]
    %v738 = vld [vmem:[%s3 + $0x1f0] sm:$0xff]
    %v739 = vld [vmem:[%s3 + $0x1f8] sm:$0xff]
    %v740 = vld [vmem:[%s3 + $0x200] sm:$0xff]
    %v741 = vld [vmem:[%s3 + $0x208] sm:$0xff]
    %v742 = vld [vmem:[%s3 + $0x210] sm:$0xff]
    %v743 = vld [vmem:[%s3 + $0x218] sm:$0xff]
    %v744 = vld [vmem:[%s3 + $0x220] sm:$0xff]
    %v745 = vld [vmem:[%s3 + $0x228] sm:$0xff]
    %v746 = vld [vmem:[%s3 + $0x230] sm:$0xff]
    %v747 = vld [vmem:[%s3 + $0x238] sm:$0xff]
    %v748 = vld [vmem:[%s3 + $0x240] sm:$0xff]
    %v749 = vld [vmem:[%s3 + $0x248] sm:$0xff]
    %v750 = vld [vmem:[%s3 + $0x250] sm:$0xff]
    %v751 = vld [vmem:[%s3 + $0x258] sm:$0xff]
    %v752 = vld [vmem:[%s3 + $0x260] sm:$0xff]
    %v753 = vld [vmem:[%s3 + $0x268] sm:$0xff]
    %v754 = vld [vmem:[%s3 + $0x270] sm:$0xff]
    %v755 = vld [vmem:[%s3 + $0x278] sm:$0xff]
    %v756 = vld [vmem:[%s3 + $0x280] sm:$0xff]
    %v757 = vld [vmem:[%s3 + $0x288] sm:$0xff]
    %v758 = vld [vmem:[%s3 + $0x290] sm:$0xff]
    %v759 = vld [vmem:[%s3 + $0x298] sm:$0xff]
    %v760 = vld [vmem:[%s3 + $0x2a0] sm:$0xff]
    %v761 = vld [vmem:[%s3 + $0x2a8] sm:$0xff]
    %v762 = vld [vmem:[%s3 + $0x2b0] sm:$0xff]
    %v763 = vld [vmem:[%s3 + $0x2b8] sm:$0xff]
    %v764 = vld [vmem:[%s3 + $0x2c0] sm:$0xff]
    %v765 = vld [vmem:[%s3 + $0x2c8] sm:$0xff]
    %v766 = vld [vmem:[%s3 + $0x2d0] sm:$0xff]
    %v767 = vld [vmem:[%s3 + $0x2d8] sm:$0xff]
    %v768 = vld [vmem:[%s3 + $0x2e0] sm:$0xff]
    %v769 = vld [vmem:[%s3 + $0x2e8] sm:$0xff]
    %v770 = vld [vmem:[%s3 + $0x2f0] sm:$0xff]
    %v771 = vld [vmem:[%s3 + $0x2f8] sm:$0xff]
    %v772 = vld [vmem:[%s3 + $0x300] sm:$0xff]
    %v773 = vld [vmem:[%s3 + $0x308] sm:$0xff]
    %v774 = vld [vmem:[%s3 + $0x310] sm:$0xff]
    %v775 = vld [vmem:[%s3 + $0x318] sm:$0xff]
    %v776 = vld [vmem:[%s3 + $0x320] sm:$0xff]
    %v777 = vld [vmem:[%s3 + $0x328] sm:$0xff]
    %v778 = vld [vmem:[%s3 + $0x330] sm:$0xff]
    %v779 = vld [vmem:[%s3 + $0x338] sm:$0xff]
    %v780 = vld [vmem:[%s3 + $0x340] sm:$0xff]
    %v781 = vld [vmem:[%s3 + $0x348] sm:$0xff]
    %v782 = vld [vmem:[%s3 + $0x350] sm:$0xff]
    %v783 = vld [vmem:[%s3 + $0x358] sm:$0xff]
    %v784 = vld [vmem:[%s3 + $0x360] sm:$0xff]
    %v785 = vld [vmem:[%s3 + $0x368] sm:$0xff]
    %v786 = vld [vmem:[%s3 + $0x370] sm:$0xff]
    %v787 = vld [vmem:[%s3 + $0x378] sm:$0xff]
    %v788 = vld [vmem:[%s3 + $0x380] sm:$0xff]
    %v789 = vld [vmem:[%s3 + $0x388] sm:$0xff]
    %v790 = vld [vmem:[%s3 + $0x390] sm:$0xff]
    %v791 = vld [vmem:[%s3 + $0x398] sm:$0xff]
    %v792 = vld [vmem:[%s3 + $0x3a0] sm:$0xff]
    %v793 = vld [vmem:[%s3 + $0x3a8] sm:$0xff]
    %v794 = vld [vmem:[%s3 + $0x3b0] sm:$0xff]
    %v795 = vld [vmem:[%s3 + $0x3b8] sm:$0xff]
    %v796 = vld [vmem:[%s3 + $0x3c0] sm:$0xff]
    %v797 = vld [vmem:[%s3 + $0x3c8] sm:$0xff]
    %v798 = vld [vmem:[%s3 + $0x3d0] sm:$0xff]
    %v799 = vld [vmem:[%s3 + $0x3d8] sm:$0xff]
    %v800 = vld [vmem:[%s3 + $0x3e0] sm:$0xff]
    %v801 = vld [vmem:[%s3 + $0x3e8] sm:$0xff]
    %v802 = vld [vmem:[%s3 + $0x3f0] sm:$0xff]
    %v803 = vld [vmem:[%s3 + $0x3f8] sm:$0xff]
    %v932 = vunpack.c.l.b16 %v676
    %v933 = vunpack.c.h.b16 %v676
    %v934 = vunpack.c.l.b16 %v677
    %v935 = vunpack.c.h.b16 %v677
    %v936 = vunpack.c.l.b16 %v678
    %v937 = vunpack.c.h.b16 %v678
    %v938 = vunpack.c.l.b16 %v679
    %v939 = vunpack.c.h.b16 %v679
    %v940 = vunpack.c.l.b16 %v680
    %v941 = vunpack.c.h.b16 %v680
    %v942 = vunpack.c.l.b16 %v681
    %v943 = vunpack.c.h.b16 %v681
    %v944 = vunpack.c.l.b16 %v682
    %v945 = vunpack.c.h.b16 %v682
    %v946 = vunpack.c.l.b16 %v683
    %v947 = vunpack.c.h.b16 %v683
    %v948 = vunpack.c.l.b16 %v684
    %v949 = vunpack.c.h.b16 %v684
    %v950 = vunpack.c.l.b16 %v685
    %v951 = vunpack.c.h.b16 %v685
    %v952 = vunpack.c.l.b16 %v686
    %v953 = vunpack.c.h.b16 %v686
    %v954 = vunpack.c.l.b16 %v687
    %v955 = vunpack.c.h.b16 %v687
    %v956 = vunpack.c.l.b16 %v688
    %v957 = vunpack.c.h.b16 %v688
    %v958 = vunpack.c.l.b16 %v689
    %v959 = vunpack.c.h.b16 %v689
    %v960 = vunpack.c.l.b16 %v690
    %v961 = vunpack.c.h.b16 %v690
    %v962 = vunpack.c.l.b16 %v691
    %v963 = vunpack.c.h.b16 %v691
    %v964 = vunpack.c.l.b16 %v692
    %v965 = vunpack.c.h.b16 %v692
    %v966 = vunpack.c.l.b16 %v693
    %v967 = vunpack.c.h.b16 %v693
    %v968 = vunpack.c.l.b16 %v694
    %v969 = vunpack.c.h.b16 %v694
    %v970 = vunpack.c.l.b16 %v695
    %v971 = vunpack.c.h.b16 %v695
    %v972 = vunpack.c.l.b16 %v696
    %v973 = vunpack.c.h.b16 %v696
    %v974 = vunpack.c.l.b16 %v697
    %v975 = vunpack.c.h.b16 %v697
    %v976 = vunpack.c.l.b16 %v698
    %v977 = vunpack.c.h.b16 %v698
    %v978 = vunpack.c.l.b16 %v699
    %v979 = vunpack.c.h.b16 %v699
    %v980 = vunpack.c.l.b16 %v700
    %v981 = vunpack.c.h.b16 %v700
    %v982 = vunpack.c.l.b16 %v701
    %v983 = vunpack.c.h.b16 %v701
    %v984 = vunpack.c.l.b16 %v702
    %v985 = vunpack.c.h.b16 %v702
    %v986 = vunpack.c.l.b16 %v703
    %v987 = vunpack.c.h.b16 %v703
    %v988 = vunpack.c.l.b16 %v704
    %v989 = vunpack.c.h.b16 %v704
    %v990 = vunpack.c.l.b16 %v705
    %v991 = vunpack.c.h.b16 %v705
    %v992 = vunpack.c.l.b16 %v706
    %v993 = vunpack.c.h.b16 %v706
    %v994 = vunpack.c.l.b16 %v707
    %v995 = vunpack.c.h.b16 %v707
    %v996 = vunpack.c.l.b16 %v708
    %v997 = vunpack.c.h.b16 %v708
    %v998 = vunpack.c.l.b16 %v709
    %v999 = vunpack.c.h.b16 %v709
    %v1000 = vunpack.c.l.b16 %v710
    %v1001 = vunpack.c.h.b16 %v710
    %v1002 = vunpack.c.l.b16 %v711
    %v1003 = vunpack.c.h.b16 %v711
    %v1004 = vunpack.c.l.b16 %v712
    %v1005 = vunpack.c.h.b16 %v712
    %v1006 = vunpack.c.l.b16 %v713
    %v1007 = vunpack.c.h.b16 %v713
    %v1008 = vunpack.c.l.b16 %v714
    %v1009 = vunpack.c.h.b16 %v714
    %v1010 = vunpack.c.l.b16 %v715
    %v1011 = vunpack.c.h.b16 %v715
    %v1012 = vunpack.c.l.b16 %v716
    %v1013 = vunpack.c.h.b16 %v716
    %v1014 = vunpack.c.l.b16 %v717
    %v1015 = vunpack.c.h.b16 %v717
    %v1016 = vunpack.c.l.b16 %v718
    %v1017 = vunpack.c.h.b16 %v718
    %v1018 = vunpack.c.l.b16 %v719
    %v1019 = vunpack.c.h.b16 %v719
    %v1020 = vunpack.c.l.b16 %v720
    %v1021 = vunpack.c.h.b16 %v720
    %v1022 = vunpack.c.l.b16 %v721
    %v1023 = vunpack.c.h.b16 %v721
    %v1024 = vunpack.c.l.b16 %v722
    %v1025 = vunpack.c.h.b16 %v722
    %v1026 = vunpack.c.l.b16 %v723
    %v1027 = vunpack.c.h.b16 %v723
    %v1028 = vunpack.c.l.b16 %v724
    %v1029 = vunpack.c.h.b16 %v724
    %v1030 = vunpack.c.l.b16 %v725
    %v1031 = vunpack.c.h.b16 %v725
    %v1032 = vunpack.c.l.b16 %v726
    %v1033 = vunpack.c.h.b16 %v726
    %v1034 = vunpack.c.l.b16 %v727
    %v1035 = vunpack.c.h.b16 %v727
    %v1036 = vunpack.c.l.b16 %v728
    %v1037 = vunpack.c.h.b16 %v728
    %v1038 = vunpack.c.l.b16 %v729
    %v1039 = vunpack.c.h.b16 %v729
    %v1040 = vunpack.c.l.b16 %v730
    %v1041 = vunpack.c.h.b16 %v730
    %v1042 = vunpack.c.l.b16 %v731
    %v1043 = vunpack.c.h.b16 %v731
    %v1044 = vunpack.c.l.b16 %v732
    %v1045 = vunpack.c.h.b16 %v732
    %v1046 = vunpack.c.l.b16 %v733
    %v1047 = vunpack.c.h.b16 %v733
    %v1048 = vunpack.c.l.b16 %v734
    %v1049 = vunpack.c.h.b16 %v734
    %v1050 = vunpack.c.l.b16 %v735
    %v1051 = vunpack.c.h.b16 %v735
    %v1052 = vunpack.c.l.b16 %v736
    %v1053 = vunpack.c.h.b16 %v736
    %v1054 = vunpack.c.l.b16 %v737
    %v1055 = vunpack.c.h.b16 %v737
    %v1056 = vunpack.c.l.b16 %v738
    %v1057 = vunpack.c.h.b16 %v738
    %v1058 = vunpack.c.l.b16 %v739
    %v1059 = vunpack.c.h.b16 %v739
    %v1060 = vunpack.c.l.b16 %v740
    %v1061 = vunpack.c.h.b16 %v740
    %v1062 = vunpack.c.l.b16 %v741
    %v1063 = vunpack.c.h.b16 %v741
    %v1064 = vunpack.c.l.b16 %v742
    %v1065 = vunpack.c.h.b16 %v742
    %v1066 = vunpack.c.l.b16 %v743
    %v1067 = vunpack.c.h.b16 %v743
    %v1068 = vunpack.c.l.b16 %v744
    %v1069 = vunpack.c.h.b16 %v744
    %v1070 = vunpack.c.l.b16 %v745
    %v1071 = vunpack.c.h.b16 %v745
    %v1072 = vunpack.c.l.b16 %v746
    %v1073 = vunpack.c.h.b16 %v746
    %v1074 = vunpack.c.l.b16 %v747
    %v1075 = vunpack.c.h.b16 %v747
    %v1076 = vunpack.c.l.b16 %v748
    %v1077 = vunpack.c.h.b16 %v748
    %v1078 = vunpack.c.l.b16 %v749
    %v1079 = vunpack.c.h.b16 %v749
    %v1080 = vunpack.c.l.b16 %v750
    %v1081 = vunpack.c.h.b16 %v750
    %v1082 = vunpack.c.l.b16 %v751
    %v1083 = vunpack.c.h.b16 %v751
    %v1084 = vunpack.c.l.b16 %v752
    %v1085 = vunpack.c.h.b16 %v752
    %v1086 = vunpack.c.l.b16 %v753
    %v1087 = vunpack.c.h.b16 %v753
    %v1088 = vunpack.c.l.b16 %v754
    %v1089 = vunpack.c.h.b16 %v754
    %v1090 = vunpack.c.l.b16 %v755
    %v1091 = vunpack.c.h.b16 %v755
    %v1092 = vunpack.c.l.b16 %v756
    %v1093 = vunpack.c.h.b16 %v756
    %v1094 = vunpack.c.l.b16 %v757
    %v1095 = vunpack.c.h.b16 %v757
    %v1096 = vunpack.c.l.b16 %v758
    %v1097 = vunpack.c.h.b16 %v758
    %v1098 = vunpack.c.l.b16 %v759
    %v1099 = vunpack.c.h.b16 %v759
    %v1100 = vunpack.c.l.b16 %v760
    %v1101 = vunpack.c.h.b16 %v760
    %v1102 = vunpack.c.l.b16 %v761
    %v1103 = vunpack.c.h.b16 %v761
    %v1104 = vunpack.c.l.b16 %v762
    %v1105 = vunpack.c.h.b16 %v762
    %v1106 = vunpack.c.l.b16 %v763
    %v1107 = vunpack.c.h.b16 %v763
    %v1108 = vunpack.c.l.b16 %v764
    %v1109 = vunpack.c.h.b16 %v764
    %v1110 = vunpack.c.l.b16 %v765
    %v1111 = vunpack.c.h.b16 %v765
    %v1112 = vunpack.c.l.b16 %v766
    %v1113 = vunpack.c.h.b16 %v766
    %v1114 = vunpack.c.l.b16 %v767
    %v1115 = vunpack.c.h.b16 %v767
    %v1116 = vunpack.c.l.b16 %v768
    %v1117 = vunpack.c.h.b16 %v768
    %v1118 = vunpack.c.l.b16 %v769
    %v1119 = vunpack.c.h.b16 %v769
    %v1120 = vunpack.c.l.b16 %v770
    %v1121 = vunpack.c.h.b16 %v770
    %v1122 = vunpack.c.l.b16 %v771
    %v1123 = vunpack.c.h.b16 %v771
    %v1124 = vunpack.c.l.b16 %v772
    %v1125 = vunpack.c.h.b16 %v772
    %v1126 = vunpack.c.l.b16 %v773
    %v1127 = vunpack.c.h.b16 %v773
    %v1128 = vunpack.c.l.b16 %v774
    %v1129 = vunpack.c.h.b16 %v774
    %v1130 = vunpack.c.l.b16 %v775
    %v1131 = vunpack.c.h.b16 %v775
    %v1132 = vunpack.c.l.b16 %v776
    %v1133 = vunpack.c.h.b16 %v776
    %v1134 = vunpack.c.l.b16 %v777
    %v1135 = vunpack.c.h.b16 %v777
    %v1136 = vunpack.c.l.b16 %v778
    %v1137 = vunpack.c.h.b16 %v778
    %v1138 = vunpack.c.l.b16 %v779
    %v1139 = vunpack.c.h.b16 %v779
    %v1140 = vunpack.c.l.b16 %v780
    %v1141 = vunpack.c.h.b16 %v780
    %v1142 = vunpack.c.l.b16 %v781
    %v1143 = vunpack.c.h.b16 %v781
    %v1144 = vunpack.c.l.b16 %v782
    %v1145 = vunpack.c.h.b16 %v782
    %v1146 = vunpack.c.l.b16 %v783
    %v1147 = vunpack.c.h.b16 %v783
    %v1148 = vunpack.c.l.b16 %v784
    %v1149 = vunpack.c.h.b16 %v784
    %v1150 = vunpack.c.l.b16 %v785
    %v1151 = vunpack.c.h.b16 %v785
    %v1152 = vunpack.c.l.b16 %v786
    %v1153 = vunpack.c.h.b16 %v786
    %v1154 = vunpack.c.l.b16 %v787
    %v1155 = vunpack.c.h.b16 %v787
    %v1156 = vunpack.c.l.b16 %v788
    %v1157 = vunpack.c.h.b16 %v788
    %v1158 = vunpack.c.l.b16 %v789
    %v1159 = vunpack.c.h.b16 %v789
    %v1160 = vunpack.c.l.b16 %v790
    %v1161 = vunpack.c.h.b16 %v790
    %v1162 = vunpack.c.l.b16 %v791
    %v1163 = vunpack.c.h.b16 %v791
    %v1164 = vunpack.c.l.b16 %v792
    %v1165 = vunpack.c.h.b16 %v792
    %v1166 = vunpack.c.l.b16 %v793
    %v1167 = vunpack.c.h.b16 %v793
    %v1168 = vunpack.c.l.b16 %v794
    %v1169 = vunpack.c.h.b16 %v794
    %v1170 = vunpack.c.l.b16 %v795
    %v1171 = vunpack.c.h.b16 %v795
    %v1172 = vunpack.c.l.b16 %v796
    %v1173 = vunpack.c.h.b16 %v796
    %v1174 = vunpack.c.l.b16 %v797
    %v1175 = vunpack.c.h.b16 %v797
    %v1176 = vunpack.c.l.b16 %v798
    %v1177 = vunpack.c.h.b16 %v798
    %v1178 = vunpack.c.l.b16 %v799
    %v1179 = vunpack.c.h.b16 %v799
    %v1180 = vunpack.c.l.b16 %v800
    %v1181 = vunpack.c.h.b16 %v800
    %v1182 = vunpack.c.l.b16 %v801
    %v1183 = vunpack.c.h.b16 %v801
    %v1184 = vunpack.c.l.b16 %v802
    %v1185 = vunpack.c.h.b16 %v802
    %v1186 = vunpack.c.l.b16 %v803
    %v1187 = vunpack.c.h.b16 %v803
    %v1188 = vpack.c.b16 %v940, %v932
    %v1189 = vpack.c.b16 %v941, %v933
    %v1190 = vpack.c.b16 %v942, %v934
    %v1191 = vpack.c.b16 %v943, %v935
    %v1192 = vpack.c.b16 %v944, %v936
    %v1193 = vpack.c.b16 %v945, %v937
    %v1194 = vpack.c.b16 %v946, %v938
    %v1195 = vpack.c.b16 %v947, %v939
    %v1196 = vpack.c.b16 %v956, %v948
    %v1197 = vpack.c.b16 %v957, %v949
    %v1198 = vpack.c.b16 %v958, %v950
    %v1199 = vpack.c.b16 %v959, %v951
    %v1200 = vpack.c.b16 %v960, %v952
    %v1201 = vpack.c.b16 %v961, %v953
    %v1202 = vpack.c.b16 %v962, %v954
    %v1203 = vpack.c.b16 %v963, %v955
    %v1204 = vpack.c.b16 %v972, %v964
    %v1205 = vpack.c.b16 %v973, %v965
    %v1206 = vpack.c.b16 %v974, %v966
    %v1207 = vpack.c.b16 %v975, %v967
    %v1208 = vpack.c.b16 %v976, %v968
    %v1209 = vpack.c.b16 %v977, %v969
    %v1210 = vpack.c.b16 %v978, %v970
    %v1211 = vpack.c.b16 %v979, %v971
    %v1212 = vpack.c.b16 %v988, %v980
    %v1213 = vpack.c.b16 %v989, %v981
    %v1214 = vpack.c.b16 %v990, %v982
    %v1215 = vpack.c.b16 %v991, %v983
    %v1216 = vpack.c.b16 %v992, %v984
    %v1217 = vpack.c.b16 %v993, %v985
    %v1218 = vpack.c.b16 %v994, %v986
    %v1219 = vpack.c.b16 %v995, %v987
    %v1220 = vpack.c.b16 %v1004, %v996
    %v1221 = vpack.c.b16 %v1005, %v997
    %v1222 = vpack.c.b16 %v1006, %v998
    %v1223 = vpack.c.b16 %v1007, %v999
    %v1224 = vpack.c.b16 %v1008, %v1000
    %v1225 = vpack.c.b16 %v1009, %v1001
    %v1226 = vpack.c.b16 %v1010, %v1002
    %v1227 = vpack.c.b16 %v1011, %v1003
    %v1228 = vpack.c.b16 %v1020, %v1012
    %v1229 = vpack.c.b16 %v1021, %v1013
    %v1230 = vpack.c.b16 %v1022, %v1014
    %v1231 = vpack.c.b16 %v1023, %v1015
    %v1232 = vpack.c.b16 %v1024, %v1016
    %v1233 = vpack.c.b16 %v1025, %v1017
    %v1234 = vpack.c.b16 %v1026, %v1018
    %v1235 = vpack.c.b16 %v1027, %v1019
    %v1236 = vpack.c.b16 %v1036, %v1028
    %v1237 = vpack.c.b16 %v1037, %v1029
    %v1238 = vpack.c.b16 %v1038, %v1030
    %v1239 = vpack.c.b16 %v1039, %v1031
    %v1240 = vpack.c.b16 %v1040, %v1032
    %v1241 = vpack.c.b16 %v1041, %v1033
    %v1242 = vpack.c.b16 %v1042, %v1034
    %v1243 = vpack.c.b16 %v1043, %v1035
    %v1244 = vpack.c.b16 %v1052, %v1044
    %v1245 = vpack.c.b16 %v1053, %v1045
    %v1246 = vpack.c.b16 %v1054, %v1046
    %v1247 = vpack.c.b16 %v1055, %v1047
    %v1248 = vpack.c.b16 %v1056, %v1048
    %v1249 = vpack.c.b16 %v1057, %v1049
    %v1250 = vpack.c.b16 %v1058, %v1050
    %v1251 = vpack.c.b16 %v1059, %v1051
    %v1252 = vpack.c.b16 %v1068, %v1060
    %v1253 = vpack.c.b16 %v1069, %v1061
    %v1254 = vpack.c.b16 %v1070, %v1062
    %v1255 = vpack.c.b16 %v1071, %v1063
    %v1256 = vpack.c.b16 %v1072, %v1064
    %v1257 = vpack.c.b16 %v1073, %v1065
    %v1258 = vpack.c.b16 %v1074, %v1066
    %v1259 = vpack.c.b16 %v1075, %v1067
    %v1260 = vpack.c.b16 %v1084, %v1076
    %v1261 = vpack.c.b16 %v1085, %v1077
    %v1262 = vpack.c.b16 %v1086, %v1078
    %v1263 = vpack.c.b16 %v1087, %v1079
    %v1264 = vpack.c.b16 %v1088, %v1080
    %v1265 = vpack.c.b16 %v1089, %v1081
    %v1266 = vpack.c.b16 %v1090, %v1082
    %v1267 = vpack.c.b16 %v1091, %v1083
    %v1268 = vpack.c.b16 %v1100, %v1092
    %v1269 = vpack.c.b16 %v1101, %v1093
    %v1270 = vpack.c.b16 %v1102, %v1094
    %v1271 = vpack.c.b16 %v1103, %v1095
    %v1272 = vpack.c.b16 %v1104, %v1096
    %v1273 = vpack.c.b16 %v1105, %v1097
    %v1274 = vpack.c.b16 %v1106, %v1098
    %v1275 = vpack.c.b16 %v1107, %v1099
    %v1276 = vpack.c.b16 %v1116, %v1108
    %v1277 = vpack.c.b16 %v1117, %v1109
    %v1278 = vpack.c.b16 %v1118, %v1110
    %v1279 = vpack.c.b16 %v1119, %v1111
    %v1280 = vpack.c.b16 %v1120, %v1112
    %v1281 = vpack.c.b16 %v1121, %v1113
    %v1282 = vpack.c.b16 %v1122, %v1114
    %v1283 = vpack.c.b16 %v1123, %v1115
    %v1284 = vpack.c.b16 %v1132, %v1124
    %v1285 = vpack.c.b16 %v1133, %v1125
    %v1286 = vpack.c.b16 %v1134, %v1126
    %v1287 = vpack.c.b16 %v1135, %v1127
    %v1288 = vpack.c.b16 %v1136, %v1128
    %v1289 = vpack.c.b16 %v1137, %v1129
    %v1290 = vpack.c.b16 %v1138, %v1130
    %v1291 = vpack.c.b16 %v1139, %v1131
    %v1292 = vpack.c.b16 %v1148, %v1140
    %v1293 = vpack.c.b16 %v1149, %v1141
    %v1294 = vpack.c.b16 %v1150, %v1142
    %v1295 = vpack.c.b16 %v1151, %v1143
    %v1296 = vpack.c.b16 %v1152, %v1144
    %v1297 = vpack.c.b16 %v1153, %v1145
    %v1298 = vpack.c.b16 %v1154, %v1146
    %v1299 = vpack.c.b16 %v1155, %v1147
    %v1300 = vpack.c.b16 %v1164, %v1156
    %v1301 = vpack.c.b16 %v1165, %v1157
    %v1302 = vpack.c.b16 %v1166, %v1158
    %v1303 = vpack.c.b16 %v1167, %v1159
    %v1304 = vpack.c.b16 %v1168, %v1160
    %v1305 = vpack.c.b16 %v1169, %v1161
    %v1306 = vpack.c.b16 %v1170, %v1162
    %v1307 = vpack.c.b16 %v1171, %v1163
    %v1308 = vpack.c.b16 %v1180, %v1172
    %v1309 = vpack.c.b16 %v1181, %v1173
    %v1310 = vpack.c.b16 %v1182, %v1174
    %v1311 = vpack.c.b16 %v1183, %v1175
    %v1312 = vpack.c.b16 %v1184, %v1176
    %v1313 = vpack.c.b16 %v1185, %v1177
    %v1314 = vpack.c.b16 %v1186, %v1178
    %v1315 = vpack.c.b16 %v1187, %v1179
    %1444 = vmatprep.subr.bf16.mxu0 %v1189
    %1445 = vmatpush1.bf16.msra.mxu0 %v1188
    %1446 = vmatprep.subr.bf16.mxu0 %v1197
    %1447 = vmatpush1.bf16.msra.mxu0 %v1196
    %1448 = vmatprep.subr.bf16.mxu0 %v1205
    %1449 = vmatpush1.bf16.msra.mxu0 %v1204
    %1450 = vmatprep.subr.bf16.mxu0 %v1213
    %1451 = vmatpush1.bf16.msra.mxu0 %v1212
    %1452 = vmatprep.subr.bf16.mxu0 %v1221
    %1453 = vmatpush1.bf16.msra.mxu0 %v1220
    %1454 = vmatprep.subr.bf16.mxu0 %v1229
    %1455 = vmatpush1.bf16.msra.mxu0 %v1228
    %1456 = vmatprep.subr.bf16.mxu0 %v1237
    %1457 = vmatpush1.bf16.msra.mxu0 %v1236
    %1458 = vmatprep.subr.bf16.mxu0 %v1245
    %1459 = vmatpush1.bf16.msra.mxu0 %v1244
    %1460 = vmatprep.subr.bf16.mxu0 %v1253
    %1461 = vmatpush1.bf16.msra.mxu0 %v1252
    %1462 = vmatprep.subr.bf16.mxu0 %v1261
    %1463 = vmatpush1.bf16.msra.mxu0 %v1260
    %1464 = vmatprep.subr.bf16.mxu0 %v1269
    %1465 = vmatpush1.bf16.msra.mxu0 %v1268
    %1466 = vmatprep.subr.bf16.mxu0 %v1277
    %1467 = vmatpush1.bf16.msra.mxu0 %v1276
    %1468 = vmatprep.subr.bf16.mxu0 %v1285
    %1469 = vmatpush1.bf16.msra.mxu0 %v1284
    %1470 = vmatprep.subr.bf16.mxu0 %v1293
    %1471 = vmatpush1.bf16.msra.mxu0 %v1292
    %1472 = vmatprep.subr.bf16.mxu0 %v1301
    %1473 = vmatpush1.bf16.msra.mxu0 %v1300
    %1474 = vmatprep.subr.bf16.mxu0 %v1309
    %1475 = vmatpush1.bf16.msra.mxu0 %v1308
    %1476 = vmatprep.mubr.bf16.mxu0 0
    %1477 = vmatmul.mubr.bf16.gmra.mrb[0].mxu0 0
    %v1478 = vpop.f32.mrb[0].mxu0
    %v1479 = vadd.f32 0.0, %v1478
    %v1480 = vpop.f32.mrb[0].mxu0
    %v1481 = vadd.f32 0.0, %v1480
    %v1482 = vpop.f32.mrb[0].mxu0
    %v1483 = vpop.f32.mrb[0].mxu0
    %1484 = vdwg.mxu0
    %1485 = vmatprep.subr.bf16.mxu0 %v1191
    %1486 = vmatpush1.bf16.msra.mxu0 %v1190
    %1487 = vmatprep.subr.bf16.mxu0 %v1199
    %1488 = vmatpush1.bf16.msra.mxu0 %v1198
    %1489 = vmatprep.subr.bf16.mxu0 %v1207
    %1490 = vmatpush1.bf16.msra.mxu0 %v1206
    %1491 = vmatprep.subr.bf16.mxu0 %v1215
    %1492 = vmatpush1.bf16.msra.mxu0 %v1214
    %1493 = vmatprep.subr.bf16.mxu0 %v1223
    %1494 = vmatpush1.bf16.msra.mxu0 %v1222
    %1495 = vmatprep.subr.bf16.mxu0 %v1231
    %1496 = vmatpush1.bf16.msra.mxu0 %v1230
    %1497 = vmatprep.subr.bf16.mxu0 %v1239
    %1498 = vmatpush1.bf16.msra.mxu0 %v1238
    %1499 = vmatprep.subr.bf16.mxu0 %v1247
    %1500 = vmatpush1.bf16.msra.mxu0 %v1246
    %1501 = vmatprep.subr.bf16.mxu0 %v1255
    %1502 = vmatpush1.bf16.msra.mxu0 %v1254
    %1503 = vmatprep.subr.bf16.mxu0 %v1263
    %1504 = vmatpush1.bf16.msra.mxu0 %v1262
    %1505 = vmatprep.subr.bf16.mxu0 %v1271
    %1506 = vmatpush1.bf16.msra.mxu0 %v1270
    %1507 = vmatprep.subr.bf16.mxu0 %v1279
    %1508 = vmatpush1.bf16.msra.mxu0 %v1278
    %1509 = vmatprep.subr.bf16.mxu0 %v1287
    %1510 = vmatpush1.bf16.msra.mxu0 %v1286
    %1511 = vmatprep.subr.bf16.mxu0 %v1295
    %1512 = vmatpush1.bf16.msra.mxu0 %v1294
    %1513 = vmatprep.subr.bf16.mxu0 %v1303
    %1514 = vmatpush1.bf16.msra.mxu0 %v1302
    %1515 = vmatprep.subr.bf16.mxu0 %v1311
    %1516 = vmatpush1.bf16.msra.mxu0 %v1310
    %1517 = vmatprep.mubr.bf16.mxu0 0
    %1518 = vmatmul.mubr.bf16.gmra.mrb[0].mxu0 0
    %v1519 = vpop.f32.mrb[0].mxu0
    %v1520 = vadd.f32 0.0, %v1519
    %v1521 = vpop.f32.mrb[0].mxu0
    %v1522 = vadd.f32 0.0, %v1521
    %v1523 = vpop.f32.mrb[0].mxu0
    %v1524 = vpop.f32.mrb[0].mxu0
    %1525 = vdwg.mxu0
    %1526 = vmatprep.subr.bf16.mxu0 %v1193
    %1527 = vmatpush1.bf16.msra.mxu0 %v1192
    %1528 = vmatprep.subr.bf16.mxu0 %v1201
    %1529 = vmatpush1.bf16.msra.mxu0 %v1200
    %1530 = vmatprep.subr.bf16.mxu0 %v1209
    %1531 = vmatpush1.bf16.msra.mxu0 %v1208
    %1532 = vmatprep.subr.bf16.mxu0 %v1217
    %1533 = vmatpush1.bf16.msra.mxu0 %v1216
    %1534 = vmatprep.subr.bf16.mxu0 %v1225
    %1535 = vmatpush1.bf16.msra.mxu0 %v1224
    %1536 = vmatprep.subr.bf16.mxu0 %v1233
    %1537 = vmatpush1.bf16.msra.mxu0 %v1232
    %1538 = vmatprep.subr.bf16.mxu0 %v1241
    %1539 = vmatpush1.bf16.msra.mxu0 %v1240
    %1540 = vmatprep.subr.bf16.mxu0 %v1249
    %1541 = vmatpush1.bf16.msra.mxu0 %v1248
    %1542 = vmatprep.subr.bf16.mxu0 %v1257
    %1543 = vmatpush1.bf16.msra.mxu0 %v1256
    %1544 = vmatprep.subr.bf16.mxu0 %v1265
    %1545 = vmatpush1.bf16.msra.mxu0 %v1264
    %1546 = vmatprep.subr.bf16.mxu0 %v1273
    %1547 = vmatpush1.bf16.msra.mxu0 %v1272
    %1548 = vmatprep.subr.bf16.mxu0 %v1281
    %1549 = vmatpush1.bf16.msra.mxu0 %v1280
    %1550 = vmatprep.subr.bf16.mxu0 %v1289
    %1551 = vmatpush1.bf16.msra.mxu0 %v1288
    %1552 = vmatprep.subr.bf16.mxu0 %v1297
    %1553 = vmatpush1.bf16.msra.mxu0 %v1296
    %1554 = vmatprep.subr.bf16.mxu0 %v1305
    %1555 = vmatpush1.bf16.msra.mxu0 %v1304
    %1556 = vmatprep.subr.bf16.mxu0 %v1313
    %1557 = vmatpush1.bf16.msra.mxu0 %v1312
    %1558 = vmatprep.mubr.bf16.mxu0 0
    %1559 = vmatmul.mubr.bf16.gmra.mrb[0].mxu0 0
    %v1560 = vpop.f32.mrb[0].mxu0
    %v1561 = vadd.f32 0.0, %v1560
    %v1562 = vpop.f32.mrb[0].mxu0
    %v1563 = vadd.f32 0.0, %v1562
    %v1564 = vpop.f32.mrb[0].mxu0
    %v1565 = vpop.f32.mrb[0].mxu0
    %1566 = vdwg.mxu0
    %1567 = vmatprep.subr.bf16.mxu0 %v1195
    %1568 = vmatpush1.bf16.msra.mxu0 %v1194
    %1569 = vmatprep.subr.bf16.mxu0 %v1203
    %1570 = vmatpush1.bf16.msra.mxu0 %v1202
    %1571 = vmatprep.subr.bf16.mxu0 %v1211
    %1572 = vmatpush1.bf16.msra.mxu0 %v1210
    %1573 = vmatprep.subr.bf16.mxu0 %v1219
    %1574 = vmatpush1.bf16.msra.mxu0 %v1218
    %1575 = vmatprep.subr.bf16.mxu0 %v1227
    %1576 = vmatpush1.bf16.msra.mxu0 %v1226
    %1577 = vmatprep.subr.bf16.mxu0 %v1235
    %1578 = vmatpush1.bf16.msra.mxu0 %v1234
    %1579 = vmatprep.subr.bf16.mxu0 %v1243
    %1580 = vmatpush1.bf16.msra.mxu0 %v1242
    %1581 = vmatprep.subr.bf16.mxu0 %v1251
    %1582 = vmatpush1.bf16.msra.mxu0 %v1250
    %1583 = vmatprep.subr.bf16.mxu0 %v1259
    %1584 = vmatpush1.bf16.msra.mxu0 %v1258
    %1585 = vmatprep.subr.bf16.mxu0 %v1267
    %1586 = vmatpush1.bf16.msra.mxu0 %v1266
    %1587 = vmatprep.subr.bf16.mxu0 %v1275
    %1588 = vmatpush1.bf16.msra.mxu0 %v1274
    %1589 = vmatprep.subr.bf16.mxu0 %v1283
    %1590 = vmatpush1.bf16.msra.mxu0 %v1282
    %1591 = vmatprep.subr.bf16.mxu0 %v1291
    %1592 = vmatpush1.bf16.msra.mxu0 %v1290
    %1593 = vmatprep.subr.bf16.mxu0 %v1299
    %1594 = vmatpush1.bf16.msra.mxu0 %v1298
    %1595 = vmatprep.subr.bf16.mxu0 %v1307
    %1596 = vmatpush1.bf16.msra.mxu0 %v1306
    %1597 = vmatprep.subr.bf16.mxu0 %v1315
    %1598 = vmatpush1.bf16.msra.mxu0 %v1314
    %1599 = vmatprep.mubr.bf16.mxu0 0
    %1600 = vmatmul.mubr.bf16.gmra.mrb[0].mxu0 0
    %v1601 = vpop.f32.mrb[0].mxu0
    %v1602 = vadd.f32 0.0, %v1601
    %v1603 = vpop.f32.mrb[0].mxu0
    %v1604 = vadd.f32 0.0, %v1603
    %v1605 = vpop.f32.mrb[0].mxu0
    %v1606 = vpop.f32.mrb[0].mxu0
    %1607 = vdwg.mxu0
    %v1608 = vld [vmem:[#allocation2] sm:$0xff]
    %v1609 = vld [vmem:[#allocation2 + $0x8] sm:$0xff]
    %v1610 = vld [vmem:[#allocation2 + $0x10] sm:$0xff]
    %v1611 = vld [vmem:[#allocation2 + $0x18] sm:$0xff]
    %v1612 = vadd.f32 %v1608, %v1479
    %v1613 = vadd.f32 %v1609, %v1481
    %v1614 = vadd.f32 %v1610, %v1520
    %v1615 = vadd.f32 %v1611, %v1522
    %s1616 = scalar_lea.vmem [#allocation2], 448
    %v1617 = vld [vmem:[%s1616 + $0x20] sm:$0xff]
    %v1618 = vld [vmem:[%s1616 + $0x28] sm:$0xff]
    %v1619 = vld [vmem:[%s1616 + $0x30] sm:$0xff]
    %v1620 = vld [vmem:[%s1616 + $0x38] sm:$0xff]
    %v1621 = vadd.f32 %v1617, %v1561
    %v1622 = vadd.f32 %v1618, %v1563
    %v1623 = vadd.f32 %v1619, %v1602
    %v1624 = vadd.f32 %v1620, %v1604
    %v1625 = vxor.u32 %v1612, 2147483648
    %v1626 = vxor.u32 %v1621, 2147483648
    %v1627 = vmul.f32 %v1625, 1.442695
    %v1628 = vpow.pop %v1627
    %v1629 = vmul.f32 %v1626, 1.442695
    %v1630 = vpow.pop %v1629
    %v1631 = vadd.f32 %v1628, 1.0
    %v1632 = vadd.f32 %v1630, 1.0
    %v1633 = vrcp.pop %v1631
    %v1634 = vmul.f32 1.0, %v1633
    %v1635 = vrcp.pop %v1632
    %v1636 = vmul.f32 1.0, %v1635
    %v1637 = vxor.u32 %v1613, 2147483648
    %v1638 = vxor.u32 %v1622, 2147483648
    %v1639 = vmul.f32 %v1637, 1.442695
    %v1640 = vpow.pop %v1639
    %v1641 = vmul.f32 %v1638, 1.442695
    %v1642 = vpow.pop %v1641
    %v1643 = vadd.f32 %v1640, 1.0
    %v1644 = vadd.f32 %v1642, 1.0
    %v1645 = vrcp.pop %v1643
    %v1646 = vmul.f32 1.0, %v1645
    %v1647 = vrcp.pop %v1644
    %v1648 = vmul.f32 1.0, %v1647
    %v1649 = vtanh.pop %v1614
    %v1650 = vtanh.pop %v1623
    %v1651 = vxor.u32 %v1615, 2147483648
    %v1652 = vxor.u32 %v1624, 2147483648
    %v1653 = vmul.f32 %v1651, 1.442695
    %v1654 = vpow.pop %v1653
    %v1655 = vmul.f32 %v1652, 1.442695
    %v1656 = vpow.pop %v1655
    %v1657 = vadd.f32 %v1654, 1.0
    %v1658 = vadd.f32 %v1656, 1.0
    %v1659 = vrcp.pop %v1657
    %v1660 = vmul.f32 1.0, %v1659
    %v1661 = vrcp.pop %v1658
    %v1662 = vmul.f32 1.0, %v1661
    %v1663 = vmul.f32 %v1646, 0.0
    %v1664 = vmul.f32 %v1648, 0.0
    %v1665 = vmul.f32 %v1634, %v1649
    %v1666 = vmul.f32 %v1636, %v1650
    %v1667 = vadd.f32 %v1663, %v1665
    %v1668 = vadd.f32 %v1664, %v1666
    %v1669 = vtanh.pop %v1667
    %v1670 = vtanh.pop %v1668
    %v1671 = vmul.f32 %v1660, %v1669
    %v1672 = vmul.f32 %v1662, %v1670
    %1673 = vst [vmem:[#allocation3] sm:$0xff] %v1671
    %s1674 = scalar_lea.vmem [#allocation4], 56
    %1675 = vst [vmem:[%s1674] sm:$0xff] %v1672
    %v1676 = vpack.c.bf16 %v1671, %v1671
    %v1677 = vpack.c.bf16 %v1672, %v1672
    %1678 = vmatprep.subr.bf16.mxu0 %v1189
    %1679 = vmatpush1.bf16.msra.mxu0 %v1188
    %1680 = vmatprep.subr.bf16.mxu0 %v1197
    %1681 = vmatpush1.bf16.msra.mxu0 %v1196
    %1682 = vmatprep.subr.bf16.mxu0 %v1205
    %1683 = vmatpush1.bf16.msra.mxu0 %v1204
    %1684 = vmatprep.subr.bf16.mxu0 %v1213
    %1685 = vmatpush1.bf16.msra.mxu0 %v1212
    %1686 = vmatprep.subr.bf16.mxu0 %v1221
    %1687 = vmatpush1.bf16.msra.mxu0 %v1220
    %1688 = vmatprep.subr.bf16.mxu0 %v1229
    %1689 = vmatpush1.bf16.msra.mxu0 %v1228
    %1690 = vmatprep.subr.bf16.mxu0 %v1237
    %1691 = vmatpush1.bf16.msra.mxu0 %v1236
    %1692 = vmatprep.subr.bf16.mxu0 %v1245
    %1693 = vmatpush1.bf16.msra.mxu0 %v1244
    %1694 = vmatprep.subr.bf16.mxu0 %v1253
    %1695 = vmatpush1.bf16.msra.mxu0 %v1252
    %1696 = vmatprep.subr.bf16.mxu0 %v1261
    %1697 = vmatpush1.bf16.msra.mxu0 %v1260
    %1698 = vmatprep.subr.bf16.mxu0 %v1269
    %1699 = vmatpush1.bf16.msra.mxu0 %v1268
    %1700 = vmatprep.subr.bf16.mxu0 %v1277
    %1701 = vmatpush1.bf16.msra.mxu0 %v1276
    %1702 = vmatprep.subr.bf16.mxu0 %v1285
    %1703 = vmatpush1.bf16.msra.mxu0 %v1284
    %1704 = vmatprep.subr.bf16.mxu0 %v1293
    %1705 = vmatpush1.bf16.msra.mxu0 %v1292
    %1706 = vmatprep.subr.bf16.mxu0 %v1301
    %1707 = vmatpush1.bf16.msra.mxu0 %v1300
    %1708 = vmatprep.subr.bf16.mxu0 %v1309
    %1709 = vmatpush1.bf16.msra.mxu0 %v1308
    %1710 = vmatprep.mubr.bf16.mxu0 %v1677
    %1711 = vmatmul.mubr.bf16.gmra.mrb[0].mxu0 %v1676
    %v1712 = vpop.f32.mrb[0].mxu0
    %v1713 = vadd.f32 0.0, %v1712
    %v1714 = vpop.f32.mrb[0].mxu0
    %v1715 = vadd.f32 0.0, %v1714
    %v1716 = vpop.f32.mrb[0].mxu0
    %v1717 = vpop.f32.mrb[0].mxu0
    %1718 = vdwg.mxu0
    %1719 = vmatprep.subr.bf16.mxu0 %v1191
    %1720 = vmatpush1.bf16.msra.mxu0 %v1190
    %1721 = vmatprep.subr.bf16.mxu0 %v1199
    %1722 = vmatpush1.bf16.msra.mxu0 %v1198
    %1723 = vmatprep.subr.bf16.mxu0 %v1207
    %1724 = vmatpush1.bf16.msra.mxu0 %v1206
    %1725 = vmatprep.subr.bf16.mxu0 %v1215
    %1726 = vmatpush1.bf16.msra.mxu0 %v1214
    %1727 = vmatprep.subr.bf16.mxu0 %v1223
    %1728 = vmatpush1.bf16.msra.mxu0 %v1222
    %1729 = vmatprep.subr.bf16.mxu0 %v1231
    %1730 = vmatpush1.bf16.msra.mxu0 %v1230
    %1731 = vmatprep.subr.bf16.mxu0 %v1239
    %1732 = vmatpush1.bf16.msra.mxu0 %v1238
    %1733 = vmatprep.subr.bf16.mxu0 %v1247
    %1734 = vmatpush1.bf16.msra.mxu0 %v1246
    %1735 = vmatprep.subr.bf16.mxu0 %v1255
    %1736 = vmatpush1.bf16.msra.mxu0 %v1254
    %1737 = vmatprep.subr.bf16.mxu0 %v1263
    %1738 = vmatpush1.bf16.msra.mxu0 %v1262
    %1739 = vmatprep.subr.bf16.mxu0 %v1271
    %1740 = vmatpush1.bf16.msra.mxu0 %v1270
    %1741 = vmatprep.subr.bf16.mxu0 %v1279
    %1742 = vmatpush1.bf16.msra.mxu0 %v1278
    %1743 = vmatprep.subr.bf16.mxu0 %v1287
    %1744 = vmatpush1.bf16.msra.mxu0 %v1286
    %1745 = vmatprep.subr.bf16.mxu0 %v1295
    %1746 = vmatpush1.bf16.msra.mxu0 %v1294
    %1747 = vmatprep.subr.bf16.mxu0 %v1303
    %1748 = vmatpush1.bf16.msra.mxu0 %v1302
    %1749 = vmatprep.subr.bf16.mxu0 %v1311
    %1750 = vmatpush1.bf16.msra.mxu0 %v1310
    %1751 = vmatprep.mubr.bf16.mxu0 %v1677
    %1752 = vmatmul.mubr.bf16.gmra.mrb[0].mxu0 %v1676
    %v1753 = vpop.f32.mrb[0].mxu0
    %v1754 = vadd.f32 0.0, %v1753
    %v1755 = vpop.f32.mrb[0].mxu0
    %v1756 = vadd.f32 0.0, %v1755
    %v1757 = vpop.f32.mrb[0].mxu0
    %v1758 = vpop.f32.mrb[0].mxu0
    %1759 = vdwg.mxu0
    %1760 = vmatprep.subr.bf16.mxu0 %v1193
    %1761 = vmatpush1.bf16.msra.mxu0 %v1192
    %1762 = vmatprep.subr.bf16.mxu0 %v1201
    %1763 = vmatpush1.bf16.msra.mxu0 %v1200
    %1764 = vmatprep.subr.bf16.mxu0 %v1209
    %1765 = vmatpush1.bf16.msra.mxu0 %v1208
    %1766 = vmatprep.subr.bf16.mxu0 %v1217
    %1767 = vmatpush1.bf16.msra.mxu0 %v1216
    %1768 = vmatprep.subr.bf16.mxu0 %v1225
    %1769 = vmatpush1.bf16.msra.mxu0 %v1224
    %1770 = vmatprep.subr.bf16.mxu0 %v1233
    %1771 = vmatpush1.bf16.msra.mxu0 %v1232
    %1772 = vmatprep.subr.bf16.mxu0 %v1241
    %1773 = vmatpush1.bf16.msra.mxu0 %v1240
    %1774 = vmatprep.subr.bf16.mxu0 %v1249
    %1775 = vmatpush1.bf16.msra.mxu0 %v1248
    %1776 = vmatprep.subr.bf16.mxu0 %v1257
    %1777 = vmatpush1.bf16.msra.mxu0 %v1256
    %1778 = vmatprep.subr.bf16.mxu0 %v1265
    %1779 = vmatpush1.bf16.msra.mxu0 %v1264
    %1780 = vmatprep.subr.bf16.mxu0 %v1273
    %1781 = vmatpush1.bf16.msra.mxu0 %v1272
    %1782 = vmatprep.subr.bf16.mxu0 %v1281
    %1783 = vmatpush1.bf16.msra.mxu0 %v1280
    %1784 = vmatprep.subr.bf16.mxu0 %v1289
    %1785 = vmatpush1.bf16.msra.mxu0 %v1288
    %1786 = vmatprep.subr.bf16.mxu0 %v1297
    %1787 = vmatpush1.bf16.msra.mxu0 %v1296
    %1788 = vmatprep.subr.bf16.mxu0 %v1305
    %1789 = vmatpush1.bf16.msra.mxu0 %v1304
    %1790 = vmatprep.subr.bf16.mxu0 %v1313
    %1791 = vmatpush1.bf16.msra.mxu0 %v1312
    %1792 = vmatprep.mubr.bf16.mxu0 %v1677
    %1793 = vmatmul.mubr.bf16.gmra.mrb[0].mxu0 %v1676
    %v1794 = vpop.f32.mrb[0].mxu0
    %v1795 = vadd.f32 0.0, %v1794
    %v1796 = vpop.f32.mrb[0].mxu0
    %v1797 = vadd.f32 0.0, %v1796
    %v1798 = vpop.f32.mrb[0].mxu0
    %v1799 = vpop.f32.mrb[0].mxu0
    %1800 = vdwg.mxu0
    %1801 = vmatprep.subr.bf16.mxu0 %v1195
    %1802 = vmatpush1.bf16.msra.mxu0 %v1194
    %1803 = vmatprep.subr.bf16.mxu0 %v1203
    %1804 = vmatpush1.bf16.msra.mxu0 %v1202
    %1805 = vmatprep.subr.bf16.mxu0 %v1211
    %1806 = vmatpush1.bf16.msra.mxu0 %v1210
    %1807 = vmatprep.subr.bf16.mxu0 %v1219
    %1808 = vmatpush1.bf16.msra.mxu0 %v1218
    %1809 = vmatprep.subr.bf16.mxu0 %v1227
    %1810 = vmatpush1.bf16.msra.mxu0 %v1226
    %1811 = vmatprep.subr.bf16.mxu0 %v1235
    %1812 = vmatpush1.bf16.msra.mxu0 %v1234
    %1813 = vmatprep.subr.bf16.mxu0 %v1243
    %1814 = vmatpush1.bf16.msra.mxu0 %v1242
    %1815 = vmatprep.subr.bf16.mxu0 %v1251
    %1816 = vmatpush1.bf16.msra.mxu0 %v1250
    %1817 = vmatprep.subr.bf16.mxu0 %v1259
    %1818 = vmatpush1.bf16.msra.mxu0 %v1258
    %1819 = vmatprep.subr.bf16.mxu0 %v1267
    %1820 = vmatpush1.bf16.msra.mxu0 %v1266
    %1821 = vmatprep.subr.bf16.mxu0 %v1275
    %1822 = vmatpush1.bf16.msra.mxu0 %v1274
    %1823 = vmatprep.subr.bf16.mxu0 %v1283
    %1824 = vmatpush1.bf16.msra.mxu0 %v1282
    %1825 = vmatprep.subr.bf16.mxu0 %v1291
    %1826 = vmatpush1.bf16.msra.mxu0 %v1290
    %1827 = vmatprep.subr.bf16.mxu0 %v1299
    %1828 = vmatpush1.bf16.msra.mxu0 %v1298
    %1829 = vmatprep.subr.bf16.mxu0 %v1307
    %1830 = vmatpush1.bf16.msra.mxu0 %v1306
    %1831 = vmatprep.subr.bf16.mxu0 %v1315
    %1832 = vmatpush1.bf16.msra.mxu0 %v1314
    %1833 = vmatprep.mubr.bf16.mxu0 %v1677
    %1834 = vmatmul.mubr.bf16.gmra.mrb[0].mxu0 %v1676
    %v1835 = vpop.f32.mrb[0].mxu0
    %v1836 = vadd.f32 0.0, %v1835
    %v1837 = vpop.f32.mrb[0].mxu0
    %v1838 = vadd.f32 0.0, %v1837
    %v1839 = vpop.f32.mrb[0].mxu0
    %v1840 = vpop.f32.mrb[0].mxu0
    %1841 = vdwg.mxu0
    %s1842 = scalar_lea.vmem [#allocation2], 64
    %v1843 = vld [vmem:[%s1842] sm:$0xff]
    %v1844 = vld [vmem:[%s1842 + $0x8] sm:$0xff]
    %v1845 = vld [vmem:[%s1842 + $0x10] sm:$0xff]
    %v1846 = vld [vmem:[%s1842 + $0x18] sm:$0xff]
    %v1847 = vadd.f32 %v1843, %v1713
    %v1848 = vadd.f32 %v1844, %v1715
    %v1849 = vadd.f32 %v1845, %v1754
    %v1850 = vadd.f32 %v1846, %v1756
    %s1851 = scalar_lea.vmem [#allocation2], 384
    %v1852 = vld [vmem:[%s1851 + $0x20] sm:$0xff]
    %v1853 = vld [vmem:[%s1851 + $0x28] sm:$0xff]
    %v1854 = vld [vmem:[%s1851 + $0x30] sm:$0xff]
    %v1855 = vld [vmem:[%s1851 + $0x38] sm:$0xff]
    %v1856 = vadd.f32 %v1852, %v1795
    %v1857 = vadd.f32 %v1853, %v1797
    %v1858 = vadd.f32 %v1854, %v1836
    %v1859 = vadd.f32 %v1855, %v1838
    %v1860 = vxor.u32 %v1847, 2147483648
    %v1861 = vxor.u32 %v1856, 2147483648
    %v1862 = vmul.f32 %v1860, 1.442695
    %v1863 = vpow.pop %v1862
    %v1864 = vmul.f32 %v1861, 1.442695
    %v1865 = vpow.pop %v1864
    %v1866 = vadd.f32 %v1863, 1.0
    %v1867 = vadd.f32 %v1865, 1.0
    %v1868 = vrcp.pop %v1866
    %v1869 = vmul.f32 1.0, %v1868
    %v1870 = vrcp.pop %v1867
    %v1871 = vmul.f32 1.0, %v1870
    %v1872 = vxor.u32 %v1848, 2147483648
    %v1873 = vxor.u32 %v1857, 2147483648
    %v1874 = vmul.f32 %v1872, 1.442695
    %v1875 = vpow.pop %v1874
    %v1876 = vmul.f32 %v1873, 1.442695
    %v1877 = vpow.pop %v1876
    %v1878 = vadd.f32 %v1875, 1.0
    %v1879 = vadd.f32 %v1877, 1.0
    %v1880 = vrcp.pop %v1878
    %v1881 = vmul.f32 1.0, %v1880
    %v1882 = vrcp.pop %v1879
    %v1883 = vmul.f32 1.0, %v1882
    %v1884 = vtanh.pop %v1849
    %v1885 = vtanh.pop %v1858
    %v1886 = vxor.u32 %v1850, 2147483648
    %v1887 = vxor.u32 %v1859, 2147483648
    %v1888 = vmul.f32 %v1886, 1.442695
    %v1889 = vpow.pop %v1888
    %v1890 = vmul.f32 %v1887, 1.442695
    %v1891 = vpow.pop %v1890
    %v1892 = vadd.f32 %v1889, 1.0
    %v1893 = vadd.f32 %v1891, 1.0
    %v1894 = vrcp.pop %v1892
    %v1895 = vmul.f32 1.0, %v1894
    %v1896 = vrcp.pop %v1893
    %v1897 = vmul.f32 1.0, %v1896
    %v1898 = vmul.f32 %v1881, %v1667
    %v1899 = vmul.f32 %v1883, %v1668
    %v1900 = vmul.f32 %v1869, %v1884
    %v1901 = vmul.f32 %v1871, %v1885
    %v1902 = vadd.f32 %v1898, %v1900
    %v1903 = vadd.f32 %v1899, %v1901
    %v1904 = vtanh.pop %v1902
    %v1905 = vtanh.pop %v1903
    %v1906 = vmul.f32 %v1895, %v1904
    %v1907 = vmul.f32 %v1897, %v1905
    %s1908 = scalar_lea.vmem [#allocation3], 8
    %1909 = vst [vmem:[%s1908] sm:$0xff] %v1906
    %s1910 = scalar_lea.vmem [#allocation4], 48
    %1911 = vst [vmem:[%s1910] sm:$0xff] %v1907
    %v1912 = vpack.c.bf16 %v1906, %v1906
    %v1913 = vpack.c.bf16 %v1907, %v1907
    %1914 = vmatprep.subr.bf16.mxu0 %v1189
    %1915 = vmatpush1.bf16.msra.mxu0 %v1188
    %1916 = vmatprep.subr.bf16.mxu0 %v1197
    %1917 = vmatpush1.bf16.msra.mxu0 %v1196
    %1918 = vmatprep.subr.bf16.mxu0 %v1205
    %1919 = vmatpush1.bf16.msra.mxu0 %v1204
    %1920 = vmatprep.subr.bf16.mxu0 %v1213
    %1921 = vmatpush1.bf16.msra.mxu0 %v1212
    %1922 = vmatprep.subr.bf16.mxu0 %v1221
    %1923 = vmatpush1.bf16.msra.mxu0 %v1220
    %1924 = vmatprep.subr.bf16.mxu0 %v1229
    %1925 = vmatpush1.bf16.msra.mxu0 %v1228
    %1926 = vmatprep.subr.bf16.mxu0 %v1237
    %1927 = vmatpush1.bf16.msra.mxu0 %v1236
    %1928 = vmatprep.subr.bf16.mxu0 %v1245
    %1929 = vmatpush1.bf16.msra.mxu0 %v1244
    %1930 = vmatprep.subr.bf16.mxu0 %v1253
    %1931 = vmatpush1.bf16.msra.mxu0 %v1252
    %1932 = vmatprep.subr.bf16.mxu0 %v1261
    %1933 = vmatpush1.bf16.msra.mxu0 %v1260
    %1934 = vmatprep.subr.bf16.mxu0 %v1269
    %1935 = vmatpush1.bf16.msra.mxu0 %v1268
    %1936 = vmatprep.subr.bf16.mxu0 %v1277
    %1937 = vmatpush1.bf16.msra.mxu0 %v1276
    %1938 = vmatprep.subr.bf16.mxu0 %v1285
    %1939 = vmatpush1.bf16.msra.mxu0 %v1284
    %1940 = vmatprep.subr.bf16.mxu0 %v1293
    %1941 = vmatpush1.bf16.msra.mxu0 %v1292
    %1942 = vmatprep.subr.bf16.mxu0 %v1301
    %1943 = vmatpush1.bf16.msra.mxu0 %v1300
    %1944 = vmatprep.subr.bf16.mxu0 %v1309
    %1945 = vmatpush1.bf16.msra.mxu0 %v1308
    %1946 = vmatprep.mubr.bf16.mxu0 %v1913
    %1947 = vmatmul.mubr.bf16.gmra.mrb[0].mxu0 %v1912
    %v1948 = vpop.f32.mrb[0].mxu0
    %v1949 = vadd.f32 0.0, %v1948
    %v1950 = vpop.f32.mrb[0].mxu0
    %v1951 = vadd.f32 0.0, %v1950
    %v1952 = vpop.f32.mrb[0].mxu0
    %v1953 = vpop.f32.mrb[0].mxu0
    %1954 = vdwg.mxu0
    %1955 = vmatprep.subr.bf16.mxu0 %v1191
    %1956 = vmatpush1.bf16.msra.mxu0 %v1190
    %1957 = vmatprep.subr.bf16.mxu0 %v1199
    %1958 = vmatpush1.bf16.msra.mxu0 %v1198
    %1959 = vmatprep.subr.bf16.mxu0 %v1207
    %1960 = vmatpush1.bf16.msra.mxu0 %v1206
    %1961 = vmatprep.subr.bf16.mxu0 %v1215
    %1962 = vmatpush1.bf16.msra.mxu0 %v1214
    %1963 = vmatprep.subr.bf16.mxu0 %v1223
    %1964 = vmatpush1.bf16.msra.mxu0 %v1222
    %1965 = vmatprep.subr.bf16.mxu0 %v1231
    %1966 = vmatpush1.bf16.msra.mxu0 %v1230
    %1967 = vmatprep.subr.bf16.mxu0 %v1239
    %1968 = vmatpush1.bf16.msra.mxu0 %v1238
    %1969 = vmatprep.subr.bf16.mxu0 %v1247
    %1970 = vmatpush1.bf16.msra.mxu0 %v1246
    %1971 = vmatprep.subr.bf16.mxu0 %v1255
    %1972 = vmatpush1.bf16.msra.mxu0 %v1254
    %1973 = vmatprep.subr.bf16.mxu0 %v1263
    %1974 = vmatpush1.bf16.msra.mxu0 %v1262
    %1975 = vmatprep.subr.bf16.mxu0 %v1271
    %1976 = vmatpush1.bf16.msra.mxu0 %v1270
    %1977 = vmatprep.subr.bf16.mxu0 %v1279
    %1978 = vmatpush1.bf16.msra.mxu0 %v1278
    %1979 = vmatprep.subr.bf16.mxu0 %v1287
    %1980 = vmatpush1.bf16.msra.mxu0 %v1286
    %1981 = vmatprep.subr.bf16.mxu0 %v1295
    %1982 = vmatpush1.bf16.msra.mxu0 %v1294
    %1983 = vmatprep.subr.bf16.mxu0 %v1303
    %1984 = vmatpush1.bf16.msra.mxu0 %v1302
    %1985 = vmatprep.subr.bf16.mxu0 %v1311
    %1986 = vmatpush1.bf16.msra.mxu0 %v1310
    %1987 = vmatprep.mubr.bf16.mxu0 %v1913
    %1988 = vmatmul.mubr.bf16.gmra.mrb[0].mxu0 %v1912
    %v1989 = vpop.f32.mrb[0].mxu0
    %v1990 = vadd.f32 0.0, %v1989
    %v1991 = vpop.f32.mrb[0].mxu0
    %v1992 = vadd.f32 0.0, %v1991
    %v1993 = vpop.f32.mrb[0].mxu0
    %v1994 = vpop.f32.mrb[0].mxu0
    %1995 = vdwg.mxu0
    %1996 = vmatprep.subr.bf16.mxu0 %v1193
    %1997 = vmatpush1.bf16.msra.mxu0 %v1192
    %1998 = vmatprep.subr.bf16.mxu0 %v1201
    %1999 = vmatpush1.bf16.msra.mxu0 %v1200
    %2000 = vmatprep.subr.bf16.mxu0 %v1209
    %2001 = vmatpush1.bf16.msra.mxu0 %v1208
    %2002 = vmatprep.subr.bf16.mxu0 %v1217
    %2003 = vmatpush1.bf16.msra.mxu0 %v1216
    %2004 = vmatprep.subr.bf16.mxu0 %v1225
    %2005 = vmatpush1.bf16.msra.mxu0 %v1224
    %2006 = vmatprep.subr.bf16.mxu0 %v1233
    %2007 = vmatpush1.bf16.msra.mxu0 %v1232
    %2008 = vmatprep.subr.bf16.mxu0 %v1241
    %2009 = vmatpush1.bf16.msra.mxu0 %v1240
    %2010 = vmatprep.subr.bf16.mxu0 %v1249
    %2011 = vmatpush1.bf16.msra.mxu0 %v1248
    %2012 = vmatprep.subr.bf16.mxu0 %v1257
    %2013 = vmatpush1.bf16.msra.mxu0 %v1256
    %2014 = vmatprep.subr.bf16.mxu0 %v1265
    %2015 = vmatpush1.bf16.msra.mxu0 %v1264
    %2016 = vmatprep.subr.bf16.mxu0 %v1273
    %2017 = vmatpush1.bf16.msra.mxu0 %v1272
    %2018 = vmatprep.subr.bf16.mxu0 %v1281
    %2019 = vmatpush1.bf16.msra.mxu0 %v1280
    %2020 = vmatprep.subr.bf16.mxu0 %v1289
    %2021 = vmatpush1.bf16.msra.mxu0 %v1288
    %2022 = vmatprep.subr.bf16.mxu0 %v1297
    %2023 = vmatpush1.bf16.msra.mxu0 %v1296
    %2024 = vmatprep.subr.bf16.mxu0 %v1305
    %2025 = vmatpush1.bf16.msra.mxu0 %v1304
    %2026 = vmatprep.subr.bf16.mxu0 %v1313
    %2027 = vmatpush1.bf16.msra.mxu0 %v1312
    %2028 = vmatprep.mubr.bf16.mxu0 %v1913
    %2029 = vmatmul.mubr.bf16.gmra.mrb[0].mxu0 %v1912
    %v2030 = vpop.f32.mrb[0].mxu0
    %v2031 = vadd.f32 0.0, %v2030
    %v2032 = vpop.f32.mrb[0].mxu0
    %v2033 = vadd.f32 0.0, %v2032
    %v2034 = vpop.f32.mrb[0].mxu0
    %v2035 = vpop.f32.mrb[0].mxu0
    %2036 = vdwg.mxu0
    %2037 = vmatprep.subr.bf16.mxu0 %v1195
    %2038 = vmatpush1.bf16.msra.mxu0 %v1194
    %2039 = vmatprep.subr.bf16.mxu0 %v1203
    %2040 = vmatpush1.bf16.msra.mxu0 %v1202
    %2041 = vmatprep.subr.bf16.mxu0 %v1211
    %2042 = vmatpush1.bf16.msra.mxu0 %v1210
    %2043 = vmatprep.subr.bf16.mxu0 %v1219
    %2044 = vmatpush1.bf16.msra.mxu0 %v1218
    %2045 = vmatprep.subr.bf16.mxu0 %v1227
    %2046 = vmatpush1.bf16.msra.mxu0 %v1226
    %2047 = vmatprep.subr.bf16.mxu0 %v1235
    %2048 = vmatpush1.bf16.msra.mxu0 %v1234
    %2049 = vmatprep.subr.bf16.mxu0 %v1243
    %2050 = vmatpush1.bf16.msra.mxu0 %v1242
    %2051 = vmatprep.subr.bf16.mxu0 %v1251
    %2052 = vmatpush1.bf16.msra.mxu0 %v1250
    %2053 = vmatprep.subr.bf16.mxu0 %v1259
    %2054 = vmatpush1.bf16.msra.mxu0 %v1258
    %2055 = vmatprep.subr.bf16.mxu0 %v1267
    %2056 = vmatpush1.bf16.msra.mxu0 %v1266
    %2057 = vmatprep.subr.bf16.mxu0 %v1275
    %2058 = vmatpush1.bf16.msra.mxu0 %v1274
    %2059 = vmatprep.subr.bf16.mxu0 %v1283
    %2060 = vmatpush1.bf16.msra.mxu0 %v1282
    %2061 = vmatprep.subr.bf16.mxu0 %v1291
    %2062 = vmatpush1.bf16.msra.mxu0 %v1290
    %2063 = vmatprep.subr.bf16.mxu0 %v1299
    %2064 = vmatpush1.bf16.msra.mxu0 %v1298
    %2065 = vmatprep.subr.bf16.mxu0 %v1307
    %2066 = vmatpush1.bf16.msra.mxu0 %v1306
    %2067 = vmatprep.subr.bf16.mxu0 %v1315
    %2068 = vmatpush1.bf16.msra.mxu0 %v1314
    %2069 = vmatprep.mubr.bf16.mxu0 %v1913
    %2070 = vmatmul.mubr.bf16.gmra.mrb[0].mxu0 %v1912
    %v2071 = vpop.f32.mrb[0].mxu0
    %v2072 = vadd.f32 0.0, %v2071
    %v2073 = vpop.f32.mrb[0].mxu0
    %v2074 = vadd.f32 0.0, %v2073
    %v2075 = vpop.f32.mrb[0].mxu0
    %v2076 = vpop.f32.mrb[0].mxu0
    %2077 = vdwg.mxu0
    %s2078 = scalar_lea.vmem [#allocation2], 128
    %v2079 = vld [vmem:[%s2078] sm:$0xff]
    %v2080 = vld [vmem:[%s2078 + $0x8] sm:$0xff]
    %v2081 = vld [vmem:[%s2078 + $0x10] sm:$0xff]
    %v2082 = vld [vmem:[%s2078 + $0x18] sm:$0xff]
    %v2083 = vadd.f32 %v2079, %v1949
    %v2084 = vadd.f32 %v2080, %v1951
    %v2085 = vadd.f32 %v2081, %v1990
    %v2086 = vadd.f32 %v2082, %v1992
    %s2087 = scalar_lea.vmem [#allocation2], 320
    %v2088 = vld [vmem:[%s2087 + $0x20] sm:$0xff]
    %v2089 = vld [vmem:[%s2087 + $0x28] sm:$0xff]
    %v2090 = vld [vmem:[%s2087 + $0x30] sm:$0xff]
    %v2091 = vld [vmem:[%s2087 + $0x38] sm:$0xff]
    %v2092 = vadd.f32 %v2088, %v2031
    %v2093 = vadd.f32 %v2089, %v2033
    %v2094 = vadd.f32 %v2090, %v2072
    %v2095 = vadd.f32 %v2091, %v2074
    %v2096 = vxor.u32 %v2083, 2147483648
    %v2097 = vxor.u32 %v2092, 2147483648
    %v2098 = vmul.f32 %v2096, 1.442695
    %v2099 = vpow.pop %v2098
    %v2100 = vmul.f32 %v2097, 1.442695
    %v2101 = vpow.pop %v2100
    %v2102 = vadd.f32 %v2099, 1.0
    %v2103 = vadd.f32 %v2101, 1.0
    %v2104 = vrcp.pop %v2102
    %v2105 = vmul.f32 1.0, %v2104
    %v2106 = vrcp.pop %v2103
    %v2107 = vmul.f32 1.0, %v2106
    %v2108 = vxor.u32 %v2084, 2147483648
    %v2109 = vxor.u32 %v2093, 2147483648
    %v2110 = vmul.f32 %v2108, 1.442695
    %v2111 = vpow.pop %v2110
    %v2112 = vmul.f32 %v2109, 1.442695
    %v2113 = vpow.pop %v2112
    %v2114 = vadd.f32 %v2111, 1.0
    %v2115 = vadd.f32 %v2113, 1.0
    %v2116 = vrcp.pop %v2114
    %v2117 = vmul.f32 1.0, %v2116
    %v2118 = vrcp.pop %v2115
    %v2119 = vmul.f32 1.0, %v2118
    %v2120 = vtanh.pop %v2085
    %v2121 = vtanh.pop %v2094
    %v2122 = vxor.u32 %v2086, 2147483648
    %v2123 = vxor.u32 %v2095, 2147483648
    %v2124 = vmul.f32 %v2122, 1.442695
    %v2125 = vpow.pop %v2124
    %v2126 = vmul.f32 %v2123, 1.442695
    %v2127 = vpow.pop %v2126
    %v2128 = vadd.f32 %v2125, 1.0
    %v2129 = vadd.f32 %v2127, 1.0
    %v2130 = vrcp.pop %v2128
    %v2131 = vmul.f32 1.0, %v2130
    %v2132 = vrcp.pop %v2129
    %v2133 = vmul.f32 1.0, %v2132
    %v2134 = vmul.f32 %v2117, %v1902
    %v2135 = vmul.f32 %v2119, %v1903
    %v2136 = vmul.f32 %v2105, %v2120
    %v2137 = vmul.f32 %v2107, %v2121
    %v2138 = vadd.f32 %v2134, %v2136
    %v2139 = vadd.f32 %v2135, %v2137
    %v2140 = vtanh.pop %v2138
    %v2141 = vtanh.pop %v2139
    %v2142 = vmul.f32 %v2131, %v2140
    %v2143 = vmul.f32 %v2133, %v2141
    %s2144 = scalar_lea.vmem [#allocation3], 16
    %2145 = vst [vmem:[%s2144] sm:$0xff] %v2142
    %s2146 = scalar_lea.vmem [#allocation4], 40
    %2147 = vst [vmem:[%s2146] sm:$0xff] %v2143
    %v2148 = vpack.c.bf16 %v2142, %v2142
    %v2149 = vpack.c.bf16 %v2143, %v2143
    %2150 = vmatprep.subr.bf16.mxu0 %v1189
    %2151 = vmatpush1.bf16.msra.mxu0 %v1188
    %2152 = vmatprep.subr.bf16.mxu0 %v1197
    %2153 = vmatpush1.bf16.msra.mxu0 %v1196
    %2154 = vmatprep.subr.bf16.mxu0 %v1205
    %2155 = vmatpush1.bf16.msra.mxu0 %v1204
    %2156 = vmatprep.subr.bf16.mxu0 %v1213
    %2157 = vmatpush1.bf16.msra.mxu0 %v1212
    %2158 = vmatprep.subr.bf16.mxu0 %v1221
    %2159 = vmatpush1.bf16.msra.mxu0 %v1220
    %2160 = vmatprep.subr.bf16.mxu0 %v1229
    %2161 = vmatpush1.bf16.msra.mxu0 %v1228
    %2162 = vmatprep.subr.bf16.mxu0 %v1237
    %2163 = vmatpush1.bf16.msra.mxu0 %v1236
    %2164 = vmatprep.subr.bf16.mxu0 %v1245
    %2165 = vmatpush1.bf16.msra.mxu0 %v1244
    %2166 = vmatprep.subr.bf16.mxu0 %v1253
    %2167 = vmatpush1.bf16.msra.mxu0 %v1252
    %2168 = vmatprep.subr.bf16.mxu0 %v1261
    %2169 = vmatpush1.bf16.msra.mxu0 %v1260
    %2170 = vmatprep.subr.bf16.mxu0 %v1269
    %2171 = vmatpush1.bf16.msra.mxu0 %v1268
    %2172 = vmatprep.subr.bf16.mxu0 %v1277
    %2173 = vmatpush1.bf16.msra.mxu0 %v1276
    %2174 = vmatprep.subr.bf16.mxu0 %v1285
    %2175 = vmatpush1.bf16.msra.mxu0 %v1284
    %2176 = vmatprep.subr.bf16.mxu0 %v1293
    %2177 = vmatpush1.bf16.msra.mxu0 %v1292
    %2178 = vmatprep.subr.bf16.mxu0 %v1301
    %2179 = vmatpush1.bf16.msra.mxu0 %v1300
    %2180 = vmatprep.subr.bf16.mxu0 %v1309
    %2181 = vmatpush1.bf16.msra.mxu0 %v1308
    %2182 = vmatprep.mubr.bf16.mxu0 %v2149
    %2183 = vmatmul.mubr.bf16.gmra.mrb[0].mxu0 %v2148
    %v2184 = vpop.f32.mrb[0].mxu0
    %v2185 = vadd.f32 0.0, %v2184
    %v2186 = vpop.f32.mrb[0].mxu0
    %v2187 = vadd.f32 0.0, %v2186
    %v2188 = vpop.f32.mrb[0].mxu0
    %v2189 = vpop.f32.mrb[0].mxu0
    %2190 = vdwg.mxu0
    %2191 = vmatprep.subr.bf16.mxu0 %v1191
    %2192 = vmatpush1.bf16.msra.mxu0 %v1190
    %2193 = vmatprep.subr.bf16.mxu0 %v1199
    %2194 = vmatpush1.bf16.msra.mxu0 %v1198
    %2195 = vmatprep.subr.bf16.mxu0 %v1207
    %2196 = vmatpush1.bf16.msra.mxu0 %v1206
    %2197 = vmatprep.subr.bf16.mxu0 %v1215
    %2198 = vmatpush1.bf16.msra.mxu0 %v1214
    %2199 = vmatprep.subr.bf16.mxu0 %v1223
    %2200 = vmatpush1.bf16.msra.mxu0 %v1222
    %2201 = vmatprep.subr.bf16.mxu0 %v1231
    %2202 = vmatpush1.bf16.msra.mxu0 %v1230
    %2203 = vmatprep.subr.bf16.mxu0 %v1239
    %2204 = vmatpush1.bf16.msra.mxu0 %v1238
    %2205 = vmatprep.subr.bf16.mxu0 %v1247
    %2206 = vmatpush1.bf16.msra.mxu0 %v1246
    %2207 = vmatprep.subr.bf16.mxu0 %v1255
    %2208 = vmatpush1.bf16.msra.mxu0 %v1254
    %2209 = vmatprep.subr.bf16.mxu0 %v1263
    %2210 = vmatpush1.bf16.msra.mxu0 %v1262
    %2211 = vmatprep.subr.bf16.mxu0 %v1271
    %2212 = vmatpush1.bf16.msra.mxu0 %v1270
    %2213 = vmatprep.subr.bf16.mxu0 %v1279
    %2214 = vmatpush1.bf16.msra.mxu0 %v1278
    %2215 = vmatprep.subr.bf16.mxu0 %v1287
    %2216 = vmatpush1.bf16.msra.mxu0 %v1286
    %2217 = vmatprep.subr.bf16.mxu0 %v1295
    %2218 = vmatpush1.bf16.msra.mxu0 %v1294
    %2219 = vmatprep.subr.bf16.mxu0 %v1303
    %2220 = vmatpush1.bf16.msra.mxu0 %v1302
    %2221 = vmatprep.subr.bf16.mxu0 %v1311
    %2222 = vmatpush1.bf16.msra.mxu0 %v1310
    %2223 = vmatprep.mubr.bf16.mxu0 %v2149
    %2224 = vmatmul.mubr.bf16.gmra.mrb[0].mxu0 %v2148
    %v2225 = vpop.f32.mrb[0].mxu0
    %v2226 = vadd.f32 0.0, %v2225
    %v2227 = vpop.f32.mrb[0].mxu0
    %v2228 = vadd.f32 0.0, %v2227
    %v2229 = vpop.f32.mrb[0].mxu0
    %v2230 = vpop.f32.mrb[0].mxu0
    %2231 = vdwg.mxu0
    %2232 = vmatprep.subr.bf16.mxu0 %v1193
    %2233 = vmatpush1.bf16.msra.mxu0 %v1192
    %2234 = vmatprep.subr.bf16.mxu0 %v1201
    %2235 = vmatpush1.bf16.msra.mxu0 %v1200
    %2236 = vmatprep.subr.bf16.mxu0 %v1209
    %2237 = vmatpush1.bf16.msra.mxu0 %v1208
    %2238 = vmatprep.subr.bf16.mxu0 %v1217
    %2239 = vmatpush1.bf16.msra.mxu0 %v1216
    %2240 = vmatprep.subr.bf16.mxu0 %v1225
    %2241 = vmatpush1.bf16.msra.mxu0 %v1224
    %2242 = vmatprep.subr.bf16.mxu0 %v1233
    %2243 = vmatpush1.bf16.msra.mxu0 %v1232
    %2244 = vmatprep.subr.bf16.mxu0 %v1241
    %2245 = vmatpush1.bf16.msra.mxu0 %v1240
    %2246 = vmatprep.subr.bf16.mxu0 %v1249
    %2247 = vmatpush1.bf16.msra.mxu0 %v1248
    %2248 = vmatprep.subr.bf16.mxu0 %v1257
    %2249 = vmatpush1.bf16.msra.mxu0 %v1256
    %2250 = vmatprep.subr.bf16.mxu0 %v1265
    %2251 = vmatpush1.bf16.msra.mxu0 %v1264
    %2252 = vmatprep.subr.bf16.mxu0 %v1273
    %2253 = vmatpush1.bf16.msra.mxu0 %v1272
    %2254 = vmatprep.subr.bf16.mxu0 %v1281
    %2255 = vmatpush1.bf16.msra.mxu0 %v1280
    %2256 = vmatprep.subr.bf16.mxu0 %v1289
    %2257 = vmatpush1.bf16.msra.mxu0 %v1288
    %2258 = vmatprep.subr.bf16.mxu0 %v1297
    %2259 = vmatpush1.bf16.msra.mxu0 %v1296
    %2260 = vmatprep.subr.bf16.mxu0 %v1305
    %2261 = vmatpush1.bf16.msra.mxu0 %v1304
    %2262 = vmatprep.subr.bf16.mxu0 %v1313
    %2263 = vmatpush1.bf16.msra.mxu0 %v1312
    %2264 = vmatprep.mubr.bf16.mxu0 %v2149
    %2265 = vmatmul.mubr.bf16.gmra.mrb[0].mxu0 %v2148
    %v2266 = vpop.f32.mrb[0].mxu0
    %v2267 = vadd.f32 0.0, %v2266
    %v2268 = vpop.f32.mrb[0].mxu0
    %v2269 = vadd.f32 0.0, %v2268
    %v2270 = vpop.f32.mrb[0].mxu0
    %v2271 = vpop.f32.mrb[0].mxu0
    %2272 = vdwg.mxu0
    %2273 = vmatprep.subr.bf16.mxu0 %v1195
    %2274 = vmatpush1.bf16.msra.mxu0 %v1194
    %2275 = vmatprep.subr.bf16.mxu0 %v1203
    %2276 = vmatpush1.bf16.msra.mxu0 %v1202
    %2277 = vmatprep.subr.bf16.mxu0 %v1211
    %2278 = vmatpush1.bf16.msra.mxu0 %v1210
    %2279 = vmatprep.subr.bf16.mxu0 %v1219
    %2280 = vmatpush1.bf16.msra.mxu0 %v1218
    %2281 = vmatprep.subr.bf16.mxu0 %v1227
    %2282 = vmatpush1.bf16.msra.mxu0 %v1226
    %2283 = vmatprep.subr.bf16.mxu0 %v1235
    %2284 = vmatpush1.bf16.msra.mxu0 %v1234
    %2285 = vmatprep.subr.bf16.mxu0 %v1243
    %2286 = vmatpush1.bf16.msra.mxu0 %v1242
    %2287 = vmatprep.subr.bf16.mxu0 %v1251
    %2288 = vmatpush1.bf16.msra.mxu0 %v1250
    %2289 = vmatprep.subr.bf16.mxu0 %v1259
    %2290 = vmatpush1.bf16.msra.mxu0 %v1258
    %2291 = vmatprep.subr.bf16.mxu0 %v1267
    %2292 = vmatpush1.bf16.msra.mxu0 %v1266
    %2293 = vmatprep.subr.bf16.mxu0 %v1275
    %2294 = vmatpush1.bf16.msra.mxu0 %v1274
    %2295 = vmatprep.subr.bf16.mxu0 %v1283
    %2296 = vmatpush1.bf16.msra.mxu0 %v1282
    %2297 = vmatprep.subr.bf16.mxu0 %v1291
    %2298 = vmatpush1.bf16.msra.mxu0 %v1290
    %2299 = vmatprep.subr.bf16.mxu0 %v1299
    %2300 = vmatpush1.bf16.msra.mxu0 %v1298
    %2301 = vmatprep.subr.bf16.mxu0 %v1307
    %2302 = vmatpush1.bf16.msra.mxu0 %v1306
    %2303 = vmatprep.subr.bf16.mxu0 %v1315
    %2304 = vmatpush1.bf16.msra.mxu0 %v1314
    %2305 = vmatprep.mubr.bf16.mxu0 %v2149
    %2306 = vmatmul.mubr.bf16.gmra.mrb[0].mxu0 %v2148
    %v2307 = vpop.f32.mrb[0].mxu0
    %v2308 = vadd.f32 0.0, %v2307
    %v2309 = vpop.f32.mrb[0].mxu0
    %v2310 = vadd.f32 0.0, %v2309
    %v2311 = vpop.f32.mrb[0].mxu0
    %v2312 = vpop.f32.mrb[0].mxu0
    %2313 = vdwg.mxu0
    %s2314 = scalar_lea.vmem [#allocation2], 192
    %v2315 = vld [vmem:[%s2314] sm:$0xff]
    %v2316 = vld [vmem:[%s2314 + $0x8] sm:$0xff]
    %v2317 = vld [vmem:[%s2314 + $0x10] sm:$0xff]
    %v2318 = vld [vmem:[%s2314 + $0x18] sm:$0xff]
    %v2319 = vadd.f32 %v2315, %v2185
    %v2320 = vadd.f32 %v2316, %v2187
    %v2321 = vadd.f32 %v2317, %v2226
    %v2322 = vadd.f32 %v2318, %v2228
    %s2323 = scalar_lea.vmem [#allocation2], 256
    %v2324 = vld [vmem:[%s2323 + $0x20] sm:$0xff]
    %v2325 = vld [vmem:[%s2323 + $0x28] sm:$0xff]
    %v2326 = vld [vmem:[%s2323 + $0x30] sm:$0xff]
    %v2327 = vld [vmem:[%s2323 + $0x38] sm:$0xff]
    %v2328 = vadd.f32 %v2324, %v2267
    %v2329 = vadd.f32 %v2325, %v2269
    %v2330 = vadd.f32 %v2326, %v2308
    %v2331 = vadd.f32 %v2327, %v2310
    %v2332 = vxor.u32 %v2319, 2147483648
    %v2333 = vxor.u32 %v2328, 2147483648
    %v2334 = vmul.f32 %v2332, 1.442695
    %v2335 = vpow.pop %v2334
    %v2336 = vmul.f32 %v2333, 1.442695
    %v2337 = vpow.pop %v2336
    %v2338 = vadd.f32 %v2335, 1.0
    %v2339 = vadd.f32 %v2337, 1.0
    %v2340 = vrcp.pop %v2338
    %v2341 = vmul.f32 1.0, %v2340
    %v2342 = vrcp.pop %v2339
    %v2343 = vmul.f32 1.0, %v2342
    %v2344 = vxor.u32 %v2320, 2147483648
    %v2345 = vxor.u32 %v2329, 2147483648
    %v2346 = vmul.f32 %v2344, 1.442695
    %v2347 = vpow.pop %v2346
    %v2348 = vmul.f32 %v2345, 1.442695
    %v2349 = vpow.pop %v2348
    %v2350 = vadd.f32 %v2347, 1.0
    %v2351 = vadd.f32 %v2349, 1.0
    %v2352 = vrcp.pop %v2350
    %v2353 = vmul.f32 1.0, %v2352
    %v2354 = vrcp.pop %v2351
    %v2355 = vmul.f32 1.0, %v2354
    %v2356 = vtanh.pop %v2321
    %v2357 = vtanh.pop %v2330
    %v2358 = vxor.u32 %v2322, 2147483648
    %v2359 = vxor.u32 %v2331, 2147483648
    %v2360 = vmul.f32 %v2358, 1.442695
    %v2361 = vpow.pop %v2360
    %v2362 = vmul.f32 %v2359, 1.442695
    %v2363 = vpow.pop %v2362
    %v2364 = vadd.f32 %v2361, 1.0
    %v2365 = vadd.f32 %v2363, 1.0
    %v2366 = vrcp.pop %v2364
    %v2367 = vmul.f32 1.0, %v2366
    %v2368 = vrcp.pop %v2365
    %v2369 = vmul.f32 1.0, %v2368
    %v2370 = vmul.f32 %v2353, %v2138
    %v2371 = vmul.f32 %v2355, %v2139
    %v2372 = vmul.f32 %v2341, %v2356
    %v2373 = vmul.f32 %v2343, %v2357
    %v2374 = vadd.f32 %v2370, %v2372
    %v2375 = vadd.f32 %v2371, %v2373
    %v2376 = vtanh.pop %v2374
    %v2377 = vtanh.pop %v2375
    %v2378 = vmul.f32 %v2367, %v2376
    %v2379 = vmul.f32 %v2369, %v2377
    %s2380 = scalar_lea.vmem [#allocation3], 24
    %2381 = vst [vmem:[%s2380] sm:$0xff] %v2378
    %s2382 = scalar_lea.vmem [#allocation4], 32
    %2383 = vst [vmem:[%s2382] sm:$0xff] %v2379
    %v2384 = vpack.c.bf16 %v2378, %v2378
    %v2385 = vpack.c.bf16 %v2379, %v2379
    %2386 = vmatprep.subr.bf16.mxu0 %v1189
    %2387 = vmatpush1.bf16.msra.mxu0 %v1188
    %2388 = vmatprep.subr.bf16.mxu0 %v1197
    %2389 = vmatpush1.bf16.msra.mxu0 %v1196
    %2390 = vmatprep.subr.bf16.mxu0 %v1205
    %2391 = vmatpush1.bf16.msra.mxu0 %v1204
    %2392 = vmatprep.subr.bf16.mxu0 %v1213
    %2393 = vmatpush1.bf16.msra.mxu0 %v1212
    %2394 = vmatprep.subr.bf16.mxu0 %v1221
    %2395 = vmatpush1.bf16.msra.mxu0 %v1220
    %2396 = vmatprep.subr.bf16.mxu0 %v1229
    %2397 = vmatpush1.bf16.msra.mxu0 %v1228
    %2398 = vmatprep.subr.bf16.mxu0 %v1237
    %2399 = vmatpush1.bf16.msra.mxu0 %v1236
    %2400 = vmatprep.subr.bf16.mxu0 %v1245
    %2401 = vmatpush1.bf16.msra.mxu0 %v1244
    %2402 = vmatprep.subr.bf16.mxu0 %v1253
    %2403 = vmatpush1.bf16.msra.mxu0 %v1252
    %2404 = vmatprep.subr.bf16.mxu0 %v1261
    %2405 = vmatpush1.bf16.msra.mxu0 %v1260
    %2406 = vmatprep.subr.bf16.mxu0 %v1269
    %2407 = vmatpush1.bf16.msra.mxu0 %v1268
    %2408 = vmatprep.subr.bf16.mxu0 %v1277
    %2409 = vmatpush1.bf16.msra.mxu0 %v1276
    %2410 = vmatprep.subr.bf16.mxu0 %v1285
    %2411 = vmatpush1.bf16.msra.mxu0 %v1284
    %2412 = vmatprep.subr.bf16.mxu0 %v1293
    %2413 = vmatpush1.bf16.msra.mxu0 %v1292
    %2414 = vmatprep.subr.bf16.mxu0 %v1301
    %2415 = vmatpush1.bf16.msra.mxu0 %v1300
    %2416 = vmatprep.subr.bf16.mxu0 %v1309
    %2417 = vmatpush1.bf16.msra.mxu0 %v1308
    %2418 = vmatprep.mubr.bf16.mxu0 %v2385
    %2419 = vmatmul.mubr.bf16.gmra.mrb[0].mxu0 %v2384
    %v2420 = vpop.f32.mrb[0].mxu0
    %v2421 = vadd.f32 0.0, %v2420
    %v2422 = vpop.f32.mrb[0].mxu0
    %v2423 = vadd.f32 0.0, %v2422
    %v2424 = vpop.f32.mrb[0].mxu0
    %v2425 = vpop.f32.mrb[0].mxu0
    %2426 = vdwg.mxu0
    %2427 = vmatprep.subr.bf16.mxu0 %v1191
    %2428 = vmatpush1.bf16.msra.mxu0 %v1190
    %2429 = vmatprep.subr.bf16.mxu0 %v1199
    %2430 = vmatpush1.bf16.msra.mxu0 %v1198
    %2431 = vmatprep.subr.bf16.mxu0 %v1207
    %2432 = vmatpush1.bf16.msra.mxu0 %v1206
    %2433 = vmatprep.subr.bf16.mxu0 %v1215
    %2434 = vmatpush1.bf16.msra.mxu0 %v1214
    %2435 = vmatprep.subr.bf16.mxu0 %v1223
    %2436 = vmatpush1.bf16.msra.mxu0 %v1222
    %2437 = vmatprep.subr.bf16.mxu0 %v1231
    %2438 = vmatpush1.bf16.msra.mxu0 %v1230
    %2439 = vmatprep.subr.bf16.mxu0 %v1239
    %2440 = vmatpush1.bf16.msra.mxu0 %v1238
    %2441 = vmatprep.subr.bf16.mxu0 %v1247
    %2442 = vmatpush1.bf16.msra.mxu0 %v1246
    %2443 = vmatprep.subr.bf16.mxu0 %v1255
    %2444 = vmatpush1.bf16.msra.mxu0 %v1254
    %2445 = vmatprep.subr.bf16.mxu0 %v1263
    %2446 = vmatpush1.bf16.msra.mxu0 %v1262
    %2447 = vmatprep.subr.bf16.mxu0 %v1271
    %2448 = vmatpush1.bf16.msra.mxu0 %v1270
    %2449 = vmatprep.subr.bf16.mxu0 %v1279
    %2450 = vmatpush1.bf16.msra.mxu0 %v1278
    %2451 = vmatprep.subr.bf16.mxu0 %v1287
    %2452 = vmatpush1.bf16.msra.mxu0 %v1286
    %2453 = vmatprep.subr.bf16.mxu0 %v1295
    %2454 = vmatpush1.bf16.msra.mxu0 %v1294
    %2455 = vmatprep.subr.bf16.mxu0 %v1303
    %2456 = vmatpush1.bf16.msra.mxu0 %v1302
    %2457 = vmatprep.subr.bf16.mxu0 %v1311
    %2458 = vmatpush1.bf16.msra.mxu0 %v1310
    %2459 = vmatprep.mubr.bf16.mxu0 %v2385
    %2460 = vmatmul.mubr.bf16.gmra.mrb[0].mxu0 %v2384
    %v2461 = vpop.f32.mrb[0].mxu0
    %v2462 = vadd.f32 0.0, %v2461
    %v2463 = vpop.f32.mrb[0].mxu0
    %v2464 = vadd.f32 0.0, %v2463
    %v2465 = vpop.f32.mrb[0].mxu0
    %v2466 = vpop.f32.mrb[0].mxu0
    %2467 = vdwg.mxu0
    %2468 = vmatprep.subr.bf16.mxu0 %v1193
    %2469 = vmatpush1.bf16.msra.mxu0 %v1192
    %2470 = vmatprep.subr.bf16.mxu0 %v1201
    %2471 = vmatpush1.bf16.msra.mxu0 %v1200
    %2472 = vmatprep.subr.bf16.mxu0 %v1209
    %2473 = vmatpush1.bf16.msra.mxu0 %v1208
    %2474 = vmatprep.subr.bf16.mxu0 %v1217
    %2475 = vmatpush1.bf16.msra.mxu0 %v1216
    %2476 = vmatprep.subr.bf16.mxu0 %v1225
    %2477 = vmatpush1.bf16.msra.mxu0 %v1224
    %2478 = vmatprep.subr.bf16.mxu0 %v1233
    %2479 = vmatpush1.bf16.msra.mxu0 %v1232
    %2480 = vmatprep.subr.bf16.mxu0 %v1241
    %2481 = vmatpush1.bf16.msra.mxu0 %v1240
    %2482 = vmatprep.subr.bf16.mxu0 %v1249
    %2483 = vmatpush1.bf16.msra.mxu0 %v1248
    %2484 = vmatprep.subr.bf16.mxu0 %v1257
    %2485 = vmatpush1.bf16.msra.mxu0 %v1256
    %2486 = vmatprep.subr.bf16.mxu0 %v1265
    %2487 = vmatpush1.bf16.msra.mxu0 %v1264
    %2488 = vmatprep.subr.bf16.mxu0 %v1273
    %2489 = vmatpush1.bf16.msra.mxu0 %v1272
    %2490 = vmatprep.subr.bf16.mxu0 %v1281
    %2491 = vmatpush1.bf16.msra.mxu0 %v1280
    %2492 = vmatprep.subr.bf16.mxu0 %v1289
    %2493 = vmatpush1.bf16.msra.mxu0 %v1288
    %2494 = vmatprep.subr.bf16.mxu0 %v1297
    %2495 = vmatpush1.bf16.msra.mxu0 %v1296
    %2496 = vmatprep.subr.bf16.mxu0 %v1305
    %2497 = vmatpush1.bf16.msra.mxu0 %v1304
    %2498 = vmatprep.subr.bf16.mxu0 %v1313
    %2499 = vmatpush1.bf16.msra.mxu0 %v1312
    %2500 = vmatprep.mubr.bf16.mxu0 %v2385
    %2501 = vmatmul.mubr.bf16.gmra.mrb[0].mxu0 %v2384
    %v2502 = vpop.f32.mrb[0].mxu0
    %v2503 = vadd.f32 0.0, %v2502
    %v2504 = vpop.f32.mrb[0].mxu0
    %v2505 = vadd.f32 0.0, %v2504
    %v2506 = vpop.f32.mrb[0].mxu0
    %v2507 = vpop.f32.mrb[0].mxu0
    %2508 = vdwg.mxu0
    %2509 = vmatprep.subr.bf16.mxu0 %v1195
    %2510 = vmatpush1.bf16.msra.mxu0 %v1194
    %2511 = vmatprep.subr.bf16.mxu0 %v1203
    %2512 = vmatpush1.bf16.msra.mxu0 %v1202
    %2513 = vmatprep.subr.bf16.mxu0 %v1211
    %2514 = vmatpush1.bf16.msra.mxu0 %v1210
    %2515 = vmatprep.subr.bf16.mxu0 %v1219
    %2516 = vmatpush1.bf16.msra.mxu0 %v1218
    %2517 = vmatprep.subr.bf16.mxu0 %v1227
    %2518 = vmatpush1.bf16.msra.mxu0 %v1226
    %2519 = vmatprep.subr.bf16.mxu0 %v1235
    %2520 = vmatpush1.bf16.msra.mxu0 %v1234
    %2521 = vmatprep.subr.bf16.mxu0 %v1243
    %2522 = vmatpush1.bf16.msra.mxu0 %v1242
    %2523 = vmatprep.subr.bf16.mxu0 %v1251
    %2524 = vmatpush1.bf16.msra.mxu0 %v1250
    %2525 = vmatprep.subr.bf16.mxu0 %v1259
    %2526 = vmatpush1.bf16.msra.mxu0 %v1258
    %2527 = vmatprep.subr.bf16.mxu0 %v1267
    %2528 = vmatpush1.bf16.msra.mxu0 %v1266
    %2529 = vmatprep.subr.bf16.mxu0 %v1275
    %2530 = vmatpush1.bf16.msra.mxu0 %v1274
    %2531 = vmatprep.subr.bf16.mxu0 %v1283
    %2532 = vmatpush1.bf16.msra.mxu0 %v1282
    %2533 = vmatprep.subr.bf16.mxu0 %v1291
    %2534 = vmatpush1.bf16.msra.mxu0 %v1290
    %2535 = vmatprep.subr.bf16.mxu0 %v1299
    %2536 = vmatpush1.bf16.msra.mxu0 %v1298
    %2537 = vmatprep.subr.bf16.mxu0 %v1307
    %2538 = vmatpush1.bf16.msra.mxu0 %v1306
    %2539 = vmatprep.subr.bf16.mxu0 %v1315
    %2540 = vmatpush1.bf16.msra.mxu0 %v1314
    %2541 = vmatprep.mubr.bf16.mxu0 %v2385
    %2542 = vmatmul.mubr.bf16.gmra.mrb[0].mxu0 %v2384
    %v2543 = vpop.f32.mrb[0].mxu0
    %v2544 = vadd.f32 0.0, %v2543
    %v2545 = vpop.f32.mrb[0].mxu0
    %v2546 = vadd.f32 0.0, %v2545
    %v2547 = vpop.f32.mrb[0].mxu0
    %v2548 = vpop.f32.mrb[0].mxu0
    %2549 = vdwg.mxu0
    %v2550 = vld [vmem:[%s2323] sm:$0xff]
    %v2551 = vld [vmem:[%s2323 + $0x8] sm:$0xff]
    %v2552 = vld [vmem:[%s2323 + $0x10] sm:$0xff]
    %v2553 = vld [vmem:[%s2323 + $0x18] sm:$0xff]
    %v2554 = vadd.f32 %v2550, %v2421
    %v2555 = vadd.f32 %v2551, %v2423
    %v2556 = vadd.f32 %v2552, %v2462
    %v2557 = vadd.f32 %v2553, %v2464
    %v2558 = vld [vmem:[%s2314 + $0x20] sm:$0xff]
    %v2559 = vld [vmem:[%s2314 + $0x28] sm:$0xff]
    %v2560 = vld [vmem:[%s2314 + $0x30] sm:$0xff]
    %v2561 = vld [vmem:[%s2314 + $0x38] sm:$0xff]
    %v2562 = vadd.f32 %v2558, %v2503
    %v2563 = vadd.f32 %v2559, %v2505
    %v2564 = vadd.f32 %v2560, %v2544
    %v2565 = vadd.f32 %v2561, %v2546
    %v2566 = vxor.u32 %v2554, 2147483648
    %v2567 = vxor.u32 %v2562, 2147483648
    %v2568 = vmul.f32 %v2566, 1.442695
    %v2569 = vpow.pop %v2568
    %v2570 = vmul.f32 %v2567, 1.442695
    %v2571 = vpow.pop %v2570
    %v2572 = vadd.f32 %v2569, 1.0
    %v2573 = vadd.f32 %v2571, 1.0
    %v2574 = vrcp.pop %v2572
    %v2575 = vmul.f32 1.0, %v2574
    %v2576 = vrcp.pop %v2573
    %v2577 = vmul.f32 1.0, %v2576
    %v2578 = vxor.u32 %v2555, 2147483648
    %v2579 = vxor.u32 %v2563, 2147483648
    %v2580 = vmul.f32 %v2578, 1.442695
    %v2581 = vpow.pop %v2580
    %v2582 = vmul.f32 %v2579, 1.442695
    %v2583 = vpow.pop %v2582
    %v2584 = vadd.f32 %v2581, 1.0
    %v2585 = vadd.f32 %v2583, 1.0
    %v2586 = vrcp.pop %v2584
    %v2587 = vmul.f32 1.0, %v2586
    %v2588 = vrcp.pop %v2585
    %v2589 = vmul.f32 1.0, %v2588
    %v2590 = vtanh.pop %v2556
    %v2591 = vtanh.pop %v2564
    %v2592 = vxor.u32 %v2557, 2147483648
    %v2593 = vxor.u32 %v2565, 2147483648
    %v2594 = vmul.f32 %v2592, 1.442695
    %v2595 = vpow.pop %v2594
    %v2596 = vmul.f32 %v2593, 1.442695
    %v2597 = vpow.pop %v2596
    %v2598 = vadd.f32 %v2595, 1.0
    %v2599 = vadd.f32 %v2597, 1.0
    %v2600 = vrcp.pop %v2598
    %v2601 = vmul.f32 1.0, %v2600
    %v2602 = vrcp.pop %v2599
    %v2603 = vmul.f32 1.0, %v2602
    %v2604 = vmul.f32 %v2587, %v2374
    %v2605 = vmul.f32 %v2589, %v2375
    %v2606 = vmul.f32 %v2575, %v2590
    %v2607 = vmul.f32 %v2577, %v2591
    %v2608 = vadd.f32 %v2604, %v2606
    %v2609 = vadd.f32 %v2605, %v2607
    %v2610 = vtanh.pop %v2608
    %v2611 = vtanh.pop %v2609
    %v2612 = vmul.f32 %v2601, %v2610
    %v2613 = vmul.f32 %v2603, %v2611
    %s2614 = scalar_lea.vmem [#allocation3], 32
    %2615 = vst [vmem:[%s2614] sm:$0xff] %v2612
    %s2616 = scalar_lea.vmem [#allocation4], 24
    %2617 = vst [vmem:[%s2616] sm:$0xff] %v2613
    %v2618 = vpack.c.bf16 %v2612, %v2612
    %v2619 = vpack.c.bf16 %v2613, %v2613
    %2620 = vmatprep.subr.bf16.mxu0 %v1189
    %2621 = vmatpush1.bf16.msra.mxu0 %v1188
    %2622 = vmatprep.subr.bf16.mxu0 %v1197
    %2623 = vmatpush1.bf16.msra.mxu0 %v1196
    %2624 = vmatprep.subr.bf16.mxu0 %v1205
    %2625 = vmatpush1.bf16.msra.mxu0 %v1204
    %2626 = vmatprep.subr.bf16.mxu0 %v1213
    %2627 = vmatpush1.bf16.msra.mxu0 %v1212
    %2628 = vmatprep.subr.bf16.mxu0 %v1221
    %2629 = vmatpush1.bf16.msra.mxu0 %v1220
    %2630 = vmatprep.subr.bf16.mxu0 %v1229
    %2631 = vmatpush1.bf16.msra.mxu0 %v1228
    %2632 = vmatprep.subr.bf16.mxu0 %v1237
    %2633 = vmatpush1.bf16.msra.mxu0 %v1236
    %2634 = vmatprep.subr.bf16.mxu0 %v1245
    %2635 = vmatpush1.bf16.msra.mxu0 %v1244
    %2636 = vmatprep.subr.bf16.mxu0 %v1253
    %2637 = vmatpush1.bf16.msra.mxu0 %v1252
    %2638 = vmatprep.subr.bf16.mxu0 %v1261
    %2639 = vmatpush1.bf16.msra.mxu0 %v1260
    %2640 = vmatprep.subr.bf16.mxu0 %v1269
    %2641 = vmatpush1.bf16.msra.mxu0 %v1268
    %2642 = vmatprep.subr.bf16.mxu0 %v1277
    %2643 = vmatpush1.bf16.msra.mxu0 %v1276
    %2644 = vmatprep.subr.bf16.mxu0 %v1285
    %2645 = vmatpush1.bf16.msra.mxu0 %v1284
    %2646 = vmatprep.subr.bf16.mxu0 %v1293
    %2647 = vmatpush1.bf16.msra.mxu0 %v1292
    %2648 = vmatprep.subr.bf16.mxu0 %v1301
    %2649 = vmatpush1.bf16.msra.mxu0 %v1300
    %2650 = vmatprep.subr.bf16.mxu0 %v1309
    %2651 = vmatpush1.bf16.msra.mxu0 %v1308
    %2652 = vmatprep.mubr.bf16.mxu0 %v2619
    %2653 = vmatmul.mubr.bf16.gmra.mrb[0].mxu0 %v2618
    %v2654 = vpop.f32.mrb[0].mxu0
    %v2655 = vadd.f32 0.0, %v2654
    %v2656 = vpop.f32.mrb[0].mxu0
    %v2657 = vadd.f32 0.0, %v2656
    %v2658 = vpop.f32.mrb[0].mxu0
    %v2659 = vpop.f32.mrb[0].mxu0
    %2660 = vdwg.mxu0
    %2661 = vmatprep.subr.bf16.mxu0 %v1191
    %2662 = vmatpush1.bf16.msra.mxu0 %v1190
    %2663 = vmatprep.subr.bf16.mxu0 %v1199
    %2664 = vmatpush1.bf16.msra.mxu0 %v1198
    %2665 = vmatprep.subr.bf16.mxu0 %v1207
    %2666 = vmatpush1.bf16.msra.mxu0 %v1206
    %2667 = vmatprep.subr.bf16.mxu0 %v1215
    %2668 = vmatpush1.bf16.msra.mxu0 %v1214
    %2669 = vmatprep.subr.bf16.mxu0 %v1223
    %2670 = vmatpush1.bf16.msra.mxu0 %v1222
    %2671 = vmatprep.subr.bf16.mxu0 %v1231
    %2672 = vmatpush1.bf16.msra.mxu0 %v1230
    %2673 = vmatprep.subr.bf16.mxu0 %v1239
    %2674 = vmatpush1.bf16.msra.mxu0 %v1238
    %2675 = vmatprep.subr.bf16.mxu0 %v1247
    %2676 = vmatpush1.bf16.msra.mxu0 %v1246
    %2677 = vmatprep.subr.bf16.mxu0 %v1255
    %2678 = vmatpush1.bf16.msra.mxu0 %v1254
    %2679 = vmatprep.subr.bf16.mxu0 %v1263
    %2680 = vmatpush1.bf16.msra.mxu0 %v1262
    %2681 = vmatprep.subr.bf16.mxu0 %v1271
    %2682 = vmatpush1.bf16.msra.mxu0 %v1270
    %2683 = vmatprep.subr.bf16.mxu0 %v1279
    %2684 = vmatpush1.bf16.msra.mxu0 %v1278
    %2685 = vmatprep.subr.bf16.mxu0 %v1287
    %2686 = vmatpush1.bf16.msra.mxu0 %v1286
    %2687 = vmatprep.subr.bf16.mxu0 %v1295
    %2688 = vmatpush1.bf16.msra.mxu0 %v1294
    %2689 = vmatprep.subr.bf16.mxu0 %v1303
    %2690 = vmatpush1.bf16.msra.mxu0 %v1302
    %2691 = vmatprep.subr.bf16.mxu0 %v1311
    %2692 = vmatpush1.bf16.msra.mxu0 %v1310
    %2693 = vmatprep.mubr.bf16.mxu0 %v2619
    %2694 = vmatmul.mubr.bf16.gmra.mrb[0].mxu0 %v2618
    %v2695 = vpop.f32.mrb[0].mxu0
    %v2696 = vadd.f32 0.0, %v2695
    %v2697 = vpop.f32.mrb[0].mxu0
    %v2698 = vadd.f32 0.0, %v2697
    %v2699 = vpop.f32.mrb[0].mxu0
    %v2700 = vpop.f32.mrb[0].mxu0
    %2701 = vdwg.mxu0
    %2702 = vmatprep.subr.bf16.mxu0 %v1193
    %2703 = vmatpush1.bf16.msra.mxu0 %v1192
    %2704 = vmatprep.subr.bf16.mxu0 %v1201
    %2705 = vmatpush1.bf16.msra.mxu0 %v1200
    %2706 = vmatprep.subr.bf16.mxu0 %v1209
    %2707 = vmatpush1.bf16.msra.mxu0 %v1208
    %2708 = vmatprep.subr.bf16.mxu0 %v1217
    %2709 = vmatpush1.bf16.msra.mxu0 %v1216
    %2710 = vmatprep.subr.bf16.mxu0 %v1225
    %2711 = vmatpush1.bf16.msra.mxu0 %v1224
    %2712 = vmatprep.subr.bf16.mxu0 %v1233
    %2713 = vmatpush1.bf16.msra.mxu0 %v1232
    %2714 = vmatprep.subr.bf16.mxu0 %v1241
    %2715 = vmatpush1.bf16.msra.mxu0 %v1240
    %2716 = vmatprep.subr.bf16.mxu0 %v1249
    %2717 = vmatpush1.bf16.msra.mxu0 %v1248
    %2718 = vmatprep.subr.bf16.mxu0 %v1257
    %2719 = vmatpush1.bf16.msra.mxu0 %v1256
    %2720 = vmatprep.subr.bf16.mxu0 %v1265
    %2721 = vmatpush1.bf16.msra.mxu0 %v1264
    %2722 = vmatprep.subr.bf16.mxu0 %v1273
    %2723 = vmatpush1.bf16.msra.mxu0 %v1272
    %2724 = vmatprep.subr.bf16.mxu0 %v1281
    %2725 = vmatpush1.bf16.msra.mxu0 %v1280
    %2726 = vmatprep.subr.bf16.mxu0 %v1289
    %2727 = vmatpush1.bf16.msra.mxu0 %v1288
    %2728 = vmatprep.subr.bf16.mxu0 %v1297
    %2729 = vmatpush1.bf16.msra.mxu0 %v1296
    %2730 = vmatprep.subr.bf16.mxu0 %v1305
    %2731 = vmatpush1.bf16.msra.mxu0 %v1304
    %2732 = vmatprep.subr.bf16.mxu0 %v1313
    %2733 = vmatpush1.bf16.msra.mxu0 %v1312
    %2734 = vmatprep.mubr.bf16.mxu0 %v2619
    %2735 = vmatmul.mubr.bf16.gmra.mrb[0].mxu0 %v2618
    %v2736 = vpop.f32.mrb[0].mxu0
    %v2737 = vadd.f32 0.0, %v2736
    %v2738 = vpop.f32.mrb[0].mxu0
    %v2739 = vadd.f32 0.0, %v2738
    %v2740 = vpop.f32.mrb[0].mxu0
    %v2741 = vpop.f32.mrb[0].mxu0
    %2742 = vdwg.mxu0
    %2743 = vmatprep.subr.bf16.mxu0 %v1195
    %2744 = vmatpush1.bf16.msra.mxu0 %v1194
    %2745 = vmatprep.subr.bf16.mxu0 %v1203
    %2746 = vmatpush1.bf16.msra.mxu0 %v1202
    %2747 = vmatprep.subr.bf16.mxu0 %v1211
    %2748 = vmatpush1.bf16.msra.mxu0 %v1210
    %2749 = vmatprep.subr.bf16.mxu0 %v1219
    %2750 = vmatpush1.bf16.msra.mxu0 %v1218
    %2751 = vmatprep.subr.bf16.mxu0 %v1227
    %2752 = vmatpush1.bf16.msra.mxu0 %v1226
    %2753 = vmatprep.subr.bf16.mxu0 %v1235
    %2754 = vmatpush1.bf16.msra.mxu0 %v1234
    %2755 = vmatprep.subr.bf16.mxu0 %v1243
    %2756 = vmatpush1.bf16.msra.mxu0 %v1242
    %2757 = vmatprep.subr.bf16.mxu0 %v1251
    %2758 = vmatpush1.bf16.msra.mxu0 %v1250
    %2759 = vmatprep.subr.bf16.mxu0 %v1259
    %2760 = vmatpush1.bf16.msra.mxu0 %v1258
    %2761 = vmatprep.subr.bf16.mxu0 %v1267
    %2762 = vmatpush1.bf16.msra.mxu0 %v1266
    %2763 = vmatprep.subr.bf16.mxu0 %v1275
    %2764 = vmatpush1.bf16.msra.mxu0 %v1274
    %2765 = vmatprep.subr.bf16.mxu0 %v1283
    %2766 = vmatpush1.bf16.msra.mxu0 %v1282
    %2767 = vmatprep.subr.bf16.mxu0 %v1291
    %2768 = vmatpush1.bf16.msra.mxu0 %v1290
    %2769 = vmatprep.subr.bf16.mxu0 %v1299
    %2770 = vmatpush1.bf16.msra.mxu0 %v1298
    %2771 = vmatprep.subr.bf16.mxu0 %v1307
    %2772 = vmatpush1.bf16.msra.mxu0 %v1306
    %2773 = vmatprep.subr.bf16.mxu0 %v1315
    %2774 = vmatpush1.bf16.msra.mxu0 %v1314
    %2775 = vmatprep.mubr.bf16.mxu0 %v2619
    %2776 = vmatmul.mubr.bf16.gmra.mrb[0].mxu0 %v2618
    %v2777 = vpop.f32.mrb[0].mxu0
    %v2778 = vadd.f32 0.0, %v2777
    %v2779 = vpop.f32.mrb[0].mxu0
    %v2780 = vadd.f32 0.0, %v2779
    %v2781 = vpop.f32.mrb[0].mxu0
    %v2782 = vpop.f32.mrb[0].mxu0
    %2783 = vdwg.mxu0
    %v2784 = vld [vmem:[%s2087] sm:$0xff]
    %v2785 = vld [vmem:[%s2087 + $0x8] sm:$0xff]
    %v2786 = vld [vmem:[%s2087 + $0x10] sm:$0xff]
    %v2787 = vld [vmem:[%s2087 + $0x18] sm:$0xff]
    %v2788 = vadd.f32 %v2784, %v2655
    %v2789 = vadd.f32 %v2785, %v2657
    %v2790 = vadd.f32 %v2786, %v2696
    %v2791 = vadd.f32 %v2787, %v2698
    %v2792 = vld [vmem:[%s2078 + $0x20] sm:$0xff]
    %v2793 = vld [vmem:[%s2078 + $0x28] sm:$0xff]
    %v2794 = vld [vmem:[%s2078 + $0x30] sm:$0xff]
    %v2795 = vld [vmem:[%s2078 + $0x38] sm:$0xff]
    %v2796 = vadd.f32 %v2792, %v2737
    %v2797 = vadd.f32 %v2793, %v2739
    %v2798 = vadd.f32 %v2794, %v2778
    %v2799 = vadd.f32 %v2795, %v2780
    %v2800 = vxor.u32 %v2788, 2147483648
    %v2801 = vxor.u32 %v2796, 2147483648
    %v2802 = vmul.f32 %v2800, 1.442695
    %v2803 = vpow.pop %v2802
    %v2804 = vmul.f32 %v2801, 1.442695
    %v2805 = vpow.pop %v2804
    %v2806 = vadd.f32 %v2803, 1.0
    %v2807 = vadd.f32 %v2805, 1.0
    %v2808 = vrcp.pop %v2806
    %v2809 = vmul.f32 1.0, %v2808
    %v2810 = vrcp.pop %v2807
    %v2811 = vmul.f32 1.0, %v2810
    %v2812 = vxor.u32 %v2789, 2147483648
    %v2813 = vxor.u32 %v2797, 2147483648
    %v2814 = vmul.f32 %v2812, 1.442695
    %v2815 = vpow.pop %v2814
    %v2816 = vmul.f32 %v2813, 1.442695
    %v2817 = vpow.pop %v2816
    %v2818 = vadd.f32 %v2815, 1.0
    %v2819 = vadd.f32 %v2817, 1.0
    %v2820 = vrcp.pop %v2818
    %v2821 = vmul.f32 1.0, %v2820
    %v2822 = vrcp.pop %v2819
    %v2823 = vmul.f32 1.0, %v2822
    %v2824 = vtanh.pop %v2790
    %v2825 = vtanh.pop %v2798
    %v2826 = vxor.u32 %v2791, 2147483648
    %v2827 = vxor.u32 %v2799, 2147483648
    %v2828 = vmul.f32 %v2826, 1.442695
    %v2829 = vpow.pop %v2828
    %v2830 = vmul.f32 %v2827, 1.442695
    %v2831 = vpow.pop %v2830
    %v2832 = vadd.f32 %v2829, 1.0
    %v2833 = vadd.f32 %v2831, 1.0
    %v2834 = vrcp.pop %v2832
    %v2835 = vmul.f32 1.0, %v2834
    %v2836 = vrcp.pop %v2833
    %v2837 = vmul.f32 1.0, %v2836
    %v2838 = vmul.f32 %v2821, %v2608
    %v2839 = vmul.f32 %v2823, %v2609
    %v2840 = vmul.f32 %v2809, %v2824
    %v2841 = vmul.f32 %v2811, %v2825
    %v2842 = vadd.f32 %v2838, %v2840
    %v2843 = vadd.f32 %v2839, %v2841
    %v2844 = vtanh.pop %v2842
    %v2845 = vtanh.pop %v2843
    %v2846 = vmul.f32 %v2835, %v2844
    %v2847 = vmul.f32 %v2837, %v2845
    %s2848 = scalar_lea.vmem [#allocation3], 40
    %2849 = vst [vmem:[%s2848] sm:$0xff] %v2846
    %s2850 = scalar_lea.vmem [#allocation4], 16
    %2851 = vst [vmem:[%s2850] sm:$0xff] %v2847
    %v2852 = vpack.c.bf16 %v2846, %v2846
    %v2853 = vpack.c.bf16 %v2847, %v2847
    %2854 = vmatprep.subr.bf16.mxu0 %v1189
    %2855 = vmatpush1.bf16.msra.mxu0 %v1188
    %2856 = vmatprep.subr.bf16.mxu0 %v1197
    %2857 = vmatpush1.bf16.msra.mxu0 %v1196
    %2858 = vmatprep.subr.bf16.mxu0 %v1205
    %2859 = vmatpush1.bf16.msra.mxu0 %v1204
    %2860 = vmatprep.subr.bf16.mxu0 %v1213
    %2861 = vmatpush1.bf16.msra.mxu0 %v1212
    %2862 = vmatprep.subr.bf16.mxu0 %v1221
    %2863 = vmatpush1.bf16.msra.mxu0 %v1220
    %2864 = vmatprep.subr.bf16.mxu0 %v1229
    %2865 = vmatpush1.bf16.msra.mxu0 %v1228
    %2866 = vmatprep.subr.bf16.mxu0 %v1237
    %2867 = vmatpush1.bf16.msra.mxu0 %v1236
    %2868 = vmatprep.subr.bf16.mxu0 %v1245
    %2869 = vmatpush1.bf16.msra.mxu0 %v1244
    %2870 = vmatprep.subr.bf16.mxu0 %v1253
    %2871 = vmatpush1.bf16.msra.mxu0 %v1252
    %2872 = vmatprep.subr.bf16.mxu0 %v1261
    %2873 = vmatpush1.bf16.msra.mxu0 %v1260
    %2874 = vmatprep.subr.bf16.mxu0 %v1269
    %2875 = vmatpush1.bf16.msra.mxu0 %v1268
    %2876 = vmatprep.subr.bf16.mxu0 %v1277
    %2877 = vmatpush1.bf16.msra.mxu0 %v1276
    %2878 = vmatprep.subr.bf16.mxu0 %v1285
    %2879 = vmatpush1.bf16.msra.mxu0 %v1284
    %2880 = vmatprep.subr.bf16.mxu0 %v1293
    %2881 = vmatpush1.bf16.msra.mxu0 %v1292
    %2882 = vmatprep.subr.bf16.mxu0 %v1301
    %2883 = vmatpush1.bf16.msra.mxu0 %v1300
    %2884 = vmatprep.subr.bf16.mxu0 %v1309
    %2885 = vmatpush1.bf16.msra.mxu0 %v1308
    %2886 = vmatprep.mubr.bf16.mxu0 %v2853
    %2887 = vmatmul.mubr.bf16.gmra.mrb[0].mxu0 %v2852
    %v2888 = vpop.f32.mrb[0].mxu0
    %v2889 = vadd.f32 0.0, %v2888
    %v2890 = vpop.f32.mrb[0].mxu0
    %v2891 = vadd.f32 0.0, %v2890
    %v2892 = vpop.f32.mrb[0].mxu0
    %v2893 = vpop.f32.mrb[0].mxu0
    %2894 = vdwg.mxu0
    %2895 = vmatprep.subr.bf16.mxu0 %v1191
    %2896 = vmatpush1.bf16.msra.mxu0 %v1190
    %2897 = vmatprep.subr.bf16.mxu0 %v1199
    %2898 = vmatpush1.bf16.msra.mxu0 %v1198
    %2899 = vmatprep.subr.bf16.mxu0 %v1207
    %2900 = vmatpush1.bf16.msra.mxu0 %v1206
    %2901 = vmatprep.subr.bf16.mxu0 %v1215
    %2902 = vmatpush1.bf16.msra.mxu0 %v1214
    %2903 = vmatprep.subr.bf16.mxu0 %v1223
    %2904 = vmatpush1.bf16.msra.mxu0 %v1222
    %2905 = vmatprep.subr.bf16.mxu0 %v1231
    %2906 = vmatpush1.bf16.msra.mxu0 %v1230
    %2907 = vmatprep.subr.bf16.mxu0 %v1239
    %2908 = vmatpush1.bf16.msra.mxu0 %v1238
    %2909 = vmatprep.subr.bf16.mxu0 %v1247
    %2910 = vmatpush1.bf16.msra.mxu0 %v1246
    %2911 = vmatprep.subr.bf16.mxu0 %v1255
    %2912 = vmatpush1.bf16.msra.mxu0 %v1254
    %2913 = vmatprep.subr.bf16.mxu0 %v1263
    %2914 = vmatpush1.bf16.msra.mxu0 %v1262
    %2915 = vmatprep.subr.bf16.mxu0 %v1271
    %2916 = vmatpush1.bf16.msra.mxu0 %v1270
    %2917 = vmatprep.subr.bf16.mxu0 %v1279
    %2918 = vmatpush1.bf16.msra.mxu0 %v1278
    %2919 = vmatprep.subr.bf16.mxu0 %v1287
    %2920 = vmatpush1.bf16.msra.mxu0 %v1286
    %2921 = vmatprep.subr.bf16.mxu0 %v1295
    %2922 = vmatpush1.bf16.msra.mxu0 %v1294
    %2923 = vmatprep.subr.bf16.mxu0 %v1303
    %2924 = vmatpush1.bf16.msra.mxu0 %v1302
    %2925 = vmatprep.subr.bf16.mxu0 %v1311
    %2926 = vmatpush1.bf16.msra.mxu0 %v1310
    %2927 = vmatprep.mubr.bf16.mxu0 %v2853
    %2928 = vmatmul.mubr.bf16.gmra.mrb[0].mxu0 %v2852
    %v2929 = vpop.f32.mrb[0].mxu0
    %v2930 = vadd.f32 0.0, %v2929
    %v2931 = vpop.f32.mrb[0].mxu0
    %v2932 = vadd.f32 0.0, %v2931
    %v2933 = vpop.f32.mrb[0].mxu0
    %v2934 = vpop.f32.mrb[0].mxu0
    %2935 = vdwg.mxu0
    %2936 = vmatprep.subr.bf16.mxu0 %v1193
    %2937 = vmatpush1.bf16.msra.mxu0 %v1192
    %2938 = vmatprep.subr.bf16.mxu0 %v1201
    %2939 = vmatpush1.bf16.msra.mxu0 %v1200
    %2940 = vmatprep.subr.bf16.mxu0 %v1209
    %2941 = vmatpush1.bf16.msra.mxu0 %v1208
    %2942 = vmatprep.subr.bf16.mxu0 %v1217
    %2943 = vmatpush1.bf16.msra.mxu0 %v1216
    %2944 = vmatprep.subr.bf16.mxu0 %v1225
    %2945 = vmatpush1.bf16.msra.mxu0 %v1224
    %2946 = vmatprep.subr.bf16.mxu0 %v1233
    %2947 = vmatpush1.bf16.msra.mxu0 %v1232
    %2948 = vmatprep.subr.bf16.mxu0 %v1241
    %2949 = vmatpush1.bf16.msra.mxu0 %v1240
    %2950 = vmatprep.subr.bf16.mxu0 %v1249
    %2951 = vmatpush1.bf16.msra.mxu0 %v1248
    %2952 = vmatprep.subr.bf16.mxu0 %v1257
    %2953 = vmatpush1.bf16.msra.mxu0 %v1256
    %2954 = vmatprep.subr.bf16.mxu0 %v1265
    %2955 = vmatpush1.bf16.msra.mxu0 %v1264
    %2956 = vmatprep.subr.bf16.mxu0 %v1273
    %2957 = vmatpush1.bf16.msra.mxu0 %v1272
    %2958 = vmatprep.subr.bf16.mxu0 %v1281
    %2959 = vmatpush1.bf16.msra.mxu0 %v1280
    %2960 = vmatprep.subr.bf16.mxu0 %v1289
    %2961 = vmatpush1.bf16.msra.mxu0 %v1288
    %2962 = vmatprep.subr.bf16.mxu0 %v1297
    %2963 = vmatpush1.bf16.msra.mxu0 %v1296
    %2964 = vmatprep.subr.bf16.mxu0 %v1305
    %2965 = vmatpush1.bf16.msra.mxu0 %v1304
    %2966 = vmatprep.subr.bf16.mxu0 %v1313
    %2967 = vmatpush1.bf16.msra.mxu0 %v1312
    %2968 = vmatprep.mubr.bf16.mxu0 %v2853
    %2969 = vmatmul.mubr.bf16.gmra.mrb[0].mxu0 %v2852
    %v2970 = vpop.f32.mrb[0].mxu0
    %v2971 = vadd.f32 0.0, %v2970
    %v2972 = vpop.f32.mrb[0].mxu0
    %v2973 = vadd.f32 0.0, %v2972
    %v2974 = vpop.f32.mrb[0].mxu0
    %v2975 = vpop.f32.mrb[0].mxu0
    %2976 = vdwg.mxu0
    %2977 = vmatprep.subr.bf16.mxu0 %v1195
    %2978 = vmatpush1.bf16.msra.mxu0 %v1194
    %2979 = vmatprep.subr.bf16.mxu0 %v1203
    %2980 = vmatpush1.bf16.msra.mxu0 %v1202
    %2981 = vmatprep.subr.bf16.mxu0 %v1211
    %2982 = vmatpush1.bf16.msra.mxu0 %v1210
    %2983 = vmatprep.subr.bf16.mxu0 %v1219
    %2984 = vmatpush1.bf16.msra.mxu0 %v1218
    %2985 = vmatprep.subr.bf16.mxu0 %v1227
    %2986 = vmatpush1.bf16.msra.mxu0 %v1226
    %2987 = vmatprep.subr.bf16.mxu0 %v1235
    %2988 = vmatpush1.bf16.msra.mxu0 %v1234
    %2989 = vmatprep.subr.bf16.mxu0 %v1243
    %2990 = vmatpush1.bf16.msra.mxu0 %v1242
    %2991 = vmatprep.subr.bf16.mxu0 %v1251
    %2992 = vmatpush1.bf16.msra.mxu0 %v1250
    %2993 = vmatprep.subr.bf16.mxu0 %v1259
    %2994 = vmatpush1.bf16.msra.mxu0 %v1258
    %2995 = vmatprep.subr.bf16.mxu0 %v1267
    %2996 = vmatpush1.bf16.msra.mxu0 %v1266
    %2997 = vmatprep.subr.bf16.mxu0 %v1275
    %2998 = vmatpush1.bf16.msra.mxu0 %v1274
    %2999 = vmatprep.subr.bf16.mxu0 %v1283
    %3000 = vmatpush1.bf16.msra.mxu0 %v1282
    %3001 = vmatprep.subr.bf16.mxu0 %v1291
    %3002 = vmatpush1.bf16.msra.mxu0 %v1290
    %3003 = vmatprep.subr.bf16.mxu0 %v1299
    %3004 = vmatpush1.bf16.msra.mxu0 %v1298
    %3005 = vmatprep.subr.bf16.mxu0 %v1307
    %3006 = vmatpush1.bf16.msra.mxu0 %v1306
    %3007 = vmatprep.subr.bf16.mxu0 %v1315
    %3008 = vmatpush1.bf16.msra.mxu0 %v1314
    %3009 = vmatprep.mubr.bf16.mxu0 %v2853
    %3010 = vmatmul.mubr.bf16.gmra.mrb[0].mxu0 %v2852
    %v3011 = vpop.f32.mrb[0].mxu0
    %v3012 = vadd.f32 0.0, %v3011
    %v3013 = vpop.f32.mrb[0].mxu0
    %v3014 = vadd.f32 0.0, %v3013
    %v3015 = vpop.f32.mrb[0].mxu0
    %v3016 = vpop.f32.mrb[0].mxu0
    %3017 = vdwg.mxu0
    %v3018 = vld [vmem:[%s1851] sm:$0xff]
    %v3019 = vld [vmem:[%s1851 + $0x8] sm:$0xff]
    %v3020 = vld [vmem:[%s1851 + $0x10] sm:$0xff]
    %v3021 = vld [vmem:[%s1851 + $0x18] sm:$0xff]
    %v3022 = vadd.f32 %v3018, %v2889
    %v3023 = vadd.f32 %v3019, %v2891
    %v3024 = vadd.f32 %v3020, %v2930
    %v3025 = vadd.f32 %v3021, %v2932
    %v3026 = vld [vmem:[%s1842 + $0x20] sm:$0xff]
    %v3027 = vld [vmem:[%s1842 + $0x28] sm:$0xff]
    %v3028 = vld [vmem:[%s1842 + $0x30] sm:$0xff]
    %v3029 = vld [vmem:[%s1842 + $0x38] sm:$0xff]
    %v3030 = vadd.f32 %v3026, %v2971
    %v3031 = vadd.f32 %v3027, %v2973
    %v3032 = vadd.f32 %v3028, %v3012
    %v3033 = vadd.f32 %v3029, %v3014
    %v3034 = vxor.u32 %v3022, 2147483648
    %v3035 = vxor.u32 %v3030, 2147483648
    %v3036 = vmul.f32 %v3034, 1.442695
    %v3037 = vpow.pop %v3036
    %v3038 = vmul.f32 %v3035, 1.442695
    %v3039 = vpow.pop %v3038
    %v3040 = vadd.f32 %v3037, 1.0
    %v3041 = vadd.f32 %v3039, 1.0
    %v3042 = vrcp.pop %v3040
    %v3043 = vmul.f32 1.0, %v3042
    %v3044 = vrcp.pop %v3041
    %v3045 = vmul.f32 1.0, %v3044
    %v3046 = vxor.u32 %v3023, 2147483648
    %v3047 = vxor.u32 %v3031, 2147483648
    %v3048 = vmul.f32 %v3046, 1.442695
    %v3049 = vpow.pop %v3048
    %v3050 = vmul.f32 %v3047, 1.442695
    %v3051 = vpow.pop %v3050
    %v3052 = vadd.f32 %v3049, 1.0
    %v3053 = vadd.f32 %v3051, 1.0
    %v3054 = vrcp.pop %v3052
    %v3055 = vmul.f32 1.0, %v3054
    %v3056 = vrcp.pop %v3053
    %v3057 = vmul.f32 1.0, %v3056
    %v3058 = vtanh.pop %v3024
    %v3059 = vtanh.pop %v3032
    %v3060 = vxor.u32 %v3025, 2147483648
    %v3061 = vxor.u32 %v3033, 2147483648
    %v3062 = vmul.f32 %v3060, 1.442695
    %v3063 = vpow.pop %v3062
    %v3064 = vmul.f32 %v3061, 1.442695
    %v3065 = vpow.pop %v3064
    %v3066 = vadd.f32 %v3063, 1.0
    %v3067 = vadd.f32 %v3065, 1.0
    %v3068 = vrcp.pop %v3066
    %v3069 = vmul.f32 1.0, %v3068
    %v3070 = vrcp.pop %v3067
    %v3071 = vmul.f32 1.0, %v3070
    %v3072 = vmul.f32 %v3055, %v2842
    %v3073 = vmul.f32 %v3057, %v2843
    %v3074 = vmul.f32 %v3043, %v3058
    %v3075 = vmul.f32 %v3045, %v3059
    %v3076 = vadd.f32 %v3072, %v3074
    %v3077 = vadd.f32 %v3073, %v3075
    %v3078 = vtanh.pop %v3076
    %v3079 = vtanh.pop %v3077
    %v3080 = vmul.f32 %v3069, %v3078
    %v3081 = vmul.f32 %v3071, %v3079
    %s3082 = scalar_lea.vmem [#allocation3], 48
    %3083 = vst [vmem:[%s3082] sm:$0xff] %v3080
    %s3084 = scalar_lea.vmem [#allocation4], 8
    %3085 = vst [vmem:[%s3084] sm:$0xff] %v3081
    %v3086 = vpack.c.bf16 %v3080, %v3080
    %v3087 = vpack.c.bf16 %v3081, %v3081
    %3088 = vmatprep.subr.bf16.mxu0 %v1189
    %3089 = vmatpush1.bf16.msra.mxu0 %v1188
    %3090 = vmatprep.subr.bf16.mxu0 %v1197
    %3091 = vmatpush1.bf16.msra.mxu0 %v1196
    %3092 = vmatprep.subr.bf16.mxu0 %v1205
    %3093 = vmatpush1.bf16.msra.mxu0 %v1204
    %3094 = vmatprep.subr.bf16.mxu0 %v1213
    %3095 = vmatpush1.bf16.msra.mxu0 %v1212
    %3096 = vmatprep.subr.bf16.mxu0 %v1221
    %3097 = vmatpush1.bf16.msra.mxu0 %v1220
    %3098 = vmatprep.subr.bf16.mxu0 %v1229
    %3099 = vmatpush1.bf16.msra.mxu0 %v1228
    %3100 = vmatprep.subr.bf16.mxu0 %v1237
    %3101 = vmatpush1.bf16.msra.mxu0 %v1236
    %3102 = vmatprep.subr.bf16.mxu0 %v1245
    %3103 = vmatpush1.bf16.msra.mxu0 %v1244
    %3104 = vmatprep.subr.bf16.mxu0 %v1253
    %3105 = vmatpush1.bf16.msra.mxu0 %v1252
    %3106 = vmatprep.subr.bf16.mxu0 %v1261
    %3107 = vmatpush1.bf16.msra.mxu0 %v1260
    %3108 = vmatprep.subr.bf16.mxu0 %v1269
    %3109 = vmatpush1.bf16.msra.mxu0 %v1268
    %3110 = vmatprep.subr.bf16.mxu0 %v1277
    %3111 = vmatpush1.bf16.msra.mxu0 %v1276
    %3112 = vmatprep.subr.bf16.mxu0 %v1285
    %3113 = vmatpush1.bf16.msra.mxu0 %v1284
    %3114 = vmatprep.subr.bf16.mxu0 %v1293
    %3115 = vmatpush1.bf16.msra.mxu0 %v1292
    %3116 = vmatprep.subr.bf16.mxu0 %v1301
    %3117 = vmatpush1.bf16.msra.mxu0 %v1300
    %3118 = vmatprep.subr.bf16.mxu0 %v1309
    %3119 = vmatpush1.bf16.msra.mxu0 %v1308
    %3120 = vmatprep.mubr.bf16.mxu0 %v3087
    %3121 = vmatmul.mubr.bf16.gmra.mrb[0].mxu0 %v3086
    %v3122 = vpop.f32.mrb[0].mxu0
    %v3123 = vadd.f32 0.0, %v3122
    %v3124 = vpop.f32.mrb[0].mxu0
    %v3125 = vadd.f32 0.0, %v3124
    %v3126 = vpop.f32.mrb[0].mxu0
    %v3127 = vpop.f32.mrb[0].mxu0
    %3128 = vdwg.mxu0
    %3129 = vmatprep.subr.bf16.mxu0 %v1191
    %3130 = vmatpush1.bf16.msra.mxu0 %v1190
    %3131 = vmatprep.subr.bf16.mxu0 %v1199
    %3132 = vmatpush1.bf16.msra.mxu0 %v1198
    %3133 = vmatprep.subr.bf16.mxu0 %v1207
    %3134 = vmatpush1.bf16.msra.mxu0 %v1206
    %3135 = vmatprep.subr.bf16.mxu0 %v1215
    %3136 = vmatpush1.bf16.msra.mxu0 %v1214
    %3137 = vmatprep.subr.bf16.mxu0 %v1223
    %3138 = vmatpush1.bf16.msra.mxu0 %v1222
    %3139 = vmatprep.subr.bf16.mxu0 %v1231
    %3140 = vmatpush1.bf16.msra.mxu0 %v1230
    %3141 = vmatprep.subr.bf16.mxu0 %v1239
    %3142 = vmatpush1.bf16.msra.mxu0 %v1238
    %3143 = vmatprep.subr.bf16.mxu0 %v1247
    %3144 = vmatpush1.bf16.msra.mxu0 %v1246
    %3145 = vmatprep.subr.bf16.mxu0 %v1255
    %3146 = vmatpush1.bf16.msra.mxu0 %v1254
    %3147 = vmatprep.subr.bf16.mxu0 %v1263
    %3148 = vmatpush1.bf16.msra.mxu0 %v1262
    %3149 = vmatprep.subr.bf16.mxu0 %v1271
    %3150 = vmatpush1.bf16.msra.mxu0 %v1270
    %3151 = vmatprep.subr.bf16.mxu0 %v1279
    %3152 = vmatpush1.bf16.msra.mxu0 %v1278
    %3153 = vmatprep.subr.bf16.mxu0 %v1287
    %3154 = vmatpush1.bf16.msra.mxu0 %v1286
    %3155 = vmatprep.subr.bf16.mxu0 %v1295
    %3156 = vmatpush1.bf16.msra.mxu0 %v1294
    %3157 = vmatprep.subr.bf16.mxu0 %v1303
    %3158 = vmatpush1.bf16.msra.mxu0 %v1302
    %3159 = vmatprep.subr.bf16.mxu0 %v1311
    %3160 = vmatpush1.bf16.msra.mxu0 %v1310
    %3161 = vmatprep.mubr.bf16.mxu0 %v3087
    %3162 = vmatmul.mubr.bf16.gmra.mrb[0].mxu0 %v3086
    %v3163 = vpop.f32.mrb[0].mxu0
    %v3164 = vadd.f32 0.0, %v3163
    %v3165 = vpop.f32.mrb[0].mxu0
    %v3166 = vadd.f32 0.0, %v3165
    %v3167 = vpop.f32.mrb[0].mxu0
    %v3168 = vpop.f32.mrb[0].mxu0
    %3169 = vdwg.mxu0
    %3170 = vmatprep.subr.bf16.mxu0 %v1193
    %3171 = vmatpush1.bf16.msra.mxu0 %v1192
    %3172 = vmatprep.subr.bf16.mxu0 %v1201
    %3173 = vmatpush1.bf16.msra.mxu0 %v1200
    %3174 = vmatprep.subr.bf16.mxu0 %v1209
    %3175 = vmatpush1.bf16.msra.mxu0 %v1208
    %3176 = vmatprep.subr.bf16.mxu0 %v1217
    %3177 = vmatpush1.bf16.msra.mxu0 %v1216
    %3178 = vmatprep.subr.bf16.mxu0 %v1225
    %3179 = vmatpush1.bf16.msra.mxu0 %v1224
    %3180 = vmatprep.subr.bf16.mxu0 %v1233
    %3181 = vmatpush1.bf16.msra.mxu0 %v1232
    %3182 = vmatprep.subr.bf16.mxu0 %v1241
    %3183 = vmatpush1.bf16.msra.mxu0 %v1240
    %3184 = vmatprep.subr.bf16.mxu0 %v1249
    %3185 = vmatpush1.bf16.msra.mxu0 %v1248
    %3186 = vmatprep.subr.bf16.mxu0 %v1257
    %3187 = vmatpush1.bf16.msra.mxu0 %v1256
    %3188 = vmatprep.subr.bf16.mxu0 %v1265
    %3189 = vmatpush1.bf16.msra.mxu0 %v1264
    %3190 = vmatprep.subr.bf16.mxu0 %v1273
    %3191 = vmatpush1.bf16.msra.mxu0 %v1272
    %3192 = vmatprep.subr.bf16.mxu0 %v1281
    %3193 = vmatpush1.bf16.msra.mxu0 %v1280
    %3194 = vmatprep.subr.bf16.mxu0 %v1289
    %3195 = vmatpush1.bf16.msra.mxu0 %v1288
    %3196 = vmatprep.subr.bf16.mxu0 %v1297
    %3197 = vmatpush1.bf16.msra.mxu0 %v1296
    %3198 = vmatprep.subr.bf16.mxu0 %v1305
    %3199 = vmatpush1.bf16.msra.mxu0 %v1304
    %3200 = vmatprep.subr.bf16.mxu0 %v1313
    %3201 = vmatpush1.bf16.msra.mxu0 %v1312
    %3202 = vmatprep.mubr.bf16.mxu0 %v3087
    %3203 = vmatmul.mubr.bf16.gmra.mrb[0].mxu0 %v3086
    %v3204 = vpop.f32.mrb[0].mxu0
    %v3205 = vadd.f32 0.0, %v3204
    %v3206 = vpop.f32.mrb[0].mxu0
    %v3207 = vadd.f32 0.0, %v3206
    %v3208 = vpop.f32.mrb[0].mxu0
    %v3209 = vpop.f32.mrb[0].mxu0
    %3210 = vdwg.mxu0
    %3211 = vmatprep.subr.bf16.mxu0 %v1195
    %3212 = vmatpush1.bf16.msra.mxu0 %v1194
    %3213 = vmatprep.subr.bf16.mxu0 %v1203
    %3214 = vmatpush1.bf16.msra.mxu0 %v1202
    %3215 = vmatprep.subr.bf16.mxu0 %v1211
    %3216 = vmatpush1.bf16.msra.mxu0 %v1210
    %3217 = vmatprep.subr.bf16.mxu0 %v1219
    %3218 = vmatpush1.bf16.msra.mxu0 %v1218
    %3219 = vmatprep.subr.bf16.mxu0 %v1227
    %3220 = vmatpush1.bf16.msra.mxu0 %v1226
    %3221 = vmatprep.subr.bf16.mxu0 %v1235
    %3222 = vmatpush1.bf16.msra.mxu0 %v1234
    %3223 = vmatprep.subr.bf16.mxu0 %v1243
    %3224 = vmatpush1.bf16.msra.mxu0 %v1242
    %3225 = vmatprep.subr.bf16.mxu0 %v1251
    %3226 = vmatpush1.bf16.msra.mxu0 %v1250
    %3227 = vmatprep.subr.bf16.mxu0 %v1259
    %3228 = vmatpush1.bf16.msra.mxu0 %v1258
    %3229 = vmatprep.subr.bf16.mxu0 %v1267
    %3230 = vmatpush1.bf16.msra.mxu0 %v1266
    %3231 = vmatprep.subr.bf16.mxu0 %v1275
    %3232 = vmatpush1.bf16.msra.mxu0 %v1274
    %3233 = vmatprep.subr.bf16.mxu0 %v1283
    %3234 = vmatpush1.bf16.msra.mxu0 %v1282
    %3235 = vmatprep.subr.bf16.mxu0 %v1291
    %3236 = vmatpush1.bf16.msra.mxu0 %v1290
    %3237 = vmatprep.subr.bf16.mxu0 %v1299
    %3238 = vmatpush1.bf16.msra.mxu0 %v1298
    %3239 = vmatprep.subr.bf16.mxu0 %v1307
    %3240 = vmatpush1.bf16.msra.mxu0 %v1306
    %3241 = vmatprep.subr.bf16.mxu0 %v1315
    %3242 = vmatpush1.bf16.msra.mxu0 %v1314
    %3243 = vmatprep.mubr.bf16.mxu0 %v3087
    %3244 = vmatmul.mubr.bf16.gmra.mrb[0].mxu0 %v3086
    %v3245 = vpop.f32.mrb[0].mxu0
    %v3246 = vadd.f32 0.0, %v3245
    %v3247 = vpop.f32.mrb[0].mxu0
    %v3248 = vadd.f32 0.0, %v3247
    %v3249 = vpop.f32.mrb[0].mxu0
    %v3250 = vpop.f32.mrb[0].mxu0
    %3251 = vdwg.mxu0
    %v3252 = vld [vmem:[%s1616] sm:$0xff]
    %v3253 = vld [vmem:[%s1616 + $0x8] sm:$0xff]
    %v3254 = vld [vmem:[%s1616 + $0x10] sm:$0xff]
    %v3255 = vld [vmem:[%s1616 + $0x18] sm:$0xff]
    %v3256 = vadd.f32 %v3252, %v3123
    %v3257 = vadd.f32 %v3253, %v3125
    %v3258 = vadd.f32 %v3254, %v3164
    %v3259 = vadd.f32 %v3255, %v3166
    %v3260 = vld [vmem:[#allocation2 + $0x20] sm:$0xff]
    %v3261 = vld [vmem:[#allocation2 + $0x28] sm:$0xff]
    %v3262 = vld [vmem:[#allocation2 + $0x30] sm:$0xff]
    %v3263 = vld [vmem:[#allocation2 + $0x38] sm:$0xff]
    %v3264 = vadd.f32 %v3260, %v3205
    %v3265 = vadd.f32 %v3261, %v3207
    %v3266 = vadd.f32 %v3262, %v3246
    %v3267 = vadd.f32 %v3263, %v3248
    %v3268 = vxor.u32 %v3256, 2147483648
    %v3269 = vxor.u32 %v3264, 2147483648
    %v3270 = vmul.f32 %v3268, 1.442695
    %v3271 = vpow.pop %v3270
    %v3272 = vmul.f32 %v3269, 1.442695
    %v3273 = vpow.pop %v3272
    %v3274 = vadd.f32 %v3271, 1.0
    %v3275 = vadd.f32 %v3273, 1.0
    %v3276 = vrcp.pop %v3274
    %v3277 = vmul.f32 1.0, %v3276
    %v3278 = vrcp.pop %v3275
    %v3279 = vmul.f32 1.0, %v3278
    %v3280 = vxor.u32 %v3257, 2147483648
    %v3281 = vxor.u32 %v3265, 2147483648
    %v3282 = vmul.f32 %v3280, 1.442695
    %v3283 = vpow.pop %v3282
    %v3284 = vmul.f32 %v3281, 1.442695
    %v3285 = vpow.pop %v3284
    %v3286 = vadd.f32 %v3283, 1.0
    %v3287 = vadd.f32 %v3285, 1.0
    %v3288 = vrcp.pop %v3286
    %v3289 = vmul.f32 1.0, %v3288
    %v3290 = vrcp.pop %v3287
    %v3291 = vmul.f32 1.0, %v3290
    %v3292 = vtanh.pop %v3258
    %v3293 = vtanh.pop %v3266
    %v3294 = vxor.u32 %v3259, 2147483648
    %v3295 = vxor.u32 %v3267, 2147483648
    %v3296 = vmul.f32 %v3294, 1.442695
    %v3297 = vpow.pop %v3296
    %v3298 = vmul.f32 %v3295, 1.442695
    %v3299 = vpow.pop %v3298
    %v3300 = vadd.f32 %v3297, 1.0
    %v3301 = vadd.f32 %v3299, 1.0
    %v3302 = vrcp.pop %v3300
    %v3303 = vmul.f32 1.0, %v3302
    %v3304 = vrcp.pop %v3301
    %v3305 = vmul.f32 1.0, %v3304
    %v3306 = vmul.f32 %v3289, %v3076
    %v3307 = vmul.f32 %v3291, %v3077
    %v3308 = vmul.f32 %v3277, %v3292
    %v3309 = vmul.f32 %v3279, %v3293
    %v3310 = vadd.f32 %v3306, %v3308
    %v3311 = vadd.f32 %v3307, %v3309
    %v3312 = vtanh.pop %v3310
    %v3313 = vtanh.pop %v3311
    %v3314 = vmul.f32 %v3303, %v3312
    %v3315 = vmul.f32 %v3305, %v3313
    %s3316 = scalar_lea.vmem [#allocation3], 56
    %3317 = vst [vmem:[%s3316] sm:$0xff] %v3314
    %3318 = vst [vmem:[#allocation4] sm:$0xff] %v3315
    %v3319 = vld [vmem:[#allocation3] sm:$0xff]
    %v3320 = vld [vmem:[#allocation3 + $0x8] sm:$0xff]
    %v3321 = vld [vmem:[#allocation3 + $0x10] sm:$0xff]
    %v3322 = vld [vmem:[#allocation3 + $0x18] sm:$0xff]
    %v3323 = vld [vmem:[#allocation3 + $0x20] sm:$0xff]
    %v3324 = vld [vmem:[#allocation3 + $0x28] sm:$0xff]
    %v3325 = vld [vmem:[#allocation3 + $0x30] sm:$0xff]
    %v3326 = vld [vmem:[#allocation3 + $0x38] sm:$0xff]
    %v3327 = vld [vmem:[#allocation4] sm:$0xff]
    %v3328 = vld [vmem:[#allocation4 + $0x8] sm:$0xff]
    %v3329 = vld [vmem:[#allocation4 + $0x10] sm:$0xff]
    %v3330 = vld [vmem:[#allocation4 + $0x18] sm:$0xff]
    %v3331 = vld [vmem:[#allocation4 + $0x20] sm:$0xff]
    %v3332 = vld [vmem:[#allocation4 + $0x28] sm:$0xff]
    %v3333 = vld [vmem:[#allocation4 + $0x30] sm:$0xff]
    %v3334 = vld [vmem:[#allocation4 + $0x38] sm:$0xff]
    %v3335 = vpack.c.bf16 %v3320, %v3319
    %v3336 = vpack.c.bf16 %v3328, %v3327
    %v3337 = vpack.c.bf16 %v3322, %v3321
    %v3338 = vpack.c.bf16 %v3330, %v3329
    %v3339 = vpack.c.bf16 %v3324, %v3323
    %v3340 = vpack.c.bf16 %v3332, %v3331
    %v3341 = vpack.c.bf16 %v3326, %v3325
    %v3342 = vpack.c.bf16 %v3334, %v3333
    %v3343 = vld [vmem:[%s4] sm:$0xf]
    %v3344 = vld [vmem:[%s4 + $0x4] sm:$0xf]
    %v3345 = vld [vmem:[%s4 + $0x8] sm:$0xf]
    %v3346 = vld [vmem:[%s4 + $0xc] sm:$0xf]
    %v3347 = vld [vmem:[%s4 + $0x10] sm:$0xf]
    %v3348 = vld [vmem:[%s4 + $0x14] sm:$0xf]
    %v3349 = vld [vmem:[%s4 + $0x18] sm:$0xf]
    %v3350 = vld [vmem:[%s4 + $0x1c] sm:$0xf]
    %v3351 = vld [vmem:[%s4 + $0x20] sm:$0xf]
    %v3352 = vld [vmem:[%s4 + $0x24] sm:$0xf]
    %v3353 = vld [vmem:[%s4 + $0x28] sm:$0xf]
    %v3354 = vld [vmem:[%s4 + $0x2c] sm:$0xf]
    %v3355 = vld [vmem:[%s4 + $0x30] sm:$0xf]
    %v3356 = vld [vmem:[%s4 + $0x34] sm:$0xf]
    %v3357 = vld [vmem:[%s4 + $0x38] sm:$0xf]
    %v3358 = vld [vmem:[%s4 + $0x3c] sm:$0xf]
    %v3359 = vld [vmem:[%s4 + $0x40] sm:$0xf]
    %v3360 = vld [vmem:[%s4 + $0x44] sm:$0xf]
    %v3361 = vld [vmem:[%s4 + $0x48] sm:$0xf]
    %v3362 = vld [vmem:[%s4 + $0x4c] sm:$0xf]
    %v3363 = vld [vmem:[%s4 + $0x50] sm:$0xf]
    %v3364 = vld [vmem:[%s4 + $0x54] sm:$0xf]
    %v3365 = vld [vmem:[%s4 + $0x58] sm:$0xf]
    %v3366 = vld [vmem:[%s4 + $0x5c] sm:$0xf]
    %v3367 = vld [vmem:[%s4 + $0x60] sm:$0xf]
    %v3368 = vld [vmem:[%s4 + $0x64] sm:$0xf]
    %v3369 = vld [vmem:[%s4 + $0x68] sm:$0xf]
    %v3370 = vld [vmem:[%s4 + $0x6c] sm:$0xf]
    %v3371 = vld [vmem:[%s4 + $0x70] sm:$0xf]
    %v3372 = vld [vmem:[%s4 + $0x74] sm:$0xf]
    %v3373 = vld [vmem:[%s4 + $0x78] sm:$0xf]
    %v3374 = vld [vmem:[%s4 + $0x7c] sm:$0xf]
    %v3375 = vld [vmem:[#allocation9] sm:$0x1]
    %v3377 = vlaneseq
    %v3378 = vshrl.u32 %v3377, 7
    %v3379 = vsub.s32 0, %v3378
    %v3380 = vrot.slane %v3375, %v3379
    %v3414 = vunpack.c.l.b16 %v3343
    %v3415 = vunpack.c.l.b16 %v3344
    %v3416 = vunpack.c.l.b16 %v3345
    %v3417 = vunpack.c.l.b16 %v3346
    %v3418 = vunpack.c.l.b16 %v3347
    %v3419 = vunpack.c.l.b16 %v3348
    %v3420 = vunpack.c.l.b16 %v3349
    %v3421 = vunpack.c.l.b16 %v3350
    %v3422 = vunpack.c.l.b16 %v3351
    %v3423 = vunpack.c.l.b16 %v3352
    %v3424 = vunpack.c.l.b16 %v3353
    %v3425 = vunpack.c.l.b16 %v3354
    %v3426 = vunpack.c.l.b16 %v3355
    %v3427 = vunpack.c.l.b16 %v3356
    %v3428 = vunpack.c.l.b16 %v3357
    %v3429 = vunpack.c.l.b16 %v3358
    %v3430 = vunpack.c.l.b16 %v3359
    %v3431 = vunpack.c.l.b16 %v3360
    %v3432 = vunpack.c.l.b16 %v3361
    %v3433 = vunpack.c.l.b16 %v3362
    %v3434 = vunpack.c.l.b16 %v3363
    %v3435 = vunpack.c.l.b16 %v3364
    %v3436 = vunpack.c.l.b16 %v3365
    %v3437 = vunpack.c.l.b16 %v3366
    %v3438 = vunpack.c.l.b16 %v3367
    %v3439 = vunpack.c.l.b16 %v3368
    %v3440 = vunpack.c.l.b16 %v3369
    %v3441 = vunpack.c.l.b16 %v3370
    %v3442 = vunpack.c.l.b16 %v3371
    %v3443 = vunpack.c.l.b16 %v3372
    %v3444 = vunpack.c.l.b16 %v3373
    %v3445 = vunpack.c.l.b16 %v3374
    %v3446 = vpack.c.b16 %v3415, %v3414
    %v3447 = vpack.c.b16 %v3417, %v3416
    %v3448 = vpack.c.b16 %v3419, %v3418
    %v3449 = vpack.c.b16 %v3421, %v3420
    %v3450 = vpack.c.b16 %v3423, %v3422
    %v3451 = vpack.c.b16 %v3425, %v3424
    %v3452 = vpack.c.b16 %v3427, %v3426
    %v3453 = vpack.c.b16 %v3429, %v3428
    %v3454 = vpack.c.b16 %v3431, %v3430
    %v3455 = vpack.c.b16 %v3433, %v3432
    %v3456 = vpack.c.b16 %v3435, %v3434
    %v3457 = vpack.c.b16 %v3437, %v3436
    %v3458 = vpack.c.b16 %v3439, %v3438
    %v3459 = vpack.c.b16 %v3441, %v3440
    %v3460 = vpack.c.b16 %v3443, %v3442
    %v3461 = vpack.c.b16 %v3445, %v3444
    %3478 = vmatprep.subr.bf16.mxu0 0
    %3479 = vmatpush1.bf16.msra.mxu0 %v3446
    %3480 = vmatprep.subr.bf16.mxu0 0
    %3481 = vmatpush1.bf16.msra.mxu0 %v3447
    %3482 = vmatprep.subr.bf16.mxu0 0
    %3483 = vmatpush1.bf16.msra.mxu0 %v3448
    %3484 = vmatprep.subr.bf16.mxu0 0
    %3485 = vmatpush1.bf16.msra.mxu0 %v3449
    %3486 = vmatprep.subr.bf16.mxu0 0
    %3487 = vmatpush1.bf16.msra.mxu0 %v3450
    %3488 = vmatprep.subr.bf16.mxu0 0
    %3489 = vmatpush1.bf16.msra.mxu0 %v3451
    %3490 = vmatprep.subr.bf16.mxu0 0
    %3491 = vmatpush1.bf16.msra.mxu0 %v3452
    %3492 = vmatprep.subr.bf16.mxu0 0
    %3493 = vmatpush1.bf16.msra.mxu0 %v3453
    %3494 = vmatprep.subr.bf16.mxu0 0
    %3495 = vmatpush1.bf16.msra.mxu0 %v3454
    %3496 = vmatprep.subr.bf16.mxu0 0
    %3497 = vmatpush1.bf16.msra.mxu0 %v3455
    %3498 = vmatprep.subr.bf16.mxu0 0
    %3499 = vmatpush1.bf16.msra.mxu0 %v3456
    %3500 = vmatprep.subr.bf16.mxu0 0
    %3501 = vmatpush1.bf16.msra.mxu0 %v3457
    %3502 = vmatprep.subr.bf16.mxu0 0
    %3503 = vmatpush1.bf16.msra.mxu0 %v3458
    %3504 = vmatprep.subr.bf16.mxu0 0
    %3505 = vmatpush1.bf16.msra.mxu0 %v3459
    %3506 = vmatprep.subr.bf16.mxu0 0
    %3507 = vmatpush1.bf16.msra.mxu0 %v3460
    %3508 = vmatprep.subr.bf16.mxu0 0
    %3509 = vmatpush1.bf16.msra.mxu0 %v3461
    %3510 = vmatprep.mubr.bf16.mxu0 %v3336
    %3511 = vmatmul.mubr.bf16.gmra.mrb[0].mxu0 %v3335
    %v3512 = vpop.f32.mrb[0].mxu0
    %v3513 = vadd.f32 %v3380, %v3512
    %v3514 = vpop.f32.mrb[0].mxu0
    %v3515 = vpop.f32.mrb[0].mxu0
    %v3516 = vadd.f32 %v3380, %v3515
    %v3517 = vpop.f32.mrb[0].mxu0
    %3518 = vmatprep.mubr.bf16.mxu0 %v3338
    %3519 = vmatmul.mubr.bf16.gmra.mrb[0].mxu0 %v3337
    %v3520 = vpop.f32.mrb[0].mxu0
    %v3521 = vadd.f32 %v3380, %v3520
    %v3522 = vpop.f32.mrb[0].mxu0
    %v3523 = vpop.f32.mrb[0].mxu0
    %v3524 = vadd.f32 %v3380, %v3523
    %v3525 = vpop.f32.mrb[0].mxu0
    %3526 = vmatprep.mubr.bf16.mxu0 %v3340
    %3527 = vmatmul.mubr.bf16.gmra.mrb[0].mxu0 %v3339
    %v3528 = vpop.f32.mrb[0].mxu0
    %v3529 = vadd.f32 %v3380, %v3528
    %v3530 = vpop.f32.mrb[0].mxu0
    %v3531 = vpop.f32.mrb[0].mxu0
    %v3532 = vadd.f32 %v3380, %v3531
    %v3533 = vpop.f32.mrb[0].mxu0
    %3534 = vmatprep.mubr.bf16.mxu0 %v3342
    %3535 = vmatmul.mubr.bf16.gmra.mrb[0].mxu0 %v3341
    %v3536 = vpop.f32.mrb[0].mxu0
    %v3537 = vadd.f32 %v3380, %v3536
    %v3538 = vpop.f32.mrb[0].mxu0
    %v3539 = vpop.f32.mrb[0].mxu0
    %v3540 = vadd.f32 %v3380, %v3539
    %v3541 = vpop.f32.mrb[0].mxu0
    %3542 = vdwg.mxu0
    %3543 = vst [vmem:[%s6] sm:$0xff] %v3513
    %3544 = vst [vmem:[%s6 + $0x8] sm:$0xff] %v3516
    %3545 = vst [vmem:[%s6 + $0x10] sm:$0xff] %v3521
    %3546 = vst [vmem:[%s6 + $0x18] sm:$0xff] %v3524
    %3547 = vst [vmem:[%s6 + $0x20] sm:$0xff] %v3529
    %3548 = vst [vmem:[%s6 + $0x28] sm:$0xff] %v3532
    %3549 = vst [vmem:[%s6 + $0x30] sm:$0xff] %v3537
    %3550 = vst [vmem:[%s6 + $0x38] sm:$0xff] %v3540
    // Predicated region
    $region38: #{run.5} parent=1 // pred_check
      _
    $region39: #{run.5} parent=1 // pred_check_branch
      %3552 = sbr.rel (0) target = $region41
    $region40: #{run.5} parent=1 // pred_region
      _
    $region41: #{run.5} parent=1 // pred_fallthru
      _
    // Predicated region
    $region42: #{run.5} parent=1 // pred_check
      _
    $region43: #{run.5} parent=1 // pred_check_branch
      %3554 = sbr.rel (0) target = $region45
    $region44: #{run.5} parent=1 // pred_region
      _
    $region45: #{run.5} parent=1 // pred_fallthru
      _
    %3555 = vsyncpa [#allocation6], 1
    %3556 = vsyncpa [#allocation8], 1

</llo_original>
